<compile_context>
chip_gen: v6e
topology: v6e:2x2x1
jax: 0.10.0
libtpu: 0.0.40
codegen_flags: <defaults>
</compile_context>

<pallas_src>
import math

import jax
import jax.numpy as jnp
from jax import lax
from jax.experimental import pallas as pl
from jax.experimental.pallas import tpu as pltpu

# ---- model / example dimensions -------------------------------------------
B = 2            # real batch
S = 8            # sequence length of z_t (small example seq)
F_IN = 30        # fc_in input features
D_FC = 64        # fc_in output features
H1 = 128         # gru1 hidden size (per direction)
H2 = 64          # gru2 hidden size (per direction)
F_OUT = 30       # fc_out output features
OUT_PAD = 128    # lane-dense kernel output width (wrapper slices to F_OUT)

BP = 8           # sequences per batch group = one full 8-row sublane tile
M = S * BP       # rows per group; each time step is exactly one 8-row tile


# ---------------------------------------------------------------------------
# Pallas kernel: fc_in -> fused bidir GRU1 -> fused bidir GRU2 -> fc_out.
# ---------------------------------------------------------------------------
def score_kernel(z_ref, w_in_ref, b_in_ref,
                 wi1_ref, bi1_ref, wh1_ref, bhn1_ref,
                 wi2_ref, bi2_ref, wh2_ref, bhn2_ref,
                 w_out_f_ref, w_out_b_ref, b_out_ref,
                 out_ref,
                 gi1_scr, h1_scr, gi2_scr, h2f_scr, h2b_scr):
    f32 = jnp.float32
    bf16 = jnp.bfloat16

    # ---- fc_in + leaky_relu(0.2) ----
    x = jnp.dot(z_ref[...].astype(bf16), w_in_ref[...],
                preferred_element_type=f32) + b_in_ref[...]
    x = jnp.maximum(x, 0.2 * x)                                   # (M, 64) f32

    # Fused bidirectional GRU layer.
    #   gi layout (gate-major, both dirs): [r_f r_b z_f z_b n_f n_b], hd lanes each
    #   h  layout:                         [h_fwd (hd) | h_bwd (hd)]
    def bidir_gru(x_bf16, wi_ref, bi_ref, wh_ref, bhn_ref, gi_scr, hd, store):
        two_h = 2 * hd
        # (1) One MXU matmul: input projections of BOTH directions, ALL time
        #     steps (b_ih and the additive b_hr/b_hz biases are pre-folded).
        gi_scr[...] = (jnp.dot(x_bf16, wi_ref[...], preferred_element_type=f32)
                       + bi_ref[...])

        # (2) Pre-blend fwd/bwd gate slabs OFF the serial chain: after this
        #     pass, row block i holds exactly the gates recurrence step i needs
        #     (fwd gates from time i, bwd gates from time S-1-i).
        lane = lax.broadcasted_iota(jnp.int32, (BP, 6 * hd), 1)
        fwd_mask = (lane % two_h) < hd
        for i in range(S // 2):
            tf, tb = i, S - 1 - i
            a = gi_scr[tf * BP:(tf + 1) * BP, :]
            b = gi_scr[tb * BP:(tb + 1) * BP, :]
            gi_scr[tf * BP:(tf + 1) * BP, :] = jnp.where(fwd_mask, a, b)
            gi_scr[tb * BP:(tb + 1) * BP, :] = jnp.where(fwd_mask, b, a)

        # (3) Serial recurrence: one block-diagonal recurrent matmul per step
        #     serves both directions; loop fully unrolled (static indices).
        bhn = jnp.broadcast_to(bhn_ref[...], (BP, two_h))      # hoisted
        wh = wh_ref[...]                                        # hoisted, bf16
        # TODO(synk): drive the MXU explicitly (pltpu.matmul_push_rhs once per
        # layer + matmul_acc_lhs/pop per step) so the loop-invariant wh is not
        # re-streamed each step; kept as jnp.dot for portability across the
        # v5e/v6e/v7x MXU geometries.
        h = jnp.zeros((BP, two_h), f32)
        for i in range(S):
            tf, tb = i, S - 1 - i                          # fwd time / bwd time
            gi = gi_scr[i * BP:(i + 1) * BP, :]
            gh = jnp.dot(h.astype(bf16), wh, preferred_element_type=f32)
            r = jax.nn.sigmoid(gi[:, 0:two_h] + gh[:, 0:two_h])
            zg = jax.nn.sigmoid(gi[:, two_h:2 * two_h] + gh[:, two_h:2 * two_h])
            n = jnp.tanh(gi[:, 2 * two_h:3 * two_h]
                         + r * (gh[:, 2 * two_h:3 * two_h] + bhn))
            h = (1.0 - zg) * n + zg * h
            store(tf, tb, h)

    # ---- GRU1: bidirectional 64 -> 128/dir; halves are 128-lane aligned ----
    def store1(tf, tb, h):
        h1_scr[tf * BP:(tf + 1) * BP, 0:H1] = h[:, 0:H1]
        h1_scr[tb * BP:(tb + 1) * BP, H1:2 * H1] = h[:, H1:2 * H1]
    bidir_gru(x.astype(bf16), wi1_ref, bi1_ref, wh1_ref, bhn1_ref,
              gi1_scr, H1, store1)

    # ---- GRU2: bidirectional 256 -> 64/dir, tightly packed (no zero pad).
    #      Every store stays a full 128-lane tile: the whole h goes into the
    #      fwd scratch at row tf and into the bwd scratch at row tb; the unused
    #      half of each scratch is masked by zero weight rows in fc_out.
    def store2(tf, tb, h):
        h2f_scr[tf * BP:(tf + 1) * BP, :] = h
        h2b_scr[tb * BP:(tb + 1) * BP, :] = h
    bidir_gru(h1_scr[...].astype(bf16), wi2_ref, bi2_ref, wh2_ref, bhn2_ref,
              gi2_scr, H2, store2)

    # ---- fc_out: two matmuls with zero-masked weight halves, lane-dense out ----
    out_ref[...] = (jnp.dot(h2f_scr[...].astype(bf16), w_out_f_ref[...],
                            preferred_element_type=f32)
                    + jnp.dot(h2b_scr[...].astype(bf16), w_out_b_ref[...],
                              preferred_element_type=f32)
                    + b_out_ref[...])


# ---------------------------------------------------------------------------
# Parameter construction and one-time fusion into the kernel layouts.
# ---------------------------------------------------------------------------
def _uniform(key, shape, fan):
    bound = 1.0 / math.sqrt(fan)
    return jax.random.uniform(key, shape, jnp.float32, -bound, bound)


def make_params(key):
    ks = list(jax.random.split(key, 24))
    p = {}
    # fc_in: Linear(30, 64) stored transposed (30, 64), bias (1, 64)
    p["w_in"] = _uniform(ks[0], (F_IN, D_FC), F_IN)
    p["b_in"] = _uniform(ks[1], (1, D_FC), F_IN)
    # gru1: input 64, hidden 128, bidirectional; PyTorch gate order (r, z, n).
    for d, base in (("f", 2), ("b", 6)):
        p[f"g1{d}_wi"] = _uniform(ks[base + 0], (D_FC, 3 * H1), H1)
        p[f"g1{d}_wh"] = _uniform(ks[base + 1], (H1, 3 * H1), H1)
        p[f"g1{d}_bi"] = _uniform(ks[base + 2], (1, 3 * H1), H1)
        p[f"g1{d}_bh"] = _uniform(ks[base + 3], (1, 3 * H1), H1)
    # gru2: input 256, hidden 64, bidirectional.
    for d, base in (("f", 10), ("b", 14)):
        p[f"g2{d}_wi"] = _uniform(ks[base + 0], (2 * H1, 3 * H2), H2)
        p[f"g2{d}_wh"] = _uniform(ks[base + 1], (H2, 3 * H2), H2)
        p[f"g2{d}_bi"] = _uniform(ks[base + 2], (1, 3 * H2), H2)
        p[f"g2{d}_bh"] = _uniform(ks[base + 3], (1, 3 * H2), H2)
    # fc_out: Linear(128, 30) stored transposed (128, 30), bias (1, 30)
    p["w_out"] = _uniform(ks[18], (2 * H2, F_OUT), 2 * H2)
    p["b_out"] = _uniform(ks[19], (1, F_OUT), 2 * H2)
    # Embedding tables (computed in forward but unused by the returned score).
    p["label_emb"] = jax.random.normal(ks[20], (6, 10), jnp.float32)
    p["level_emb"] = jax.random.normal(ks[21], (31, 50), jnp.float32)
    p["amp_emb"] = jax.random.normal(ks[22], (21, 30), jnp.float32)
    return p


def _fuse_bidir_gru(p, prefix, in_dim, H):
    """Fused, gate-major parameters for one bidir GRU layer (no zero padding).

    Returns:
      wi  : (in_dim, 6H) bf16  columns [r_f r_b z_f z_b n_f n_b], each H wide
      bi  : (1, 6H)     f32    b_ih, with b_hr / b_hz folded in (additive)
      wh  : (2H, 6H)    bf16   block-diagonal recurrent weights, same columns
      bhn : (1, 2H)     f32    candidate-gate b_hn as [fwd | bwd]
    """
    wi = jnp.zeros((in_dim, 6 * H), jnp.float32)
    bi = jnp.zeros((1, 6 * H), jnp.float32)
    wh = jnp.zeros((2 * H, 6 * H), jnp.float32)
    bhn = jnp.zeros((1, 2 * H), jnp.float32)
    for d_idx, d in enumerate(("f", "b")):
        wi_d = p[f"{prefix}{d}_wi"]     # (in_dim, 3H)
        wh_d = p[f"{prefix}{d}_wh"]     # (H, 3H)
        bi_d = p[f"{prefix}{d}_bi"]     # (1, 3H)
        bh_d = p[f"{prefix}{d}_bh"]     # (1, 3H)
        row0 = d_idx * H
        for g in range(3):              # PyTorch gate order: r, z, n
            col0 = 2 * g * H + d_idx * H
            wi = wi.at[:, col0:col0 + H].set(wi_d[:, g * H:(g + 1) * H])
            wh = wh.at[row0:row0 + H, col0:col0 + H].set(wh_d[:, g * H:(g + 1) * H])
            b = bi_d[:, g * H:(g + 1) * H]
            if g < 2:                   # fold additive recurrent bias for r, z
                b = b + bh_d[:, g * H:(g + 1) * H]
            bi = bi.at[:, col0:col0 + H].set(b)
        bhn = bhn.at[:, row0:row0 + H].set(bh_d[:, 2 * H:3 * H])
    return wi.astype(jnp.bfloat16), bi, wh.astype(jnp.bfloat16), bhn


def sinusoidal_positional_embedding(seq_len=30, feat_dim=50):
    pos = jnp.arange(seq_len, dtype=jnp.float32)[:, None]
    div = jnp.exp(jnp.arange(0, feat_dim, 2, dtype=jnp.float32)
                  * -(math.log(10000.0) / feat_dim))
    pe = jnp.zeros((seq_len, feat_dim), jnp.float32)
    pe = pe.at[:, 0::2].set(jnp.sin(pos * div))
    pe = pe.at[:, 1::2].set(jnp.cos(pos * div))
    return pe


def score_model_forward(params, z_t, t, labels, snr, amps):
    """Pallas implementation of ScoreModel.forward. z_t: (B, S, 30) float32."""
    # Dead-code embeddings (present in the PyTorch forward, never feed `score`).
    _ = params["label_emb"][labels]
    _ = params["level_emb"][snr]
    _ = params["amp_emb"][amps]
    _ = jnp.broadcast_to(sinusoidal_positional_embedding()[None],
                         (z_t.shape[0], 30, 50))

    bf16 = jnp.bfloat16

    # One-time parameter fusion / bf16 cast (plain XLA, outside the kernel).
    wi1, bi1, wh1, bhn1 = _fuse_bidir_gru(params, "g1", D_FC, H1)
    wi2, bi2, wh2, bhn2 = _fuse_bidir_gru(params, "g2", 2 * H1, H2)
    w_in = params["w_in"].astype(bf16)
    # fc_out split into zero-masked halves (fwd reads lanes 0:64 of h2_fwd,
    # bwd reads lanes 64:128 of h2_bwd), columns zero-padded to 128 lanes.
    w_out_f = (jnp.zeros((2 * H2, OUT_PAD), jnp.float32)
               .at[0:H2, 0:F_OUT].set(params["w_out"][0:H2, :])).astype(bf16)
    w_out_b = (jnp.zeros((2 * H2, OUT_PAD), jnp.float32)
               .at[H2:2 * H2, 0:F_OUT].set(params["w_out"][H2:2 * H2, :])).astype(bf16)
    b_out = (jnp.zeros((1, OUT_PAD), jnp.float32)
             .at[:, 0:F_OUT].set(params["b_out"]))

    # Pack sequences into groups of 8 (one full sublane tile per time step);
    # each group is one grid iteration -> "parallel" uses the 2nd TC on v7x.
    Bv = z_t.shape[0]
    G = -(-Bv // BP)
    z_pad = (jnp.zeros((G * BP, S, F_IN), jnp.float32)
             .at[:Bv].set(z_t.astype(jnp.float32)))
    z_flat = (z_pad.reshape(G, BP, S, F_IN)
              .transpose(0, 2, 1, 3)
              .reshape(G * M, F_IN))

    args = [z_flat, w_in, params["b_in"],
            wi1, bi1, wh1, bhn1,
            wi2, bi2, wh2, bhn2,
            w_out_f, w_out_b, b_out]

    def _bcast_spec(shape):
        nd = len(shape)
        return pl.BlockSpec(shape, lambda g, nd=nd: (0,) * nd)

    in_specs = [pl.BlockSpec((M, F_IN), lambda g: (g, 0))]
    in_specs += [_bcast_spec(a.shape) for a in args[1:]]

    out_flat = pl.pallas_call(
        score_kernel,
        out_shape=jax.ShapeDtypeStruct((G * M, OUT_PAD), jnp.float32),
        grid=(G,),
        in_specs=in_specs,
        out_specs=pl.BlockSpec((M, OUT_PAD), lambda g: (g, 0)),
        scratch_shapes=[
            pltpu.VMEM((M, 6 * H1), jnp.float32),   # gru1 fused input gates
            pltpu.VMEM((M, 2 * H1), jnp.float32),   # gru1 hidden seq [fwd|bwd]
            pltpu.VMEM((M, 6 * H2), jnp.float32),   # gru2 fused input gates
            pltpu.VMEM((M, 2 * H2), jnp.float32),   # gru2 hidden (fwd rows)
            pltpu.VMEM((M, 2 * H2), jnp.float32),   # gru2 hidden (bwd rows)
        ],
        compiler_params=pltpu.CompilerParams(
            dimension_semantics=("parallel",)),
    )(*args)

    out = (out_flat.reshape(G, S, BP, OUT_PAD)
           .transpose(0, 2, 1, 3)
           .reshape(G * BP, S, OUT_PAD)[:Bv, :, :F_OUT])
    return out                                                  # (B, S, 30)


# ---------------------------------------------------------------------------
# Plain-JAX reference (mirrors the PyTorch module) for a correctness check.
# ---------------------------------------------------------------------------
def _ref_bidir_gru(x_tm, p, prefix, H):
    Sl, Bl, _ = x_tm.shape
    outs = []
    for d, rev in (("f", False), ("b", True)):
        wi, wh = p[f"{prefix}{d}_wi"], p[f"{prefix}{d}_wh"]
        bi, bh = p[f"{prefix}{d}_bi"], p[f"{prefix}{d}_bh"]
        h = jnp.zeros((Bl, H), jnp.float32)
        hs = [None] * Sl
        order = range(Sl - 1, -1, -1) if rev else range(Sl)
        for tt in order:
            gi = x_tm[tt] @ wi + bi
            gh = h @ wh + bh
            r = jax.nn.sigmoid(gi[:, 0:H] + gh[:, 0:H])
            z = jax.nn.sigmoid(gi[:, H:2 * H] + gh[:, H:2 * H])
            n = jnp.tanh(gi[:, 2 * H:3 * H] + r * gh[:, 2 * H:3 * H])
            h = (1.0 - z) * n + z * h
            hs[tt] = h
        outs.append(jnp.stack(hs, axis=0))
    return jnp.concatenate(outs, axis=-1)


def reference_forward(p, z_t):
    x = jnp.transpose(z_t.astype(jnp.float32), (1, 0, 2))             # (S, B, 30)
    x = x @ p["w_in"] + p["b_in"]
    x = jnp.maximum(x, 0.2 * x)
    x = _ref_bidir_gru(x, p, "g1", H1)
    x = _ref_bidir_gru(x, p, "g2", H2)
    out = x @ p["w_out"] + p["b_out"]
    return jnp.transpose(out, (1, 0, 2))


if __name__ == "__main__":
    key = jax.random.PRNGKey(0)
    k_param, k_z = jax.random.split(key)
    params = make_params(k_param)

    z_t = jax.random.normal(k_z, (B, S, F_IN), jnp.float32)
    t = jnp.zeros((B,), jnp.int32)          # only used for batch size in torch
    labels = jnp.array(3, jnp.int32)        # index into Embedding(6, 10)
    snr = jnp.array(12, jnp.int32)          # index into Embedding(31, 50)
    amps = jnp.array(7, jnp.int32)          # index into Embedding(21, 30)

    score = score_model_forward(params, z_t, t, labels, snr, amps)
    score = jax.block_until_ready(score)

    assert score.shape == (B, S, F_OUT), score.shape
    assert bool(jnp.all(jnp.isfinite(score)))

    # Check the fused bf16-operand kernel against a plain-JAX f32 reference.
    ref = reference_forward(params, z_t)
    max_err = float(jnp.max(jnp.abs(score - ref)))
    assert max_err < 5e-2, f"mismatch vs reference: {max_err}"

    print("KERNEL_OK")
</pallas_src>

<mosaic_0001>
module attributes {stable_mosaic.version = 11 : i64} {
  func.func @score_kernel(%arg0: i32, %arg1: memref<64x30xf32, #tpu.memory_space<vmem>>, %arg2: memref<30x64xbf16, #tpu.memory_space<vmem>>, %arg3: memref<1x64xf32, #tpu.memory_space<vmem>>, %arg4: memref<64x768xbf16, #tpu.memory_space<vmem>>, %arg5: memref<1x768xf32, #tpu.memory_space<vmem>>, %arg6: memref<256x768xbf16, #tpu.memory_space<vmem>>, %arg7: memref<1x256xf32, #tpu.memory_space<vmem>>, %arg8: memref<256x384xbf16, #tpu.memory_space<vmem>>, %arg9: memref<1x384xf32, #tpu.memory_space<vmem>>, %arg10: memref<128x384xbf16, #tpu.memory_space<vmem>>, %arg11: memref<1x128xf32, #tpu.memory_space<vmem>>, %arg12: memref<128x128xbf16, #tpu.memory_space<vmem>>, %arg13: memref<128x128xbf16, #tpu.memory_space<vmem>>, %arg14: memref<1x128xf32, #tpu.memory_space<vmem>>, %arg15: memref<64x128xf32, #tpu.memory_space<vmem>>, %arg16: memref<64x768xf32, #tpu.memory_space<vmem>>, %arg17: memref<64x256xf32, #tpu.memory_space<vmem>>, %arg18: memref<64x384xf32, #tpu.memory_space<vmem>>, %arg19: memref<64x128xf32, #tpu.memory_space<vmem>>, %arg20: memref<64x128xf32, #tpu.memory_space<vmem>>) attributes {dimension_semantics = [#tpu.dimension_semantics<parallel>], iteration_bounds = array<i64: 1>, scalar_prefetch = 0 : i64, scratch_operands = 5 : i64, tpu.core_type = #tpu.core_type<tc>, window_params = [{transform_indices = @transform_0, window_bounds = array<i64: 64, 30>}, {pipeline_mode = #tpu.pipeline_mode<synchronous>, transform_indices = @transform_1, window_bounds = array<i64: 30, 64>}, {pipeline_mode = #tpu.pipeline_mode<synchronous>, transform_indices = @transform_2, window_bounds = array<i64: 1, 64>}, {pipeline_mode = #tpu.pipeline_mode<synchronous>, transform_indices = @transform_3, window_bounds = array<i64: 64, 768>}, {pipeline_mode = #tpu.pipeline_mode<synchronous>, transform_indices = @transform_4, window_bounds = array<i64: 1, 768>}, {pipeline_mode = #tpu.pipeline_mode<synchronous>, transform_indices = @transform_5, window_bounds = array<i64: 256, 768>}, {pipeline_mode = #tpu.pipeline_mode<synchronous>, transform_indices = @transform_6, window_bounds = array<i64: 1, 256>}, {pipeline_mode = #tpu.pipeline_mode<synchronous>, transform_indices = @transform_7, window_bounds = array<i64: 256, 384>}, {pipeline_mode = #tpu.pipeline_mode<synchronous>, transform_indices = @transform_8, window_bounds = array<i64: 1, 384>}, {pipeline_mode = #tpu.pipeline_mode<synchronous>, transform_indices = @transform_9, window_bounds = array<i64: 128, 384>}, {pipeline_mode = #tpu.pipeline_mode<synchronous>, transform_indices = @transform_10, window_bounds = array<i64: 1, 128>}, {pipeline_mode = #tpu.pipeline_mode<synchronous>, transform_indices = @transform_11, window_bounds = array<i64: 128, 128>}, {pipeline_mode = #tpu.pipeline_mode<synchronous>, transform_indices = @transform_12, window_bounds = array<i64: 128, 128>}, {pipeline_mode = #tpu.pipeline_mode<synchronous>, transform_indices = @transform_13, window_bounds = array<i64: 1, 128>}, {transform_indices = @transform_14, window_bounds = array<i64: 64, 128>}]} {
    %c0 = arith.constant 0 : index
    %c0_0 = arith.constant 0 : index
    %0 = vector.load %arg1[%c0, %c0_0] : memref<64x30xf32, #tpu.memory_space<vmem>>, vector<64x30xf32>
    %1 = arith.truncf %0 : vector<64x30xf32> to vector<64x30xbf16>
    %c0_1 = arith.constant 0 : index
    %c0_2 = arith.constant 0 : index
    %2 = vector.load %arg2[%c0_1, %c0_2] : memref<30x64xbf16, #tpu.memory_space<vmem>>, vector<30x64xbf16>
    %cst = arith.constant dense<0.000000e+00> : vector<64x64xf32>
    %3 = tpu.matmul %1, %2, %cst {dimension_numbers = #tpu.dot_dimension_numbers<[1], [0], [0], [1], [0, 0, 1, 1], [], []>} : vector<64x30xbf16>, vector<30x64xbf16>, vector<64x64xf32> -> vector<64x64xf32>
    %c0_3 = arith.constant 0 : index
    %c0_4 = arith.constant 0 : index
    %4 = vector.load %arg3[%c0_3, %c0_4] : memref<1x64xf32, #tpu.memory_space<vmem>>, vector<1x64xf32>
    %5 = vector.broadcast %4 : vector<1x64xf32> to vector<64x64xf32>
    %6 = arith.addf %3, %5 : vector<64x64xf32>
    %cst_5 = arith.constant 2.000000e-01 : f32
    %7 = vector.broadcast %cst_5 : f32 to vector<64x64xf32>
    %8 = arith.mulf %7, %6 : vector<64x64xf32>
    %9 = arith.maximumf %6, %8 : vector<64x64xf32>
    %10 = arith.truncf %9 : vector<64x64xf32> to vector<64x64xbf16>
    %c0_6 = arith.constant 0 : index
    %c0_7 = arith.constant 0 : index
    %11 = vector.load %arg4[%c0_6, %c0_7] : memref<64x768xbf16, #tpu.memory_space<vmem>>, vector<64x768xbf16>
    %cst_8 = arith.constant dense<0.000000e+00> : vector<64x768xf32>
    %12 = tpu.matmul %10, %11, %cst_8 {dimension_numbers = #tpu.dot_dimension_numbers<[1], [0], [0], [1], [0, 0, 1, 1], [], []>} : vector<64x64xbf16>, vector<64x768xbf16>, vector<64x768xf32> -> vector<64x768xf32>
    %c0_9 = arith.constant 0 : index
    %c0_10 = arith.constant 0 : index
    %13 = vector.load %arg5[%c0_9, %c0_10] : memref<1x768xf32, #tpu.memory_space<vmem>>, vector<1x768xf32>
    %14 = vector.broadcast %13 : vector<1x768xf32> to vector<64x768xf32>
    %15 = arith.addf %12, %14 : vector<64x768xf32>
    %c0_11 = arith.constant 0 : index
    %c0_12 = arith.constant 0 : index
    %16 = vector.load %arg16[%c0_11, %c0_12] : memref<64x768xf32, #tpu.memory_space<vmem>>, vector<64x768xf32>
    tpu.vector_store %arg16[%c0_11, %c0_12], %15 {strides = array<i32>} : memref<64x768xf32, #tpu.memory_space<vmem>>, vector<64x768xf32>,
    %17 = tpu.iota {dimensions = array<i32: 1>} : vector<8x768xi32>
    %c256_i32 = arith.constant 256 : i32
    %c0_i32 = arith.constant 0 : i32
    %18 = arith.cmpi eq, %c256_i32, %c0_i32 : i32
    %c1_i32 = arith.constant 1 : i32
    %19 = arith.select %18, %c1_i32, %c256_i32 : i32
    %20 = vector.broadcast %19 : i32 to vector<8x768xi32>
    %21 = arith.remsi %17, %20 : vector<8x768xi32>
    %c0_i32_13 = arith.constant 0 : i32
    %22 = vector.broadcast %c0_i32_13 : i32 to vector<8x768xi32>
    %23 = arith.cmpi ne, %21, %22 : vector<8x768xi32>
    %c0_i32_14 = arith.constant 0 : i32
    %24 = vector.broadcast %c0_i32_14 : i32 to vector<8x768xi32>
    %25 = arith.cmpi slt, %21, %24 : vector<8x768xi32>
    %c0_i32_15 = arith.constant 0 : i32
    %26 = arith.cmpi slt, %19, %c0_i32_15 : i32
    %27 = vector.broadcast %26 : i1 to vector<8x768xi1>
    %28 = vector.broadcast %27 : vector<8x768xi1> to vector<8x768xi1>
    %29 = arith.xori %25, %28 : vector<8x768xi1>
    %30 = arith.andi %29, %23 : vector<8x768xi1>
    %31 = vector.broadcast %19 : i32 to vector<8x768xi32>
    %32 = arith.addi %21, %31 : vector<8x768xi32>
    %33 = arith.select %30, %32, %21 : vector<8x768xi1>, vector<8x768xi32>
    %c128_i32 = arith.constant 128 : i32
    %34 = vector.broadcast %c128_i32 : i32 to vector<8x768xi32>
    %35 = arith.cmpi slt, %33, %34 : vector<8x768xi32>
    %c0_16 = arith.constant 0 : index
    %c0_17 = arith.constant 0 : index
    %36 = vector.load %arg16[%c0_16, %c0_17] : memref<64x768xf32, #tpu.memory_space<vmem>>, vector<8x768xf32>
    %c56 = arith.constant 56 : index
    %c0_18 = arith.constant 0 : index
    %37 = vector.load %arg16[%c56, %c0_18] : memref<64x768xf32, #tpu.memory_space<vmem>>, vector<8x768xf32>
    %38 = arith.select %35, %36, %37 : vector<8x768xi1>, vector<8x768xf32>
    %c0_19 = arith.constant 0 : index
    %c0_20 = arith.constant 0 : index
    %39 = vector.load %arg16[%c0_19, %c0_20] : memref<64x768xf32, #tpu.memory_space<vmem>>, vector<8x768xf32>
    tpu.vector_store %arg16[%c0_19, %c0_20], %38 {strides = array<i32>} : memref<64x768xf32, #tpu.memory_space<vmem>>, vector<8x768xf32>,
    %40 = arith.select %35, %37, %36 : vector<8x768xi1>, vector<8x768xf32>
    %c56_21 = arith.constant 56 : index
    %c0_22 = arith.constant 0 : index
    %41 = vector.load %arg16[%c56_21, %c0_22] : memref<64x768xf32, #tpu.memory_space<vmem>>, vector<8x768xf32>
    tpu.vector_store %arg16[%c56_21, %c0_22], %40 {strides = array<i32>} : memref<64x768xf32, #tpu.memory_space<vmem>>, vector<8x768xf32>,
    %c8 = arith.constant 8 : index
    %c0_23 = arith.constant 0 : index
    %42 = vector.load %arg16[%c8, %c0_23] : memref<64x768xf32, #tpu.memory_space<vmem>>, vector<8x768xf32>
    %c48 = arith.constant 48 : index
    %c0_24 = arith.constant 0 : index
    %43 = vector.load %arg16[%c48, %c0_24] : memref<64x768xf32, #tpu.memory_space<vmem>>, vector<8x768xf32>
    %44 = arith.select %35, %42, %43 : vector<8x768xi1>, vector<8x768xf32>
    %c8_25 = arith.constant 8 : index
    %c0_26 = arith.constant 0 : index
    %45 = vector.load %arg16[%c8_25, %c0_26] : memref<64x768xf32, #tpu.memory_space<vmem>>, vector<8x768xf32>
    tpu.vector_store %arg16[%c8_25, %c0_26], %44 {strides = array<i32>} : memref<64x768xf32, #tpu.memory_space<vmem>>, vector<8x768xf32>,
    %46 = arith.select %35, %43, %42 : vector<8x768xi1>, vector<8x768xf32>
    %c48_27 = arith.constant 48 : index
    %c0_28 = arith.constant 0 : index
    %47 = vector.load %arg16[%c48_27, %c0_28] : memref<64x768xf32, #tpu.memory_space<vmem>>, vector<8x768xf32>
    tpu.vector_store %arg16[%c48_27, %c0_28], %46 {strides = array<i32>} : memref<64x768xf32, #tpu.memory_space<vmem>>, vector<8x768xf32>,
    %c16 = arith.constant 16 : index
    %c0_29 = arith.constant 0 : index
    %48 = vector.load %arg16[%c16, %c0_29] : memref<64x768xf32, #tpu.memory_space<vmem>>, vector<8x768xf32>
    %c40 = arith.constant 40 : index
    %c0_30 = arith.constant 0 : index
    %49 = vector.load %arg16[%c40, %c0_30] : memref<64x768xf32, #tpu.memory_space<vmem>>, vector<8x768xf32>
    %50 = arith.select %35, %48, %49 : vector<8x768xi1>, vector<8x768xf32>
    %c16_31 = arith.constant 16 : index
    %c0_32 = arith.constant 0 : index
    %51 = vector.load %arg16[%c16_31, %c0_32] : memref<64x768xf32, #tpu.memory_space<vmem>>, vector<8x768xf32>
    tpu.vector_store %arg16[%c16_31, %c0_32], %50 {strides = array<i32>} : memref<64x768xf32, #tpu.memory_space<vmem>>, vector<8x768xf32>,
    %52 = arith.select %35, %49, %48 : vector<8x768xi1>, vector<8x768xf32>
    %c40_33 = arith.constant 40 : index
    %c0_34 = arith.constant 0 : index
    %53 = vector.load %arg16[%c40_33, %c0_34] : memref<64x768xf32, #tpu.memory_space<vmem>>, vector<8x768xf32>
    tpu.vector_store %arg16[%c40_33, %c0_34], %52 {strides = array<i32>} : memref<64x768xf32, #tpu.memory_space<vmem>>, vector<8x768xf32>,
    %c24 = arith.constant 24 : index
    %c0_35 = arith.constant 0 : index
    %54 = vector.load %arg16[%c24, %c0_35] : memref<64x768xf32, #tpu.memory_space<vmem>>, vector<8x768xf32>
    %c32 = arith.constant 32 : index
    %c0_36 = arith.constant 0 : index
    %55 = vector.load %arg16[%c32, %c0_36] : memref<64x768xf32, #tpu.memory_space<vmem>>, vector<8x768xf32>
    %56 = arith.select %35, %54, %55 : vector<8x768xi1>, vector<8x768xf32>
    %c24_37 = arith.constant 24 : index
    %c0_38 = arith.constant 0 : index
    %57 = vector.load %arg16[%c24_37, %c0_38] : memref<64x768xf32, #tpu.memory_space<vmem>>, vector<8x768xf32>
    tpu.vector_store %arg16[%c24_37, %c0_38], %56 {strides = array<i32>} : memref<64x768xf32, #tpu.memory_space<vmem>>, vector<8x768xf32>,
    %58 = arith.select %35, %55, %54 : vector<8x768xi1>, vector<8x768xf32>
    %c32_39 = arith.constant 32 : index
    %c0_40 = arith.constant 0 : index
    %59 = vector.load %arg16[%c32_39, %c0_40] : memref<64x768xf32, #tpu.memory_space<vmem>>, vector<8x768xf32>
    tpu.vector_store %arg16[%c32_39, %c0_40], %58 {strides = array<i32>} : memref<64x768xf32, #tpu.memory_space<vmem>>, vector<8x768xf32>,
    %c0_41 = arith.constant 0 : index
    %c0_42 = arith.constant 0 : index
    %60 = vector.load %arg7[%c0_41, %c0_42] : memref<1x256xf32, #tpu.memory_space<vmem>>, vector<1x256xf32>
    %61 = vector.shape_cast %60 : vector<1x256xf32> to vector<1x256xf32>
    %62 = vector.broadcast %61 : vector<1x256xf32> to vector<8x256xf32>
    %c0_43 = arith.constant 0 : index
    %c0_44 = arith.constant 0 : index
    %63 = vector.load %arg6[%c0_43, %c0_44] : memref<256x768xbf16, #tpu.memory_space<vmem>>, vector<256x768xbf16>
    %cst_45 = arith.constant 0.000000e+00 : f32
    %64 = vector.broadcast %cst_45 : f32 to vector<8x256xf32>
    %c0_46 = arith.constant 0 : index
    %c0_47 = arith.constant 0 : index
    %65 = vector.load %arg16[%c0_46, %c0_47] : memref<64x768xf32, #tpu.memory_space<vmem>>, vector<8x768xf32>
    %66 = arith.truncf %64 : vector<8x256xf32> to vector<8x256xbf16>
    %cst_48 = arith.constant dense<0.000000e+00> : vector<8x768xf32>
    %67 = tpu.matmul %66, %63, %cst_48 {dimension_numbers = #tpu.dot_dimension_numbers<[1], [0], [0], [1], [0, 0, 1, 1], [], []>} : vector<8x256xbf16>, vector<256x768xbf16>, vector<8x768xf32> -> vector<8x768xf32>
    %68 = vector.extract_strided_slice %65 {offsets = [0, 0], sizes = [8, 256], strides = [1, 1]} : vector<8x768xf32> to vector<8x256xf32>
    %69 = vector.extract_strided_slice %67 {offsets = [0, 0], sizes = [8, 256], strides = [1, 1]} : vector<8x768xf32> to vector<8x256xf32>
    %70 = arith.addf %68, %69 : vector<8x256xf32>
    %71 = arith.negf %70 : vector<8x256xf32>
    %72 = math.exp %71 : vector<8x256xf32>
    %cst_49 = arith.constant 1.000000e+00 : f32
    %73 = vector.broadcast %cst_49 : f32 to vector<8x256xf32>
    %74 = arith.addf %73, %72 : vector<8x256xf32>
    %75 = arith.divf %73, %74 : vector<8x256xf32>
    %76 = vector.extract_strided_slice %65 {offsets = [0, 256], sizes = [8, 256], strides = [1, 1]} : vector<8x768xf32> to vector<8x256xf32>
    %77 = vector.extract_strided_slice %67 {offsets = [0, 256], sizes = [8, 256], strides = [1, 1]} : vector<8x768xf32> to vector<8x256xf32>
    %78 = arith.addf %76, %77 : vector<8x256xf32>
    %79 = arith.negf %78 : vector<8x256xf32>
    %80 = math.exp %79 : vector<8x256xf32>
    %cst_50 = arith.constant 1.000000e+00 : f32
    %81 = vector.broadcast %cst_50 : f32 to vector<8x256xf32>
    %82 = arith.addf %81, %80 : vector<8x256xf32>
    %83 = arith.divf %81, %82 : vector<8x256xf32>
    %84 = vector.extract_strided_slice %65 {offsets = [0, 512], sizes = [8, 256], strides = [1, 1]} : vector<8x768xf32> to vector<8x256xf32>
    %85 = vector.extract_strided_slice %67 {offsets = [0, 512], sizes = [8, 256], strides = [1, 1]} : vector<8x768xf32> to vector<8x256xf32>
    %86 = arith.addf %85, %62 : vector<8x256xf32>
    %87 = arith.mulf %75, %86 : vector<8x256xf32>
    %88 = arith.addf %84, %87 : vector<8x256xf32>
    %89 = math.tanh %88 : vector<8x256xf32>
    %cst_51 = arith.constant 1.000000e+00 : f32
    %90 = vector.broadcast %cst_51 : f32 to vector<8x256xf32>
    %91 = arith.subf %90, %83 : vector<8x256xf32>
    %92 = arith.mulf %91, %89 : vector<8x256xf32>
    %93 = arith.mulf %83, %64 : vector<8x256xf32>
    %94 = arith.addf %92, %93 : vector<8x256xf32>
    %95 = vector.extract_strided_slice %94 {offsets = [0, 0], sizes = [8, 128], strides = [1, 1]} : vector<8x256xf32> to vector<8x128xf32>
    %c0_52 = arith.constant 0 : index
    %c0_53 = arith.constant 0 : index
    %96 = vector.load %arg17[%c0_52, %c0_53] : memref<64x256xf32, #tpu.memory_space<vmem>>, vector<8x128xf32>
    tpu.vector_store %arg17[%c0_52, %c0_53], %95 {strides = array<i32>} : memref<64x256xf32, #tpu.memory_space<vmem>>, vector<8x128xf32>,
    %97 = vector.extract_strided_slice %94 {offsets = [0, 128], sizes = [8, 128], strides = [1, 1]} : vector<8x256xf32> to vector<8x128xf32>
    %c56_54 = arith.constant 56 : index
    %c128 = arith.constant 128 : index
    %98 = vector.load %arg17[%c56_54, %c128] : memref<64x256xf32, #tpu.memory_space<vmem>>, vector<8x128xf32>
    tpu.vector_store %arg17[%c56_54, %c128], %97 {strides = array<i32>} : memref<64x256xf32, #tpu.memory_space<vmem>>, vector<8x128xf32>,
    %c8_55 = arith.constant 8 : index
    %c0_56 = arith.constant 0 : index
    %99 = vector.load %arg16[%c8_55, %c0_56] : memref<64x768xf32, #tpu.memory_space<vmem>>, vector<8x768xf32>
    %100 = arith.truncf %94 : vector<8x256xf32> to vector<8x256xbf16>
    %cst_57 = arith.constant dense<0.000000e+00> : vector<8x768xf32>
    %101 = tpu.matmul %100, %63, %cst_57 {dimension_numbers = #tpu.dot_dimension_numbers<[1], [0], [0], [1], [0, 0, 1, 1], [], []>} : vector<8x256xbf16>, vector<256x768xbf16>, vector<8x768xf32> -> vector<8x768xf32>
    %102 = vector.extract_strided_slice %99 {offsets = [0, 0], sizes = [8, 256], strides = [1, 1]} : vector<8x768xf32> to vector<8x256xf32>
    %103 = vector.extract_strided_slice %101 {offsets = [0, 0], sizes = [8, 256], strides = [1, 1]} : vector<8x768xf32> to vector<8x256xf32>
    %104 = arith.addf %102, %103 : vector<8x256xf32>
    %105 = arith.negf %104 : vector<8x256xf32>
    %106 = math.exp %105 : vector<8x256xf32>
    %cst_58 = arith.constant 1.000000e+00 : f32
    %107 = vector.broadcast %cst_58 : f32 to vector<8x256xf32>
    %108 = arith.addf %107, %106 : vector<8x256xf32>
    %109 = arith.divf %107, %108 : vector<8x256xf32>
    %110 = vector.extract_strided_slice %99 {offsets = [0, 256], sizes = [8, 256], strides = [1, 1]} : vector<8x768xf32> to vector<8x256xf32>
    %111 = vector.extract_strided_slice %101 {offsets = [0, 256], sizes = [8, 256], strides = [1, 1]} : vector<8x768xf32> to vector<8x256xf32>
    %112 = arith.addf %110, %111 : vector<8x256xf32>
    %113 = arith.negf %112 : vector<8x256xf32>
    %114 = math.exp %113 : vector<8x256xf32>
    %cst_59 = arith.constant 1.000000e+00 : f32
    %115 = vector.broadcast %cst_59 : f32 to vector<8x256xf32>
    %116 = arith.addf %115, %114 : vector<8x256xf32>
    %117 = arith.divf %115, %116 : vector<8x256xf32>
    %118 = vector.extract_strided_slice %99 {offsets = [0, 512], sizes = [8, 256], strides = [1, 1]} : vector<8x768xf32> to vector<8x256xf32>
    %119 = vector.extract_strided_slice %101 {offsets = [0, 512], sizes = [8, 256], strides = [1, 1]} : vector<8x768xf32> to vector<8x256xf32>
    %120 = arith.addf %119, %62 : vector<8x256xf32>
    %121 = arith.mulf %109, %120 : vector<8x256xf32>
    %122 = arith.addf %118, %121 : vector<8x256xf32>
    %123 = math.tanh %122 : vector<8x256xf32>
    %cst_60 = arith.constant 1.000000e+00 : f32
    %124 = vector.broadcast %cst_60 : f32 to vector<8x256xf32>
    %125 = arith.subf %124, %117 : vector<8x256xf32>
    %126 = arith.mulf %125, %123 : vector<8x256xf32>
    %127 = arith.mulf %117, %94 : vector<8x256xf32>
    %128 = arith.addf %126, %127 : vector<8x256xf32>
    %129 = vector.extract_strided_slice %128 {offsets = [0, 0], sizes = [8, 128], strides = [1, 1]} : vector<8x256xf32> to vector<8x128xf32>
    %c8_61 = arith.constant 8 : index
    %c0_62 = arith.constant 0 : index
    %130 = vector.load %arg17[%c8_61, %c0_62] : memref<64x256xf32, #tpu.memory_space<vmem>>, vector<8x128xf32>
    tpu.vector_store %arg17[%c8_61, %c0_62], %129 {strides = array<i32>} : memref<64x256xf32, #tpu.memory_space<vmem>>, vector<8x128xf32>,
    %131 = vector.extract_strided_slice %128 {offsets = [0, 128], sizes = [8, 128], strides = [1, 1]} : vector<8x256xf32> to vector<8x128xf32>
    %c48_63 = arith.constant 48 : index
    %c128_64 = arith.constant 128 : index
    %132 = vector.load %arg17[%c48_63, %c128_64] : memref<64x256xf32, #tpu.memory_space<vmem>>, vector<8x128xf32>
    tpu.vector_store %arg17[%c48_63, %c128_64], %131 {strides = array<i32>} : memref<64x256xf32, #tpu.memory_space<vmem>>, vector<8x128xf32>,
    %c16_65 = arith.constant 16 : index
    %c0_66 = arith.constant 0 : index
    %133 = vector.load %arg16[%c16_65, %c0_66] : memref<64x768xf32, #tpu.memory_space<vmem>>, vector<8x768xf32>
    %134 = arith.truncf %128 : vector<8x256xf32> to vector<8x256xbf16>
    %cst_67 = arith.constant dense<0.000000e+00> : vector<8x768xf32>
    %135 = tpu.matmul %134, %63, %cst_67 {dimension_numbers = #tpu.dot_dimension_numbers<[1], [0], [0], [1], [0, 0, 1, 1], [], []>} : vector<8x256xbf16>, vector<256x768xbf16>, vector<8x768xf32> -> vector<8x768xf32>
    %136 = vector.extract_strided_slice %133 {offsets = [0, 0], sizes = [8, 256], strides = [1, 1]} : vector<8x768xf32> to vector<8x256xf32>
    %137 = vector.extract_strided_slice %135 {offsets = [0, 0], sizes = [8, 256], strides = [1, 1]} : vector<8x768xf32> to vector<8x256xf32>
    %138 = arith.addf %136, %137 : vector<8x256xf32>
    %139 = arith.negf %138 : vector<8x256xf32>
    %140 = math.exp %139 : vector<8x256xf32>
    %cst_68 = arith.constant 1.000000e+00 : f32
    %141 = vector.broadcast %cst_68 : f32 to vector<8x256xf32>
    %142 = arith.addf %141, %140 : vector<8x256xf32>
    %143 = arith.divf %141, %142 : vector<8x256xf32>
    %144 = vector.extract_strided_slice %133 {offsets = [0, 256], sizes = [8, 256], strides = [1, 1]} : vector<8x768xf32> to vector<8x256xf32>
    %145 = vector.extract_strided_slice %135 {offsets = [0, 256], sizes = [8, 256], strides = [1, 1]} : vector<8x768xf32> to vector<8x256xf32>
    %146 = arith.addf %144, %145 : vector<8x256xf32>
    %147 = arith.negf %146 : vector<8x256xf32>
    %148 = math.exp %147 : vector<8x256xf32>
    %cst_69 = arith.constant 1.000000e+00 : f32
    %149 = vector.broadcast %cst_69 : f32 to vector<8x256xf32>
    %150 = arith.addf %149, %148 : vector<8x256xf32>
    %151 = arith.divf %149, %150 : vector<8x256xf32>
    %152 = vector.extract_strided_slice %133 {offsets = [0, 512], sizes = [8, 256], strides = [1, 1]} : vector<8x768xf32> to vector<8x256xf32>
    %153 = vector.extract_strided_slice %135 {offsets = [0, 512], sizes = [8, 256], strides = [1, 1]} : vector<8x768xf32> to vector<8x256xf32>
    %154 = arith.addf %153, %62 : vector<8x256xf32>
    %155 = arith.mulf %143, %154 : vector<8x256xf32>
    %156 = arith.addf %152, %155 : vector<8x256xf32>
    %157 = math.tanh %156 : vector<8x256xf32>
    %cst_70 = arith.constant 1.000000e+00 : f32
    %158 = vector.broadcast %cst_70 : f32 to vector<8x256xf32>
    %159 = arith.subf %158, %151 : vector<8x256xf32>
    %160 = arith.mulf %159, %157 : vector<8x256xf32>
    %161 = arith.mulf %151, %128 : vector<8x256xf32>
    %162 = arith.addf %160, %161 : vector<8x256xf32>
    %163 = vector.extract_strided_slice %162 {offsets = [0, 0], sizes = [8, 128], strides = [1, 1]} : vector<8x256xf32> to vector<8x128xf32>
    %c16_71 = arith.constant 16 : index
    %c0_72 = arith.constant 0 : index
    %164 = vector.load %arg17[%c16_71, %c0_72] : memref<64x256xf32, #tpu.memory_space<vmem>>, vector<8x128xf32>
    tpu.vector_store %arg17[%c16_71, %c0_72], %163 {strides = array<i32>} : memref<64x256xf32, #tpu.memory_space<vmem>>, vector<8x128xf32>,
    %165 = vector.extract_strided_slice %162 {offsets = [0, 128], sizes = [8, 128], strides = [1, 1]} : vector<8x256xf32> to vector<8x128xf32>
    %c40_73 = arith.constant 40 : index
    %c128_74 = arith.constant 128 : index
    %166 = vector.load %arg17[%c40_73, %c128_74] : memref<64x256xf32, #tpu.memory_space<vmem>>, vector<8x128xf32>
    tpu.vector_store %arg17[%c40_73, %c128_74], %165 {strides = array<i32>} : memref<64x256xf32, #tpu.memory_space<vmem>>, vector<8x128xf32>,
    %c24_75 = arith.constant 24 : index
    %c0_76 = arith.constant 0 : index
    %167 = vector.load %arg16[%c24_75, %c0_76] : memref<64x768xf32, #tpu.memory_space<vmem>>, vector<8x768xf32>
    %168 = arith.truncf %162 : vector<8x256xf32> to vector<8x256xbf16>
    %cst_77 = arith.constant dense<0.000000e+00> : vector<8x768xf32>
    %169 = tpu.matmul %168, %63, %cst_77 {dimension_numbers = #tpu.dot_dimension_numbers<[1], [0], [0], [1], [0, 0, 1, 1], [], []>} : vector<8x256xbf16>, vector<256x768xbf16>, vector<8x768xf32> -> vector<8x768xf32>
    %170 = vector.extract_strided_slice %167 {offsets = [0, 0], sizes = [8, 256], strides = [1, 1]} : vector<8x768xf32> to vector<8x256xf32>
    %171 = vector.extract_strided_slice %169 {offsets = [0, 0], sizes = [8, 256], strides = [1, 1]} : vector<8x768xf32> to vector<8x256xf32>
    %172 = arith.addf %170, %171 : vector<8x256xf32>
    %173 = arith.negf %172 : vector<8x256xf32>
    %174 = math.exp %173 : vector<8x256xf32>
    %cst_78 = arith.constant 1.000000e+00 : f32
    %175 = vector.broadcast %cst_78 : f32 to vector<8x256xf32>
    %176 = arith.addf %175, %174 : vector<8x256xf32>
    %177 = arith.divf %175, %176 : vector<8x256xf32>
    %178 = vector.extract_strided_slice %167 {offsets = [0, 256], sizes = [8, 256], strides = [1, 1]} : vector<8x768xf32> to vector<8x256xf32>
    %179 = vector.extract_strided_slice %169 {offsets = [0, 256], sizes = [8, 256], strides = [1, 1]} : vector<8x768xf32> to vector<8x256xf32>
    %180 = arith.addf %178, %179 : vector<8x256xf32>
    %181 = arith.negf %180 : vector<8x256xf32>
    %182 = math.exp %181 : vector<8x256xf32>
    %cst_79 = arith.constant 1.000000e+00 : f32
    %183 = vector.broadcast %cst_79 : f32 to vector<8x256xf32>
    %184 = arith.addf %183, %182 : vector<8x256xf32>
    %185 = arith.divf %183, %184 : vector<8x256xf32>
    %186 = vector.extract_strided_slice %167 {offsets = [0, 512], sizes = [8, 256], strides = [1, 1]} : vector<8x768xf32> to vector<8x256xf32>
    %187 = vector.extract_strided_slice %169 {offsets = [0, 512], sizes = [8, 256], strides = [1, 1]} : vector<8x768xf32> to vector<8x256xf32>
    %188 = arith.addf %187, %62 : vector<8x256xf32>
    %189 = arith.mulf %177, %188 : vector<8x256xf32>
    %190 = arith.addf %186, %189 : vector<8x256xf32>
    %191 = math.tanh %190 : vector<8x256xf32>
    %cst_80 = arith.constant 1.000000e+00 : f32
    %192 = vector.broadcast %cst_80 : f32 to vector<8x256xf32>
    %193 = arith.subf %192, %185 : vector<8x256xf32>
    %194 = arith.mulf %193, %191 : vector<8x256xf32>
    %195 = arith.mulf %185, %162 : vector<8x256xf32>
    %196 = arith.addf %194, %195 : vector<8x256xf32>
    %197 = vector.extract_strided_slice %196 {offsets = [0, 0], sizes = [8, 128], strides = [1, 1]} : vector<8x256xf32> to vector<8x128xf32>
    %c24_81 = arith.constant 24 : index
    %c0_82 = arith.constant 0 : index
    %198 = vector.load %arg17[%c24_81, %c0_82] : memref<64x256xf32, #tpu.memory_space<vmem>>, vector<8x128xf32>
    tpu.vector_store %arg17[%c24_81, %c0_82], %197 {strides = array<i32>} : memref<64x256xf32, #tpu.memory_space<vmem>>, vector<8x128xf32>,
    %199 = vector.extract_strided_slice %196 {offsets = [0, 128], sizes = [8, 128], strides = [1, 1]} : vector<8x256xf32> to vector<8x128xf32>
    %c32_83 = arith.constant 32 : index
    %c128_84 = arith.constant 128 : index
    %200 = vector.load %arg17[%c32_83, %c128_84] : memref<64x256xf32, #tpu.memory_space<vmem>>, vector<8x128xf32>
    tpu.vector_store %arg17[%c32_83, %c128_84], %199 {strides = array<i32>} : memref<64x256xf32, #tpu.memory_space<vmem>>, vector<8x128xf32>,
    %c32_85 = arith.constant 32 : index
    %c0_86 = arith.constant 0 : index
    %201 = vector.load %arg16[%c32_85, %c0_86] : memref<64x768xf32, #tpu.memory_space<vmem>>, vector<8x768xf32>
    %202 = arith.truncf %196 : vector<8x256xf32> to vector<8x256xbf16>
    %cst_87 = arith.constant dense<0.000000e+00> : vector<8x768xf32>
    %203 = tpu.matmul %202, %63, %cst_87 {dimension_numbers = #tpu.dot_dimension_numbers<[1], [0], [0], [1], [0, 0, 1, 1], [], []>} : vector<8x256xbf16>, vector<256x768xbf16>, vector<8x768xf32> -> vector<8x768xf32>
    %204 = vector.extract_strided_slice %201 {offsets = [0, 0], sizes = [8, 256], strides = [1, 1]} : vector<8x768xf32> to vector<8x256xf32>
    %205 = vector.extract_strided_slice %203 {offsets = [0, 0], sizes = [8, 256], strides = [1, 1]} : vector<8x768xf32> to vector<8x256xf32>
    %206 = arith.addf %204, %205 : vector<8x256xf32>
    %207 = arith.negf %206 : vector<8x256xf32>
    %208 = math.exp %207 : vector<8x256xf32>
    %cst_88 = arith.constant 1.000000e+00 : f32
    %209 = vector.broadcast %cst_88 : f32 to vector<8x256xf32>
    %210 = arith.addf %209, %208 : vector<8x256xf32>
    %211 = arith.divf %209, %210 : vector<8x256xf32>
    %212 = vector.extract_strided_slice %201 {offsets = [0, 256], sizes = [8, 256], strides = [1, 1]} : vector<8x768xf32> to vector<8x256xf32>
    %213 = vector.extract_strided_slice %203 {offsets = [0, 256], sizes = [8, 256], strides = [1, 1]} : vector<8x768xf32> to vector<8x256xf32>
    %214 = arith.addf %212, %213 : vector<8x256xf32>
    %215 = arith.negf %214 : vector<8x256xf32>
    %216 = math.exp %215 : vector<8x256xf32>
    %cst_89 = arith.constant 1.000000e+00 : f32
    %217 = vector.broadcast %cst_89 : f32 to vector<8x256xf32>
    %218 = arith.addf %217, %216 : vector<8x256xf32>
    %219 = arith.divf %217, %218 : vector<8x256xf32>
    %220 = vector.extract_strided_slice %201 {offsets = [0, 512], sizes = [8, 256], strides = [1, 1]} : vector<8x768xf32> to vector<8x256xf32>
    %221 = vector.extract_strided_slice %203 {offsets = [0, 512], sizes = [8, 256], strides = [1, 1]} : vector<8x768xf32> to vector<8x256xf32>
    %222 = arith.addf %221, %62 : vector<8x256xf32>
    %223 = arith.mulf %211, %222 : vector<8x256xf32>
    %224 = arith.addf %220, %223 : vector<8x256xf32>
    %225 = math.tanh %224 : vector<8x256xf32>
    %cst_90 = arith.constant 1.000000e+00 : f32
    %226 = vector.broadcast %cst_90 : f32 to vector<8x256xf32>
    %227 = arith.subf %226, %219 : vector<8x256xf32>
    %228 = arith.mulf %227, %225 : vector<8x256xf32>
    %229 = arith.mulf %219, %196 : vector<8x256xf32>
    %230 = arith.addf %228, %229 : vector<8x256xf32>
    %231 = vector.extract_strided_slice %230 {offsets = [0, 0], sizes = [8, 128], strides = [1, 1]} : vector<8x256xf32> to vector<8x128xf32>
    %c32_91 = arith.constant 32 : index
    %c0_92 = arith.constant 0 : index
    %232 = vector.load %arg17[%c32_91, %c0_92] : memref<64x256xf32, #tpu.memory_space<vmem>>, vector<8x128xf32>
    tpu.vector_store %arg17[%c32_91, %c0_92], %231 {strides = array<i32>} : memref<64x256xf32, #tpu.memory_space<vmem>>, vector<8x128xf32>,
    %233 = vector.extract_strided_slice %230 {offsets = [0, 128], sizes = [8, 128], strides = [1, 1]} : vector<8x256xf32> to vector<8x128xf32>
    %c24_93 = arith.constant 24 : index
    %c128_94 = arith.constant 128 : index
    %234 = vector.load %arg17[%c24_93, %c128_94] : memref<64x256xf32, #tpu.memory_space<vmem>>, vector<8x128xf32>
    tpu.vector_store %arg17[%c24_93, %c128_94], %233 {strides = array<i32>} : memref<64x256xf32, #tpu.memory_space<vmem>>, vector<8x128xf32>,
    %c40_95 = arith.constant 40 : index
    %c0_96 = arith.constant 0 : index
    %235 = vector.load %arg16[%c40_95, %c0_96] : memref<64x768xf32, #tpu.memory_space<vmem>>, vector<8x768xf32>
    %236 = arith.truncf %230 : vector<8x256xf32> to vector<8x256xbf16>
    %cst_97 = arith.constant dense<0.000000e+00> : vector<8x768xf32>
    %237 = tpu.matmul %236, %63, %cst_97 {dimension_numbers = #tpu.dot_dimension_numbers<[1], [0], [0], [1], [0, 0, 1, 1], [], []>} : vector<8x256xbf16>, vector<256x768xbf16>, vector<8x768xf32> -> vector<8x768xf32>
    %238 = vector.extract_strided_slice %235 {offsets = [0, 0], sizes = [8, 256], strides = [1, 1]} : vector<8x768xf32> to vector<8x256xf32>
    %239 = vector.extract_strided_slice %237 {offsets = [0, 0], sizes = [8, 256], strides = [1, 1]} : vector<8x768xf32> to vector<8x256xf32>
    %240 = arith.addf %238, %239 : vector<8x256xf32>
    %241 = arith.negf %240 : vector<8x256xf32>
    %242 = math.exp %241 : vector<8x256xf32>
    %cst_98 = arith.constant 1.000000e+00 : f32
    %243 = vector.broadcast %cst_98 : f32 to vector<8x256xf32>
    %244 = arith.addf %243, %242 : vector<8x256xf32>
    %245 = arith.divf %243, %244 : vector<8x256xf32>
    %246 = vector.extract_strided_slice %235 {offsets = [0, 256], sizes = [8, 256], strides = [1, 1]} : vector<8x768xf32> to vector<8x256xf32>
    %247 = vector.extract_strided_slice %237 {offsets = [0, 256], sizes = [8, 256], strides = [1, 1]} : vector<8x768xf32> to vector<8x256xf32>
    %248 = arith.addf %246, %247 : vector<8x256xf32>
    %249 = arith.negf %248 : vector<8x256xf32>
    %250 = math.exp %249 : vector<8x256xf32>
    %cst_99 = arith.constant 1.000000e+00 : f32
    %251 = vector.broadcast %cst_99 : f32 to vector<8x256xf32>
    %252 = arith.addf %251, %250 : vector<8x256xf32>
    %253 = arith.divf %251, %252 : vector<8x256xf32>
    %254 = vector.extract_strided_slice %235 {offsets = [0, 512], sizes = [8, 256], strides = [1, 1]} : vector<8x768xf32> to vector<8x256xf32>
    %255 = vector.extract_strided_slice %237 {offsets = [0, 512], sizes = [8, 256], strides = [1, 1]} : vector<8x768xf32> to vector<8x256xf32>
    %256 = arith.addf %255, %62 : vector<8x256xf32>
    %257 = arith.mulf %245, %256 : vector<8x256xf32>
    %258 = arith.addf %254, %257 : vector<8x256xf32>
    %259 = math.tanh %258 : vector<8x256xf32>
    %cst_100 = arith.constant 1.000000e+00 : f32
    %260 = vector.broadcast %cst_100 : f32 to vector<8x256xf32>
    %261 = arith.subf %260, %253 : vector<8x256xf32>
    %262 = arith.mulf %261, %259 : vector<8x256xf32>
    %263 = arith.mulf %253, %230 : vector<8x256xf32>
    %264 = arith.addf %262, %263 : vector<8x256xf32>
    %265 = vector.extract_strided_slice %264 {offsets = [0, 0], sizes = [8, 128], strides = [1, 1]} : vector<8x256xf32> to vector<8x128xf32>
    %c40_101 = arith.constant 40 : index
    %c0_102 = arith.constant 0 : index
    %266 = vector.load %arg17[%c40_101, %c0_102] : memref<64x256xf32, #tpu.memory_space<vmem>>, vector<8x128xf32>
    tpu.vector_store %arg17[%c40_101, %c0_102], %265 {strides = array<i32>} : memref<64x256xf32, #tpu.memory_space<vmem>>, vector<8x128xf32>,
    %267 = vector.extract_strided_slice %264 {offsets = [0, 128], sizes = [8, 128], strides = [1, 1]} : vector<8x256xf32> to vector<8x128xf32>
    %c16_103 = arith.constant 16 : index
    %c128_104 = arith.constant 128 : index
    %268 = vector.load %arg17[%c16_103, %c128_104] : memref<64x256xf32, #tpu.memory_space<vmem>>, vector<8x128xf32>
    tpu.vector_store %arg17[%c16_103, %c128_104], %267 {strides = array<i32>} : memref<64x256xf32, #tpu.memory_space<vmem>>, vector<8x128xf32>,
    %c48_105 = arith.constant 48 : index
    %c0_106 = arith.constant 0 : index
    %269 = vector.load %arg16[%c48_105, %c0_106] : memref<64x768xf32, #tpu.memory_space<vmem>>, vector<8x768xf32>
    %270 = arith.truncf %264 : vector<8x256xf32> to vector<8x256xbf16>
    %cst_107 = arith.constant dense<0.000000e+00> : vector<8x768xf32>
    %271 = tpu.matmul %270, %63, %cst_107 {dimension_numbers = #tpu.dot_dimension_numbers<[1], [0], [0], [1], [0, 0, 1, 1], [], []>} : vector<8x256xbf16>, vector<256x768xbf16>, vector<8x768xf32> -> vector<8x768xf32>
    %272 = vector.extract_strided_slice %269 {offsets = [0, 0], sizes = [8, 256], strides = [1, 1]} : vector<8x768xf32> to vector<8x256xf32>
    %273 = vector.extract_strided_slice %271 {offsets = [0, 0], sizes = [8, 256], strides = [1, 1]} : vector<8x768xf32> to vector<8x256xf32>
    %274 = arith.addf %272, %273 : vector<8x256xf32>
    %275 = arith.negf %274 : vector<8x256xf32>
    %276 = math.exp %275 : vector<8x256xf32>
    %cst_108 = arith.constant 1.000000e+00 : f32
    %277 = vector.broadcast %cst_108 : f32 to vector<8x256xf32>
    %278 = arith.addf %277, %276 : vector<8x256xf32>
    %279 = arith.divf %277, %278 : vector<8x256xf32>
    %280 = vector.extract_strided_slice %269 {offsets = [0, 256], sizes = [8, 256], strides = [1, 1]} : vector<8x768xf32> to vector<8x256xf32>
    %281 = vector.extract_strided_slice %271 {offsets = [0, 256], sizes = [8, 256], strides = [1, 1]} : vector<8x768xf32> to vector<8x256xf32>
    %282 = arith.addf %280, %281 : vector<8x256xf32>
    %283 = arith.negf %282 : vector<8x256xf32>
    %284 = math.exp %283 : vector<8x256xf32>
    %cst_109 = arith.constant 1.000000e+00 : f32
    %285 = vector.broadcast %cst_109 : f32 to vector<8x256xf32>
    %286 = arith.addf %285, %284 : vector<8x256xf32>
    %287 = arith.divf %285, %286 : vector<8x256xf32>
    %288 = vector.extract_strided_slice %269 {offsets = [0, 512], sizes = [8, 256], strides = [1, 1]} : vector<8x768xf32> to vector<8x256xf32>
    %289 = vector.extract_strided_slice %271 {offsets = [0, 512], sizes = [8, 256], strides = [1, 1]} : vector<8x768xf32> to vector<8x256xf32>
    %290 = arith.addf %289, %62 : vector<8x256xf32>
    %291 = arith.mulf %279, %290 : vector<8x256xf32>
    %292 = arith.addf %288, %291 : vector<8x256xf32>
    %293 = math.tanh %292 : vector<8x256xf32>
    %cst_110 = arith.constant 1.000000e+00 : f32
    %294 = vector.broadcast %cst_110 : f32 to vector<8x256xf32>
    %295 = arith.subf %294, %287 : vector<8x256xf32>
    %296 = arith.mulf %295, %293 : vector<8x256xf32>
    %297 = arith.mulf %287, %264 : vector<8x256xf32>
    %298 = arith.addf %296, %297 : vector<8x256xf32>
    %299 = vector.extract_strided_slice %298 {offsets = [0, 0], sizes = [8, 128], strides = [1, 1]} : vector<8x256xf32> to vector<8x128xf32>
    %c48_111 = arith.constant 48 : index
    %c0_112 = arith.constant 0 : index
    %300 = vector.load %arg17[%c48_111, %c0_112] : memref<64x256xf32, #tpu.memory_space<vmem>>, vector<8x128xf32>
    tpu.vector_store %arg17[%c48_111, %c0_112], %299 {strides = array<i32>} : memref<64x256xf32, #tpu.memory_space<vmem>>, vector<8x128xf32>,
    %301 = vector.extract_strided_slice %298 {offsets = [0, 128], sizes = [8, 128], strides = [1, 1]} : vector<8x256xf32> to vector<8x128xf32>
    %c8_113 = arith.constant 8 : index
    %c128_114 = arith.constant 128 : index
    %302 = vector.load %arg17[%c8_113, %c128_114] : memref<64x256xf32, #tpu.memory_space<vmem>>, vector<8x128xf32>
    tpu.vector_store %arg17[%c8_113, %c128_114], %301 {strides = array<i32>} : memref<64x256xf32, #tpu.memory_space<vmem>>, vector<8x128xf32>,
    %c56_115 = arith.constant 56 : index
    %c0_116 = arith.constant 0 : index
    %303 = vector.load %arg16[%c56_115, %c0_116] : memref<64x768xf32, #tpu.memory_space<vmem>>, vector<8x768xf32>
    %304 = arith.truncf %298 : vector<8x256xf32> to vector<8x256xbf16>
    %cst_117 = arith.constant dense<0.000000e+00> : vector<8x768xf32>
    %305 = tpu.matmul %304, %63, %cst_117 {dimension_numbers = #tpu.dot_dimension_numbers<[1], [0], [0], [1], [0, 0, 1, 1], [], []>} : vector<8x256xbf16>, vector<256x768xbf16>, vector<8x768xf32> -> vector<8x768xf32>
    %306 = vector.extract_strided_slice %303 {offsets = [0, 0], sizes = [8, 256], strides = [1, 1]} : vector<8x768xf32> to vector<8x256xf32>
    %307 = vector.extract_strided_slice %305 {offsets = [0, 0], sizes = [8, 256], strides = [1, 1]} : vector<8x768xf32> to vector<8x256xf32>
    %308 = arith.addf %306, %307 : vector<8x256xf32>
    %309 = arith.negf %308 : vector<8x256xf32>
    %310 = math.exp %309 : vector<8x256xf32>
    %cst_118 = arith.constant 1.000000e+00 : f32
    %311 = vector.broadcast %cst_118 : f32 to vector<8x256xf32>
    %312 = arith.addf %311, %310 : vector<8x256xf32>
    %313 = arith.divf %311, %312 : vector<8x256xf32>
    %314 = vector.extract_strided_slice %303 {offsets = [0, 256], sizes = [8, 256], strides = [1, 1]} : vector<8x768xf32> to vector<8x256xf32>
    %315 = vector.extract_strided_slice %305 {offsets = [0, 256], sizes = [8, 256], strides = [1, 1]} : vector<8x768xf32> to vector<8x256xf32>
    %316 = arith.addf %314, %315 : vector<8x256xf32>
    %317 = arith.negf %316 : vector<8x256xf32>
    %318 = math.exp %317 : vector<8x256xf32>
    %cst_119 = arith.constant 1.000000e+00 : f32
    %319 = vector.broadcast %cst_119 : f32 to vector<8x256xf32>
    %320 = arith.addf %319, %318 : vector<8x256xf32>
    %321 = arith.divf %319, %320 : vector<8x256xf32>
    %322 = vector.extract_strided_slice %303 {offsets = [0, 512], sizes = [8, 256], strides = [1, 1]} : vector<8x768xf32> to vector<8x256xf32>
    %323 = vector.extract_strided_slice %305 {offsets = [0, 512], sizes = [8, 256], strides = [1, 1]} : vector<8x768xf32> to vector<8x256xf32>
    %324 = arith.addf %323, %62 : vector<8x256xf32>
    %325 = arith.mulf %313, %324 : vector<8x256xf32>
    %326 = arith.addf %322, %325 : vector<8x256xf32>
    %327 = math.tanh %326 : vector<8x256xf32>
    %cst_120 = arith.constant 1.000000e+00 : f32
    %328 = vector.broadcast %cst_120 : f32 to vector<8x256xf32>
    %329 = arith.subf %328, %321 : vector<8x256xf32>
    %330 = arith.mulf %329, %327 : vector<8x256xf32>
    %331 = arith.mulf %321, %298 : vector<8x256xf32>
    %332 = arith.addf %330, %331 : vector<8x256xf32>
    %333 = vector.extract_strided_slice %332 {offsets = [0, 0], sizes = [8, 128], strides = [1, 1]} : vector<8x256xf32> to vector<8x128xf32>
    %c56_121 = arith.constant 56 : index
    %c0_122 = arith.constant 0 : index
    %334 = vector.load %arg17[%c56_121, %c0_122] : memref<64x256xf32, #tpu.memory_space<vmem>>, vector<8x128xf32>
    tpu.vector_store %arg17[%c56_121, %c0_122], %333 {strides = array<i32>} : memref<64x256xf32, #tpu.memory_space<vmem>>, vector<8x128xf32>,
    %335 = vector.extract_strided_slice %332 {offsets = [0, 128], sizes = [8, 128], strides = [1, 1]} : vector<8x256xf32> to vector<8x128xf32>
    %c0_123 = arith.constant 0 : index
    %c128_124 = arith.constant 128 : index
    %336 = vector.load %arg17[%c0_123, %c128_124] : memref<64x256xf32, #tpu.memory_space<vmem>>, vector<8x128xf32>
    tpu.vector_store %arg17[%c0_123, %c128_124], %335 {strides = array<i32>} : memref<64x256xf32, #tpu.memory_space<vmem>>, vector<8x128xf32>,
    %c0_125 = arith.constant 0 : index
    %c0_126 = arith.constant 0 : index
    %337 = vector.load %arg17[%c0_125, %c0_126] : memref<64x256xf32, #tpu.memory_space<vmem>>, vector<64x256xf32>
    %338 = arith.truncf %337 : vector<64x256xf32> to vector<64x256xbf16>
    %c0_127 = arith.constant 0 : index
    %c0_128 = arith.constant 0 : index
    %339 = vector.load %arg8[%c0_127, %c0_128] : memref<256x384xbf16, #tpu.memory_space<vmem>>, vector<256x384xbf16>
    %cst_129 = arith.constant dense<0.000000e+00> : vector<64x384xf32>
    %340 = tpu.matmul %338, %339, %cst_129 {dimension_numbers = #tpu.dot_dimension_numbers<[1], [0], [0], [1], [0, 0, 1, 1], [], []>} : vector<64x256xbf16>, vector<256x384xbf16>, vector<64x384xf32> -> vector<64x384xf32>
    %c0_130 = arith.constant 0 : index
    %c0_131 = arith.constant 0 : index
    %341 = vector.load %arg9[%c0_130, %c0_131] : memref<1x384xf32, #tpu.memory_space<vmem>>, vector<1x384xf32>
    %342 = vector.broadcast %341 : vector<1x384xf32> to vector<64x384xf32>
    %343 = arith.addf %340, %342 : vector<64x384xf32>
    %c0_132 = arith.constant 0 : index
    %c0_133 = arith.constant 0 : index
    %344 = vector.load %arg18[%c0_132, %c0_133] : memref<64x384xf32, #tpu.memory_space<vmem>>, vector<64x384xf32>
    tpu.vector_store %arg18[%c0_132, %c0_133], %343 {strides = array<i32>} : memref<64x384xf32, #tpu.memory_space<vmem>>, vector<64x384xf32>,
    %345 = tpu.iota {dimensions = array<i32: 1>} : vector<8x384xi32>
    %c128_i32_134 = arith.constant 128 : i32
    %c0_i32_135 = arith.constant 0 : i32
    %346 = arith.cmpi eq, %c128_i32_134, %c0_i32_135 : i32
    %c1_i32_136 = arith.constant 1 : i32
    %347 = arith.select %346, %c1_i32_136, %c128_i32_134 : i32
    %348 = vector.broadcast %347 : i32 to vector<8x384xi32>
    %349 = arith.remsi %345, %348 : vector<8x384xi32>
    %c0_i32_137 = arith.constant 0 : i32
    %350 = vector.broadcast %c0_i32_137 : i32 to vector<8x384xi32>
    %351 = arith.cmpi ne, %349, %350 : vector<8x384xi32>
    %c0_i32_138 = arith.constant 0 : i32
    %352 = vector.broadcast %c0_i32_138 : i32 to vector<8x384xi32>
    %353 = arith.cmpi slt, %349, %352 : vector<8x384xi32>
    %c0_i32_139 = arith.constant 0 : i32
    %354 = arith.cmpi slt, %347, %c0_i32_139 : i32
    %355 = vector.broadcast %354 : i1 to vector<8x384xi1>
    %356 = vector.broadcast %355 : vector<8x384xi1> to vector<8x384xi1>
    %357 = arith.xori %353, %356 : vector<8x384xi1>
    %358 = arith.andi %357, %351 : vector<8x384xi1>
    %359 = vector.broadcast %347 : i32 to vector<8x384xi32>
    %360 = arith.addi %349, %359 : vector<8x384xi32>
    %361 = arith.select %358, %360, %349 : vector<8x384xi1>, vector<8x384xi32>
    %c64_i32 = arith.constant 64 : i32
    %362 = vector.broadcast %c64_i32 : i32 to vector<8x384xi32>
    %363 = arith.cmpi slt, %361, %362 : vector<8x384xi32>
    %c0_140 = arith.constant 0 : index
    %c0_141 = arith.constant 0 : index
    %364 = vector.load %arg18[%c0_140, %c0_141] : memref<64x384xf32, #tpu.memory_space<vmem>>, vector<8x384xf32>
    %c56_142 = arith.constant 56 : index
    %c0_143 = arith.constant 0 : index
    %365 = vector.load %arg18[%c56_142, %c0_143] : memref<64x384xf32, #tpu.memory_space<vmem>>, vector<8x384xf32>
    %366 = arith.select %363, %364, %365 : vector<8x384xi1>, vector<8x384xf32>
    %c0_144 = arith.constant 0 : index
    %c0_145 = arith.constant 0 : index
    %367 = vector.load %arg18[%c0_144, %c0_145] : memref<64x384xf32, #tpu.memory_space<vmem>>, vector<8x384xf32>
    tpu.vector_store %arg18[%c0_144, %c0_145], %366 {strides = array<i32>} : memref<64x384xf32, #tpu.memory_space<vmem>>, vector<8x384xf32>,
    %368 = arith.select %363, %365, %364 : vector<8x384xi1>, vector<8x384xf32>
    %c56_146 = arith.constant 56 : index
    %c0_147 = arith.constant 0 : index
    %369 = vector.load %arg18[%c56_146, %c0_147] : memref<64x384xf32, #tpu.memory_space<vmem>>, vector<8x384xf32>
    tpu.vector_store %arg18[%c56_146, %c0_147], %368 {strides = array<i32>} : memref<64x384xf32, #tpu.memory_space<vmem>>, vector<8x384xf32>,
    %c8_148 = arith.constant 8 : index
    %c0_149 = arith.constant 0 : index
    %370 = vector.load %arg18[%c8_148, %c0_149] : memref<64x384xf32, #tpu.memory_space<vmem>>, vector<8x384xf32>
    %c48_150 = arith.constant 48 : index
    %c0_151 = arith.constant 0 : index
    %371 = vector.load %arg18[%c48_150, %c0_151] : memref<64x384xf32, #tpu.memory_space<vmem>>, vector<8x384xf32>
    %372 = arith.select %363, %370, %371 : vector<8x384xi1>, vector<8x384xf32>
    %c8_152 = arith.constant 8 : index
    %c0_153 = arith.constant 0 : index
    %373 = vector.load %arg18[%c8_152, %c0_153] : memref<64x384xf32, #tpu.memory_space<vmem>>, vector<8x384xf32>
    tpu.vector_store %arg18[%c8_152, %c0_153], %372 {strides = array<i32>} : memref<64x384xf32, #tpu.memory_space<vmem>>, vector<8x384xf32>,
    %374 = arith.select %363, %371, %370 : vector<8x384xi1>, vector<8x384xf32>
    %c48_154 = arith.constant 48 : index
    %c0_155 = arith.constant 0 : index
    %375 = vector.load %arg18[%c48_154, %c0_155] : memref<64x384xf32, #tpu.memory_space<vmem>>, vector<8x384xf32>
    tpu.vector_store %arg18[%c48_154, %c0_155], %374 {strides = array<i32>} : memref<64x384xf32, #tpu.memory_space<vmem>>, vector<8x384xf32>,
    %c16_156 = arith.constant 16 : index
    %c0_157 = arith.constant 0 : index
    %376 = vector.load %arg18[%c16_156, %c0_157] : memref<64x384xf32, #tpu.memory_space<vmem>>, vector<8x384xf32>
    %c40_158 = arith.constant 40 : index
    %c0_159 = arith.constant 0 : index
    %377 = vector.load %arg18[%c40_158, %c0_159] : memref<64x384xf32, #tpu.memory_space<vmem>>, vector<8x384xf32>
    %378 = arith.select %363, %376, %377 : vector<8x384xi1>, vector<8x384xf32>
    %c16_160 = arith.constant 16 : index
    %c0_161 = arith.constant 0 : index
    %379 = vector.load %arg18[%c16_160, %c0_161] : memref<64x384xf32, #tpu.memory_space<vmem>>, vector<8x384xf32>
    tpu.vector_store %arg18[%c16_160, %c0_161], %378 {strides = array<i32>} : memref<64x384xf32, #tpu.memory_space<vmem>>, vector<8x384xf32>,
    %380 = arith.select %363, %377, %376 : vector<8x384xi1>, vector<8x384xf32>
    %c40_162 = arith.constant 40 : index
    %c0_163 = arith.constant 0 : index
    %381 = vector.load %arg18[%c40_162, %c0_163] : memref<64x384xf32, #tpu.memory_space<vmem>>, vector<8x384xf32>
    tpu.vector_store %arg18[%c40_162, %c0_163], %380 {strides = array<i32>} : memref<64x384xf32, #tpu.memory_space<vmem>>, vector<8x384xf32>,
    %c24_164 = arith.constant 24 : index
    %c0_165 = arith.constant 0 : index
    %382 = vector.load %arg18[%c24_164, %c0_165] : memref<64x384xf32, #tpu.memory_space<vmem>>, vector<8x384xf32>
    %c32_166 = arith.constant 32 : index
    %c0_167 = arith.constant 0 : index
    %383 = vector.load %arg18[%c32_166, %c0_167] : memref<64x384xf32, #tpu.memory_space<vmem>>, vector<8x384xf32>
    %384 = arith.select %363, %382, %383 : vector<8x384xi1>, vector<8x384xf32>
    %c24_168 = arith.constant 24 : index
    %c0_169 = arith.constant 0 : index
    %385 = vector.load %arg18[%c24_168, %c0_169] : memref<64x384xf32, #tpu.memory_space<vmem>>, vector<8x384xf32>
    tpu.vector_store %arg18[%c24_168, %c0_169], %384 {strides = array<i32>} : memref<64x384xf32, #tpu.memory_space<vmem>>, vector<8x384xf32>,
    %386 = arith.select %363, %383, %382 : vector<8x384xi1>, vector<8x384xf32>
    %c32_170 = arith.constant 32 : index
    %c0_171 = arith.constant 0 : index
    %387 = vector.load %arg18[%c32_170, %c0_171] : memref<64x384xf32, #tpu.memory_space<vmem>>, vector<8x384xf32>
    tpu.vector_store %arg18[%c32_170, %c0_171], %386 {strides = array<i32>} : memref<64x384xf32, #tpu.memory_space<vmem>>, vector<8x384xf32>,
    %c0_172 = arith.constant 0 : index
    %c0_173 = arith.constant 0 : index
    %388 = vector.load %arg11[%c0_172, %c0_173] : memref<1x128xf32, #tpu.memory_space<vmem>>, vector<1x128xf32>
    %389 = vector.shape_cast %388 : vector<1x128xf32> to vector<1x128xf32>
    %390 = vector.broadcast %389 : vector<1x128xf32> to vector<8x128xf32>
    %c0_174 = arith.constant 0 : index
    %c0_175 = arith.constant 0 : index
    %391 = vector.load %arg10[%c0_174, %c0_175] : memref<128x384xbf16, #tpu.memory_space<vmem>>, vector<128x384xbf16>
    %cst_176 = arith.constant 0.000000e+00 : f32
    %392 = vector.broadcast %cst_176 : f32 to vector<8x128xf32>
    %c0_177 = arith.constant 0 : index
    %c0_178 = arith.constant 0 : index
    %393 = vector.load %arg18[%c0_177, %c0_178] : memref<64x384xf32, #tpu.memory_space<vmem>>, vector<8x384xf32>
    %394 = arith.truncf %392 : vector<8x128xf32> to vector<8x128xbf16>
    %cst_179 = arith.constant dense<0.000000e+00> : vector<8x384xf32>
    %395 = tpu.matmul %394, %391, %cst_179 {dimension_numbers = #tpu.dot_dimension_numbers<[1], [0], [0], [1], [0, 0, 1, 1], [], []>} : vector<8x128xbf16>, vector<128x384xbf16>, vector<8x384xf32> -> vector<8x384xf32>
    %396 = vector.extract_strided_slice %393 {offsets = [0, 0], sizes = [8, 128], strides = [1, 1]} : vector<8x384xf32> to vector<8x128xf32>
    %397 = vector.extract_strided_slice %395 {offsets = [0, 0], sizes = [8, 128], strides = [1, 1]} : vector<8x384xf32> to vector<8x128xf32>
    %398 = arith.addf %396, %397 : vector<8x128xf32>
    %399 = arith.negf %398 : vector<8x128xf32>
    %400 = math.exp %399 : vector<8x128xf32>
    %cst_180 = arith.constant 1.000000e+00 : f32
    %401 = vector.broadcast %cst_180 : f32 to vector<8x128xf32>
    %402 = arith.addf %401, %400 : vector<8x128xf32>
    %403 = arith.divf %401, %402 : vector<8x128xf32>
    %404 = vector.extract_strided_slice %393 {offsets = [0, 128], sizes = [8, 128], strides = [1, 1]} : vector<8x384xf32> to vector<8x128xf32>
    %405 = vector.extract_strided_slice %395 {offsets = [0, 128], sizes = [8, 128], strides = [1, 1]} : vector<8x384xf32> to vector<8x128xf32>
    %406 = arith.addf %404, %405 : vector<8x128xf32>
    %407 = arith.negf %406 : vector<8x128xf32>
    %408 = math.exp %407 : vector<8x128xf32>
    %cst_181 = arith.constant 1.000000e+00 : f32
    %409 = vector.broadcast %cst_181 : f32 to vector<8x128xf32>
    %410 = arith.addf %409, %408 : vector<8x128xf32>
    %411 = arith.divf %409, %410 : vector<8x128xf32>
    %412 = vector.extract_strided_slice %393 {offsets = [0, 256], sizes = [8, 128], strides = [1, 1]} : vector<8x384xf32> to vector<8x128xf32>
    %413 = vector.extract_strided_slice %395 {offsets = [0, 256], sizes = [8, 128], strides = [1, 1]} : vector<8x384xf32> to vector<8x128xf32>
    %414 = arith.addf %413, %390 : vector<8x128xf32>
    %415 = arith.mulf %403, %414 : vector<8x128xf32>
    %416 = arith.addf %412, %415 : vector<8x128xf32>
    %417 = math.tanh %416 : vector<8x128xf32>
    %cst_182 = arith.constant 1.000000e+00 : f32
    %418 = vector.broadcast %cst_182 : f32 to vector<8x128xf32>
    %419 = arith.subf %418, %411 : vector<8x128xf32>
    %420 = arith.mulf %419, %417 : vector<8x128xf32>
    %421 = arith.mulf %411, %392 : vector<8x128xf32>
    %422 = arith.addf %420, %421 : vector<8x128xf32>
    %c0_183 = arith.constant 0 : index
    %c0_184 = arith.constant 0 : index
    %423 = vector.load %arg19[%c0_183, %c0_184] : memref<64x128xf32, #tpu.memory_space<vmem>>, vector<8x128xf32>
    tpu.vector_store %arg19[%c0_183, %c0_184], %422 {strides = array<i32>} : memref<64x128xf32, #tpu.memory_space<vmem>>, vector<8x128xf32>,
    %c56_185 = arith.constant 56 : index
    %c0_186 = arith.constant 0 : index
    %424 = vector.load %arg20[%c56_185, %c0_186] : memref<64x128xf32, #tpu.memory_space<vmem>>, vector<8x128xf32>
    tpu.vector_store %arg20[%c56_185, %c0_186], %422 {strides = array<i32>} : memref<64x128xf32, #tpu.memory_space<vmem>>, vector<8x128xf32>,
    %c8_187 = arith.constant 8 : index
    %c0_188 = arith.constant 0 : index
    %425 = vector.load %arg18[%c8_187, %c0_188] : memref<64x384xf32, #tpu.memory_space<vmem>>, vector<8x384xf32>
    %426 = arith.truncf %422 : vector<8x128xf32> to vector<8x128xbf16>
    %cst_189 = arith.constant dense<0.000000e+00> : vector<8x384xf32>
    %427 = tpu.matmul %426, %391, %cst_189 {dimension_numbers = #tpu.dot_dimension_numbers<[1], [0], [0], [1], [0, 0, 1, 1], [], []>} : vector<8x128xbf16>, vector<128x384xbf16>, vector<8x384xf32> -> vector<8x384xf32>
    %428 = vector.extract_strided_slice %425 {offsets = [0, 0], sizes = [8, 128], strides = [1, 1]} : vector<8x384xf32> to vector<8x128xf32>
    %429 = vector.extract_strided_slice %427 {offsets = [0, 0], sizes = [8, 128], strides = [1, 1]} : vector<8x384xf32> to vector<8x128xf32>
    %430 = arith.addf %428, %429 : vector<8x128xf32>
    %431 = arith.negf %430 : vector<8x128xf32>
    %432 = math.exp %431 : vector<8x128xf32>
    %cst_190 = arith.constant 1.000000e+00 : f32
    %433 = vector.broadcast %cst_190 : f32 to vector<8x128xf32>
    %434 = arith.addf %433, %432 : vector<8x128xf32>
    %435 = arith.divf %433, %434 : vector<8x128xf32>
    %436 = vector.extract_strided_slice %425 {offsets = [0, 128], sizes = [8, 128], strides = [1, 1]} : vector<8x384xf32> to vector<8x128xf32>
    %437 = vector.extract_strided_slice %427 {offsets = [0, 128], sizes = [8, 128], strides = [1, 1]} : vector<8x384xf32> to vector<8x128xf32>
    %438 = arith.addf %436, %437 : vector<8x128xf32>
    %439 = arith.negf %438 : vector<8x128xf32>
    %440 = math.exp %439 : vector<8x128xf32>
    %cst_191 = arith.constant 1.000000e+00 : f32
    %441 = vector.broadcast %cst_191 : f32 to vector<8x128xf32>
    %442 = arith.addf %441, %440 : vector<8x128xf32>
    %443 = arith.divf %441, %442 : vector<8x128xf32>
    %444 = vector.extract_strided_slice %425 {offsets = [0, 256], sizes = [8, 128], strides = [1, 1]} : vector<8x384xf32> to vector<8x128xf32>
    %445 = vector.extract_strided_slice %427 {offsets = [0, 256], sizes = [8, 128], strides = [1, 1]} : vector<8x384xf32> to vector<8x128xf32>
    %446 = arith.addf %445, %390 : vector<8x128xf32>
    %447 = arith.mulf %435, %446 : vector<8x128xf32>
    %448 = arith.addf %444, %447 : vector<8x128xf32>
    %449 = math.tanh %448 : vector<8x128xf32>
    %cst_192 = arith.constant 1.000000e+00 : f32
    %450 = vector.broadcast %cst_192 : f32 to vector<8x128xf32>
    %451 = arith.subf %450, %443 : vector<8x128xf32>
    %452 = arith.mulf %451, %449 : vector<8x128xf32>
    %453 = arith.mulf %443, %422 : vector<8x128xf32>
    %454 = arith.addf %452, %453 : vector<8x128xf32>
    %c8_193 = arith.constant 8 : index
    %c0_194 = arith.constant 0 : index
    %455 = vector.load %arg19[%c8_193, %c0_194] : memref<64x128xf32, #tpu.memory_space<vmem>>, vector<8x128xf32>
    tpu.vector_store %arg19[%c8_193, %c0_194], %454 {strides = array<i32>} : memref<64x128xf32, #tpu.memory_space<vmem>>, vector<8x128xf32>,
    %c48_195 = arith.constant 48 : index
    %c0_196 = arith.constant 0 : index
    %456 = vector.load %arg20[%c48_195, %c0_196] : memref<64x128xf32, #tpu.memory_space<vmem>>, vector<8x128xf32>
    tpu.vector_store %arg20[%c48_195, %c0_196], %454 {strides = array<i32>} : memref<64x128xf32, #tpu.memory_space<vmem>>, vector<8x128xf32>,
    %c16_197 = arith.constant 16 : index
    %c0_198 = arith.constant 0 : index
    %457 = vector.load %arg18[%c16_197, %c0_198] : memref<64x384xf32, #tpu.memory_space<vmem>>, vector<8x384xf32>
    %458 = arith.truncf %454 : vector<8x128xf32> to vector<8x128xbf16>
    %cst_199 = arith.constant dense<0.000000e+00> : vector<8x384xf32>
    %459 = tpu.matmul %458, %391, %cst_199 {dimension_numbers = #tpu.dot_dimension_numbers<[1], [0], [0], [1], [0, 0, 1, 1], [], []>} : vector<8x128xbf16>, vector<128x384xbf16>, vector<8x384xf32> -> vector<8x384xf32>
    %460 = vector.extract_strided_slice %457 {offsets = [0, 0], sizes = [8, 128], strides = [1, 1]} : vector<8x384xf32> to vector<8x128xf32>
    %461 = vector.extract_strided_slice %459 {offsets = [0, 0], sizes = [8, 128], strides = [1, 1]} : vector<8x384xf32> to vector<8x128xf32>
    %462 = arith.addf %460, %461 : vector<8x128xf32>
    %463 = arith.negf %462 : vector<8x128xf32>
    %464 = math.exp %463 : vector<8x128xf32>
    %cst_200 = arith.constant 1.000000e+00 : f32
    %465 = vector.broadcast %cst_200 : f32 to vector<8x128xf32>
    %466 = arith.addf %465, %464 : vector<8x128xf32>
    %467 = arith.divf %465, %466 : vector<8x128xf32>
    %468 = vector.extract_strided_slice %457 {offsets = [0, 128], sizes = [8, 128], strides = [1, 1]} : vector<8x384xf32> to vector<8x128xf32>
    %469 = vector.extract_strided_slice %459 {offsets = [0, 128], sizes = [8, 128], strides = [1, 1]} : vector<8x384xf32> to vector<8x128xf32>
    %470 = arith.addf %468, %469 : vector<8x128xf32>
    %471 = arith.negf %470 : vector<8x128xf32>
    %472 = math.exp %471 : vector<8x128xf32>
    %cst_201 = arith.constant 1.000000e+00 : f32
    %473 = vector.broadcast %cst_201 : f32 to vector<8x128xf32>
    %474 = arith.addf %473, %472 : vector<8x128xf32>
    %475 = arith.divf %473, %474 : vector<8x128xf32>
    %476 = vector.extract_strided_slice %457 {offsets = [0, 256], sizes = [8, 128], strides = [1, 1]} : vector<8x384xf32> to vector<8x128xf32>
    %477 = vector.extract_strided_slice %459 {offsets = [0, 256], sizes = [8, 128], strides = [1, 1]} : vector<8x384xf32> to vector<8x128xf32>
    %478 = arith.addf %477, %390 : vector<8x128xf32>
    %479 = arith.mulf %467, %478 : vector<8x128xf32>
    %480 = arith.addf %476, %479 : vector<8x128xf32>
    %481 = math.tanh %480 : vector<8x128xf32>
    %cst_202 = arith.constant 1.000000e+00 : f32
    %482 = vector.broadcast %cst_202 : f32 to vector<8x128xf32>
    %483 = arith.subf %482, %475 : vector<8x128xf32>
    %484 = arith.mulf %483, %481 : vector<8x128xf32>
    %485 = arith.mulf %475, %454 : vector<8x128xf32>
    %486 = arith.addf %484, %485 : vector<8x128xf32>
    %c16_203 = arith.constant 16 : index
    %c0_204 = arith.constant 0 : index
    %487 = vector.load %arg19[%c16_203, %c0_204] : memref<64x128xf32, #tpu.memory_space<vmem>>, vector<8x128xf32>
    tpu.vector_store %arg19[%c16_203, %c0_204], %486 {strides = array<i32>} : memref<64x128xf32, #tpu.memory_space<vmem>>, vector<8x128xf32>,
    %c40_205 = arith.constant 40 : index
    %c0_206 = arith.constant 0 : index
    %488 = vector.load %arg20[%c40_205, %c0_206] : memref<64x128xf32, #tpu.memory_space<vmem>>, vector<8x128xf32>
    tpu.vector_store %arg20[%c40_205, %c0_206], %486 {strides = array<i32>} : memref<64x128xf32, #tpu.memory_space<vmem>>, vector<8x128xf32>,
    %c24_207 = arith.constant 24 : index
    %c0_208 = arith.constant 0 : index
    %489 = vector.load %arg18[%c24_207, %c0_208] : memref<64x384xf32, #tpu.memory_space<vmem>>, vector<8x384xf32>
    %490 = arith.truncf %486 : vector<8x128xf32> to vector<8x128xbf16>
    %cst_209 = arith.constant dense<0.000000e+00> : vector<8x384xf32>
    %491 = tpu.matmul %490, %391, %cst_209 {dimension_numbers = #tpu.dot_dimension_numbers<[1], [0], [0], [1], [0, 0, 1, 1], [], []>} : vector<8x128xbf16>, vector<128x384xbf16>, vector<8x384xf32> -> vector<8x384xf32>
    %492 = vector.extract_strided_slice %489 {offsets = [0, 0], sizes = [8, 128], strides = [1, 1]} : vector<8x384xf32> to vector<8x128xf32>
    %493 = vector.extract_strided_slice %491 {offsets = [0, 0], sizes = [8, 128], strides = [1, 1]} : vector<8x384xf32> to vector<8x128xf32>
    %494 = arith.addf %492, %493 : vector<8x128xf32>
    %495 = arith.negf %494 : vector<8x128xf32>
    %496 = math.exp %495 : vector<8x128xf32>
    %cst_210 = arith.constant 1.000000e+00 : f32
    %497 = vector.broadcast %cst_210 : f32 to vector<8x128xf32>
    %498 = arith.addf %497, %496 : vector<8x128xf32>
    %499 = arith.divf %497, %498 : vector<8x128xf32>
    %500 = vector.extract_strided_slice %489 {offsets = [0, 128], sizes = [8, 128], strides = [1, 1]} : vector<8x384xf32> to vector<8x128xf32>
    %501 = vector.extract_strided_slice %491 {offsets = [0, 128], sizes = [8, 128], strides = [1, 1]} : vector<8x384xf32> to vector<8x128xf32>
    %502 = arith.addf %500, %501 : vector<8x128xf32>
    %503 = arith.negf %502 : vector<8x128xf32>
    %504 = math.exp %503 : vector<8x128xf32>
    %cst_211 = arith.constant 1.000000e+00 : f32
    %505 = vector.broadcast %cst_211 : f32 to vector<8x128xf32>
    %506 = arith.addf %505, %504 : vector<8x128xf32>
    %507 = arith.divf %505, %506 : vector<8x128xf32>
    %508 = vector.extract_strided_slice %489 {offsets = [0, 256], sizes = [8, 128], strides = [1, 1]} : vector<8x384xf32> to vector<8x128xf32>
    %509 = vector.extract_strided_slice %491 {offsets = [0, 256], sizes = [8, 128], strides = [1, 1]} : vector<8x384xf32> to vector<8x128xf32>
    %510 = arith.addf %509, %390 : vector<8x128xf32>
    %511 = arith.mulf %499, %510 : vector<8x128xf32>
    %512 = arith.addf %508, %511 : vector<8x128xf32>
    %513 = math.tanh %512 : vector<8x128xf32>
    %cst_212 = arith.constant 1.000000e+00 : f32
    %514 = vector.broadcast %cst_212 : f32 to vector<8x128xf32>
    %515 = arith.subf %514, %507 : vector<8x128xf32>
    %516 = arith.mulf %515, %513 : vector<8x128xf32>
    %517 = arith.mulf %507, %486 : vector<8x128xf32>
    %518 = arith.addf %516, %517 : vector<8x128xf32>
    %c24_213 = arith.constant 24 : index
    %c0_214 = arith.constant 0 : index
    %519 = vector.load %arg19[%c24_213, %c0_214] : memref<64x128xf32, #tpu.memory_space<vmem>>, vector<8x128xf32>
    tpu.vector_store %arg19[%c24_213, %c0_214], %518 {strides = array<i32>} : memref<64x128xf32, #tpu.memory_space<vmem>>, vector<8x128xf32>,
    %c32_215 = arith.constant 32 : index
    %c0_216 = arith.constant 0 : index
    %520 = vector.load %arg20[%c32_215, %c0_216] : memref<64x128xf32, #tpu.memory_space<vmem>>, vector<8x128xf32>
    tpu.vector_store %arg20[%c32_215, %c0_216], %518 {strides = array<i32>} : memref<64x128xf32, #tpu.memory_space<vmem>>, vector<8x128xf32>,
    %c32_217 = arith.constant 32 : index
    %c0_218 = arith.constant 0 : index
    %521 = vector.load %arg18[%c32_217, %c0_218] : memref<64x384xf32, #tpu.memory_space<vmem>>, vector<8x384xf32>
    %522 = arith.truncf %518 : vector<8x128xf32> to vector<8x128xbf16>
    %cst_219 = arith.constant dense<0.000000e+00> : vector<8x384xf32>
    %523 = tpu.matmul %522, %391, %cst_219 {dimension_numbers = #tpu.dot_dimension_numbers<[1], [0], [0], [1], [0, 0, 1, 1], [], []>} : vector<8x128xbf16>, vector<128x384xbf16>, vector<8x384xf32> -> vector<8x384xf32>
    %524 = vector.extract_strided_slice %521 {offsets = [0, 0], sizes = [8, 128], strides = [1, 1]} : vector<8x384xf32> to vector<8x128xf32>
    %525 = vector.extract_strided_slice %523 {offsets = [0, 0], sizes = [8, 128], strides = [1, 1]} : vector<8x384xf32> to vector<8x128xf32>
    %526 = arith.addf %524, %525 : vector<8x128xf32>
    %527 = arith.negf %526 : vector<8x128xf32>
    %528 = math.exp %527 : vector<8x128xf32>
    %cst_220 = arith.constant 1.000000e+00 : f32
    %529 = vector.broadcast %cst_220 : f32 to vector<8x128xf32>
    %530 = arith.addf %529, %528 : vector<8x128xf32>
    %531 = arith.divf %529, %530 : vector<8x128xf32>
    %532 = vector.extract_strided_slice %521 {offsets = [0, 128], sizes = [8, 128], strides = [1, 1]} : vector<8x384xf32> to vector<8x128xf32>
    %533 = vector.extract_strided_slice %523 {offsets = [0, 128], sizes = [8, 128], strides = [1, 1]} : vector<8x384xf32> to vector<8x128xf32>
    %534 = arith.addf %532, %533 : vector<8x128xf32>
    %535 = arith.negf %534 : vector<8x128xf32>
    %536 = math.exp %535 : vector<8x128xf32>
    %cst_221 = arith.constant 1.000000e+00 : f32
    %537 = vector.broadcast %cst_221 : f32 to vector<8x128xf32>
    %538 = arith.addf %537, %536 : vector<8x128xf32>
    %539 = arith.divf %537, %538 : vector<8x128xf32>
    %540 = vector.extract_strided_slice %521 {offsets = [0, 256], sizes = [8, 128], strides = [1, 1]} : vector<8x384xf32> to vector<8x128xf32>
    %541 = vector.extract_strided_slice %523 {offsets = [0, 256], sizes = [8, 128], strides = [1, 1]} : vector<8x384xf32> to vector<8x128xf32>
    %542 = arith.addf %541, %390 : vector<8x128xf32>
    %543 = arith.mulf %531, %542 : vector<8x128xf32>
    %544 = arith.addf %540, %543 : vector<8x128xf32>
    %545 = math.tanh %544 : vector<8x128xf32>
    %cst_222 = arith.constant 1.000000e+00 : f32
    %546 = vector.broadcast %cst_222 : f32 to vector<8x128xf32>
    %547 = arith.subf %546, %539 : vector<8x128xf32>
    %548 = arith.mulf %547, %545 : vector<8x128xf32>
    %549 = arith.mulf %539, %518 : vector<8x128xf32>
    %550 = arith.addf %548, %549 : vector<8x128xf32>
    %c32_223 = arith.constant 32 : index
    %c0_224 = arith.constant 0 : index
    %551 = vector.load %arg19[%c32_223, %c0_224] : memref<64x128xf32, #tpu.memory_space<vmem>>, vector<8x128xf32>
    tpu.vector_store %arg19[%c32_223, %c0_224], %550 {strides = array<i32>} : memref<64x128xf32, #tpu.memory_space<vmem>>, vector<8x128xf32>,
    %c24_225 = arith.constant 24 : index
    %c0_226 = arith.constant 0 : index
    %552 = vector.load %arg20[%c24_225, %c0_226] : memref<64x128xf32, #tpu.memory_space<vmem>>, vector<8x128xf32>
    tpu.vector_store %arg20[%c24_225, %c0_226], %550 {strides = array<i32>} : memref<64x128xf32, #tpu.memory_space<vmem>>, vector<8x128xf32>,
    %c40_227 = arith.constant 40 : index
    %c0_228 = arith.constant 0 : index
    %553 = vector.load %arg18[%c40_227, %c0_228] : memref<64x384xf32, #tpu.memory_space<vmem>>, vector<8x384xf32>
    %554 = arith.truncf %550 : vector<8x128xf32> to vector<8x128xbf16>
    %cst_229 = arith.constant dense<0.000000e+00> : vector<8x384xf32>
    %555 = tpu.matmul %554, %391, %cst_229 {dimension_numbers = #tpu.dot_dimension_numbers<[1], [0], [0], [1], [0, 0, 1, 1], [], []>} : vector<8x128xbf16>, vector<128x384xbf16>, vector<8x384xf32> -> vector<8x384xf32>
    %556 = vector.extract_strided_slice %553 {offsets = [0, 0], sizes = [8, 128], strides = [1, 1]} : vector<8x384xf32> to vector<8x128xf32>
    %557 = vector.extract_strided_slice %555 {offsets = [0, 0], sizes = [8, 128], strides = [1, 1]} : vector<8x384xf32> to vector<8x128xf32>
    %558 = arith.addf %556, %557 : vector<8x128xf32>
    %559 = arith.negf %558 : vector<8x128xf32>
    %560 = math.exp %559 : vector<8x128xf32>
    %cst_230 = arith.constant 1.000000e+00 : f32
    %561 = vector.broadcast %cst_230 : f32 to vector<8x128xf32>
    %562 = arith.addf %561, %560 : vector<8x128xf32>
    %563 = arith.divf %561, %562 : vector<8x128xf32>
    %564 = vector.extract_strided_slice %553 {offsets = [0, 128], sizes = [8, 128], strides = [1, 1]} : vector<8x384xf32> to vector<8x128xf32>
    %565 = vector.extract_strided_slice %555 {offsets = [0, 128], sizes = [8, 128], strides = [1, 1]} : vector<8x384xf32> to vector<8x128xf32>
    %566 = arith.addf %564, %565 : vector<8x128xf32>
    %567 = arith.negf %566 : vector<8x128xf32>
    %568 = math.exp %567 : vector<8x128xf32>
    %cst_231 = arith.constant 1.000000e+00 : f32
    %569 = vector.broadcast %cst_231 : f32 to vector<8x128xf32>
    %570 = arith.addf %569, %568 : vector<8x128xf32>
    %571 = arith.divf %569, %570 : vector<8x128xf32>
    %572 = vector.extract_strided_slice %553 {offsets = [0, 256], sizes = [8, 128], strides = [1, 1]} : vector<8x384xf32> to vector<8x128xf32>
    %573 = vector.extract_strided_slice %555 {offsets = [0, 256], sizes = [8, 128], strides = [1, 1]} : vector<8x384xf32> to vector<8x128xf32>
    %574 = arith.addf %573, %390 : vector<8x128xf32>
    %575 = arith.mulf %563, %574 : vector<8x128xf32>
    %576 = arith.addf %572, %575 : vector<8x128xf32>
    %577 = math.tanh %576 : vector<8x128xf32>
    %cst_232 = arith.constant 1.000000e+00 : f32
    %578 = vector.broadcast %cst_232 : f32 to vector<8x128xf32>
    %579 = arith.subf %578, %571 : vector<8x128xf32>
    %580 = arith.mulf %579, %577 : vector<8x128xf32>
    %581 = arith.mulf %571, %550 : vector<8x128xf32>
    %582 = arith.addf %580, %581 : vector<8x128xf32>
    %c40_233 = arith.constant 40 : index
    %c0_234 = arith.constant 0 : index
    %583 = vector.load %arg19[%c40_233, %c0_234] : memref<64x128xf32, #tpu.memory_space<vmem>>, vector<8x128xf32>
    tpu.vector_store %arg19[%c40_233, %c0_234], %582 {strides = array<i32>} : memref<64x128xf32, #tpu.memory_space<vmem>>, vector<8x128xf32>,
    %c16_235 = arith.constant 16 : index
    %c0_236 = arith.constant 0 : index
    %584 = vector.load %arg20[%c16_235, %c0_236] : memref<64x128xf32, #tpu.memory_space<vmem>>, vector<8x128xf32>
    tpu.vector_store %arg20[%c16_235, %c0_236], %582 {strides = array<i32>} : memref<64x128xf32, #tpu.memory_space<vmem>>, vector<8x128xf32>,
    %c48_237 = arith.constant 48 : index
    %c0_238 = arith.constant 0 : index
    %585 = vector.load %arg18[%c48_237, %c0_238] : memref<64x384xf32, #tpu.memory_space<vmem>>, vector<8x384xf32>
    %586 = arith.truncf %582 : vector<8x128xf32> to vector<8x128xbf16>
    %cst_239 = arith.constant dense<0.000000e+00> : vector<8x384xf32>
    %587 = tpu.matmul %586, %391, %cst_239 {dimension_numbers = #tpu.dot_dimension_numbers<[1], [0], [0], [1], [0, 0, 1, 1], [], []>} : vector<8x128xbf16>, vector<128x384xbf16>, vector<8x384xf32> -> vector<8x384xf32>
    %588 = vector.extract_strided_slice %585 {offsets = [0, 0], sizes = [8, 128], strides = [1, 1]} : vector<8x384xf32> to vector<8x128xf32>
    %589 = vector.extract_strided_slice %587 {offsets = [0, 0], sizes = [8, 128], strides = [1, 1]} : vector<8x384xf32> to vector<8x128xf32>
    %590 = arith.addf %588, %589 : vector<8x128xf32>
    %591 = arith.negf %590 : vector<8x128xf32>
    %592 = math.exp %591 : vector<8x128xf32>
    %cst_240 = arith.constant 1.000000e+00 : f32
    %593 = vector.broadcast %cst_240 : f32 to vector<8x128xf32>
    %594 = arith.addf %593, %592 : vector<8x128xf32>
    %595 = arith.divf %593, %594 : vector<8x128xf32>
    %596 = vector.extract_strided_slice %585 {offsets = [0, 128], sizes = [8, 128], strides = [1, 1]} : vector<8x384xf32> to vector<8x128xf32>
    %597 = vector.extract_strided_slice %587 {offsets = [0, 128], sizes = [8, 128], strides = [1, 1]} : vector<8x384xf32> to vector<8x128xf32>
    %598 = arith.addf %596, %597 : vector<8x128xf32>
    %599 = arith.negf %598 : vector<8x128xf32>
    %600 = math.exp %599 : vector<8x128xf32>
    %cst_241 = arith.constant 1.000000e+00 : f32
    %601 = vector.broadcast %cst_241 : f32 to vector<8x128xf32>
    %602 = arith.addf %601, %600 : vector<8x128xf32>
    %603 = arith.divf %601, %602 : vector<8x128xf32>
    %604 = vector.extract_strided_slice %585 {offsets = [0, 256], sizes = [8, 128], strides = [1, 1]} : vector<8x384xf32> to vector<8x128xf32>
    %605 = vector.extract_strided_slice %587 {offsets = [0, 256], sizes = [8, 128], strides = [1, 1]} : vector<8x384xf32> to vector<8x128xf32>
    %606 = arith.addf %605, %390 : vector<8x128xf32>
    %607 = arith.mulf %595, %606 : vector<8x128xf32>
    %608 = arith.addf %604, %607 : vector<8x128xf32>
    %609 = math.tanh %608 : vector<8x128xf32>
    %cst_242 = arith.constant 1.000000e+00 : f32
    %610 = vector.broadcast %cst_242 : f32 to vector<8x128xf32>
    %611 = arith.subf %610, %603 : vector<8x128xf32>
    %612 = arith.mulf %611, %609 : vector<8x128xf32>
    %613 = arith.mulf %603, %582 : vector<8x128xf32>
    %614 = arith.addf %612, %613 : vector<8x128xf32>
    %c48_243 = arith.constant 48 : index
    %c0_244 = arith.constant 0 : index
    %615 = vector.load %arg19[%c48_243, %c0_244] : memref<64x128xf32, #tpu.memory_space<vmem>>, vector<8x128xf32>
    tpu.vector_store %arg19[%c48_243, %c0_244], %614 {strides = array<i32>} : memref<64x128xf32, #tpu.memory_space<vmem>>, vector<8x128xf32>,
    %c8_245 = arith.constant 8 : index
    %c0_246 = arith.constant 0 : index
    %616 = vector.load %arg20[%c8_245, %c0_246] : memref<64x128xf32, #tpu.memory_space<vmem>>, vector<8x128xf32>
    tpu.vector_store %arg20[%c8_245, %c0_246], %614 {strides = array<i32>} : memref<64x128xf32, #tpu.memory_space<vmem>>, vector<8x128xf32>,
    %c56_247 = arith.constant 56 : index
    %c0_248 = arith.constant 0 : index
    %617 = vector.load %arg18[%c56_247, %c0_248] : memref<64x384xf32, #tpu.memory_space<vmem>>, vector<8x384xf32>
    %618 = arith.truncf %614 : vector<8x128xf32> to vector<8x128xbf16>
    %cst_249 = arith.constant dense<0.000000e+00> : vector<8x384xf32>
    %619 = tpu.matmul %618, %391, %cst_249 {dimension_numbers = #tpu.dot_dimension_numbers<[1], [0], [0], [1], [0, 0, 1, 1], [], []>} : vector<8x128xbf16>, vector<128x384xbf16>, vector<8x384xf32> -> vector<8x384xf32>
    %620 = vector.extract_strided_slice %617 {offsets = [0, 0], sizes = [8, 128], strides = [1, 1]} : vector<8x384xf32> to vector<8x128xf32>
    %621 = vector.extract_strided_slice %619 {offsets = [0, 0], sizes = [8, 128], strides = [1, 1]} : vector<8x384xf32> to vector<8x128xf32>
    %622 = arith.addf %620, %621 : vector<8x128xf32>
    %623 = arith.negf %622 : vector<8x128xf32>
    %624 = math.exp %623 : vector<8x128xf32>
    %cst_250 = arith.constant 1.000000e+00 : f32
    %625 = vector.broadcast %cst_250 : f32 to vector<8x128xf32>
    %626 = arith.addf %625, %624 : vector<8x128xf32>
    %627 = arith.divf %625, %626 : vector<8x128xf32>
    %628 = vector.extract_strided_slice %617 {offsets = [0, 128], sizes = [8, 128], strides = [1, 1]} : vector<8x384xf32> to vector<8x128xf32>
    %629 = vector.extract_strided_slice %619 {offsets = [0, 128], sizes = [8, 128], strides = [1, 1]} : vector<8x384xf32> to vector<8x128xf32>
    %630 = arith.addf %628, %629 : vector<8x128xf32>
    %631 = arith.negf %630 : vector<8x128xf32>
    %632 = math.exp %631 : vector<8x128xf32>
    %cst_251 = arith.constant 1.000000e+00 : f32
    %633 = vector.broadcast %cst_251 : f32 to vector<8x128xf32>
    %634 = arith.addf %633, %632 : vector<8x128xf32>
    %635 = arith.divf %633, %634 : vector<8x128xf32>
    %636 = vector.extract_strided_slice %617 {offsets = [0, 256], sizes = [8, 128], strides = [1, 1]} : vector<8x384xf32> to vector<8x128xf32>
    %637 = vector.extract_strided_slice %619 {offsets = [0, 256], sizes = [8, 128], strides = [1, 1]} : vector<8x384xf32> to vector<8x128xf32>
    %638 = arith.addf %637, %390 : vector<8x128xf32>
    %639 = arith.mulf %627, %638 : vector<8x128xf32>
    %640 = arith.addf %636, %639 : vector<8x128xf32>
    %641 = math.tanh %640 : vector<8x128xf32>
    %cst_252 = arith.constant 1.000000e+00 : f32
    %642 = vector.broadcast %cst_252 : f32 to vector<8x128xf32>
    %643 = arith.subf %642, %635 : vector<8x128xf32>
    %644 = arith.mulf %643, %641 : vector<8x128xf32>
    %645 = arith.mulf %635, %614 : vector<8x128xf32>
    %646 = arith.addf %644, %645 : vector<8x128xf32>
    %c56_253 = arith.constant 56 : index
    %c0_254 = arith.constant 0 : index
    %647 = vector.load %arg19[%c56_253, %c0_254] : memref<64x128xf32, #tpu.memory_space<vmem>>, vector<8x128xf32>
    tpu.vector_store %arg19[%c56_253, %c0_254], %646 {strides = array<i32>} : memref<64x128xf32, #tpu.memory_space<vmem>>, vector<8x128xf32>,
    %c0_255 = arith.constant 0 : index
    %c0_256 = arith.constant 0 : index
    %648 = vector.load %arg20[%c0_255, %c0_256] : memref<64x128xf32, #tpu.memory_space<vmem>>, vector<8x128xf32>
    tpu.vector_store %arg20[%c0_255, %c0_256], %646 {strides = array<i32>} : memref<64x128xf32, #tpu.memory_space<vmem>>, vector<8x128xf32>,
    %c0_257 = arith.constant 0 : index
    %c0_258 = arith.constant 0 : index
    %649 = vector.load %arg19[%c0_257, %c0_258] : memref<64x128xf32, #tpu.memory_space<vmem>>, vector<64x128xf32>
    %650 = arith.truncf %649 : vector<64x128xf32> to vector<64x128xbf16>
    %c0_259 = arith.constant 0 : index
    %c0_260 = arith.constant 0 : index
    %651 = vector.load %arg12[%c0_259, %c0_260] : memref<128x128xbf16, #tpu.memory_space<vmem>>, vector<128x128xbf16>
    %cst_261 = arith.constant dense<0.000000e+00> : vector<64x128xf32>
    %652 = tpu.matmul %650, %651, %cst_261 {dimension_numbers = #tpu.dot_dimension_numbers<[1], [0], [0], [1], [0, 0, 1, 1], [], []>} : vector<64x128xbf16>, vector<128x128xbf16>, vector<64x128xf32> -> vector<64x128xf32>
    %c0_262 = arith.constant 0 : index
    %c0_263 = arith.constant 0 : index
    %653 = vector.load %arg20[%c0_262, %c0_263] : memref<64x128xf32, #tpu.memory_space<vmem>>, vector<64x128xf32>
    %654 = arith.truncf %653 : vector<64x128xf32> to vector<64x128xbf16>
    %c0_264 = arith.constant 0 : index
    %c0_265 = arith.constant 0 : index
    %655 = vector.load %arg13[%c0_264, %c0_265] : memref<128x128xbf16, #tpu.memory_space<vmem>>, vector<128x128xbf16>
    %cst_266 = arith.constant dense<0.000000e+00> : vector<64x128xf32>
    %656 = tpu.matmul %654, %655, %cst_266 {dimension_numbers = #tpu.dot_dimension_numbers<[1], [0], [0], [1], [0, 0, 1, 1], [], []>} : vector<64x128xbf16>, vector<128x128xbf16>, vector<64x128xf32> -> vector<64x128xf32>
    %657 = arith.addf %652, %656 : vector<64x128xf32>
    %c0_267 = arith.constant 0 : index
    %c0_268 = arith.constant 0 : index
    %658 = vector.load %arg14[%c0_267, %c0_268] : memref<1x128xf32, #tpu.memory_space<vmem>>, vector<1x128xf32>
    %659 = vector.broadcast %658 : vector<1x128xf32> to vector<64x128xf32>
    %660 = arith.addf %657, %659 : vector<64x128xf32>
    %c0_269 = arith.constant 0 : index
    %c0_270 = arith.constant 0 : index
    %661 = vector.load %arg15[%c0_269, %c0_270] : memref<64x128xf32, #tpu.memory_space<vmem>>, vector<64x128xf32>
    tpu.vector_store %arg15[%c0_269, %c0_270], %660 {strides = array<i32>} : memref<64x128xf32, #tpu.memory_space<vmem>>, vector<64x128xf32>,
    return
  }
  func.func @transform_0(%arg0: i32) -> (i32, i32) {
    %c0_i32 = arith.constant 0 : i32
    %c0_i32_0 = arith.constant 0 : i32
    return %arg0, %c0_i32 : i32, i32
  }
  func.func @transform_1(%arg0: i32) -> (i32, i32) {
    %c0_i32 = arith.constant 0 : i32
    %c0_i32_0 = arith.constant 0 : i32
    %c0_i32_1 = arith.constant 0 : i32
    return %c0_i32, %c0_i32_0 : i32, i32
  }
  func.func @transform_2(%arg0: i32) -> (i32, i32) {
    %c0_i32 = arith.constant 0 : i32
    %c0_i32_0 = arith.constant 0 : i32
    %c0_i32_1 = arith.constant 0 : i32
    return %c0_i32, %c0_i32_0 : i32, i32
  }
  func.func @transform_3(%arg0: i32) -> (i32, i32) {
    %c0_i32 = arith.constant 0 : i32
    %c0_i32_0 = arith.constant 0 : i32
    %c0_i32_1 = arith.constant 0 : i32
    return %c0_i32, %c0_i32_0 : i32, i32
  }
  func.func @transform_4(%arg0: i32) -> (i32, i32) {
    %c0_i32 = arith.constant 0 : i32
    %c0_i32_0 = arith.constant 0 : i32
    %c0_i32_1 = arith.constant 0 : i32
    return %c0_i32, %c0_i32_0 : i32, i32
  }
  func.func @transform_5(%arg0: i32) -> (i32, i32) {
    %c0_i32 = arith.constant 0 : i32
    %c0_i32_0 = arith.constant 0 : i32
    %c0_i32_1 = arith.constant 0 : i32
    return %c0_i32, %c0_i32_0 : i32, i32
  }
  func.func @transform_6(%arg0: i32) -> (i32, i32) {
    %c0_i32 = arith.constant 0 : i32
    %c0_i32_0 = arith.constant 0 : i32
    %c0_i32_1 = arith.constant 0 : i32
    return %c0_i32, %c0_i32_0 : i32, i32
  }
  func.func @transform_7(%arg0: i32) -> (i32, i32) {
    %c0_i32 = arith.constant 0 : i32
    %c0_i32_0 = arith.constant 0 : i32
    %c0_i32_1 = arith.constant 0 : i32
    return %c0_i32, %c0_i32_0 : i32, i32
  }
  func.func @transform_8(%arg0: i32) -> (i32, i32) {
    %c0_i32 = arith.constant 0 : i32
    %c0_i32_0 = arith.constant 0 : i32
    %c0_i32_1 = arith.constant 0 : i32
    return %c0_i32, %c0_i32_0 : i32, i32
  }
  func.func @transform_9(%arg0: i32) -> (i32, i32) {
    %c0_i32 = arith.constant 0 : i32
    %c0_i32_0 = arith.constant 0 : i32
    %c0_i32_1 = arith.constant 0 : i32
    return %c0_i32, %c0_i32_0 : i32, i32
  }
  func.func @transform_10(%arg0: i32) -> (i32, i32) {
    %c0_i32 = arith.constant 0 : i32
    %c0_i32_0 = arith.constant 0 : i32
    %c0_i32_1 = arith.constant 0 : i32
    return %c0_i32, %c0_i32_0 : i32, i32
  }
  func.func @transform_11(%arg0: i32) -> (i32, i32) {
    %c0_i32 = arith.constant 0 : i32
    %c0_i32_0 = arith.constant 0 : i32
    %c0_i32_1 = arith.constant 0 : i32
    return %c0_i32, %c0_i32_0 : i32, i32
  }
  func.func @transform_12(%arg0: i32) -> (i32, i32) {
    %c0_i32 = arith.constant 0 : i32
    %c0_i32_0 = arith.constant 0 : i32
    %c0_i32_1 = arith.constant 0 : i32
    return %c0_i32, %c0_i32_0 : i32, i32
  }
  func.func @transform_13(%arg0: i32) -> (i32, i32) {
    %c0_i32 = arith.constant 0 : i32
    %c0_i32_0 = arith.constant 0 : i32
    %c0_i32_1 = arith.constant 0 : i32
    return %c0_i32, %c0_i32_0 : i32, i32
  }
  func.func @transform_14(%arg0: i32) -> (i32, i32) {
    %c0_i32 = arith.constant 0 : i32
    %c0_i32_0 = arith.constant 0 : i32
    return %arg0, %c0_i32 : i32, i32
  }
}

</mosaic_0001>

<llo_original>
// kernel: tpu_custom_call.1
$region0: #{tpu_custom_call.1}
  #allocation0 [shape = 'u32[]', space=smem, size = 0x4, offset = 0x4, fixed_abs, tag = 'smem constant byte address 0x4 - core index']
  #allocation1 [shape = 'u32[144,128]{1,0:T(1,128)}', space=vmem, size = 0x12000, scoped, tag = 'internal scratch']
  #allocation2 [shape = 'f32[64,768]{1,0:T(8,128)}', space=vmem, size = 0x30000, scoped, tag = 'scratch operand']
  #allocation3 [shape = 'f32[64,256]{1,0:T(8,128)}', space=vmem, size = 0x10000, scoped, tag = 'scratch operand']
  #allocation4 [shape = 'f32[64,384]{1,0:T(8,128)}', space=vmem, size = 0x18000, scoped, tag = 'scratch operand']
  #allocation5 [shape = 'f32[64,128]{1,0:T(8,128)}', space=vmem, size = 0x8000, scoped, tag = 'scratch operand']
  #allocation6 [shape = 'f32[64,128]{1,0:T(8,128)}', space=vmem, size = 0x8000, scoped, tag = 'scratch operand']
  %s0 = inlined_call_operand.vmem [shape: f32[64,30], index: 0, kind: input, shape index: {}]
  %s1 = inlined_call_operand.vmem [shape: bf16[30,64], index: 1, kind: input, shape index: {}]
  %s2 = inlined_call_operand.vmem [shape: f32[1,64], index: 2, kind: input, shape index: {}]
  %s3 = inlined_call_operand.hbm [shape: bf16[64,768], index: 3, kind: input, shape index: {}]
  %s4 = inlined_call_operand.vmem [shape: f32[1,768], index: 4, kind: input, shape index: {}]
  %s5 = inlined_call_operand.hbm [shape: bf16[256,768], index: 5, kind: input, shape index: {}]
  %s6 = inlined_call_operand.vmem [shape: f32[1,256], index: 6, kind: input, shape index: {}]
  %s7 = inlined_call_operand.hbm [shape: bf16[256,384], index: 7, kind: input, shape index: {}]
  %s8 = inlined_call_operand.vmem [shape: f32[1,384], index: 8, kind: input, shape index: {}]
  %s9 = inlined_call_operand.hbm [shape: bf16[128,384], index: 9, kind: input, shape index: {}]
  %s10 = inlined_call_operand.vmem [shape: f32[1,128], index: 10, kind: input, shape index: {}]
  %s11 = inlined_call_operand.vmem [shape: bf16[128,128], index: 11, kind: input, shape index: {}]
  %s12 = inlined_call_operand.hbm [shape: bf16[128,128], index: 12, kind: input, shape index: {}]
  %s13 = inlined_call_operand.vmem [shape: f32[1,128], index: 13, kind: input, shape index: {}]
  %s14 = inlined_call_operand.hbm [shape: f32[64,128], index: 14, kind: output, shape index: {}]
  %s15 = sld [smem:[#allocation0]]
  $region86: #{tpu_custom_call.1} parent=0
    _
  %s17 = ssub.s32 1, %s15
  %s18 = scalar_select 0, %s17, %s15
  $region1: #{tpu_custom_call.1} parent=0
    #allocation7 [shape = 'u8[98304]{0}', space=vmem, size = 0x18000, scoped, tag = 'input window, operand 3, single buffered']
    #allocation8 [shape = 's32[1]{0}', space=sflag, size = 0x4, scoped, tag = 'scoped memory for tpu_custom_call.1']
    #allocation9 [shape = 's32[1]{0}', space=sflag, size = 0x4, scoped, tag = 'scoped memory for tpu_custom_call.1']
    #allocation10 [shape = 'u8[393216]{0}', space=vmem, size = 0x60000, scoped, tag = 'input window, operand 5, single buffered']
    #allocation11 [shape = 's32[1]{0}', space=sflag, size = 0x4, scoped, tag = 'scoped memory for tpu_custom_call.1']
    #allocation12 [shape = 'u8[196608]{0}', space=vmem, size = 0x30000, scoped, tag = 'input window, operand 7, single buffered']
    #allocation13 [shape = 'u8[98304]{0}', space=vmem, size = 0x18000, scoped, tag = 'input window, operand 9, single buffered']
    #allocation14 [shape = 's32[1]{0}', space=sflag, size = 0x4, scoped, tag = 'scoped memory for tpu_custom_call.1']
    #allocation15 [shape = 'u8[32768]{0}', space=vmem, size = 0x8000, scoped, tag = 'input window, operand 12, single buffered']
    #allocation16 [shape = 'u8[32768]{0}', space=vmem, size = 0x8000, scoped, tag = 'output window, operand 0, single buffered']
    %19 = vsyncpa [#allocation8], 0
    %20 = vsyncpa [#allocation11], 0
    %21 = vsyncpa [#allocation14], 0
    %22 = vsyncpa [#allocation9], 0
    // Predicated region
    $region2: #{tpu_custom_call.1} parent=1 // pred_check
      _
    $region3: #{tpu_custom_call.1} parent=1 // pred_check_branch
      %24 = sbr.rel (0) target = $region5
    $region4: #{tpu_custom_call.1} parent=1 // pred_region
      _
    $region5: #{tpu_custom_call.1} parent=1 // pred_fallthru
      _
    // Predicated region
    $region6: #{tpu_custom_call.1} parent=1 // pred_check
      _
    $region7: #{tpu_custom_call.1} parent=1 // pred_check_branch
      %26 = sbr.rel (0) target = $region9
    $region8: #{tpu_custom_call.1} parent=1 // pred_region
      _
    $region9: #{tpu_custom_call.1} parent=1 // pred_fallthru
      _
    // Predicated region
    $region10: #{tpu_custom_call.1} parent=1 // pred_check
      _
    $region11: #{tpu_custom_call.1} parent=1 // pred_check_branch
      %28 = sbr.rel (0) target = $region13
    $region12: #{tpu_custom_call.1} parent=1 // pred_region
      _
    $region13: #{tpu_custom_call.1} parent=1 // pred_fallthru
      _
    // Predicated region
    $region14: #{tpu_custom_call.1} parent=1 // pred_check
      _
    $region15: #{tpu_custom_call.1} parent=1 // pred_check_branch
      %30 = sbr.rel (0) target = $region17
    $region16: #{tpu_custom_call.1} parent=1 // pred_region
      %s32 = ssub.s32 3072, 3072
      %33 = vsyncadd [#allocation8], %s32
      %s34 = sshll.u32 [#allocation7], 4
      %s35 = int_to_ptr.vmem [resolvable:$true] %s34
      %40 = dma.hbm_to_vmem [thread:$0]  %s3, 3072, %s35, [#allocation8], 384, 384, 24
    $region17: #{tpu_custom_call.1} parent=1 // pred_fallthru
      _
    // Predicated region
    $region18: #{tpu_custom_call.1} parent=1 // pred_check
      _
    $region19: #{tpu_custom_call.1} parent=1 // pred_check_branch
      %42 = sbr.rel (0) target = $region21
    $region20: #{tpu_custom_call.1} parent=1 // pred_region
      _
    $region21: #{tpu_custom_call.1} parent=1 // pred_fallthru
      _
    // Predicated region
    $region22: #{tpu_custom_call.1} parent=1 // pred_check
      _
    $region23: #{tpu_custom_call.1} parent=1 // pred_check_branch
      %44 = sbr.rel (0) target = $region25
    $region24: #{tpu_custom_call.1} parent=1 // pred_region
      %s46 = ssub.s32 12288, 12288
      %47 = vsyncadd [#allocation11], %s46
      %s48 = sshll.u32 [#allocation10], 4
      %s49 = int_to_ptr.vmem [resolvable:$true] %s48
      %54 = dma.hbm_to_vmem [thread:$0]  %s5, 12288, %s49, [#allocation11], 384, 384, 24
    $region25: #{tpu_custom_call.1} parent=1 // pred_fallthru
      _
    // Predicated region
    $region26: #{tpu_custom_call.1} parent=1 // pred_check
      _
    $region27: #{tpu_custom_call.1} parent=1 // pred_check_branch
      %56 = sbr.rel (0) target = $region29
    $region28: #{tpu_custom_call.1} parent=1 // pred_region
      _
    $region29: #{tpu_custom_call.1} parent=1 // pred_fallthru
      _
    // Predicated region
    $region30: #{tpu_custom_call.1} parent=1 // pred_check
      _
    $region31: #{tpu_custom_call.1} parent=1 // pred_check_branch
      %58 = sbr.rel (0) target = $region33
    $region32: #{tpu_custom_call.1} parent=1 // pred_region
      %s60 = ssub.s32 6144, 6144
      %61 = vsyncadd [#allocation11], %s60
      %s62 = sshll.u32 [#allocation12], 4
      %s63 = int_to_ptr.vmem [resolvable:$true] %s62
      %68 = dma.hbm_to_vmem [thread:$0]  %s7, 6144, %s63, [#allocation11], 192, 192, 12
    $region33: #{tpu_custom_call.1} parent=1 // pred_fallthru
      _
    // Predicated region
    $region34: #{tpu_custom_call.1} parent=1 // pred_check
      _
    $region35: #{tpu_custom_call.1} parent=1 // pred_check_branch
      %70 = sbr.rel (0) target = $region37
    $region36: #{tpu_custom_call.1} parent=1 // pred_region
      _
    $region37: #{tpu_custom_call.1} parent=1 // pred_fallthru
      _
    // Predicated region
    $region38: #{tpu_custom_call.1} parent=1 // pred_check
      _
    $region39: #{tpu_custom_call.1} parent=1 // pred_check_branch
      %72 = sbr.rel (0) target = $region41
    $region40: #{tpu_custom_call.1} parent=1 // pred_region
      %s74 = ssub.s32 3072, 3072
      %75 = vsyncadd [#allocation14], %s74
      %s76 = sshll.u32 [#allocation13], 4
      %s77 = int_to_ptr.vmem [resolvable:$true] %s76
      %82 = dma.hbm_to_vmem [thread:$0]  %s9, 3072, %s77, [#allocation14], 192, 192, 12
    $region41: #{tpu_custom_call.1} parent=1 // pred_fallthru
      _
    // Predicated region
    $region42: #{tpu_custom_call.1} parent=1 // pred_check
      _
    $region43: #{tpu_custom_call.1} parent=1 // pred_check_branch
      %84 = sbr.rel (0) target = $region45
    $region44: #{tpu_custom_call.1} parent=1 // pred_region
      _
    $region45: #{tpu_custom_call.1} parent=1 // pred_fallthru
      _
    // Predicated region
    $region46: #{tpu_custom_call.1} parent=1 // pred_check
      _
    $region47: #{tpu_custom_call.1} parent=1 // pred_check_branch
      %86 = sbr.rel (0) target = $region49
    $region48: #{tpu_custom_call.1} parent=1 // pred_region
      _
    $region49: #{tpu_custom_call.1} parent=1 // pred_fallthru
      _
    // Predicated region
    $region50: #{tpu_custom_call.1} parent=1 // pred_check
      _
    $region51: #{tpu_custom_call.1} parent=1 // pred_check_branch
      %88 = sbr.rel (0) target = $region53
    $region52: #{tpu_custom_call.1} parent=1 // pred_region
      %s90 = ssub.s32 1024, 1024
      %91 = vsyncadd [#allocation14], %s90
      %s92 = sshll.u32 [#allocation15], 4
      %s93 = int_to_ptr.vmem [resolvable:$true] %s92
      %98 = dma.hbm_to_vmem [thread:$0]  %s12, 1024, %s93, [#allocation14], 64, 64, 4
    $region53: #{tpu_custom_call.1} parent=1 // pred_fallthru
      _
    // Predicated region
    $region54: #{tpu_custom_call.1} parent=1 // pred_check
      _
    $region55: #{tpu_custom_call.1} parent=1 // pred_check_branch
      %100 = sbr.rel (0) target = $region57
    $region56: #{tpu_custom_call.1} parent=1 // pred_region
      _
    $region57: #{tpu_custom_call.1} parent=1 // pred_fallthru
      _
    // Predicated region
    $region58: #{tpu_custom_call.1} parent=1 // pred_check
      _
    $region59: #{tpu_custom_call.1} parent=1 // pred_check_branch
      %102 = sbr.rel (0) target = $region61
    $region60: #{tpu_custom_call.1} parent=1 // pred_region
      %103 = dma.done [#allocation8], 3072
    $region61: #{tpu_custom_call.1} parent=1 // pred_fallthru
      _
    // Predicated region
    $region62: #{tpu_custom_call.1} parent=1 // pred_check
      _
    $region63: #{tpu_custom_call.1} parent=1 // pred_check_branch
      %105 = sbr.rel (0) target = $region65
    $region64: #{tpu_custom_call.1} parent=1 // pred_region
      %106 = dma.done [#allocation11], 12288
    $region65: #{tpu_custom_call.1} parent=1 // pred_fallthru
      _
    // Predicated region
    $region66: #{tpu_custom_call.1} parent=1 // pred_check
      _
    $region67: #{tpu_custom_call.1} parent=1 // pred_check_branch
      %108 = sbr.rel (0) target = $region69
    $region68: #{tpu_custom_call.1} parent=1 // pred_region
      %109 = dma.done [#allocation11], 6144
    $region69: #{tpu_custom_call.1} parent=1 // pred_fallthru
      _
    // Predicated region
    $region70: #{tpu_custom_call.1} parent=1 // pred_check
      _
    $region71: #{tpu_custom_call.1} parent=1 // pred_check_branch
      %111 = sbr.rel (0) target = $region73
    $region72: #{tpu_custom_call.1} parent=1 // pred_region
      %112 = dma.done [#allocation14], 3072
    $region73: #{tpu_custom_call.1} parent=1 // pred_fallthru
      _
    // Predicated region
    $region74: #{tpu_custom_call.1} parent=1 // pred_check
      _
    $region75: #{tpu_custom_call.1} parent=1 // pred_check_branch
      %114 = sbr.rel (0) target = $region77
    $region76: #{tpu_custom_call.1} parent=1 // pred_region
      %115 = dma.done [#allocation14], 1024
    $region77: #{tpu_custom_call.1} parent=1 // pred_fallthru
      _
    %v117 = vld [vmem:[%s0] sm:$0xff]
    %v118 = vld [vmem:[%s0 + $0x8] sm:$0xff]
    %v119 = vld [vmem:[%s0 + $0x10] sm:$0xff]
    %v120 = vld [vmem:[%s0 + $0x18] sm:$0xff]
    %v121 = vld [vmem:[%s0 + $0x20] sm:$0xff]
    %v122 = vld [vmem:[%s0 + $0x28] sm:$0xff]
    %v123 = vld [vmem:[%s0 + $0x30] sm:$0xff]
    %v124 = vld [vmem:[%s0 + $0x38] sm:$0xff]
    %v125 = vpack.c.bf16 %v118, %v117
    %v126 = vpack.c.bf16 %v120, %v119
    %v127 = vpack.c.bf16 %v122, %v121
    %v128 = vpack.c.bf16 %v124, %v123
    %v129 = vld [vmem:[%s1] sm:$0xf]
    %v130 = vld [vmem:[%s1 + $0x4] sm:$0xf]
    %v131 = vld [vmem:[%s1 + $0x8] sm:$0xf]
    %v132 = vld [vmem:[%s1 + $0xc] sm:$0x7]
    %v133 = vld [vmem:[%s2] sm:$0x1]
    %v135 = vlaneseq
    %v136 = vshrl.u32 %v135, 7
    %v137 = vsub.s32 0, %v136
    %v138 = vrot.slane %v133, %v137
    %v144 = vunpack.c.l.b16 %v129
    %v145 = vunpack.c.l.b16 %v130
    %v146 = vunpack.c.l.b16 %v131
    %v147 = vunpack.c.l.b16 %v132
    %v148 = vpack.c.b16 %v145, %v144
    %v149 = vpack.c.b16 %v147, %v146
    %vm151 = vcmask 244736
    %v153 = vsel %vm151, %v125, 0
    %v156 = vsel %vm151, %v126, 0
    %v159 = vsel %vm151, %v127, 0
    %v162 = vsel %vm151, %v128, 0
    %vm164 = vcmask 1046528
    %v166 = vsel %vm164, %v149, 0
    %168 = vmatprep.subr.bf16.mxu0 0
    %169 = vmatpush1.bf16.msra.mxu0 0
    %170 = vmatprep.subr.bf16.mxu0 0
    %171 = vmatpush1.bf16.msra.mxu0 0
    %172 = vmatprep.subr.bf16.mxu0 0
    %173 = vmatpush1.bf16.msra.mxu0 0
    %174 = vmatprep.subr.bf16.mxu0 0
    %175 = vmatpush1.bf16.msra.mxu0 0
    %176 = vmatprep.subr.bf16.mxu0 0
    %177 = vmatpush1.bf16.msra.mxu0 0
    %178 = vmatprep.subr.bf16.mxu0 0
    %179 = vmatpush1.bf16.msra.mxu0 0
    %180 = vmatprep.subr.bf16.mxu0 0
    %181 = vmatpush1.bf16.msra.mxu0 %v166
    %182 = vmatprep.subr.bf16.mxu0 0
    %183 = vmatpush1.bf16.msra.mxu0 %v148
    %184 = vmatprep.subr.bf16.mxu0 0
    %185 = vmatpush2.bf16.msra.mxu0 0
    %186 = vmatprep.subr.bf16.mxu0 0
    %187 = vmatpush2.bf16.msra.mxu0 0
    %188 = vmatprep.subr.bf16.mxu0 0
    %189 = vmatpush2.bf16.msra.mxu0 0
    %190 = vmatprep.subr.bf16.mxu0 0
    %191 = vmatpush2.bf16.msra.mxu0 0
    %192 = vmatprep.subr.bf16.mxu0 0
    %193 = vmatpush2.bf16.msra.mxu0 0
    %194 = vmatprep.subr.bf16.mxu0 0
    %195 = vmatpush2.bf16.msra.mxu0 0
    %196 = vmatprep.subr.bf16.mxu0 0
    %197 = vmatpush2.bf16.msra.mxu0 0
    %198 = vmatprep.subr.bf16.mxu0 0
    %199 = vmatpush2.bf16.msra.mxu0 0
    %200 = vmatprep.mubr.bf16.mxu0 0
    %201 = vmatmul.mubr.bf16.gmra.mxu0 %v153
    %v202 = vpop.f32.mrf.mxu0
    %v203 = vadd.f32 %v138, %v202
    %v204 = vpop.f32.mrf.mxu0
    %v205 = vpop.f32.mrf.mxu0
    %v206 = vadd.f32 %v138, %v205
    %v207 = vpop.f32.mrf.mxu0
    %208 = vmatprep.mubr.bf16.mxu0 0
    %209 = vmatmul.mubr.bf16.gmra.mxu0 %v156
    %v210 = vpop.f32.mrf.mxu0
    %v211 = vadd.f32 %v138, %v210
    %v212 = vpop.f32.mrf.mxu0
    %v213 = vpop.f32.mrf.mxu0
    %v214 = vadd.f32 %v138, %v213
    %v215 = vpop.f32.mrf.mxu0
    %216 = vmatprep.mubr.bf16.mxu0 0
    %217 = vmatmul.mubr.bf16.gmra.mxu0 %v159
    %v218 = vpop.f32.mrf.mxu0
    %v219 = vadd.f32 %v138, %v218
    %v220 = vpop.f32.mrf.mxu0
    %v221 = vpop.f32.mrf.mxu0
    %v222 = vadd.f32 %v138, %v221
    %v223 = vpop.f32.mrf.mxu0
    %224 = vmatprep.mubr.bf16.mxu0 0
    %225 = vmatmul.mubr.bf16.gmra.mxu0 %v162
    %v226 = vpop.f32.mrf.mxu0
    %v227 = vadd.f32 %v138, %v226
    %v228 = vpop.f32.mrf.mxu0
    %v229 = vpop.f32.mrf.mxu0
    %v230 = vadd.f32 %v138, %v229
    %v231 = vpop.f32.mrf.mxu0
    %232 = vdwg.mxu0
    %v233 = vmul.f32 %v203, 0.2
    %v234 = vmul.f32 %v206, 0.2
    %v235 = vmul.f32 %v211, 0.2
    %v236 = vmul.f32 %v214, 0.2
    %v237 = vmul.f32 %v219, 0.2
    %v238 = vmul.f32 %v222, 0.2
    %v239 = vmul.f32 %v227, 0.2
    %v240 = vmul.f32 %v230, 0.2
    %v241 = vmax.f32 %v203, %v233
    %v242 = vmax.f32 %v206, %v234
    %v243 = vmax.f32 %v211, %v235
    %v244 = vmax.f32 %v214, %v236
    %v245 = vmax.f32 %v219, %v237
    %v246 = vmax.f32 %v222, %v238
    %v247 = vmax.f32 %v227, %v239
    %v248 = vmax.f32 %v230, %v240
    %v249 = vpack.c.bf16 %v242, %v241
    %v250 = vpack.c.bf16 %v244, %v243
    %v251 = vpack.c.bf16 %v246, %v245
    %v252 = vpack.c.bf16 %v248, %v247
    %v253 = vld [vmem:[#allocation7] sm:$0xff]
    %v254 = vld [vmem:[#allocation7 + $0x8] sm:$0xff]
    %v255 = vld [vmem:[#allocation7 + $0x10] sm:$0xff]
    %v256 = vld [vmem:[#allocation7 + $0x18] sm:$0xff]
    %v257 = vld [vmem:[#allocation7 + $0x20] sm:$0xff]
    %v258 = vld [vmem:[#allocation7 + $0x28] sm:$0xff]
    %v259 = vld [vmem:[#allocation7 + $0x30] sm:$0xff]
    %v260 = vld [vmem:[#allocation7 + $0x38] sm:$0xff]
    %v261 = vld [vmem:[#allocation7 + $0x40] sm:$0xff]
    %v262 = vld [vmem:[#allocation7 + $0x48] sm:$0xff]
    %v263 = vld [vmem:[#allocation7 + $0x50] sm:$0xff]
    %v264 = vld [vmem:[#allocation7 + $0x58] sm:$0xff]
    %v265 = vld [vmem:[#allocation7 + $0x60] sm:$0xff]
    %v266 = vld [vmem:[#allocation7 + $0x68] sm:$0xff]
    %v267 = vld [vmem:[#allocation7 + $0x70] sm:$0xff]
    %v268 = vld [vmem:[#allocation7 + $0x78] sm:$0xff]
    %v269 = vld [vmem:[#allocation7 + $0x80] sm:$0xff]
    %v270 = vld [vmem:[#allocation7 + $0x88] sm:$0xff]
    %v271 = vld [vmem:[#allocation7 + $0x90] sm:$0xff]
    %v272 = vld [vmem:[#allocation7 + $0x98] sm:$0xff]
    %v273 = vld [vmem:[#allocation7 + $0xa0] sm:$0xff]
    %v274 = vld [vmem:[#allocation7 + $0xa8] sm:$0xff]
    %v275 = vld [vmem:[#allocation7 + $0xb0] sm:$0xff]
    %v276 = vld [vmem:[#allocation7 + $0xb8] sm:$0xff]
    %v277 = vld [vmem:[%s4] sm:$0x3f]
    %v279 = vlaneseq
    %v280 = vshrl.u32 %v279, 7
    %v281 = vsub.s32 0, %v280
    %v282 = vrot.slane %v277, %v281
    %v283 = vlaneseq
    %v284 = vshrl.u32 %v283, 7
    %v285 = vsub.s32 1, %v284
    %v286 = vrot.slane %v277, %v285
    %v287 = vlaneseq
    %v288 = vshrl.u32 %v287, 7
    %v289 = vsub.s32 2, %v288
    %v290 = vrot.slane %v277, %v289
    %v291 = vlaneseq
    %v292 = vshrl.u32 %v291, 7
    %v293 = vsub.s32 3, %v292
    %v294 = vrot.slane %v277, %v293
    %v295 = vlaneseq
    %v296 = vshrl.u32 %v295, 7
    %v297 = vsub.s32 4, %v296
    %v298 = vrot.slane %v277, %v297
    %v299 = vlaneseq
    %v300 = vshrl.u32 %v299, 7
    %v301 = vsub.s32 5, %v300
    %v302 = vrot.slane %v277, %v301
    %v333 = vunpack.c.l.b16 %v253
    %v334 = vunpack.c.h.b16 %v253
    %v335 = vunpack.c.l.b16 %v254
    %v336 = vunpack.c.h.b16 %v254
    %v337 = vunpack.c.l.b16 %v255
    %v338 = vunpack.c.h.b16 %v255
    %v339 = vunpack.c.l.b16 %v256
    %v340 = vunpack.c.h.b16 %v256
    %v341 = vunpack.c.l.b16 %v257
    %v342 = vunpack.c.h.b16 %v257
    %v343 = vunpack.c.l.b16 %v258
    %v344 = vunpack.c.h.b16 %v258
    %v345 = vunpack.c.l.b16 %v259
    %v346 = vunpack.c.h.b16 %v259
    %v347 = vunpack.c.l.b16 %v260
    %v348 = vunpack.c.h.b16 %v260
    %v349 = vunpack.c.l.b16 %v261
    %v350 = vunpack.c.h.b16 %v261
    %v351 = vunpack.c.l.b16 %v262
    %v352 = vunpack.c.h.b16 %v262
    %v353 = vunpack.c.l.b16 %v263
    %v354 = vunpack.c.h.b16 %v263
    %v355 = vunpack.c.l.b16 %v264
    %v356 = vunpack.c.h.b16 %v264
    %v357 = vunpack.c.l.b16 %v265
    %v358 = vunpack.c.h.b16 %v265
    %v359 = vunpack.c.l.b16 %v266
    %v360 = vunpack.c.h.b16 %v266
    %v361 = vunpack.c.l.b16 %v267
    %v362 = vunpack.c.h.b16 %v267
    %v363 = vunpack.c.l.b16 %v268
    %v364 = vunpack.c.h.b16 %v268
    %v365 = vunpack.c.l.b16 %v269
    %v366 = vunpack.c.h.b16 %v269
    %v367 = vunpack.c.l.b16 %v270
    %v368 = vunpack.c.h.b16 %v270
    %v369 = vunpack.c.l.b16 %v271
    %v370 = vunpack.c.h.b16 %v271
    %v371 = vunpack.c.l.b16 %v272
    %v372 = vunpack.c.h.b16 %v272
    %v373 = vunpack.c.l.b16 %v273
    %v374 = vunpack.c.h.b16 %v273
    %v375 = vunpack.c.l.b16 %v274
    %v376 = vunpack.c.h.b16 %v274
    %v377 = vunpack.c.l.b16 %v275
    %v378 = vunpack.c.h.b16 %v275
    %v379 = vunpack.c.l.b16 %v276
    %v380 = vunpack.c.h.b16 %v276
    %v381 = vpack.c.b16 %v339, %v333
    %v382 = vpack.c.b16 %v340, %v334
    %v383 = vpack.c.b16 %v341, %v335
    %v384 = vpack.c.b16 %v342, %v336
    %v385 = vpack.c.b16 %v343, %v337
    %v386 = vpack.c.b16 %v344, %v338
    %v387 = vpack.c.b16 %v351, %v345
    %v388 = vpack.c.b16 %v352, %v346
    %v389 = vpack.c.b16 %v353, %v347
    %v390 = vpack.c.b16 %v354, %v348
    %v391 = vpack.c.b16 %v355, %v349
    %v392 = vpack.c.b16 %v356, %v350
    %v393 = vpack.c.b16 %v363, %v357
    %v394 = vpack.c.b16 %v364, %v358
    %v395 = vpack.c.b16 %v365, %v359
    %v396 = vpack.c.b16 %v366, %v360
    %v397 = vpack.c.b16 %v367, %v361
    %v398 = vpack.c.b16 %v368, %v362
    %v399 = vpack.c.b16 %v375, %v369
    %v400 = vpack.c.b16 %v376, %v370
    %v401 = vpack.c.b16 %v377, %v371
    %v402 = vpack.c.b16 %v378, %v372
    %v403 = vpack.c.b16 %v379, %v373
    %v404 = vpack.c.b16 %v380, %v374
    %vm429 = vcmask 523264
    %v431 = vsel %vm429, %v249, 0
    %v434 = vsel %vm429, %v250, 0
    %v437 = vsel %vm429, %v251, 0
    %v440 = vsel %vm429, %v252, 0
    %442 = vmatprep.subr.bf16.mxu0 0
    %443 = vmatpush1.bf16.msra.mxu0 0
    %444 = vmatprep.subr.bf16.mxu0 0
    %445 = vmatpush1.bf16.msra.mxu0 0
    %446 = vmatprep.subr.bf16.mxu0 0
    %447 = vmatpush1.bf16.msra.mxu0 0
    %448 = vmatprep.subr.bf16.mxu0 0
    %449 = vmatpush1.bf16.msra.mxu0 0
    %450 = vmatprep.subr.bf16.mxu0 %v400
    %451 = vmatpush1.bf16.msra.mxu0 %v399
    %452 = vmatprep.subr.bf16.mxu0 %v394
    %453 = vmatpush1.bf16.msra.mxu0 %v393
    %454 = vmatprep.subr.bf16.mxu0 %v388
    %455 = vmatpush1.bf16.msra.mxu0 %v387
    %456 = vmatprep.subr.bf16.mxu0 %v382
    %457 = vmatpush1.bf16.msra.mxu0 %v381
    %458 = vmatprep.subr.bf16.mxu0 0
    %459 = vmatpush2.bf16.msra.mxu0 0
    %460 = vmatprep.subr.bf16.mxu0 0
    %461 = vmatpush2.bf16.msra.mxu0 0
    %462 = vmatprep.subr.bf16.mxu0 0
    %463 = vmatpush2.bf16.msra.mxu0 0
    %464 = vmatprep.subr.bf16.mxu0 0
    %465 = vmatpush2.bf16.msra.mxu0 0
    %466 = vmatprep.subr.bf16.mxu0 0
    %467 = vmatpush2.bf16.msra.mxu0 0
    %468 = vmatprep.subr.bf16.mxu0 0
    %469 = vmatpush2.bf16.msra.mxu0 0
    %470 = vmatprep.subr.bf16.mxu0 0
    %471 = vmatpush2.bf16.msra.mxu0 0
    %472 = vmatprep.subr.bf16.mxu0 0
    %473 = vmatpush2.bf16.msra.mxu0 0
    %474 = vmatprep.mubr.bf16.mxu0 0
    %475 = vmatmul.mubr.bf16.gmra.mxu0 %v431
    %v476 = vpop.f32.mrf.mxu0
    %v477 = vadd.f32 %v282, %v476
    %v478 = vpop.f32.mrf.mxu0
    %v479 = vadd.f32 %v286, %v478
    %v480 = vpop.f32.mrf.mxu0
    %v481 = vadd.f32 %v282, %v480
    %v482 = vpop.f32.mrf.mxu0
    %v483 = vadd.f32 %v286, %v482
    %484 = vmatprep.mubr.bf16.mxu0 0
    %485 = vmatmul.mubr.bf16.gmra.mxu0 %v434
    %v486 = vpop.f32.mrf.mxu0
    %v487 = vadd.f32 %v282, %v486
    %v488 = vpop.f32.mrf.mxu0
    %v489 = vadd.f32 %v286, %v488
    %v490 = vpop.f32.mrf.mxu0
    %v491 = vadd.f32 %v282, %v490
    %v492 = vpop.f32.mrf.mxu0
    %v493 = vadd.f32 %v286, %v492
    %494 = vmatprep.mubr.bf16.mxu0 0
    %495 = vmatmul.mubr.bf16.gmra.mxu0 %v437
    %v496 = vpop.f32.mrf.mxu0
    %v497 = vadd.f32 %v282, %v496
    %v498 = vpop.f32.mrf.mxu0
    %v499 = vadd.f32 %v286, %v498
    %v500 = vpop.f32.mrf.mxu0
    %v501 = vadd.f32 %v282, %v500
    %v502 = vpop.f32.mrf.mxu0
    %v503 = vadd.f32 %v286, %v502
    %504 = vmatprep.mubr.bf16.mxu0 0
    %505 = vmatmul.mubr.bf16.gmra.mxu0 %v440
    %v506 = vpop.f32.mrf.mxu0
    %v507 = vadd.f32 %v282, %v506
    %v508 = vpop.f32.mrf.mxu0
    %v509 = vadd.f32 %v286, %v508
    %v510 = vpop.f32.mrf.mxu0
    %v511 = vadd.f32 %v282, %v510
    %v512 = vpop.f32.mrf.mxu0
    %v513 = vadd.f32 %v286, %v512
    %514 = vdwg.mxu0
    %515 = vmatprep.subr.bf16.mxu0 0
    %516 = vmatpush1.bf16.msra.mxu0 0
    %517 = vmatprep.subr.bf16.mxu0 0
    %518 = vmatpush1.bf16.msra.mxu0 0
    %519 = vmatprep.subr.bf16.mxu0 0
    %520 = vmatpush1.bf16.msra.mxu0 0
    %521 = vmatprep.subr.bf16.mxu0 0
    %522 = vmatpush1.bf16.msra.mxu0 0
    %523 = vmatprep.subr.bf16.mxu0 %v402
    %524 = vmatpush1.bf16.msra.mxu0 %v401
    %525 = vmatprep.subr.bf16.mxu0 %v396
    %526 = vmatpush1.bf16.msra.mxu0 %v395
    %527 = vmatprep.subr.bf16.mxu0 %v390
    %528 = vmatpush1.bf16.msra.mxu0 %v389
    %529 = vmatprep.subr.bf16.mxu0 %v384
    %530 = vmatpush1.bf16.msra.mxu0 %v383
    %531 = vmatprep.subr.bf16.mxu0 0
    %532 = vmatpush2.bf16.msra.mxu0 0
    %533 = vmatprep.subr.bf16.mxu0 0
    %534 = vmatpush2.bf16.msra.mxu0 0
    %535 = vmatprep.subr.bf16.mxu0 0
    %536 = vmatpush2.bf16.msra.mxu0 0
    %537 = vmatprep.subr.bf16.mxu0 0
    %538 = vmatpush2.bf16.msra.mxu0 0
    %539 = vmatprep.subr.bf16.mxu0 0
    %540 = vmatpush2.bf16.msra.mxu0 0
    %541 = vmatprep.subr.bf16.mxu0 0
    %542 = vmatpush2.bf16.msra.mxu0 0
    %543 = vmatprep.subr.bf16.mxu0 0
    %544 = vmatpush2.bf16.msra.mxu0 0
    %545 = vmatprep.subr.bf16.mxu0 0
    %546 = vmatpush2.bf16.msra.mxu0 0
    %547 = vmatprep.mubr.bf16.mxu0 0
    %548 = vmatmul.mubr.bf16.gmra.mxu0 %v431
    %v549 = vpop.f32.mrf.mxu0
    %v550 = vadd.f32 %v290, %v549
    %v551 = vpop.f32.mrf.mxu0
    %v552 = vadd.f32 %v294, %v551
    %v553 = vpop.f32.mrf.mxu0
    %v554 = vadd.f32 %v290, %v553
    %v555 = vpop.f32.mrf.mxu0
    %v556 = vadd.f32 %v294, %v555
    %557 = vmatprep.mubr.bf16.mxu0 0
    %558 = vmatmul.mubr.bf16.gmra.mxu0 %v434
    %v559 = vpop.f32.mrf.mxu0
    %v560 = vadd.f32 %v290, %v559
    %v561 = vpop.f32.mrf.mxu0
    %v562 = vadd.f32 %v294, %v561
    %v563 = vpop.f32.mrf.mxu0
    %v564 = vadd.f32 %v290, %v563
    %v565 = vpop.f32.mrf.mxu0
    %v566 = vadd.f32 %v294, %v565
    %567 = vmatprep.mubr.bf16.mxu0 0
    %568 = vmatmul.mubr.bf16.gmra.mxu0 %v437
    %v569 = vpop.f32.mrf.mxu0
    %v570 = vadd.f32 %v290, %v569
    %v571 = vpop.f32.mrf.mxu0
    %v572 = vadd.f32 %v294, %v571
    %v573 = vpop.f32.mrf.mxu0
    %v574 = vadd.f32 %v290, %v573
    %v575 = vpop.f32.mrf.mxu0
    %v576 = vadd.f32 %v294, %v575
    %577 = vmatprep.mubr.bf16.mxu0 0
    %578 = vmatmul.mubr.bf16.gmra.mxu0 %v440
    %v579 = vpop.f32.mrf.mxu0
    %v580 = vadd.f32 %v290, %v579
    %v581 = vpop.f32.mrf.mxu0
    %v582 = vadd.f32 %v294, %v581
    %v583 = vpop.f32.mrf.mxu0
    %v584 = vadd.f32 %v290, %v583
    %v585 = vpop.f32.mrf.mxu0
    %v586 = vadd.f32 %v294, %v585
    %587 = vdwg.mxu0
    %588 = vmatprep.subr.bf16.mxu0 0
    %589 = vmatpush1.bf16.msra.mxu0 0
    %590 = vmatprep.subr.bf16.mxu0 0
    %591 = vmatpush1.bf16.msra.mxu0 0
    %592 = vmatprep.subr.bf16.mxu0 0
    %593 = vmatpush1.bf16.msra.mxu0 0
    %594 = vmatprep.subr.bf16.mxu0 0
    %595 = vmatpush1.bf16.msra.mxu0 0
    %596 = vmatprep.subr.bf16.mxu0 %v404
    %597 = vmatpush1.bf16.msra.mxu0 %v403
    %598 = vmatprep.subr.bf16.mxu0 %v398
    %599 = vmatpush1.bf16.msra.mxu0 %v397
    %600 = vmatprep.subr.bf16.mxu0 %v392
    %601 = vmatpush1.bf16.msra.mxu0 %v391
    %602 = vmatprep.subr.bf16.mxu0 %v386
    %603 = vmatpush1.bf16.msra.mxu0 %v385
    %604 = vmatprep.subr.bf16.mxu0 0
    %605 = vmatpush2.bf16.msra.mxu0 0
    %606 = vmatprep.subr.bf16.mxu0 0
    %607 = vmatpush2.bf16.msra.mxu0 0
    %608 = vmatprep.subr.bf16.mxu0 0
    %609 = vmatpush2.bf16.msra.mxu0 0
    %610 = vmatprep.subr.bf16.mxu0 0
    %611 = vmatpush2.bf16.msra.mxu0 0
    %612 = vmatprep.subr.bf16.mxu0 0
    %613 = vmatpush2.bf16.msra.mxu0 0
    %614 = vmatprep.subr.bf16.mxu0 0
    %615 = vmatpush2.bf16.msra.mxu0 0
    %616 = vmatprep.subr.bf16.mxu0 0
    %617 = vmatpush2.bf16.msra.mxu0 0
    %618 = vmatprep.subr.bf16.mxu0 0
    %619 = vmatpush2.bf16.msra.mxu0 0
    %620 = vmatprep.mubr.bf16.mxu0 0
    %621 = vmatmul.mubr.bf16.gmra.mxu0 %v431
    %v622 = vpop.f32.mrf.mxu0
    %v623 = vadd.f32 %v298, %v622
    %v624 = vpop.f32.mrf.mxu0
    %v625 = vadd.f32 %v302, %v624
    %v626 = vpop.f32.mrf.mxu0
    %v627 = vadd.f32 %v298, %v626
    %v628 = vpop.f32.mrf.mxu0
    %v629 = vadd.f32 %v302, %v628
    %630 = vmatprep.mubr.bf16.mxu0 0
    %631 = vmatmul.mubr.bf16.gmra.mxu0 %v434
    %v632 = vpop.f32.mrf.mxu0
    %v633 = vadd.f32 %v298, %v632
    %v634 = vpop.f32.mrf.mxu0
    %v635 = vadd.f32 %v302, %v634
    %v636 = vpop.f32.mrf.mxu0
    %v637 = vadd.f32 %v298, %v636
    %v638 = vpop.f32.mrf.mxu0
    %v639 = vadd.f32 %v302, %v638
    %640 = vmatprep.mubr.bf16.mxu0 0
    %641 = vmatmul.mubr.bf16.gmra.mxu0 %v437
    %v642 = vpop.f32.mrf.mxu0
    %v643 = vadd.f32 %v298, %v642
    %v644 = vpop.f32.mrf.mxu0
    %v645 = vadd.f32 %v302, %v644
    %v646 = vpop.f32.mrf.mxu0
    %v647 = vadd.f32 %v298, %v646
    %v648 = vpop.f32.mrf.mxu0
    %v649 = vadd.f32 %v302, %v648
    %650 = vmatprep.mubr.bf16.mxu0 0
    %651 = vmatmul.mubr.bf16.gmra.mxu0 %v440
    %v652 = vpop.f32.mrf.mxu0
    %v653 = vadd.f32 %v298, %v652
    %v654 = vpop.f32.mrf.mxu0
    %v655 = vadd.f32 %v302, %v654
    %v656 = vpop.f32.mrf.mxu0
    %v657 = vadd.f32 %v298, %v656
    %v658 = vpop.f32.mrf.mxu0
    %v659 = vadd.f32 %v302, %v658
    %660 = vdwg.mxu0
    %661 = vst [vmem:[#allocation2] sm:$0xff] %v477
    %662 = vst [vmem:[#allocation2 + $0x8] sm:$0xff] %v479
    %663 = vst [vmem:[#allocation2 + $0x10] sm:$0xff] %v550
    %664 = vst [vmem:[#allocation2 + $0x18] sm:$0xff] %v552
    %665 = vst [vmem:[#allocation2 + $0x20] sm:$0xff] %v623
    %666 = vst [vmem:[#allocation2 + $0x28] sm:$0xff] %v625
    %667 = vst [vmem:[#allocation2 + $0x30] sm:$0xff] %v481
    %668 = vst [vmem:[#allocation2 + $0x38] sm:$0xff] %v483
    %669 = vst [vmem:[#allocation2 + $0x40] sm:$0xff] %v554
    %670 = vst [vmem:[#allocation2 + $0x48] sm:$0xff] %v556
    %671 = vst [vmem:[#allocation2 + $0x50] sm:$0xff] %v627
    %672 = vst [vmem:[#allocation2 + $0x58] sm:$0xff] %v629
    %673 = vst [vmem:[#allocation2 + $0x60] sm:$0xff] %v487
    %674 = vst [vmem:[#allocation2 + $0x68] sm:$0xff] %v489
    %675 = vst [vmem:[#allocation2 + $0x70] sm:$0xff] %v560
    %676 = vst [vmem:[#allocation2 + $0x78] sm:$0xff] %v562
    %677 = vst [vmem:[#allocation2 + $0x80] sm:$0xff] %v633
    %678 = vst [vmem:[#allocation2 + $0x88] sm:$0xff] %v635
    %679 = vst [vmem:[#allocation2 + $0x90] sm:$0xff] %v491
    %680 = vst [vmem:[#allocation2 + $0x98] sm:$0xff] %v493
    %681 = vst [vmem:[#allocation2 + $0xa0] sm:$0xff] %v564
    %682 = vst [vmem:[#allocation2 + $0xa8] sm:$0xff] %v566
    %683 = vst [vmem:[#allocation2 + $0xb0] sm:$0xff] %v637
    %684 = vst [vmem:[#allocation2 + $0xb8] sm:$0xff] %v639
    %685 = vst [vmem:[#allocation2 + $0xc0] sm:$0xff] %v497
    %686 = vst [vmem:[#allocation2 + $0xc8] sm:$0xff] %v499
    %687 = vst [vmem:[#allocation2 + $0xd0] sm:$0xff] %v570
    %688 = vst [vmem:[#allocation2 + $0xd8] sm:$0xff] %v572
    %689 = vst [vmem:[#allocation2 + $0xe0] sm:$0xff] %v643
    %690 = vst [vmem:[#allocation2 + $0xe8] sm:$0xff] %v645
    %691 = vst [vmem:[#allocation2 + $0xf0] sm:$0xff] %v501
    %692 = vst [vmem:[#allocation2 + $0xf8] sm:$0xff] %v503
    %693 = vst [vmem:[#allocation2 + $0x100] sm:$0xff] %v574
    %694 = vst [vmem:[#allocation2 + $0x108] sm:$0xff] %v576
    %695 = vst [vmem:[#allocation2 + $0x110] sm:$0xff] %v647
    %696 = vst [vmem:[#allocation2 + $0x118] sm:$0xff] %v649
    %697 = vst [vmem:[#allocation2 + $0x120] sm:$0xff] %v507
    %698 = vst [vmem:[#allocation2 + $0x128] sm:$0xff] %v509
    %699 = vst [vmem:[#allocation2 + $0x130] sm:$0xff] %v580
    %700 = vst [vmem:[#allocation2 + $0x138] sm:$0xff] %v582
    %701 = vst [vmem:[#allocation2 + $0x140] sm:$0xff] %v653
    %702 = vst [vmem:[#allocation2 + $0x148] sm:$0xff] %v655
    %703 = vst [vmem:[#allocation2 + $0x150] sm:$0xff] %v511
    %704 = vst [vmem:[#allocation2 + $0x158] sm:$0xff] %v513
    %705 = vst [vmem:[#allocation2 + $0x160] sm:$0xff] %v584
    %706 = vst [vmem:[#allocation2 + $0x168] sm:$0xff] %v586
    %707 = vst [vmem:[#allocation2 + $0x170] sm:$0xff] %v657
    %708 = vst [vmem:[#allocation2 + $0x178] sm:$0xff] %v659
    %v709 = vlaneseq
    %v710 = vand.u32 %v709, 127
    %v711 = vadd.s32 %v710, 128
    %v712 = vadd.s32 %v710, 256
    %v713 = vadd.s32 %v710, 384
    %v714 = vadd.s32 %v710, 512
    %v715 = vadd.s32 %v710, 640
    %vm716 = vcmp.lt.s32.totalorder %v710, 0
    %v717 = vsub.s32 0, %v710
    %v718 = vsel %vm716, %v717, %v710
    %v719 = vshrl.u32 %v718, 8
    %v720 = vand.u32 %v718, 255
    %v721 = vsub.s32 0, %v720
    %v722 = vsel %vm716, %v721, %v720
    %vm723 = vcmp.lt.s32.totalorder %v711, 0
    %v724 = vsub.s32 0, %v711
    %v725 = vsel %vm723, %v724, %v711
    %v726 = vshrl.u32 %v725, 8
    %v727 = vand.u32 %v725, 255
    %v728 = vsub.s32 0, %v727
    %v729 = vsel %vm723, %v728, %v727
    %vm730 = vcmp.lt.s32.totalorder %v712, 0
    %v731 = vsub.s32 0, %v712
    %v732 = vsel %vm730, %v731, %v712
    %v733 = vshrl.u32 %v732, 8
    %v734 = vand.u32 %v732, 255
    %v735 = vsub.s32 0, %v734
    %v736 = vsel %vm730, %v735, %v734
    %vm737 = vcmp.lt.s32.totalorder %v713, 0
    %v738 = vsub.s32 0, %v713
    %v739 = vsel %vm737, %v738, %v713
    %v740 = vshrl.u32 %v739, 8
    %v741 = vand.u32 %v739, 255
    %v742 = vsub.s32 0, %v741
    %v743 = vsel %vm737, %v742, %v741
    %vm744 = vcmp.lt.s32.totalorder %v714, 0
    %v745 = vsub.s32 0, %v714
    %v746 = vsel %vm744, %v745, %v714
    %v747 = vshrl.u32 %v746, 8
    %v748 = vand.u32 %v746, 255
    %v749 = vsub.s32 0, %v748
    %v750 = vsel %vm744, %v749, %v748
    %vm751 = vcmp.lt.s32.totalorder %v715, 0
    %v752 = vsub.s32 0, %v715
    %v753 = vsel %vm751, %v752, %v715
    %v754 = vshrl.u32 %v753, 8
    %v755 = vand.u32 %v753, 255
    %v756 = vsub.s32 0, %v755
    %v757 = vsel %vm751, %v756, %v755
    %vm758 = vcmp.ne.s32.totalorder %v722, 0
    %vm759 = vcmp.ne.s32.totalorder %v729, 0
    %vm760 = vcmp.ne.s32.totalorder %v736, 0
    %vm761 = vcmp.ne.s32.totalorder %v743, 0
    %vm762 = vcmp.ne.s32.totalorder %v750, 0
    %vm763 = vcmp.ne.s32.totalorder %v757, 0
    %vm764 = vcmp.lt.s32.totalorder %v722, 0
    %vm765 = vcmp.lt.s32.totalorder %v729, 0
    %vm766 = vcmp.lt.s32.totalorder %v736, 0
    %vm767 = vcmp.lt.s32.totalorder %v743, 0
    %vm768 = vcmp.lt.s32.totalorder %v750, 0
    %vm769 = vcmp.lt.s32.totalorder %v757, 0
    %vm770 = vmand %vm764, %vm758
    %vm771 = vmand %vm765, %vm759
    %vm772 = vmand %vm766, %vm760
    %vm773 = vmand %vm767, %vm761
    %vm774 = vmand %vm768, %vm762
    %vm775 = vmand %vm769, %vm763
    %v776 = vadd.s32 %v722, 256
    %v777 = vadd.s32 %v729, 256
    %v778 = vadd.s32 %v736, 256
    %v779 = vadd.s32 %v743, 256
    %v780 = vadd.s32 %v750, 256
    %v781 = vadd.s32 %v757, 256
    %v782 = vsel %vm770, %v776, %v722
    %v783 = vsel %vm771, %v777, %v729
    %v784 = vsel %vm772, %v778, %v736
    %v785 = vsel %vm773, %v779, %v743
    %v786 = vsel %vm774, %v780, %v750
    %v787 = vsel %vm775, %v781, %v757
    %vm788 = vcmp.lt.s32.totalorder %v782, 128
    %vm789 = vcmp.lt.s32.totalorder %v783, 128
    %vm790 = vcmp.lt.s32.totalorder %v784, 128
    %vm791 = vcmp.lt.s32.totalorder %v785, 128
    %vm792 = vcmp.lt.s32.totalorder %v786, 128
    %vm793 = vcmp.lt.s32.totalorder %v787, 128
    %v794 = vld [vmem:[#allocation2] sm:$0xff]
    %v795 = vld [vmem:[#allocation2 + $0x8] sm:$0xff]
    %v796 = vld [vmem:[#allocation2 + $0x10] sm:$0xff]
    %v797 = vld [vmem:[#allocation2 + $0x18] sm:$0xff]
    %v798 = vld [vmem:[#allocation2 + $0x20] sm:$0xff]
    %v799 = vld [vmem:[#allocation2 + $0x28] sm:$0xff]
    %v800 = vld [vmem:[#allocation2 + $0x150] sm:$0xff]
    %v801 = vld [vmem:[#allocation2 + $0x158] sm:$0xff]
    %v802 = vld [vmem:[#allocation2 + $0x160] sm:$0xff]
    %v803 = vld [vmem:[#allocation2 + $0x168] sm:$0xff]
    %v804 = vld [vmem:[#allocation2 + $0x170] sm:$0xff]
    %v805 = vld [vmem:[#allocation2 + $0x178] sm:$0xff]
    %v806 = vsel %vm788, %v794, %v800
    %v807 = vsel %vm789, %v795, %v801
    %v808 = vsel %vm790, %v796, %v802
    %v809 = vsel %vm791, %v797, %v803
    %v810 = vsel %vm792, %v798, %v804
    %v811 = vsel %vm793, %v799, %v805
    %812 = vst [vmem:[#allocation2] sm:$0xff] %v806
    %813 = vst [vmem:[#allocation2 + $0x8] sm:$0xff] %v807
    %814 = vst [vmem:[#allocation2 + $0x10] sm:$0xff] %v808
    %815 = vst [vmem:[#allocation2 + $0x18] sm:$0xff] %v809
    %816 = vst [vmem:[#allocation2 + $0x20] sm:$0xff] %v810
    %817 = vst [vmem:[#allocation2 + $0x28] sm:$0xff] %v811
    %v818 = vsel %vm788, %v800, %v794
    %v819 = vsel %vm789, %v801, %v795
    %v820 = vsel %vm790, %v802, %v796
    %v821 = vsel %vm791, %v803, %v797
    %v822 = vsel %vm792, %v804, %v798
    %v823 = vsel %vm793, %v805, %v799
    %824 = vst [vmem:[#allocation2 + $0x150] sm:$0xff] %v818
    %825 = vst [vmem:[#allocation2 + $0x158] sm:$0xff] %v819
    %826 = vst [vmem:[#allocation2 + $0x160] sm:$0xff] %v820
    %827 = vst [vmem:[#allocation2 + $0x168] sm:$0xff] %v821
    %828 = vst [vmem:[#allocation2 + $0x170] sm:$0xff] %v822
    %829 = vst [vmem:[#allocation2 + $0x178] sm:$0xff] %v823
    %v830 = vld [vmem:[#allocation2 + $0x30] sm:$0xff]
    %v831 = vld [vmem:[#allocation2 + $0x38] sm:$0xff]
    %v832 = vld [vmem:[#allocation2 + $0x40] sm:$0xff]
    %v833 = vld [vmem:[#allocation2 + $0x48] sm:$0xff]
    %v834 = vld [vmem:[#allocation2 + $0x50] sm:$0xff]
    %v835 = vld [vmem:[#allocation2 + $0x58] sm:$0xff]
    %v836 = vld [vmem:[#allocation2 + $0x120] sm:$0xff]
    %v837 = vld [vmem:[#allocation2 + $0x128] sm:$0xff]
    %v838 = vld [vmem:[#allocation2 + $0x130] sm:$0xff]
    %v839 = vld [vmem:[#allocation2 + $0x138] sm:$0xff]
    %v840 = vld [vmem:[#allocation2 + $0x140] sm:$0xff]
    %v841 = vld [vmem:[#allocation2 + $0x148] sm:$0xff]
    %v842 = vsel %vm788, %v830, %v836
    %v843 = vsel %vm789, %v831, %v837
    %v844 = vsel %vm790, %v832, %v838
    %v845 = vsel %vm791, %v833, %v839
    %v846 = vsel %vm792, %v834, %v840
    %v847 = vsel %vm793, %v835, %v841
    %848 = vst [vmem:[#allocation2 + $0x30] sm:$0xff] %v842
    %849 = vst [vmem:[#allocation2 + $0x38] sm:$0xff] %v843
    %850 = vst [vmem:[#allocation2 + $0x40] sm:$0xff] %v844
    %851 = vst [vmem:[#allocation2 + $0x48] sm:$0xff] %v845
    %852 = vst [vmem:[#allocation2 + $0x50] sm:$0xff] %v846
    %853 = vst [vmem:[#allocation2 + $0x58] sm:$0xff] %v847
    %v854 = vsel %vm788, %v836, %v830
    %v855 = vsel %vm789, %v837, %v831
    %v856 = vsel %vm790, %v838, %v832
    %v857 = vsel %vm791, %v839, %v833
    %v858 = vsel %vm792, %v840, %v834
    %v859 = vsel %vm793, %v841, %v835
    %860 = vst [vmem:[#allocation2 + $0x120] sm:$0xff] %v854
    %861 = vst [vmem:[#allocation2 + $0x128] sm:$0xff] %v855
    %862 = vst [vmem:[#allocation2 + $0x130] sm:$0xff] %v856
    %863 = vst [vmem:[#allocation2 + $0x138] sm:$0xff] %v857
    %864 = vst [vmem:[#allocation2 + $0x140] sm:$0xff] %v858
    %865 = vst [vmem:[#allocation2 + $0x148] sm:$0xff] %v859
    %v866 = vld [vmem:[#allocation2 + $0x60] sm:$0xff]
    %v867 = vld [vmem:[#allocation2 + $0x68] sm:$0xff]
    %v868 = vld [vmem:[#allocation2 + $0x70] sm:$0xff]
    %v869 = vld [vmem:[#allocation2 + $0x78] sm:$0xff]
    %v870 = vld [vmem:[#allocation2 + $0x80] sm:$0xff]
    %v871 = vld [vmem:[#allocation2 + $0x88] sm:$0xff]
    %v872 = vld [vmem:[#allocation2 + $0xf0] sm:$0xff]
    %v873 = vld [vmem:[#allocation2 + $0xf8] sm:$0xff]
    %v874 = vld [vmem:[#allocation2 + $0x100] sm:$0xff]
    %v875 = vld [vmem:[#allocation2 + $0x108] sm:$0xff]
    %v876 = vld [vmem:[#allocation2 + $0x110] sm:$0xff]
    %v877 = vld [vmem:[#allocation2 + $0x118] sm:$0xff]
    %v878 = vsel %vm788, %v866, %v872
    %v879 = vsel %vm789, %v867, %v873
    %v880 = vsel %vm790, %v868, %v874
    %v881 = vsel %vm791, %v869, %v875
    %v882 = vsel %vm792, %v870, %v876
    %v883 = vsel %vm793, %v871, %v877
    %884 = vst [vmem:[#allocation2 + $0x60] sm:$0xff] %v878
    %885 = vst [vmem:[#allocation2 + $0x68] sm:$0xff] %v879
    %886 = vst [vmem:[#allocation2 + $0x70] sm:$0xff] %v880
    %887 = vst [vmem:[#allocation2 + $0x78] sm:$0xff] %v881
    %888 = vst [vmem:[#allocation2 + $0x80] sm:$0xff] %v882
    %889 = vst [vmem:[#allocation2 + $0x88] sm:$0xff] %v883
    %v890 = vsel %vm788, %v872, %v866
    %v891 = vsel %vm789, %v873, %v867
    %v892 = vsel %vm790, %v874, %v868
    %v893 = vsel %vm791, %v875, %v869
    %v894 = vsel %vm792, %v876, %v870
    %v895 = vsel %vm793, %v877, %v871
    %896 = vst [vmem:[#allocation2 + $0xf0] sm:$0xff] %v890
    %897 = vst [vmem:[#allocation2 + $0xf8] sm:$0xff] %v891
    %898 = vst [vmem:[#allocation2 + $0x100] sm:$0xff] %v892
    %899 = vst [vmem:[#allocation2 + $0x108] sm:$0xff] %v893
    %900 = vst [vmem:[#allocation2 + $0x110] sm:$0xff] %v894
    %901 = vst [vmem:[#allocation2 + $0x118] sm:$0xff] %v895
    %v902 = vld [vmem:[#allocation2 + $0x90] sm:$0xff]
    %v903 = vld [vmem:[#allocation2 + $0x98] sm:$0xff]
    %v904 = vld [vmem:[#allocation2 + $0xa0] sm:$0xff]
    %v905 = vld [vmem:[#allocation2 + $0xa8] sm:$0xff]
    %v906 = vld [vmem:[#allocation2 + $0xb0] sm:$0xff]
    %v907 = vld [vmem:[#allocation2 + $0xb8] sm:$0xff]
    %v908 = vld [vmem:[#allocation2 + $0xc0] sm:$0xff]
    %v909 = vld [vmem:[#allocation2 + $0xc8] sm:$0xff]
    %v910 = vld [vmem:[#allocation2 + $0xd0] sm:$0xff]
    %v911 = vld [vmem:[#allocation2 + $0xd8] sm:$0xff]
    %v912 = vld [vmem:[#allocation2 + $0xe0] sm:$0xff]
    %v913 = vld [vmem:[#allocation2 + $0xe8] sm:$0xff]
    %v914 = vsel %vm788, %v902, %v908
    %v915 = vsel %vm789, %v903, %v909
    %v916 = vsel %vm790, %v904, %v910
    %v917 = vsel %vm791, %v905, %v911
    %v918 = vsel %vm792, %v906, %v912
    %v919 = vsel %vm793, %v907, %v913
    %920 = vst [vmem:[#allocation2 + $0x90] sm:$0xff] %v914
    %921 = vst [vmem:[#allocation2 + $0x98] sm:$0xff] %v915
    %922 = vst [vmem:[#allocation2 + $0xa0] sm:$0xff] %v916
    %923 = vst [vmem:[#allocation2 + $0xa8] sm:$0xff] %v917
    %924 = vst [vmem:[#allocation2 + $0xb0] sm:$0xff] %v918
    %925 = vst [vmem:[#allocation2 + $0xb8] sm:$0xff] %v919
    %v926 = vsel %vm788, %v908, %v902
    %v927 = vsel %vm789, %v909, %v903
    %v928 = vsel %vm790, %v910, %v904
    %v929 = vsel %vm791, %v911, %v905
    %v930 = vsel %vm792, %v912, %v906
    %v931 = vsel %vm793, %v913, %v907
    %932 = vst [vmem:[#allocation2 + $0xc0] sm:$0xff] %v926
    %933 = vst [vmem:[#allocation2 + $0xc8] sm:$0xff] %v927
    %934 = vst [vmem:[#allocation2 + $0xd0] sm:$0xff] %v928
    %935 = vst [vmem:[#allocation2 + $0xd8] sm:$0xff] %v929
    %936 = vst [vmem:[#allocation2 + $0xe0] sm:$0xff] %v930
    %937 = vst [vmem:[#allocation2 + $0xe8] sm:$0xff] %v931
    %v938 = vld [vmem:[%s6] sm:$0x3]
    %v940 = vlaneseq
    %v941 = vshrl.u32 %v940, 7
    %v942 = vsub.s32 0, %v941
    %v943 = vrot.slane %v938, %v942
    %v944 = vlaneseq
    %v945 = vshrl.u32 %v944, 7
    %v946 = vsub.s32 1, %v945
    %v947 = vrot.slane %v938, %v946
    %v950 = vld [vmem:[#allocation10] sm:$0xff]
    %v951 = vld [vmem:[#allocation10 + $0x8] sm:$0xff]
    %v952 = vld [vmem:[#allocation10 + $0x10] sm:$0xff]
    %v953 = vld [vmem:[#allocation10 + $0x18] sm:$0xff]
    %v954 = vld [vmem:[#allocation10 + $0x20] sm:$0xff]
    %v955 = vld [vmem:[#allocation10 + $0x28] sm:$0xff]
    %v956 = vld [vmem:[#allocation10 + $0x30] sm:$0xff]
    %v957 = vld [vmem:[#allocation10 + $0x38] sm:$0xff]
    %v958 = vld [vmem:[#allocation10 + $0x40] sm:$0xff]
    %v959 = vld [vmem:[#allocation10 + $0x48] sm:$0xff]
    %v960 = vld [vmem:[#allocation10 + $0x50] sm:$0xff]
    %v961 = vld [vmem:[#allocation10 + $0x58] sm:$0xff]
    %v962 = vld [vmem:[#allocation10 + $0x60] sm:$0xff]
    %v963 = vld [vmem:[#allocation10 + $0x68] sm:$0xff]
    %v964 = vld [vmem:[#allocation10 + $0x70] sm:$0xff]
    %v965 = vld [vmem:[#allocation10 + $0x78] sm:$0xff]
    %v966 = vld [vmem:[#allocation10 + $0x80] sm:$0xff]
    %v967 = vld [vmem:[#allocation10 + $0x88] sm:$0xff]
    %v968 = vld [vmem:[#allocation10 + $0x90] sm:$0xff]
    %v969 = vld [vmem:[#allocation10 + $0x98] sm:$0xff]
    %v970 = vld [vmem:[#allocation10 + $0xa0] sm:$0xff]
    %v971 = vld [vmem:[#allocation10 + $0xa8] sm:$0xff]
    %v972 = vld [vmem:[#allocation10 + $0xb0] sm:$0xff]
    %v973 = vld [vmem:[#allocation10 + $0xb8] sm:$0xff]
    %v974 = vld [vmem:[#allocation10 + $0xc0] sm:$0xff]
    %v975 = vld [vmem:[#allocation10 + $0xc8] sm:$0xff]
    %v976 = vld [vmem:[#allocation10 + $0xd0] sm:$0xff]
    %v977 = vld [vmem:[#allocation10 + $0xd8] sm:$0xff]
    %v978 = vld [vmem:[#allocation10 + $0xe0] sm:$0xff]
    %v979 = vld [vmem:[#allocation10 + $0xe8] sm:$0xff]
    %v980 = vld [vmem:[#allocation10 + $0xf0] sm:$0xff]
    %v981 = vld [vmem:[#allocation10 + $0xf8] sm:$0xff]
    %v982 = vld [vmem:[#allocation10 + $0x100] sm:$0xff]
    %v983 = vld [vmem:[#allocation10 + $0x108] sm:$0xff]
    %v984 = vld [vmem:[#allocation10 + $0x110] sm:$0xff]
    %v985 = vld [vmem:[#allocation10 + $0x118] sm:$0xff]
    %v986 = vld [vmem:[#allocation10 + $0x120] sm:$0xff]
    %v987 = vld [vmem:[#allocation10 + $0x128] sm:$0xff]
    %v988 = vld [vmem:[#allocation10 + $0x130] sm:$0xff]
    %v989 = vld [vmem:[#allocation10 + $0x138] sm:$0xff]
    %v990 = vld [vmem:[#allocation10 + $0x140] sm:$0xff]
    %v991 = vld [vmem:[#allocation10 + $0x148] sm:$0xff]
    %v992 = vld [vmem:[#allocation10 + $0x150] sm:$0xff]
    %v993 = vld [vmem:[#allocation10 + $0x158] sm:$0xff]
    %v994 = vld [vmem:[#allocation10 + $0x160] sm:$0xff]
    %v995 = vld [vmem:[#allocation10 + $0x168] sm:$0xff]
    %v996 = vld [vmem:[#allocation10 + $0x170] sm:$0xff]
    %v997 = vld [vmem:[#allocation10 + $0x178] sm:$0xff]
    %v998 = vld [vmem:[#allocation10 + $0x180] sm:$0xff]
    %v999 = vld [vmem:[#allocation10 + $0x188] sm:$0xff]
    %v1000 = vld [vmem:[#allocation10 + $0x190] sm:$0xff]
    %v1001 = vld [vmem:[#allocation10 + $0x198] sm:$0xff]
    %v1002 = vld [vmem:[#allocation10 + $0x1a0] sm:$0xff]
    %v1003 = vld [vmem:[#allocation10 + $0x1a8] sm:$0xff]
    %v1004 = vld [vmem:[#allocation10 + $0x1b0] sm:$0xff]
    %v1005 = vld [vmem:[#allocation10 + $0x1b8] sm:$0xff]
    %v1006 = vld [vmem:[#allocation10 + $0x1c0] sm:$0xff]
    %v1007 = vld [vmem:[#allocation10 + $0x1c8] sm:$0xff]
    %v1008 = vld [vmem:[#allocation10 + $0x1d0] sm:$0xff]
    %v1009 = vld [vmem:[#allocation10 + $0x1d8] sm:$0xff]
    %v1010 = vld [vmem:[#allocation10 + $0x1e0] sm:$0xff]
    %v1011 = vld [vmem:[#allocation10 + $0x1e8] sm:$0xff]
    %v1012 = vld [vmem:[#allocation10 + $0x1f0] sm:$0xff]
    %v1013 = vld [vmem:[#allocation10 + $0x1f8] sm:$0xff]
    %v1014 = vld [vmem:[#allocation10 + $0x200] sm:$0xff]
    %v1015 = vld [vmem:[#allocation10 + $0x208] sm:$0xff]
    %v1016 = vld [vmem:[#allocation10 + $0x210] sm:$0xff]
    %v1017 = vld [vmem:[#allocation10 + $0x218] sm:$0xff]
    %v1018 = vld [vmem:[#allocation10 + $0x220] sm:$0xff]
    %v1019 = vld [vmem:[#allocation10 + $0x228] sm:$0xff]
    %v1020 = vld [vmem:[#allocation10 + $0x230] sm:$0xff]
    %v1021 = vld [vmem:[#allocation10 + $0x238] sm:$0xff]
    %v1022 = vld [vmem:[#allocation10 + $0x240] sm:$0xff]
    %v1023 = vld [vmem:[#allocation10 + $0x248] sm:$0xff]
    %v1024 = vld [vmem:[#allocation10 + $0x250] sm:$0xff]
    %v1025 = vld [vmem:[#allocation10 + $0x258] sm:$0xff]
    %v1026 = vld [vmem:[#allocation10 + $0x260] sm:$0xff]
    %v1027 = vld [vmem:[#allocation10 + $0x268] sm:$0xff]
    %v1028 = vld [vmem:[#allocation10 + $0x270] sm:$0xff]
    %v1029 = vld [vmem:[#allocation10 + $0x278] sm:$0xff]
    %v1030 = vld [vmem:[#allocation10 + $0x280] sm:$0xff]
    %v1031 = vld [vmem:[#allocation10 + $0x288] sm:$0xff]
    %v1032 = vld [vmem:[#allocation10 + $0x290] sm:$0xff]
    %v1033 = vld [vmem:[#allocation10 + $0x298] sm:$0xff]
    %v1034 = vld [vmem:[#allocation10 + $0x2a0] sm:$0xff]
    %v1035 = vld [vmem:[#allocation10 + $0x2a8] sm:$0xff]
    %v1036 = vld [vmem:[#allocation10 + $0x2b0] sm:$0xff]
    %v1037 = vld [vmem:[#allocation10 + $0x2b8] sm:$0xff]
    %v1038 = vld [vmem:[#allocation10 + $0x2c0] sm:$0xff]
    %v1039 = vld [vmem:[#allocation10 + $0x2c8] sm:$0xff]
    %v1040 = vld [vmem:[#allocation10 + $0x2d0] sm:$0xff]
    %v1041 = vld [vmem:[#allocation10 + $0x2d8] sm:$0xff]
    %v1042 = vld [vmem:[#allocation10 + $0x2e0] sm:$0xff]
    %v1043 = vld [vmem:[#allocation10 + $0x2e8] sm:$0xff]
    %v1044 = vld [vmem:[#allocation10 + $0x2f0] sm:$0xff]
    %v1045 = vld [vmem:[#allocation10 + $0x2f8] sm:$0xff]
    %v1046 = vld [vmem:[#allocation2] sm:$0xff]
    %v1047 = vld [vmem:[#allocation2 + $0x8] sm:$0xff]
    %v1048 = vld [vmem:[#allocation2 + $0x10] sm:$0xff]
    %v1049 = vld [vmem:[#allocation2 + $0x18] sm:$0xff]
    %v1050 = vld [vmem:[#allocation2 + $0x20] sm:$0xff]
    %v1051 = vld [vmem:[#allocation2 + $0x28] sm:$0xff]
    %v1148 = vunpack.c.l.b16 %v950
    %v1149 = vunpack.c.h.b16 %v950
    %v1150 = vunpack.c.l.b16 %v951
    %v1151 = vunpack.c.h.b16 %v951
    %v1152 = vunpack.c.l.b16 %v952
    %v1153 = vunpack.c.h.b16 %v952
    %v1154 = vunpack.c.l.b16 %v953
    %v1155 = vunpack.c.h.b16 %v953
    %v1156 = vunpack.c.l.b16 %v954
    %v1157 = vunpack.c.h.b16 %v954
    %v1158 = vunpack.c.l.b16 %v955
    %v1159 = vunpack.c.h.b16 %v955
    %v1160 = vunpack.c.l.b16 %v956
    %v1161 = vunpack.c.h.b16 %v956
    %v1162 = vunpack.c.l.b16 %v957
    %v1163 = vunpack.c.h.b16 %v957
    %v1164 = vunpack.c.l.b16 %v958
    %v1165 = vunpack.c.h.b16 %v958
    %v1166 = vunpack.c.l.b16 %v959
    %v1167 = vunpack.c.h.b16 %v959
    %v1168 = vunpack.c.l.b16 %v960
    %v1169 = vunpack.c.h.b16 %v960
    %v1170 = vunpack.c.l.b16 %v961
    %v1171 = vunpack.c.h.b16 %v961
    %v1172 = vunpack.c.l.b16 %v962
    %v1173 = vunpack.c.h.b16 %v962
    %v1174 = vunpack.c.l.b16 %v963
    %v1175 = vunpack.c.h.b16 %v963
    %v1176 = vunpack.c.l.b16 %v964
    %v1177 = vunpack.c.h.b16 %v964
    %v1178 = vunpack.c.l.b16 %v965
    %v1179 = vunpack.c.h.b16 %v965
    %v1180 = vunpack.c.l.b16 %v966
    %v1181 = vunpack.c.h.b16 %v966
    %v1182 = vunpack.c.l.b16 %v967
    %v1183 = vunpack.c.h.b16 %v967
    %v1184 = vunpack.c.l.b16 %v968
    %v1185 = vunpack.c.h.b16 %v968
    %v1186 = vunpack.c.l.b16 %v969
    %v1187 = vunpack.c.h.b16 %v969
    %v1188 = vunpack.c.l.b16 %v970
    %v1189 = vunpack.c.h.b16 %v970
    %v1190 = vunpack.c.l.b16 %v971
    %v1191 = vunpack.c.h.b16 %v971
    %v1192 = vunpack.c.l.b16 %v972
    %v1193 = vunpack.c.h.b16 %v972
    %v1194 = vunpack.c.l.b16 %v973
    %v1195 = vunpack.c.h.b16 %v973
    %v1196 = vunpack.c.l.b16 %v974
    %v1197 = vunpack.c.h.b16 %v974
    %v1198 = vunpack.c.l.b16 %v975
    %v1199 = vunpack.c.h.b16 %v975
    %v1200 = vunpack.c.l.b16 %v976
    %v1201 = vunpack.c.h.b16 %v976
    %v1202 = vunpack.c.l.b16 %v977
    %v1203 = vunpack.c.h.b16 %v977
    %v1204 = vunpack.c.l.b16 %v978
    %v1205 = vunpack.c.h.b16 %v978
    %v1206 = vunpack.c.l.b16 %v979
    %v1207 = vunpack.c.h.b16 %v979
    %v1208 = vunpack.c.l.b16 %v980
    %v1209 = vunpack.c.h.b16 %v980
    %v1210 = vunpack.c.l.b16 %v981
    %v1211 = vunpack.c.h.b16 %v981
    %v1212 = vunpack.c.l.b16 %v982
    %v1213 = vunpack.c.h.b16 %v982
    %v1214 = vunpack.c.l.b16 %v983
    %v1215 = vunpack.c.h.b16 %v983
    %v1216 = vunpack.c.l.b16 %v984
    %v1217 = vunpack.c.h.b16 %v984
    %v1218 = vunpack.c.l.b16 %v985
    %v1219 = vunpack.c.h.b16 %v985
    %v1220 = vunpack.c.l.b16 %v986
    %v1221 = vunpack.c.h.b16 %v986
    %v1222 = vunpack.c.l.b16 %v987
    %v1223 = vunpack.c.h.b16 %v987
    %v1224 = vunpack.c.l.b16 %v988
    %v1225 = vunpack.c.h.b16 %v988
    %v1226 = vunpack.c.l.b16 %v989
    %v1227 = vunpack.c.h.b16 %v989
    %v1228 = vunpack.c.l.b16 %v990
    %v1229 = vunpack.c.h.b16 %v990
    %v1230 = vunpack.c.l.b16 %v991
    %v1231 = vunpack.c.h.b16 %v991
    %v1232 = vunpack.c.l.b16 %v992
    %v1233 = vunpack.c.h.b16 %v992
    %v1234 = vunpack.c.l.b16 %v993
    %v1235 = vunpack.c.h.b16 %v993
    %v1236 = vunpack.c.l.b16 %v994
    %v1237 = vunpack.c.h.b16 %v994
    %v1238 = vunpack.c.l.b16 %v995
    %v1239 = vunpack.c.h.b16 %v995
    %v1240 = vunpack.c.l.b16 %v996
    %v1241 = vunpack.c.h.b16 %v996
    %v1242 = vunpack.c.l.b16 %v997
    %v1243 = vunpack.c.h.b16 %v997
    %v1244 = vunpack.c.l.b16 %v998
    %v1245 = vunpack.c.h.b16 %v998
    %v1246 = vunpack.c.l.b16 %v999
    %v1247 = vunpack.c.h.b16 %v999
    %v1248 = vunpack.c.l.b16 %v1000
    %v1249 = vunpack.c.h.b16 %v1000
    %v1250 = vunpack.c.l.b16 %v1001
    %v1251 = vunpack.c.h.b16 %v1001
    %v1252 = vunpack.c.l.b16 %v1002
    %v1253 = vunpack.c.h.b16 %v1002
    %v1254 = vunpack.c.l.b16 %v1003
    %v1255 = vunpack.c.h.b16 %v1003
    %v1256 = vunpack.c.l.b16 %v1004
    %v1257 = vunpack.c.h.b16 %v1004
    %v1258 = vunpack.c.l.b16 %v1005
    %v1259 = vunpack.c.h.b16 %v1005
    %v1260 = vunpack.c.l.b16 %v1006
    %v1261 = vunpack.c.h.b16 %v1006
    %v1262 = vunpack.c.l.b16 %v1007
    %v1263 = vunpack.c.h.b16 %v1007
    %v1264 = vunpack.c.l.b16 %v1008
    %v1265 = vunpack.c.h.b16 %v1008
    %v1266 = vunpack.c.l.b16 %v1009
    %v1267 = vunpack.c.h.b16 %v1009
    %v1268 = vunpack.c.l.b16 %v1010
    %v1269 = vunpack.c.h.b16 %v1010
    %v1270 = vunpack.c.l.b16 %v1011
    %v1271 = vunpack.c.h.b16 %v1011
    %v1272 = vunpack.c.l.b16 %v1012
    %v1273 = vunpack.c.h.b16 %v1012
    %v1274 = vunpack.c.l.b16 %v1013
    %v1275 = vunpack.c.h.b16 %v1013
    %v1276 = vunpack.c.l.b16 %v1014
    %v1277 = vunpack.c.h.b16 %v1014
    %v1278 = vunpack.c.l.b16 %v1015
    %v1279 = vunpack.c.h.b16 %v1015
    %v1280 = vunpack.c.l.b16 %v1016
    %v1281 = vunpack.c.h.b16 %v1016
    %v1282 = vunpack.c.l.b16 %v1017
    %v1283 = vunpack.c.h.b16 %v1017
    %v1284 = vunpack.c.l.b16 %v1018
    %v1285 = vunpack.c.h.b16 %v1018
    %v1286 = vunpack.c.l.b16 %v1019
    %v1287 = vunpack.c.h.b16 %v1019
    %v1288 = vunpack.c.l.b16 %v1020
    %v1289 = vunpack.c.h.b16 %v1020
    %v1290 = vunpack.c.l.b16 %v1021
    %v1291 = vunpack.c.h.b16 %v1021
    %v1292 = vunpack.c.l.b16 %v1022
    %v1293 = vunpack.c.h.b16 %v1022
    %v1294 = vunpack.c.l.b16 %v1023
    %v1295 = vunpack.c.h.b16 %v1023
    %v1296 = vunpack.c.l.b16 %v1024
    %v1297 = vunpack.c.h.b16 %v1024
    %v1298 = vunpack.c.l.b16 %v1025
    %v1299 = vunpack.c.h.b16 %v1025
    %v1300 = vunpack.c.l.b16 %v1026
    %v1301 = vunpack.c.h.b16 %v1026
    %v1302 = vunpack.c.l.b16 %v1027
    %v1303 = vunpack.c.h.b16 %v1027
    %v1304 = vunpack.c.l.b16 %v1028
    %v1305 = vunpack.c.h.b16 %v1028
    %v1306 = vunpack.c.l.b16 %v1029
    %v1307 = vunpack.c.h.b16 %v1029
    %v1308 = vunpack.c.l.b16 %v1030
    %v1309 = vunpack.c.h.b16 %v1030
    %v1310 = vunpack.c.l.b16 %v1031
    %v1311 = vunpack.c.h.b16 %v1031
    %v1312 = vunpack.c.l.b16 %v1032
    %v1313 = vunpack.c.h.b16 %v1032
    %v1314 = vunpack.c.l.b16 %v1033
    %v1315 = vunpack.c.h.b16 %v1033
    %v1316 = vunpack.c.l.b16 %v1034
    %v1317 = vunpack.c.h.b16 %v1034
    %v1318 = vunpack.c.l.b16 %v1035
    %v1319 = vunpack.c.h.b16 %v1035
    %v1320 = vunpack.c.l.b16 %v1036
    %v1321 = vunpack.c.h.b16 %v1036
    %v1322 = vunpack.c.l.b16 %v1037
    %v1323 = vunpack.c.h.b16 %v1037
    %v1324 = vunpack.c.l.b16 %v1038
    %v1325 = vunpack.c.h.b16 %v1038
    %v1326 = vunpack.c.l.b16 %v1039
    %v1327 = vunpack.c.h.b16 %v1039
    %v1328 = vunpack.c.l.b16 %v1040
    %v1329 = vunpack.c.h.b16 %v1040
    %v1330 = vunpack.c.l.b16 %v1041
    %v1331 = vunpack.c.h.b16 %v1041
    %v1332 = vunpack.c.l.b16 %v1042
    %v1333 = vunpack.c.h.b16 %v1042
    %v1334 = vunpack.c.l.b16 %v1043
    %v1335 = vunpack.c.h.b16 %v1043
    %v1336 = vunpack.c.l.b16 %v1044
    %v1337 = vunpack.c.h.b16 %v1044
    %v1338 = vunpack.c.l.b16 %v1045
    %v1339 = vunpack.c.h.b16 %v1045
    %v1340 = vpack.c.b16 %v1154, %v1148
    %v1341 = vpack.c.b16 %v1155, %v1149
    %v1342 = vpack.c.b16 %v1156, %v1150
    %v1343 = vpack.c.b16 %v1157, %v1151
    %v1344 = vpack.c.b16 %v1158, %v1152
    %v1345 = vpack.c.b16 %v1159, %v1153
    %v1346 = vpack.c.b16 %v1166, %v1160
    %v1347 = vpack.c.b16 %v1167, %v1161
    %v1348 = vpack.c.b16 %v1168, %v1162
    %v1349 = vpack.c.b16 %v1169, %v1163
    %v1350 = vpack.c.b16 %v1170, %v1164
    %v1351 = vpack.c.b16 %v1171, %v1165
    %v1352 = vpack.c.b16 %v1178, %v1172
    %v1353 = vpack.c.b16 %v1179, %v1173
    %v1354 = vpack.c.b16 %v1180, %v1174
    %v1355 = vpack.c.b16 %v1181, %v1175
    %v1356 = vpack.c.b16 %v1182, %v1176
    %v1357 = vpack.c.b16 %v1183, %v1177
    %v1358 = vpack.c.b16 %v1190, %v1184
    %v1359 = vpack.c.b16 %v1191, %v1185
    %v1360 = vpack.c.b16 %v1192, %v1186
    %v1361 = vpack.c.b16 %v1193, %v1187
    %v1362 = vpack.c.b16 %v1194, %v1188
    %v1363 = vpack.c.b16 %v1195, %v1189
    %v1364 = vpack.c.b16 %v1202, %v1196
    %v1365 = vpack.c.b16 %v1203, %v1197
    %v1366 = vpack.c.b16 %v1204, %v1198
    %v1367 = vpack.c.b16 %v1205, %v1199
    %v1368 = vpack.c.b16 %v1206, %v1200
    %v1369 = vpack.c.b16 %v1207, %v1201
    %v1370 = vpack.c.b16 %v1214, %v1208
    %v1371 = vpack.c.b16 %v1215, %v1209
    %v1372 = vpack.c.b16 %v1216, %v1210
    %v1373 = vpack.c.b16 %v1217, %v1211
    %v1374 = vpack.c.b16 %v1218, %v1212
    %v1375 = vpack.c.b16 %v1219, %v1213
    %v1376 = vpack.c.b16 %v1226, %v1220
    %v1377 = vpack.c.b16 %v1227, %v1221
    %v1378 = vpack.c.b16 %v1228, %v1222
    %v1379 = vpack.c.b16 %v1229, %v1223
    %v1380 = vpack.c.b16 %v1230, %v1224
    %v1381 = vpack.c.b16 %v1231, %v1225
    %v1382 = vpack.c.b16 %v1238, %v1232
    %v1383 = vpack.c.b16 %v1239, %v1233
    %v1384 = vpack.c.b16 %v1240, %v1234
    %v1385 = vpack.c.b16 %v1241, %v1235
    %v1386 = vpack.c.b16 %v1242, %v1236
    %v1387 = vpack.c.b16 %v1243, %v1237
    %v1388 = vpack.c.b16 %v1250, %v1244
    %v1389 = vpack.c.b16 %v1251, %v1245
    %v1390 = vpack.c.b16 %v1252, %v1246
    %v1391 = vpack.c.b16 %v1253, %v1247
    %v1392 = vpack.c.b16 %v1254, %v1248
    %v1393 = vpack.c.b16 %v1255, %v1249
    %v1394 = vpack.c.b16 %v1262, %v1256
    %v1395 = vpack.c.b16 %v1263, %v1257
    %v1396 = vpack.c.b16 %v1264, %v1258
    %v1397 = vpack.c.b16 %v1265, %v1259
    %v1398 = vpack.c.b16 %v1266, %v1260
    %v1399 = vpack.c.b16 %v1267, %v1261
    %v1400 = vpack.c.b16 %v1274, %v1268
    %v1401 = vpack.c.b16 %v1275, %v1269
    %v1402 = vpack.c.b16 %v1276, %v1270
    %v1403 = vpack.c.b16 %v1277, %v1271
    %v1404 = vpack.c.b16 %v1278, %v1272
    %v1405 = vpack.c.b16 %v1279, %v1273
    %v1406 = vpack.c.b16 %v1286, %v1280
    %v1407 = vpack.c.b16 %v1287, %v1281
    %v1408 = vpack.c.b16 %v1288, %v1282
    %v1409 = vpack.c.b16 %v1289, %v1283
    %v1410 = vpack.c.b16 %v1290, %v1284
    %v1411 = vpack.c.b16 %v1291, %v1285
    %v1412 = vpack.c.b16 %v1298, %v1292
    %v1413 = vpack.c.b16 %v1299, %v1293
    %v1414 = vpack.c.b16 %v1300, %v1294
    %v1415 = vpack.c.b16 %v1301, %v1295
    %v1416 = vpack.c.b16 %v1302, %v1296
    %v1417 = vpack.c.b16 %v1303, %v1297
    %v1418 = vpack.c.b16 %v1310, %v1304
    %v1419 = vpack.c.b16 %v1311, %v1305
    %v1420 = vpack.c.b16 %v1312, %v1306
    %v1421 = vpack.c.b16 %v1313, %v1307
    %v1422 = vpack.c.b16 %v1314, %v1308
    %v1423 = vpack.c.b16 %v1315, %v1309
    %v1424 = vpack.c.b16 %v1322, %v1316
    %v1425 = vpack.c.b16 %v1323, %v1317
    %v1426 = vpack.c.b16 %v1324, %v1318
    %v1427 = vpack.c.b16 %v1325, %v1319
    %v1428 = vpack.c.b16 %v1326, %v1320
    %v1429 = vpack.c.b16 %v1327, %v1321
    %v1430 = vpack.c.b16 %v1334, %v1328
    %v1431 = vpack.c.b16 %v1335, %v1329
    %v1432 = vpack.c.b16 %v1336, %v1330
    %v1433 = vpack.c.b16 %v1337, %v1331
    %v1434 = vpack.c.b16 %v1338, %v1332
    %v1435 = vpack.c.b16 %v1339, %v1333
    %1532 = vmatprep.subr.bf16.mxu0 %v1383
    %1533 = vmatpush1.bf16.msra.mxu0 %v1382
    %1534 = vmatprep.subr.bf16.mxu0 %v1377
    %1535 = vmatpush1.bf16.msra.mxu0 %v1376
    %1536 = vmatprep.subr.bf16.mxu0 %v1371
    %1537 = vmatpush1.bf16.msra.mxu0 %v1370
    %1538 = vmatprep.subr.bf16.mxu0 %v1365
    %1539 = vmatpush1.bf16.msra.mxu0 %v1364
    %1540 = vmatprep.subr.bf16.mxu0 %v1359
    %1541 = vmatpush1.bf16.msra.mxu0 %v1358
    %1542 = vmatprep.subr.bf16.mxu0 %v1353
    %1543 = vmatpush1.bf16.msra.mxu0 %v1352
    %1544 = vmatprep.subr.bf16.mxu0 %v1347
    %1545 = vmatpush1.bf16.msra.mxu0 %v1346
    %1546 = vmatprep.subr.bf16.mxu0 %v1341
    %1547 = vmatpush1.bf16.msra.mxu0 %v1340
    %1548 = vmatprep.subr.bf16.mxu0 %v1431
    %1549 = vmatpush2.bf16.msra.mxu0 %v1430
    %1550 = vmatprep.subr.bf16.mxu0 %v1425
    %1551 = vmatpush2.bf16.msra.mxu0 %v1424
    %1552 = vmatprep.subr.bf16.mxu0 %v1419
    %1553 = vmatpush2.bf16.msra.mxu0 %v1418
    %1554 = vmatprep.subr.bf16.mxu0 %v1413
    %1555 = vmatpush2.bf16.msra.mxu0 %v1412
    %1556 = vmatprep.subr.bf16.mxu0 %v1407
    %1557 = vmatpush2.bf16.msra.mxu0 %v1406
    %1558 = vmatprep.subr.bf16.mxu0 %v1401
    %1559 = vmatpush2.bf16.msra.mxu0 %v1400
    %1560 = vmatprep.subr.bf16.mxu0 %v1395
    %1561 = vmatpush2.bf16.msra.mxu0 %v1394
    %1562 = vmatprep.subr.bf16.mxu0 %v1389
    %1563 = vmatpush2.bf16.msra.mxu0 %v1388
    %1564 = vmatprep.mubr.bf16.mxu0 0
    %1565 = vmatmul.mubr.bf16.gmra.mxu0 0
    %v1566 = vpop.f32.mrf.mxu0
    %v1567 = vadd.f32 0.0, %v1566
    %v1568 = vpop.f32.mrf.mxu0
    %v1569 = vadd.f32 0.0, %v1568
    %v1570 = vpop.f32.mrf.mxu0
    %v1571 = vpop.f32.mrf.mxu0
    %1572 = vdwg.mxu0
    %1573 = vmatprep.subr.bf16.mxu0 %v1385
    %1574 = vmatpush1.bf16.msra.mxu0 %v1384
    %1575 = vmatprep.subr.bf16.mxu0 %v1379
    %1576 = vmatpush1.bf16.msra.mxu0 %v1378
    %1577 = vmatprep.subr.bf16.mxu0 %v1373
    %1578 = vmatpush1.bf16.msra.mxu0 %v1372
    %1579 = vmatprep.subr.bf16.mxu0 %v1367
    %1580 = vmatpush1.bf16.msra.mxu0 %v1366
    %1581 = vmatprep.subr.bf16.mxu0 %v1361
    %1582 = vmatpush1.bf16.msra.mxu0 %v1360
    %1583 = vmatprep.subr.bf16.mxu0 %v1355
    %1584 = vmatpush1.bf16.msra.mxu0 %v1354
    %1585 = vmatprep.subr.bf16.mxu0 %v1349
    %1586 = vmatpush1.bf16.msra.mxu0 %v1348
    %1587 = vmatprep.subr.bf16.mxu0 %v1343
    %1588 = vmatpush1.bf16.msra.mxu0 %v1342
    %1589 = vmatprep.subr.bf16.mxu0 %v1433
    %1590 = vmatpush2.bf16.msra.mxu0 %v1432
    %1591 = vmatprep.subr.bf16.mxu0 %v1427
    %1592 = vmatpush2.bf16.msra.mxu0 %v1426
    %1593 = vmatprep.subr.bf16.mxu0 %v1421
    %1594 = vmatpush2.bf16.msra.mxu0 %v1420
    %1595 = vmatprep.subr.bf16.mxu0 %v1415
    %1596 = vmatpush2.bf16.msra.mxu0 %v1414
    %1597 = vmatprep.subr.bf16.mxu0 %v1409
    %1598 = vmatpush2.bf16.msra.mxu0 %v1408
    %1599 = vmatprep.subr.bf16.mxu0 %v1403
    %1600 = vmatpush2.bf16.msra.mxu0 %v1402
    %1601 = vmatprep.subr.bf16.mxu0 %v1397
    %1602 = vmatpush2.bf16.msra.mxu0 %v1396
    %1603 = vmatprep.subr.bf16.mxu0 %v1391
    %1604 = vmatpush2.bf16.msra.mxu0 %v1390
    %1605 = vmatprep.mubr.bf16.mxu0 0
    %1606 = vmatmul.mubr.bf16.gmra.mxu0 0
    %v1607 = vpop.f32.mrf.mxu0
    %v1608 = vadd.f32 0.0, %v1607
    %v1609 = vpop.f32.mrf.mxu0
    %v1610 = vadd.f32 0.0, %v1609
    %v1611 = vpop.f32.mrf.mxu0
    %v1612 = vpop.f32.mrf.mxu0
    %1613 = vdwg.mxu0
    %1614 = vmatprep.subr.bf16.mxu0 %v1387
    %1615 = vmatpush1.bf16.msra.mxu0 %v1386
    %1616 = vmatprep.subr.bf16.mxu0 %v1381
    %1617 = vmatpush1.bf16.msra.mxu0 %v1380
    %1618 = vmatprep.subr.bf16.mxu0 %v1375
    %1619 = vmatpush1.bf16.msra.mxu0 %v1374
    %1620 = vmatprep.subr.bf16.mxu0 %v1369
    %1621 = vmatpush1.bf16.msra.mxu0 %v1368
    %1622 = vmatprep.subr.bf16.mxu0 %v1363
    %1623 = vmatpush1.bf16.msra.mxu0 %v1362
    %1624 = vmatprep.subr.bf16.mxu0 %v1357
    %1625 = vmatpush1.bf16.msra.mxu0 %v1356
    %1626 = vmatprep.subr.bf16.mxu0 %v1351
    %1627 = vmatpush1.bf16.msra.mxu0 %v1350
    %1628 = vmatprep.subr.bf16.mxu0 %v1345
    %1629 = vmatpush1.bf16.msra.mxu0 %v1344
    %1630 = vmatprep.subr.bf16.mxu0 %v1435
    %1631 = vmatpush2.bf16.msra.mxu0 %v1434
    %1632 = vmatprep.subr.bf16.mxu0 %v1429
    %1633 = vmatpush2.bf16.msra.mxu0 %v1428
    %1634 = vmatprep.subr.bf16.mxu0 %v1423
    %1635 = vmatpush2.bf16.msra.mxu0 %v1422
    %1636 = vmatprep.subr.bf16.mxu0 %v1417
    %1637 = vmatpush2.bf16.msra.mxu0 %v1416
    %1638 = vmatprep.subr.bf16.mxu0 %v1411
    %1639 = vmatpush2.bf16.msra.mxu0 %v1410
    %1640 = vmatprep.subr.bf16.mxu0 %v1405
    %1641 = vmatpush2.bf16.msra.mxu0 %v1404
    %1642 = vmatprep.subr.bf16.mxu0 %v1399
    %1643 = vmatpush2.bf16.msra.mxu0 %v1398
    %1644 = vmatprep.subr.bf16.mxu0 %v1393
    %1645 = vmatpush2.bf16.msra.mxu0 %v1392
    %1646 = vmatprep.mubr.bf16.mxu0 0
    %1647 = vmatmul.mubr.bf16.gmra.mxu0 0
    %v1648 = vpop.f32.mrf.mxu0
    %v1649 = vadd.f32 0.0, %v1648
    %v1650 = vpop.f32.mrf.mxu0
    %v1651 = vadd.f32 0.0, %v1650
    %v1652 = vpop.f32.mrf.mxu0
    %v1653 = vpop.f32.mrf.mxu0
    %1654 = vdwg.mxu0
    %v1655 = vadd.f32 %v1046, %v1567
    %v1656 = vadd.f32 %v1047, %v1569
    %v1657 = vxor.u32 %v1655, 2147483648
    %v1658 = vxor.u32 %v1656, 2147483648
    %v1659 = vmul.f32 %v1657, 1.442695
    %v1660 = vpow.pop %v1659
    %v1661 = vmul.f32 %v1658, 1.442695
    %v1662 = vpow.pop %v1661
    %v1663 = vadd.f32 %v1660, 1.0
    %v1664 = vadd.f32 %v1662, 1.0
    %v1665 = vrcp.pop %v1663
    %v1666 = vmul.f32 1.0, %v1665
    %v1667 = vrcp.pop %v1664
    %v1668 = vmul.f32 1.0, %v1667
    %v1669 = vadd.f32 %v1048, %v1608
    %v1670 = vadd.f32 %v1049, %v1610
    %v1671 = vxor.u32 %v1669, 2147483648
    %v1672 = vxor.u32 %v1670, 2147483648
    %v1673 = vmul.f32 %v1671, 1.442695
    %v1674 = vpow.pop %v1673
    %v1675 = vmul.f32 %v1672, 1.442695
    %v1676 = vpow.pop %v1675
    %v1677 = vadd.f32 %v1674, 1.0
    %v1678 = vadd.f32 %v1676, 1.0
    %v1679 = vrcp.pop %v1677
    %v1680 = vmul.f32 1.0, %v1679
    %v1681 = vrcp.pop %v1678
    %v1682 = vmul.f32 1.0, %v1681
    %v1683 = vadd.f32 %v1649, %v943
    %v1684 = vadd.f32 %v1651, %v947
    %v1685 = vmul.f32 %v1666, %v1683
    %v1686 = vmul.f32 %v1668, %v1684
    %v1687 = vadd.f32 %v1050, %v1685
    %v1688 = vadd.f32 %v1051, %v1686
    %v1689 = vtanh.pop %v1687
    %v1690 = vtanh.pop %v1688
    %v1691 = vsub.f32 1.0, %v1680
    %v1692 = vsub.f32 1.0, %v1682
    %v1693 = vmul.f32 %v1691, %v1689
    %v1694 = vmul.f32 %v1692, %v1690
    %v1695 = vmul.f32 %v1680, 0.0
    %v1696 = vmul.f32 %v1682, 0.0
    %v1697 = vadd.f32 %v1693, %v1695
    %v1698 = vadd.f32 %v1694, %v1696
    %1699 = vst [vmem:[#allocation3] sm:$0xff] %v1697
    %1700 = vst [vmem:[#allocation3 + $0x78] sm:$0xff] %v1698
    %v1701 = vld [vmem:[#allocation2 + $0x30] sm:$0xff]
    %v1702 = vld [vmem:[#allocation2 + $0x38] sm:$0xff]
    %v1703 = vld [vmem:[#allocation2 + $0x40] sm:$0xff]
    %v1704 = vld [vmem:[#allocation2 + $0x48] sm:$0xff]
    %v1705 = vld [vmem:[#allocation2 + $0x50] sm:$0xff]
    %v1706 = vld [vmem:[#allocation2 + $0x58] sm:$0xff]
    %v1707 = vpack.c.bf16 %v1697, %v1697
    %v1708 = vpack.c.bf16 %v1698, %v1698
    %1709 = vmatprep.subr.bf16.mxu0 %v1383
    %1710 = vmatpush1.bf16.msra.mxu0 %v1382
    %1711 = vmatprep.subr.bf16.mxu0 %v1377
    %1712 = vmatpush1.bf16.msra.mxu0 %v1376
    %1713 = vmatprep.subr.bf16.mxu0 %v1371
    %1714 = vmatpush1.bf16.msra.mxu0 %v1370
    %1715 = vmatprep.subr.bf16.mxu0 %v1365
    %1716 = vmatpush1.bf16.msra.mxu0 %v1364
    %1717 = vmatprep.subr.bf16.mxu0 %v1359
    %1718 = vmatpush1.bf16.msra.mxu0 %v1358
    %1719 = vmatprep.subr.bf16.mxu0 %v1353
    %1720 = vmatpush1.bf16.msra.mxu0 %v1352
    %1721 = vmatprep.subr.bf16.mxu0 %v1347
    %1722 = vmatpush1.bf16.msra.mxu0 %v1346
    %1723 = vmatprep.subr.bf16.mxu0 %v1341
    %1724 = vmatpush1.bf16.msra.mxu0 %v1340
    %1725 = vmatprep.subr.bf16.mxu0 %v1431
    %1726 = vmatpush2.bf16.msra.mxu0 %v1430
    %1727 = vmatprep.subr.bf16.mxu0 %v1425
    %1728 = vmatpush2.bf16.msra.mxu0 %v1424
    %1729 = vmatprep.subr.bf16.mxu0 %v1419
    %1730 = vmatpush2.bf16.msra.mxu0 %v1418
    %1731 = vmatprep.subr.bf16.mxu0 %v1413
    %1732 = vmatpush2.bf16.msra.mxu0 %v1412
    %1733 = vmatprep.subr.bf16.mxu0 %v1407
    %1734 = vmatpush2.bf16.msra.mxu0 %v1406
    %1735 = vmatprep.subr.bf16.mxu0 %v1401
    %1736 = vmatpush2.bf16.msra.mxu0 %v1400
    %1737 = vmatprep.subr.bf16.mxu0 %v1395
    %1738 = vmatpush2.bf16.msra.mxu0 %v1394
    %1739 = vmatprep.subr.bf16.mxu0 %v1389
    %1740 = vmatpush2.bf16.msra.mxu0 %v1388
    %1741 = vmatprep.mubr.bf16.mxu0 %v1708
    %1742 = vmatmul.mubr.bf16.gmra.mxu0 %v1707
    %v1743 = vpop.f32.mrf.mxu0
    %v1744 = vadd.f32 0.0, %v1743
    %v1745 = vpop.f32.mrf.mxu0
    %v1746 = vadd.f32 0.0, %v1745
    %v1747 = vpop.f32.mrf.mxu0
    %v1748 = vpop.f32.mrf.mxu0
    %1749 = vdwg.mxu0
    %1750 = vmatprep.subr.bf16.mxu0 %v1385
    %1751 = vmatpush1.bf16.msra.mxu0 %v1384
    %1752 = vmatprep.subr.bf16.mxu0 %v1379
    %1753 = vmatpush1.bf16.msra.mxu0 %v1378
    %1754 = vmatprep.subr.bf16.mxu0 %v1373
    %1755 = vmatpush1.bf16.msra.mxu0 %v1372
    %1756 = vmatprep.subr.bf16.mxu0 %v1367
    %1757 = vmatpush1.bf16.msra.mxu0 %v1366
    %1758 = vmatprep.subr.bf16.mxu0 %v1361
    %1759 = vmatpush1.bf16.msra.mxu0 %v1360
    %1760 = vmatprep.subr.bf16.mxu0 %v1355
    %1761 = vmatpush1.bf16.msra.mxu0 %v1354
    %1762 = vmatprep.subr.bf16.mxu0 %v1349
    %1763 = vmatpush1.bf16.msra.mxu0 %v1348
    %1764 = vmatprep.subr.bf16.mxu0 %v1343
    %1765 = vmatpush1.bf16.msra.mxu0 %v1342
    %1766 = vmatprep.subr.bf16.mxu0 %v1433
    %1767 = vmatpush2.bf16.msra.mxu0 %v1432
    %1768 = vmatprep.subr.bf16.mxu0 %v1427
    %1769 = vmatpush2.bf16.msra.mxu0 %v1426
    %1770 = vmatprep.subr.bf16.mxu0 %v1421
    %1771 = vmatpush2.bf16.msra.mxu0 %v1420
    %1772 = vmatprep.subr.bf16.mxu0 %v1415
    %1773 = vmatpush2.bf16.msra.mxu0 %v1414
    %1774 = vmatprep.subr.bf16.mxu0 %v1409
    %1775 = vmatpush2.bf16.msra.mxu0 %v1408
    %1776 = vmatprep.subr.bf16.mxu0 %v1403
    %1777 = vmatpush2.bf16.msra.mxu0 %v1402
    %1778 = vmatprep.subr.bf16.mxu0 %v1397
    %1779 = vmatpush2.bf16.msra.mxu0 %v1396
    %1780 = vmatprep.subr.bf16.mxu0 %v1391
    %1781 = vmatpush2.bf16.msra.mxu0 %v1390
    %1782 = vmatprep.mubr.bf16.mxu0 %v1708
    %1783 = vmatmul.mubr.bf16.gmra.mxu0 %v1707
    %v1784 = vpop.f32.mrf.mxu0
    %v1785 = vadd.f32 0.0, %v1784
    %v1786 = vpop.f32.mrf.mxu0
    %v1787 = vadd.f32 0.0, %v1786
    %v1788 = vpop.f32.mrf.mxu0
    %v1789 = vpop.f32.mrf.mxu0
    %1790 = vdwg.mxu0
    %1791 = vmatprep.subr.bf16.mxu0 %v1387
    %1792 = vmatpush1.bf16.msra.mxu0 %v1386
    %1793 = vmatprep.subr.bf16.mxu0 %v1381
    %1794 = vmatpush1.bf16.msra.mxu0 %v1380
    %1795 = vmatprep.subr.bf16.mxu0 %v1375
    %1796 = vmatpush1.bf16.msra.mxu0 %v1374
    %1797 = vmatprep.subr.bf16.mxu0 %v1369
    %1798 = vmatpush1.bf16.msra.mxu0 %v1368
    %1799 = vmatprep.subr.bf16.mxu0 %v1363
    %1800 = vmatpush1.bf16.msra.mxu0 %v1362
    %1801 = vmatprep.subr.bf16.mxu0 %v1357
    %1802 = vmatpush1.bf16.msra.mxu0 %v1356
    %1803 = vmatprep.subr.bf16.mxu0 %v1351
    %1804 = vmatpush1.bf16.msra.mxu0 %v1350
    %1805 = vmatprep.subr.bf16.mxu0 %v1345
    %1806 = vmatpush1.bf16.msra.mxu0 %v1344
    %1807 = vmatprep.subr.bf16.mxu0 %v1435
    %1808 = vmatpush2.bf16.msra.mxu0 %v1434
    %1809 = vmatprep.subr.bf16.mxu0 %v1429
    %1810 = vmatpush2.bf16.msra.mxu0 %v1428
    %1811 = vmatprep.subr.bf16.mxu0 %v1423
    %1812 = vmatpush2.bf16.msra.mxu0 %v1422
    %1813 = vmatprep.subr.bf16.mxu0 %v1417
    %1814 = vmatpush2.bf16.msra.mxu0 %v1416
    %1815 = vmatprep.subr.bf16.mxu0 %v1411
    %1816 = vmatpush2.bf16.msra.mxu0 %v1410
    %1817 = vmatprep.subr.bf16.mxu0 %v1405
    %1818 = vmatpush2.bf16.msra.mxu0 %v1404
    %1819 = vmatprep.subr.bf16.mxu0 %v1399
    %1820 = vmatpush2.bf16.msra.mxu0 %v1398
    %1821 = vmatprep.subr.bf16.mxu0 %v1393
    %1822 = vmatpush2.bf16.msra.mxu0 %v1392
    %1823 = vmatprep.mubr.bf16.mxu0 %v1708
    %1824 = vmatmul.mubr.bf16.gmra.mxu0 %v1707
    %v1825 = vpop.f32.mrf.mxu0
    %v1826 = vadd.f32 0.0, %v1825
    %v1827 = vpop.f32.mrf.mxu0
    %v1828 = vadd.f32 0.0, %v1827
    %v1829 = vpop.f32.mrf.mxu0
    %v1830 = vpop.f32.mrf.mxu0
    %1831 = vdwg.mxu0
    %v1832 = vadd.f32 %v1701, %v1744
    %v1833 = vadd.f32 %v1702, %v1746
    %v1834 = vxor.u32 %v1832, 2147483648
    %v1835 = vxor.u32 %v1833, 2147483648
    %v1836 = vmul.f32 %v1834, 1.442695
    %v1837 = vpow.pop %v1836
    %v1838 = vmul.f32 %v1835, 1.442695
    %v1839 = vpow.pop %v1838
    %v1840 = vadd.f32 %v1837, 1.0
    %v1841 = vadd.f32 %v1839, 1.0
    %v1842 = vrcp.pop %v1840
    %v1843 = vmul.f32 1.0, %v1842
    %v1844 = vrcp.pop %v1841
    %v1845 = vmul.f32 1.0, %v1844
    %v1846 = vadd.f32 %v1703, %v1785
    %v1847 = vadd.f32 %v1704, %v1787
    %v1848 = vxor.u32 %v1846, 2147483648
    %v1849 = vxor.u32 %v1847, 2147483648
    %v1850 = vmul.f32 %v1848, 1.442695
    %v1851 = vpow.pop %v1850
    %v1852 = vmul.f32 %v1849, 1.442695
    %v1853 = vpow.pop %v1852
    %v1854 = vadd.f32 %v1851, 1.0
    %v1855 = vadd.f32 %v1853, 1.0
    %v1856 = vrcp.pop %v1854
    %v1857 = vmul.f32 1.0, %v1856
    %v1858 = vrcp.pop %v1855
    %v1859 = vmul.f32 1.0, %v1858
    %v1860 = vadd.f32 %v1826, %v943
    %v1861 = vadd.f32 %v1828, %v947
    %v1862 = vmul.f32 %v1843, %v1860
    %v1863 = vmul.f32 %v1845, %v1861
    %v1864 = vadd.f32 %v1705, %v1862
    %v1865 = vadd.f32 %v1706, %v1863
    %v1866 = vtanh.pop %v1864
    %v1867 = vtanh.pop %v1865
    %v1868 = vsub.f32 1.0, %v1857
    %v1869 = vsub.f32 1.0, %v1859
    %v1870 = vmul.f32 %v1868, %v1866
    %v1871 = vmul.f32 %v1869, %v1867
    %v1872 = vmul.f32 %v1857, %v1697
    %v1873 = vmul.f32 %v1859, %v1698
    %v1874 = vadd.f32 %v1870, %v1872
    %v1875 = vadd.f32 %v1871, %v1873
    %1876 = vst [vmem:[#allocation3 + $0x10] sm:$0xff] %v1874
    %1877 = vst [vmem:[#allocation3 + $0x68] sm:$0xff] %v1875
    %v1878 = vld [vmem:[#allocation2 + $0x60] sm:$0xff]
    %v1879 = vld [vmem:[#allocation2 + $0x68] sm:$0xff]
    %v1880 = vld [vmem:[#allocation2 + $0x70] sm:$0xff]
    %v1881 = vld [vmem:[#allocation2 + $0x78] sm:$0xff]
    %v1882 = vld [vmem:[#allocation2 + $0x80] sm:$0xff]
    %v1883 = vld [vmem:[#allocation2 + $0x88] sm:$0xff]
    %v1884 = vpack.c.bf16 %v1874, %v1874
    %v1885 = vpack.c.bf16 %v1875, %v1875
    %1886 = vmatprep.subr.bf16.mxu0 %v1383
    %1887 = vmatpush1.bf16.msra.mxu0 %v1382
    %1888 = vmatprep.subr.bf16.mxu0 %v1377
    %1889 = vmatpush1.bf16.msra.mxu0 %v1376
    %1890 = vmatprep.subr.bf16.mxu0 %v1371
    %1891 = vmatpush1.bf16.msra.mxu0 %v1370
    %1892 = vmatprep.subr.bf16.mxu0 %v1365
    %1893 = vmatpush1.bf16.msra.mxu0 %v1364
    %1894 = vmatprep.subr.bf16.mxu0 %v1359
    %1895 = vmatpush1.bf16.msra.mxu0 %v1358
    %1896 = vmatprep.subr.bf16.mxu0 %v1353
    %1897 = vmatpush1.bf16.msra.mxu0 %v1352
    %1898 = vmatprep.subr.bf16.mxu0 %v1347
    %1899 = vmatpush1.bf16.msra.mxu0 %v1346
    %1900 = vmatprep.subr.bf16.mxu0 %v1341
    %1901 = vmatpush1.bf16.msra.mxu0 %v1340
    %1902 = vmatprep.subr.bf16.mxu0 %v1431
    %1903 = vmatpush2.bf16.msra.mxu0 %v1430
    %1904 = vmatprep.subr.bf16.mxu0 %v1425
    %1905 = vmatpush2.bf16.msra.mxu0 %v1424
    %1906 = vmatprep.subr.bf16.mxu0 %v1419
    %1907 = vmatpush2.bf16.msra.mxu0 %v1418
    %1908 = vmatprep.subr.bf16.mxu0 %v1413
    %1909 = vmatpush2.bf16.msra.mxu0 %v1412
    %1910 = vmatprep.subr.bf16.mxu0 %v1407
    %1911 = vmatpush2.bf16.msra.mxu0 %v1406
    %1912 = vmatprep.subr.bf16.mxu0 %v1401
    %1913 = vmatpush2.bf16.msra.mxu0 %v1400
    %1914 = vmatprep.subr.bf16.mxu0 %v1395
    %1915 = vmatpush2.bf16.msra.mxu0 %v1394
    %1916 = vmatprep.subr.bf16.mxu0 %v1389
    %1917 = vmatpush2.bf16.msra.mxu0 %v1388
    %1918 = vmatprep.mubr.bf16.mxu0 %v1885
    %1919 = vmatmul.mubr.bf16.gmra.mxu0 %v1884
    %v1920 = vpop.f32.mrf.mxu0
    %v1921 = vadd.f32 0.0, %v1920
    %v1922 = vpop.f32.mrf.mxu0
    %v1923 = vadd.f32 0.0, %v1922
    %v1924 = vpop.f32.mrf.mxu0
    %v1925 = vpop.f32.mrf.mxu0
    %1926 = vdwg.mxu0
    %1927 = vmatprep.subr.bf16.mxu0 %v1385
    %1928 = vmatpush1.bf16.msra.mxu0 %v1384
    %1929 = vmatprep.subr.bf16.mxu0 %v1379
    %1930 = vmatpush1.bf16.msra.mxu0 %v1378
    %1931 = vmatprep.subr.bf16.mxu0 %v1373
    %1932 = vmatpush1.bf16.msra.mxu0 %v1372
    %1933 = vmatprep.subr.bf16.mxu0 %v1367
    %1934 = vmatpush1.bf16.msra.mxu0 %v1366
    %1935 = vmatprep.subr.bf16.mxu0 %v1361
    %1936 = vmatpush1.bf16.msra.mxu0 %v1360
    %1937 = vmatprep.subr.bf16.mxu0 %v1355
    %1938 = vmatpush1.bf16.msra.mxu0 %v1354
    %1939 = vmatprep.subr.bf16.mxu0 %v1349
    %1940 = vmatpush1.bf16.msra.mxu0 %v1348
    %1941 = vmatprep.subr.bf16.mxu0 %v1343
    %1942 = vmatpush1.bf16.msra.mxu0 %v1342
    %1943 = vmatprep.subr.bf16.mxu0 %v1433
    %1944 = vmatpush2.bf16.msra.mxu0 %v1432
    %1945 = vmatprep.subr.bf16.mxu0 %v1427
    %1946 = vmatpush2.bf16.msra.mxu0 %v1426
    %1947 = vmatprep.subr.bf16.mxu0 %v1421
    %1948 = vmatpush2.bf16.msra.mxu0 %v1420
    %1949 = vmatprep.subr.bf16.mxu0 %v1415
    %1950 = vmatpush2.bf16.msra.mxu0 %v1414
    %1951 = vmatprep.subr.bf16.mxu0 %v1409
    %1952 = vmatpush2.bf16.msra.mxu0 %v1408
    %1953 = vmatprep.subr.bf16.mxu0 %v1403
    %1954 = vmatpush2.bf16.msra.mxu0 %v1402
    %1955 = vmatprep.subr.bf16.mxu0 %v1397
    %1956 = vmatpush2.bf16.msra.mxu0 %v1396
    %1957 = vmatprep.subr.bf16.mxu0 %v1391
    %1958 = vmatpush2.bf16.msra.mxu0 %v1390
    %1959 = vmatprep.mubr.bf16.mxu0 %v1885
    %1960 = vmatmul.mubr.bf16.gmra.mxu0 %v1884
    %v1961 = vpop.f32.mrf.mxu0
    %v1962 = vadd.f32 0.0, %v1961
    %v1963 = vpop.f32.mrf.mxu0
    %v1964 = vadd.f32 0.0, %v1963
    %v1965 = vpop.f32.mrf.mxu0
    %v1966 = vpop.f32.mrf.mxu0
    %1967 = vdwg.mxu0
    %1968 = vmatprep.subr.bf16.mxu0 %v1387
    %1969 = vmatpush1.bf16.msra.mxu0 %v1386
    %1970 = vmatprep.subr.bf16.mxu0 %v1381
    %1971 = vmatpush1.bf16.msra.mxu0 %v1380
    %1972 = vmatprep.subr.bf16.mxu0 %v1375
    %1973 = vmatpush1.bf16.msra.mxu0 %v1374
    %1974 = vmatprep.subr.bf16.mxu0 %v1369
    %1975 = vmatpush1.bf16.msra.mxu0 %v1368
    %1976 = vmatprep.subr.bf16.mxu0 %v1363
    %1977 = vmatpush1.bf16.msra.mxu0 %v1362
    %1978 = vmatprep.subr.bf16.mxu0 %v1357
    %1979 = vmatpush1.bf16.msra.mxu0 %v1356
    %1980 = vmatprep.subr.bf16.mxu0 %v1351
    %1981 = vmatpush1.bf16.msra.mxu0 %v1350
    %1982 = vmatprep.subr.bf16.mxu0 %v1345
    %1983 = vmatpush1.bf16.msra.mxu0 %v1344
    %1984 = vmatprep.subr.bf16.mxu0 %v1435
    %1985 = vmatpush2.bf16.msra.mxu0 %v1434
    %1986 = vmatprep.subr.bf16.mxu0 %v1429
    %1987 = vmatpush2.bf16.msra.mxu0 %v1428
    %1988 = vmatprep.subr.bf16.mxu0 %v1423
    %1989 = vmatpush2.bf16.msra.mxu0 %v1422
    %1990 = vmatprep.subr.bf16.mxu0 %v1417
    %1991 = vmatpush2.bf16.msra.mxu0 %v1416
    %1992 = vmatprep.subr.bf16.mxu0 %v1411
    %1993 = vmatpush2.bf16.msra.mxu0 %v1410
    %1994 = vmatprep.subr.bf16.mxu0 %v1405
    %1995 = vmatpush2.bf16.msra.mxu0 %v1404
    %1996 = vmatprep.subr.bf16.mxu0 %v1399
    %1997 = vmatpush2.bf16.msra.mxu0 %v1398
    %1998 = vmatprep.subr.bf16.mxu0 %v1393
    %1999 = vmatpush2.bf16.msra.mxu0 %v1392
    %2000 = vmatprep.mubr.bf16.mxu0 %v1885
    %2001 = vmatmul.mubr.bf16.gmra.mxu0 %v1884
    %v2002 = vpop.f32.mrf.mxu0
    %v2003 = vadd.f32 0.0, %v2002
    %v2004 = vpop.f32.mrf.mxu0
    %v2005 = vadd.f32 0.0, %v2004
    %v2006 = vpop.f32.mrf.mxu0
    %v2007 = vpop.f32.mrf.mxu0
    %2008 = vdwg.mxu0
    %v2009 = vadd.f32 %v1878, %v1921
    %v2010 = vadd.f32 %v1879, %v1923
    %v2011 = vxor.u32 %v2009, 2147483648
    %v2012 = vxor.u32 %v2010, 2147483648
    %v2013 = vmul.f32 %v2011, 1.442695
    %v2014 = vpow.pop %v2013
    %v2015 = vmul.f32 %v2012, 1.442695
    %v2016 = vpow.pop %v2015
    %v2017 = vadd.f32 %v2014, 1.0
    %v2018 = vadd.f32 %v2016, 1.0
    %v2019 = vrcp.pop %v2017
    %v2020 = vmul.f32 1.0, %v2019
    %v2021 = vrcp.pop %v2018
    %v2022 = vmul.f32 1.0, %v2021
    %v2023 = vadd.f32 %v1880, %v1962
    %v2024 = vadd.f32 %v1881, %v1964
    %v2025 = vxor.u32 %v2023, 2147483648
    %v2026 = vxor.u32 %v2024, 2147483648
    %v2027 = vmul.f32 %v2025, 1.442695
    %v2028 = vpow.pop %v2027
    %v2029 = vmul.f32 %v2026, 1.442695
    %v2030 = vpow.pop %v2029
    %v2031 = vadd.f32 %v2028, 1.0
    %v2032 = vadd.f32 %v2030, 1.0
    %v2033 = vrcp.pop %v2031
    %v2034 = vmul.f32 1.0, %v2033
    %v2035 = vrcp.pop %v2032
    %v2036 = vmul.f32 1.0, %v2035
    %v2037 = vadd.f32 %v2003, %v943
    %v2038 = vadd.f32 %v2005, %v947
    %v2039 = vmul.f32 %v2020, %v2037
    %v2040 = vmul.f32 %v2022, %v2038
    %v2041 = vadd.f32 %v1882, %v2039
    %v2042 = vadd.f32 %v1883, %v2040
    %v2043 = vtanh.pop %v2041
    %v2044 = vtanh.pop %v2042
    %v2045 = vsub.f32 1.0, %v2034
    %v2046 = vsub.f32 1.0, %v2036
    %v2047 = vmul.f32 %v2045, %v2043
    %v2048 = vmul.f32 %v2046, %v2044
    %v2049 = vmul.f32 %v2034, %v1874
    %v2050 = vmul.f32 %v2036, %v1875
    %v2051 = vadd.f32 %v2047, %v2049
    %v2052 = vadd.f32 %v2048, %v2050
    %2053 = vst [vmem:[#allocation3 + $0x20] sm:$0xff] %v2051
    %2054 = vst [vmem:[#allocation3 + $0x58] sm:$0xff] %v2052
    %v2055 = vld [vmem:[#allocation2 + $0x90] sm:$0xff]
    %v2056 = vld [vmem:[#allocation2 + $0x98] sm:$0xff]
    %v2057 = vld [vmem:[#allocation2 + $0xa0] sm:$0xff]
    %v2058 = vld [vmem:[#allocation2 + $0xa8] sm:$0xff]
    %v2059 = vld [vmem:[#allocation2 + $0xb0] sm:$0xff]
    %v2060 = vld [vmem:[#allocation2 + $0xb8] sm:$0xff]
    %v2061 = vpack.c.bf16 %v2051, %v2051
    %v2062 = vpack.c.bf16 %v2052, %v2052
    %2063 = vmatprep.subr.bf16.mxu0 %v1383
    %2064 = vmatpush1.bf16.msra.mxu0 %v1382
    %2065 = vmatprep.subr.bf16.mxu0 %v1377
    %2066 = vmatpush1.bf16.msra.mxu0 %v1376
    %2067 = vmatprep.subr.bf16.mxu0 %v1371
    %2068 = vmatpush1.bf16.msra.mxu0 %v1370
    %2069 = vmatprep.subr.bf16.mxu0 %v1365
    %2070 = vmatpush1.bf16.msra.mxu0 %v1364
    %2071 = vmatprep.subr.bf16.mxu0 %v1359
    %2072 = vmatpush1.bf16.msra.mxu0 %v1358
    %2073 = vmatprep.subr.bf16.mxu0 %v1353
    %2074 = vmatpush1.bf16.msra.mxu0 %v1352
    %2075 = vmatprep.subr.bf16.mxu0 %v1347
    %2076 = vmatpush1.bf16.msra.mxu0 %v1346
    %2077 = vmatprep.subr.bf16.mxu0 %v1341
    %2078 = vmatpush1.bf16.msra.mxu0 %v1340
    %2079 = vmatprep.subr.bf16.mxu0 %v1431
    %2080 = vmatpush2.bf16.msra.mxu0 %v1430
    %2081 = vmatprep.subr.bf16.mxu0 %v1425
    %2082 = vmatpush2.bf16.msra.mxu0 %v1424
    %2083 = vmatprep.subr.bf16.mxu0 %v1419
    %2084 = vmatpush2.bf16.msra.mxu0 %v1418
    %2085 = vmatprep.subr.bf16.mxu0 %v1413
    %2086 = vmatpush2.bf16.msra.mxu0 %v1412
    %2087 = vmatprep.subr.bf16.mxu0 %v1407
    %2088 = vmatpush2.bf16.msra.mxu0 %v1406
    %2089 = vmatprep.subr.bf16.mxu0 %v1401
    %2090 = vmatpush2.bf16.msra.mxu0 %v1400
    %2091 = vmatprep.subr.bf16.mxu0 %v1395
    %2092 = vmatpush2.bf16.msra.mxu0 %v1394
    %2093 = vmatprep.subr.bf16.mxu0 %v1389
    %2094 = vmatpush2.bf16.msra.mxu0 %v1388
    %2095 = vmatprep.mubr.bf16.mxu0 %v2062
    %2096 = vmatmul.mubr.bf16.gmra.mxu0 %v2061
    %v2097 = vpop.f32.mrf.mxu0
    %v2098 = vadd.f32 0.0, %v2097
    %v2099 = vpop.f32.mrf.mxu0
    %v2100 = vadd.f32 0.0, %v2099
    %v2101 = vpop.f32.mrf.mxu0
    %v2102 = vpop.f32.mrf.mxu0
    %2103 = vdwg.mxu0
    %2104 = vmatprep.subr.bf16.mxu0 %v1385
    %2105 = vmatpush1.bf16.msra.mxu0 %v1384
    %2106 = vmatprep.subr.bf16.mxu0 %v1379
    %2107 = vmatpush1.bf16.msra.mxu0 %v1378
    %2108 = vmatprep.subr.bf16.mxu0 %v1373
    %2109 = vmatpush1.bf16.msra.mxu0 %v1372
    %2110 = vmatprep.subr.bf16.mxu0 %v1367
    %2111 = vmatpush1.bf16.msra.mxu0 %v1366
    %2112 = vmatprep.subr.bf16.mxu0 %v1361
    %2113 = vmatpush1.bf16.msra.mxu0 %v1360
    %2114 = vmatprep.subr.bf16.mxu0 %v1355
    %2115 = vmatpush1.bf16.msra.mxu0 %v1354
    %2116 = vmatprep.subr.bf16.mxu0 %v1349
    %2117 = vmatpush1.bf16.msra.mxu0 %v1348
    %2118 = vmatprep.subr.bf16.mxu0 %v1343
    %2119 = vmatpush1.bf16.msra.mxu0 %v1342
    %2120 = vmatprep.subr.bf16.mxu0 %v1433
    %2121 = vmatpush2.bf16.msra.mxu0 %v1432
    %2122 = vmatprep.subr.bf16.mxu0 %v1427
    %2123 = vmatpush2.bf16.msra.mxu0 %v1426
    %2124 = vmatprep.subr.bf16.mxu0 %v1421
    %2125 = vmatpush2.bf16.msra.mxu0 %v1420
    %2126 = vmatprep.subr.bf16.mxu0 %v1415
    %2127 = vmatpush2.bf16.msra.mxu0 %v1414
    %2128 = vmatprep.subr.bf16.mxu0 %v1409
    %2129 = vmatpush2.bf16.msra.mxu0 %v1408
    %2130 = vmatprep.subr.bf16.mxu0 %v1403
    %2131 = vmatpush2.bf16.msra.mxu0 %v1402
    %2132 = vmatprep.subr.bf16.mxu0 %v1397
    %2133 = vmatpush2.bf16.msra.mxu0 %v1396
    %2134 = vmatprep.subr.bf16.mxu0 %v1391
    %2135 = vmatpush2.bf16.msra.mxu0 %v1390
    %2136 = vmatprep.mubr.bf16.mxu0 %v2062
    %2137 = vmatmul.mubr.bf16.gmra.mxu0 %v2061
    %v2138 = vpop.f32.mrf.mxu0
    %v2139 = vadd.f32 0.0, %v2138
    %v2140 = vpop.f32.mrf.mxu0
    %v2141 = vadd.f32 0.0, %v2140
    %v2142 = vpop.f32.mrf.mxu0
    %v2143 = vpop.f32.mrf.mxu0
    %2144 = vdwg.mxu0
    %2145 = vmatprep.subr.bf16.mxu0 %v1387
    %2146 = vmatpush1.bf16.msra.mxu0 %v1386
    %2147 = vmatprep.subr.bf16.mxu0 %v1381
    %2148 = vmatpush1.bf16.msra.mxu0 %v1380
    %2149 = vmatprep.subr.bf16.mxu0 %v1375
    %2150 = vmatpush1.bf16.msra.mxu0 %v1374
    %2151 = vmatprep.subr.bf16.mxu0 %v1369
    %2152 = vmatpush1.bf16.msra.mxu0 %v1368
    %2153 = vmatprep.subr.bf16.mxu0 %v1363
    %2154 = vmatpush1.bf16.msra.mxu0 %v1362
    %2155 = vmatprep.subr.bf16.mxu0 %v1357
    %2156 = vmatpush1.bf16.msra.mxu0 %v1356
    %2157 = vmatprep.subr.bf16.mxu0 %v1351
    %2158 = vmatpush1.bf16.msra.mxu0 %v1350
    %2159 = vmatprep.subr.bf16.mxu0 %v1345
    %2160 = vmatpush1.bf16.msra.mxu0 %v1344
    %2161 = vmatprep.subr.bf16.mxu0 %v1435
    %2162 = vmatpush2.bf16.msra.mxu0 %v1434
    %2163 = vmatprep.subr.bf16.mxu0 %v1429
    %2164 = vmatpush2.bf16.msra.mxu0 %v1428
    %2165 = vmatprep.subr.bf16.mxu0 %v1423
    %2166 = vmatpush2.bf16.msra.mxu0 %v1422
    %2167 = vmatprep.subr.bf16.mxu0 %v1417
    %2168 = vmatpush2.bf16.msra.mxu0 %v1416
    %2169 = vmatprep.subr.bf16.mxu0 %v1411
    %2170 = vmatpush2.bf16.msra.mxu0 %v1410
    %2171 = vmatprep.subr.bf16.mxu0 %v1405
    %2172 = vmatpush2.bf16.msra.mxu0 %v1404
    %2173 = vmatprep.subr.bf16.mxu0 %v1399
    %2174 = vmatpush2.bf16.msra.mxu0 %v1398
    %2175 = vmatprep.subr.bf16.mxu0 %v1393
    %2176 = vmatpush2.bf16.msra.mxu0 %v1392
    %2177 = vmatprep.mubr.bf16.mxu0 %v2062
    %2178 = vmatmul.mubr.bf16.gmra.mxu0 %v2061
    %v2179 = vpop.f32.mrf.mxu0
    %v2180 = vadd.f32 0.0, %v2179
    %v2181 = vpop.f32.mrf.mxu0
    %v2182 = vadd.f32 0.0, %v2181
    %v2183 = vpop.f32.mrf.mxu0
    %v2184 = vpop.f32.mrf.mxu0
    %2185 = vdwg.mxu0
    %v2186 = vadd.f32 %v2055, %v2098
    %v2187 = vadd.f32 %v2056, %v2100
    %v2188 = vxor.u32 %v2186, 2147483648
    %v2189 = vxor.u32 %v2187, 2147483648
    %v2190 = vmul.f32 %v2188, 1.442695
    %v2191 = vpow.pop %v2190
    %v2192 = vmul.f32 %v2189, 1.442695
    %v2193 = vpow.pop %v2192
    %v2194 = vadd.f32 %v2191, 1.0
    %v2195 = vadd.f32 %v2193, 1.0
    %v2196 = vrcp.pop %v2194
    %v2197 = vmul.f32 1.0, %v2196
    %v2198 = vrcp.pop %v2195
    %v2199 = vmul.f32 1.0, %v2198
    %v2200 = vadd.f32 %v2057, %v2139
    %v2201 = vadd.f32 %v2058, %v2141
    %v2202 = vxor.u32 %v2200, 2147483648
    %v2203 = vxor.u32 %v2201, 2147483648
    %v2204 = vmul.f32 %v2202, 1.442695
    %v2205 = vpow.pop %v2204
    %v2206 = vmul.f32 %v2203, 1.442695
    %v2207 = vpow.pop %v2206
    %v2208 = vadd.f32 %v2205, 1.0
    %v2209 = vadd.f32 %v2207, 1.0
    %v2210 = vrcp.pop %v2208
    %v2211 = vmul.f32 1.0, %v2210
    %v2212 = vrcp.pop %v2209
    %v2213 = vmul.f32 1.0, %v2212
    %v2214 = vadd.f32 %v2180, %v943
    %v2215 = vadd.f32 %v2182, %v947
    %v2216 = vmul.f32 %v2197, %v2214
    %v2217 = vmul.f32 %v2199, %v2215
    %v2218 = vadd.f32 %v2059, %v2216
    %v2219 = vadd.f32 %v2060, %v2217
    %v2220 = vtanh.pop %v2218
    %v2221 = vtanh.pop %v2219
    %v2222 = vsub.f32 1.0, %v2211
    %v2223 = vsub.f32 1.0, %v2213
    %v2224 = vmul.f32 %v2222, %v2220
    %v2225 = vmul.f32 %v2223, %v2221
    %v2226 = vmul.f32 %v2211, %v2051
    %v2227 = vmul.f32 %v2213, %v2052
    %v2228 = vadd.f32 %v2224, %v2226
    %v2229 = vadd.f32 %v2225, %v2227
    %2230 = vst [vmem:[#allocation3 + $0x30] sm:$0xff] %v2228
    %2231 = vst [vmem:[#allocation3 + $0x48] sm:$0xff] %v2229
    %v2232 = vld [vmem:[#allocation2 + $0xc0] sm:$0xff]
    %v2233 = vld [vmem:[#allocation2 + $0xc8] sm:$0xff]
    %v2234 = vld [vmem:[#allocation2 + $0xd0] sm:$0xff]
    %v2235 = vld [vmem:[#allocation2 + $0xd8] sm:$0xff]
    %v2236 = vld [vmem:[#allocation2 + $0xe0] sm:$0xff]
    %v2237 = vld [vmem:[#allocation2 + $0xe8] sm:$0xff]
    %v2238 = vpack.c.bf16 %v2228, %v2228
    %v2239 = vpack.c.bf16 %v2229, %v2229
    %2240 = vmatprep.subr.bf16.mxu0 %v1383
    %2241 = vmatpush1.bf16.msra.mxu0 %v1382
    %2242 = vmatprep.subr.bf16.mxu0 %v1377
    %2243 = vmatpush1.bf16.msra.mxu0 %v1376
    %2244 = vmatprep.subr.bf16.mxu0 %v1371
    %2245 = vmatpush1.bf16.msra.mxu0 %v1370
    %2246 = vmatprep.subr.bf16.mxu0 %v1365
    %2247 = vmatpush1.bf16.msra.mxu0 %v1364
    %2248 = vmatprep.subr.bf16.mxu0 %v1359
    %2249 = vmatpush1.bf16.msra.mxu0 %v1358
    %2250 = vmatprep.subr.bf16.mxu0 %v1353
    %2251 = vmatpush1.bf16.msra.mxu0 %v1352
    %2252 = vmatprep.subr.bf16.mxu0 %v1347
    %2253 = vmatpush1.bf16.msra.mxu0 %v1346
    %2254 = vmatprep.subr.bf16.mxu0 %v1341
    %2255 = vmatpush1.bf16.msra.mxu0 %v1340
    %2256 = vmatprep.subr.bf16.mxu0 %v1431
    %2257 = vmatpush2.bf16.msra.mxu0 %v1430
    %2258 = vmatprep.subr.bf16.mxu0 %v1425
    %2259 = vmatpush2.bf16.msra.mxu0 %v1424
    %2260 = vmatprep.subr.bf16.mxu0 %v1419
    %2261 = vmatpush2.bf16.msra.mxu0 %v1418
    %2262 = vmatprep.subr.bf16.mxu0 %v1413
    %2263 = vmatpush2.bf16.msra.mxu0 %v1412
    %2264 = vmatprep.subr.bf16.mxu0 %v1407
    %2265 = vmatpush2.bf16.msra.mxu0 %v1406
    %2266 = vmatprep.subr.bf16.mxu0 %v1401
    %2267 = vmatpush2.bf16.msra.mxu0 %v1400
    %2268 = vmatprep.subr.bf16.mxu0 %v1395
    %2269 = vmatpush2.bf16.msra.mxu0 %v1394
    %2270 = vmatprep.subr.bf16.mxu0 %v1389
    %2271 = vmatpush2.bf16.msra.mxu0 %v1388
    %2272 = vmatprep.mubr.bf16.mxu0 %v2239
    %2273 = vmatmul.mubr.bf16.gmra.mxu0 %v2238
    %v2274 = vpop.f32.mrf.mxu0
    %v2275 = vadd.f32 0.0, %v2274
    %v2276 = vpop.f32.mrf.mxu0
    %v2277 = vadd.f32 0.0, %v2276
    %v2278 = vpop.f32.mrf.mxu0
    %v2279 = vpop.f32.mrf.mxu0
    %2280 = vdwg.mxu0
    %2281 = vmatprep.subr.bf16.mxu0 %v1385
    %2282 = vmatpush1.bf16.msra.mxu0 %v1384
    %2283 = vmatprep.subr.bf16.mxu0 %v1379
    %2284 = vmatpush1.bf16.msra.mxu0 %v1378
    %2285 = vmatprep.subr.bf16.mxu0 %v1373
    %2286 = vmatpush1.bf16.msra.mxu0 %v1372
    %2287 = vmatprep.subr.bf16.mxu0 %v1367
    %2288 = vmatpush1.bf16.msra.mxu0 %v1366
    %2289 = vmatprep.subr.bf16.mxu0 %v1361
    %2290 = vmatpush1.bf16.msra.mxu0 %v1360
    %2291 = vmatprep.subr.bf16.mxu0 %v1355
    %2292 = vmatpush1.bf16.msra.mxu0 %v1354
    %2293 = vmatprep.subr.bf16.mxu0 %v1349
    %2294 = vmatpush1.bf16.msra.mxu0 %v1348
    %2295 = vmatprep.subr.bf16.mxu0 %v1343
    %2296 = vmatpush1.bf16.msra.mxu0 %v1342
    %2297 = vmatprep.subr.bf16.mxu0 %v1433
    %2298 = vmatpush2.bf16.msra.mxu0 %v1432
    %2299 = vmatprep.subr.bf16.mxu0 %v1427
    %2300 = vmatpush2.bf16.msra.mxu0 %v1426
    %2301 = vmatprep.subr.bf16.mxu0 %v1421
    %2302 = vmatpush2.bf16.msra.mxu0 %v1420
    %2303 = vmatprep.subr.bf16.mxu0 %v1415
    %2304 = vmatpush2.bf16.msra.mxu0 %v1414
    %2305 = vmatprep.subr.bf16.mxu0 %v1409
    %2306 = vmatpush2.bf16.msra.mxu0 %v1408
    %2307 = vmatprep.subr.bf16.mxu0 %v1403
    %2308 = vmatpush2.bf16.msra.mxu0 %v1402
    %2309 = vmatprep.subr.bf16.mxu0 %v1397
    %2310 = vmatpush2.bf16.msra.mxu0 %v1396
    %2311 = vmatprep.subr.bf16.mxu0 %v1391
    %2312 = vmatpush2.bf16.msra.mxu0 %v1390
    %2313 = vmatprep.mubr.bf16.mxu0 %v2239
    %2314 = vmatmul.mubr.bf16.gmra.mxu0 %v2238
    %v2315 = vpop.f32.mrf.mxu0
    %v2316 = vadd.f32 0.0, %v2315
    %v2317 = vpop.f32.mrf.mxu0
    %v2318 = vadd.f32 0.0, %v2317
    %v2319 = vpop.f32.mrf.mxu0
    %v2320 = vpop.f32.mrf.mxu0
    %2321 = vdwg.mxu0
    %2322 = vmatprep.subr.bf16.mxu0 %v1387
    %2323 = vmatpush1.bf16.msra.mxu0 %v1386
    %2324 = vmatprep.subr.bf16.mxu0 %v1381
    %2325 = vmatpush1.bf16.msra.mxu0 %v1380
    %2326 = vmatprep.subr.bf16.mxu0 %v1375
    %2327 = vmatpush1.bf16.msra.mxu0 %v1374
    %2328 = vmatprep.subr.bf16.mxu0 %v1369
    %2329 = vmatpush1.bf16.msra.mxu0 %v1368
    %2330 = vmatprep.subr.bf16.mxu0 %v1363
    %2331 = vmatpush1.bf16.msra.mxu0 %v1362
    %2332 = vmatprep.subr.bf16.mxu0 %v1357
    %2333 = vmatpush1.bf16.msra.mxu0 %v1356
    %2334 = vmatprep.subr.bf16.mxu0 %v1351
    %2335 = vmatpush1.bf16.msra.mxu0 %v1350
    %2336 = vmatprep.subr.bf16.mxu0 %v1345
    %2337 = vmatpush1.bf16.msra.mxu0 %v1344
    %2338 = vmatprep.subr.bf16.mxu0 %v1435
    %2339 = vmatpush2.bf16.msra.mxu0 %v1434
    %2340 = vmatprep.subr.bf16.mxu0 %v1429
    %2341 = vmatpush2.bf16.msra.mxu0 %v1428
    %2342 = vmatprep.subr.bf16.mxu0 %v1423
    %2343 = vmatpush2.bf16.msra.mxu0 %v1422
    %2344 = vmatprep.subr.bf16.mxu0 %v1417
    %2345 = vmatpush2.bf16.msra.mxu0 %v1416
    %2346 = vmatprep.subr.bf16.mxu0 %v1411
    %2347 = vmatpush2.bf16.msra.mxu0 %v1410
    %2348 = vmatprep.subr.bf16.mxu0 %v1405
    %2349 = vmatpush2.bf16.msra.mxu0 %v1404
    %2350 = vmatprep.subr.bf16.mxu0 %v1399
    %2351 = vmatpush2.bf16.msra.mxu0 %v1398
    %2352 = vmatprep.subr.bf16.mxu0 %v1393
    %2353 = vmatpush2.bf16.msra.mxu0 %v1392
    %2354 = vmatprep.mubr.bf16.mxu0 %v2239
    %2355 = vmatmul.mubr.bf16.gmra.mxu0 %v2238
    %v2356 = vpop.f32.mrf.mxu0
    %v2357 = vadd.f32 0.0, %v2356
    %v2358 = vpop.f32.mrf.mxu0
    %v2359 = vadd.f32 0.0, %v2358
    %v2360 = vpop.f32.mrf.mxu0
    %v2361 = vpop.f32.mrf.mxu0
    %2362 = vdwg.mxu0
    %v2363 = vadd.f32 %v2232, %v2275
    %v2364 = vadd.f32 %v2233, %v2277
    %v2365 = vxor.u32 %v2363, 2147483648
    %v2366 = vxor.u32 %v2364, 2147483648
    %v2367 = vmul.f32 %v2365, 1.442695
    %v2368 = vpow.pop %v2367
    %v2369 = vmul.f32 %v2366, 1.442695
    %v2370 = vpow.pop %v2369
    %v2371 = vadd.f32 %v2368, 1.0
    %v2372 = vadd.f32 %v2370, 1.0
    %v2373 = vrcp.pop %v2371
    %v2374 = vmul.f32 1.0, %v2373
    %v2375 = vrcp.pop %v2372
    %v2376 = vmul.f32 1.0, %v2375
    %v2377 = vadd.f32 %v2234, %v2316
    %v2378 = vadd.f32 %v2235, %v2318
    %v2379 = vxor.u32 %v2377, 2147483648
    %v2380 = vxor.u32 %v2378, 2147483648
    %v2381 = vmul.f32 %v2379, 1.442695
    %v2382 = vpow.pop %v2381
    %v2383 = vmul.f32 %v2380, 1.442695
    %v2384 = vpow.pop %v2383
    %v2385 = vadd.f32 %v2382, 1.0
    %v2386 = vadd.f32 %v2384, 1.0
    %v2387 = vrcp.pop %v2385
    %v2388 = vmul.f32 1.0, %v2387
    %v2389 = vrcp.pop %v2386
    %v2390 = vmul.f32 1.0, %v2389
    %v2391 = vadd.f32 %v2357, %v943
    %v2392 = vadd.f32 %v2359, %v947
    %v2393 = vmul.f32 %v2374, %v2391
    %v2394 = vmul.f32 %v2376, %v2392
    %v2395 = vadd.f32 %v2236, %v2393
    %v2396 = vadd.f32 %v2237, %v2394
    %v2397 = vtanh.pop %v2395
    %v2398 = vtanh.pop %v2396
    %v2399 = vsub.f32 1.0, %v2388
    %v2400 = vsub.f32 1.0, %v2390
    %v2401 = vmul.f32 %v2399, %v2397
    %v2402 = vmul.f32 %v2400, %v2398
    %v2403 = vmul.f32 %v2388, %v2228
    %v2404 = vmul.f32 %v2390, %v2229
    %v2405 = vadd.f32 %v2401, %v2403
    %v2406 = vadd.f32 %v2402, %v2404
    %2407 = vst [vmem:[#allocation3 + $0x40] sm:$0xff] %v2405
    %2408 = vst [vmem:[#allocation3 + $0x38] sm:$0xff] %v2406
    %v2409 = vld [vmem:[#allocation2 + $0xf0] sm:$0xff]
    %v2410 = vld [vmem:[#allocation2 + $0xf8] sm:$0xff]
    %v2411 = vld [vmem:[#allocation2 + $0x100] sm:$0xff]
    %v2412 = vld [vmem:[#allocation2 + $0x108] sm:$0xff]
    %v2413 = vld [vmem:[#allocation2 + $0x110] sm:$0xff]
    %v2414 = vld [vmem:[#allocation2 + $0x118] sm:$0xff]
    %v2415 = vpack.c.bf16 %v2405, %v2405
    %v2416 = vpack.c.bf16 %v2406, %v2406
    %2417 = vmatprep.subr.bf16.mxu0 %v1383
    %2418 = vmatpush1.bf16.msra.mxu0 %v1382
    %2419 = vmatprep.subr.bf16.mxu0 %v1377
    %2420 = vmatpush1.bf16.msra.mxu0 %v1376
    %2421 = vmatprep.subr.bf16.mxu0 %v1371
    %2422 = vmatpush1.bf16.msra.mxu0 %v1370
    %2423 = vmatprep.subr.bf16.mxu0 %v1365
    %2424 = vmatpush1.bf16.msra.mxu0 %v1364
    %2425 = vmatprep.subr.bf16.mxu0 %v1359
    %2426 = vmatpush1.bf16.msra.mxu0 %v1358
    %2427 = vmatprep.subr.bf16.mxu0 %v1353
    %2428 = vmatpush1.bf16.msra.mxu0 %v1352
    %2429 = vmatprep.subr.bf16.mxu0 %v1347
    %2430 = vmatpush1.bf16.msra.mxu0 %v1346
    %2431 = vmatprep.subr.bf16.mxu0 %v1341
    %2432 = vmatpush1.bf16.msra.mxu0 %v1340
    %2433 = vmatprep.subr.bf16.mxu0 %v1431
    %2434 = vmatpush2.bf16.msra.mxu0 %v1430
    %2435 = vmatprep.subr.bf16.mxu0 %v1425
    %2436 = vmatpush2.bf16.msra.mxu0 %v1424
    %2437 = vmatprep.subr.bf16.mxu0 %v1419
    %2438 = vmatpush2.bf16.msra.mxu0 %v1418
    %2439 = vmatprep.subr.bf16.mxu0 %v1413
    %2440 = vmatpush2.bf16.msra.mxu0 %v1412
    %2441 = vmatprep.subr.bf16.mxu0 %v1407
    %2442 = vmatpush2.bf16.msra.mxu0 %v1406
    %2443 = vmatprep.subr.bf16.mxu0 %v1401
    %2444 = vmatpush2.bf16.msra.mxu0 %v1400
    %2445 = vmatprep.subr.bf16.mxu0 %v1395
    %2446 = vmatpush2.bf16.msra.mxu0 %v1394
    %2447 = vmatprep.subr.bf16.mxu0 %v1389
    %2448 = vmatpush2.bf16.msra.mxu0 %v1388
    %2449 = vmatprep.mubr.bf16.mxu0 %v2416
    %2450 = vmatmul.mubr.bf16.gmra.mxu0 %v2415
    %v2451 = vpop.f32.mrf.mxu0
    %v2452 = vadd.f32 0.0, %v2451
    %v2453 = vpop.f32.mrf.mxu0
    %v2454 = vadd.f32 0.0, %v2453
    %v2455 = vpop.f32.mrf.mxu0
    %v2456 = vpop.f32.mrf.mxu0
    %2457 = vdwg.mxu0
    %2458 = vmatprep.subr.bf16.mxu0 %v1385
    %2459 = vmatpush1.bf16.msra.mxu0 %v1384
    %2460 = vmatprep.subr.bf16.mxu0 %v1379
    %2461 = vmatpush1.bf16.msra.mxu0 %v1378
    %2462 = vmatprep.subr.bf16.mxu0 %v1373
    %2463 = vmatpush1.bf16.msra.mxu0 %v1372
    %2464 = vmatprep.subr.bf16.mxu0 %v1367
    %2465 = vmatpush1.bf16.msra.mxu0 %v1366
    %2466 = vmatprep.subr.bf16.mxu0 %v1361
    %2467 = vmatpush1.bf16.msra.mxu0 %v1360
    %2468 = vmatprep.subr.bf16.mxu0 %v1355
    %2469 = vmatpush1.bf16.msra.mxu0 %v1354
    %2470 = vmatprep.subr.bf16.mxu0 %v1349
    %2471 = vmatpush1.bf16.msra.mxu0 %v1348
    %2472 = vmatprep.subr.bf16.mxu0 %v1343
    %2473 = vmatpush1.bf16.msra.mxu0 %v1342
    %2474 = vmatprep.subr.bf16.mxu0 %v1433
    %2475 = vmatpush2.bf16.msra.mxu0 %v1432
    %2476 = vmatprep.subr.bf16.mxu0 %v1427
    %2477 = vmatpush2.bf16.msra.mxu0 %v1426
    %2478 = vmatprep.subr.bf16.mxu0 %v1421
    %2479 = vmatpush2.bf16.msra.mxu0 %v1420
    %2480 = vmatprep.subr.bf16.mxu0 %v1415
    %2481 = vmatpush2.bf16.msra.mxu0 %v1414
    %2482 = vmatprep.subr.bf16.mxu0 %v1409
    %2483 = vmatpush2.bf16.msra.mxu0 %v1408
    %2484 = vmatprep.subr.bf16.mxu0 %v1403
    %2485 = vmatpush2.bf16.msra.mxu0 %v1402
    %2486 = vmatprep.subr.bf16.mxu0 %v1397
    %2487 = vmatpush2.bf16.msra.mxu0 %v1396
    %2488 = vmatprep.subr.bf16.mxu0 %v1391
    %2489 = vmatpush2.bf16.msra.mxu0 %v1390
    %2490 = vmatprep.mubr.bf16.mxu0 %v2416
    %2491 = vmatmul.mubr.bf16.gmra.mxu0 %v2415
    %v2492 = vpop.f32.mrf.mxu0
    %v2493 = vadd.f32 0.0, %v2492
    %v2494 = vpop.f32.mrf.mxu0
    %v2495 = vadd.f32 0.0, %v2494
    %v2496 = vpop.f32.mrf.mxu0
    %v2497 = vpop.f32.mrf.mxu0
    %2498 = vdwg.mxu0
    %2499 = vmatprep.subr.bf16.mxu0 %v1387
    %2500 = vmatpush1.bf16.msra.mxu0 %v1386
    %2501 = vmatprep.subr.bf16.mxu0 %v1381
    %2502 = vmatpush1.bf16.msra.mxu0 %v1380
    %2503 = vmatprep.subr.bf16.mxu0 %v1375
    %2504 = vmatpush1.bf16.msra.mxu0 %v1374
    %2505 = vmatprep.subr.bf16.mxu0 %v1369
    %2506 = vmatpush1.bf16.msra.mxu0 %v1368
    %2507 = vmatprep.subr.bf16.mxu0 %v1363
    %2508 = vmatpush1.bf16.msra.mxu0 %v1362
    %2509 = vmatprep.subr.bf16.mxu0 %v1357
    %2510 = vmatpush1.bf16.msra.mxu0 %v1356
    %2511 = vmatprep.subr.bf16.mxu0 %v1351
    %2512 = vmatpush1.bf16.msra.mxu0 %v1350
    %2513 = vmatprep.subr.bf16.mxu0 %v1345
    %2514 = vmatpush1.bf16.msra.mxu0 %v1344
    %2515 = vmatprep.subr.bf16.mxu0 %v1435
    %2516 = vmatpush2.bf16.msra.mxu0 %v1434
    %2517 = vmatprep.subr.bf16.mxu0 %v1429
    %2518 = vmatpush2.bf16.msra.mxu0 %v1428
    %2519 = vmatprep.subr.bf16.mxu0 %v1423
    %2520 = vmatpush2.bf16.msra.mxu0 %v1422
    %2521 = vmatprep.subr.bf16.mxu0 %v1417
    %2522 = vmatpush2.bf16.msra.mxu0 %v1416
    %2523 = vmatprep.subr.bf16.mxu0 %v1411
    %2524 = vmatpush2.bf16.msra.mxu0 %v1410
    %2525 = vmatprep.subr.bf16.mxu0 %v1405
    %2526 = vmatpush2.bf16.msra.mxu0 %v1404
    %2527 = vmatprep.subr.bf16.mxu0 %v1399
    %2528 = vmatpush2.bf16.msra.mxu0 %v1398
    %2529 = vmatprep.subr.bf16.mxu0 %v1393
    %2530 = vmatpush2.bf16.msra.mxu0 %v1392
    %2531 = vmatprep.mubr.bf16.mxu0 %v2416
    %2532 = vmatmul.mubr.bf16.gmra.mxu0 %v2415
    %v2533 = vpop.f32.mrf.mxu0
    %v2534 = vadd.f32 0.0, %v2533
    %v2535 = vpop.f32.mrf.mxu0
    %v2536 = vadd.f32 0.0, %v2535
    %v2537 = vpop.f32.mrf.mxu0
    %v2538 = vpop.f32.mrf.mxu0
    %2539 = vdwg.mxu0
    %v2540 = vadd.f32 %v2409, %v2452
    %v2541 = vadd.f32 %v2410, %v2454
    %v2542 = vxor.u32 %v2540, 2147483648
    %v2543 = vxor.u32 %v2541, 2147483648
    %v2544 = vmul.f32 %v2542, 1.442695
    %v2545 = vpow.pop %v2544
    %v2546 = vmul.f32 %v2543, 1.442695
    %v2547 = vpow.pop %v2546
    %v2548 = vadd.f32 %v2545, 1.0
    %v2549 = vadd.f32 %v2547, 1.0
    %v2550 = vrcp.pop %v2548
    %v2551 = vmul.f32 1.0, %v2550
    %v2552 = vrcp.pop %v2549
    %v2553 = vmul.f32 1.0, %v2552
    %v2554 = vadd.f32 %v2411, %v2493
    %v2555 = vadd.f32 %v2412, %v2495
    %v2556 = vxor.u32 %v2554, 2147483648
    %v2557 = vxor.u32 %v2555, 2147483648
    %v2558 = vmul.f32 %v2556, 1.442695
    %v2559 = vpow.pop %v2558
    %v2560 = vmul.f32 %v2557, 1.442695
    %v2561 = vpow.pop %v2560
    %v2562 = vadd.f32 %v2559, 1.0
    %v2563 = vadd.f32 %v2561, 1.0
    %v2564 = vrcp.pop %v2562
    %v2565 = vmul.f32 1.0, %v2564
    %v2566 = vrcp.pop %v2563
    %v2567 = vmul.f32 1.0, %v2566
    %v2568 = vadd.f32 %v2534, %v943
    %v2569 = vadd.f32 %v2536, %v947
    %v2570 = vmul.f32 %v2551, %v2568
    %v2571 = vmul.f32 %v2553, %v2569
    %v2572 = vadd.f32 %v2413, %v2570
    %v2573 = vadd.f32 %v2414, %v2571
    %v2574 = vtanh.pop %v2572
    %v2575 = vtanh.pop %v2573
    %v2576 = vsub.f32 1.0, %v2565
    %v2577 = vsub.f32 1.0, %v2567
    %v2578 = vmul.f32 %v2576, %v2574
    %v2579 = vmul.f32 %v2577, %v2575
    %v2580 = vmul.f32 %v2565, %v2405
    %v2581 = vmul.f32 %v2567, %v2406
    %v2582 = vadd.f32 %v2578, %v2580
    %v2583 = vadd.f32 %v2579, %v2581
    %2584 = vst [vmem:[#allocation3 + $0x50] sm:$0xff] %v2582
    %2585 = vst [vmem:[#allocation3 + $0x28] sm:$0xff] %v2583
    %v2586 = vld [vmem:[#allocation2 + $0x120] sm:$0xff]
    %v2587 = vld [vmem:[#allocation2 + $0x128] sm:$0xff]
    %v2588 = vld [vmem:[#allocation2 + $0x130] sm:$0xff]
    %v2589 = vld [vmem:[#allocation2 + $0x138] sm:$0xff]
    %v2590 = vld [vmem:[#allocation2 + $0x140] sm:$0xff]
    %v2591 = vld [vmem:[#allocation2 + $0x148] sm:$0xff]
    %v2592 = vpack.c.bf16 %v2582, %v2582
    %v2593 = vpack.c.bf16 %v2583, %v2583
    %2594 = vmatprep.subr.bf16.mxu0 %v1383
    %2595 = vmatpush1.bf16.msra.mxu0 %v1382
    %2596 = vmatprep.subr.bf16.mxu0 %v1377
    %2597 = vmatpush1.bf16.msra.mxu0 %v1376
    %2598 = vmatprep.subr.bf16.mxu0 %v1371
    %2599 = vmatpush1.bf16.msra.mxu0 %v1370
    %2600 = vmatprep.subr.bf16.mxu0 %v1365
    %2601 = vmatpush1.bf16.msra.mxu0 %v1364
    %2602 = vmatprep.subr.bf16.mxu0 %v1359
    %2603 = vmatpush1.bf16.msra.mxu0 %v1358
    %2604 = vmatprep.subr.bf16.mxu0 %v1353
    %2605 = vmatpush1.bf16.msra.mxu0 %v1352
    %2606 = vmatprep.subr.bf16.mxu0 %v1347
    %2607 = vmatpush1.bf16.msra.mxu0 %v1346
    %2608 = vmatprep.subr.bf16.mxu0 %v1341
    %2609 = vmatpush1.bf16.msra.mxu0 %v1340
    %2610 = vmatprep.subr.bf16.mxu0 %v1431
    %2611 = vmatpush2.bf16.msra.mxu0 %v1430
    %2612 = vmatprep.subr.bf16.mxu0 %v1425
    %2613 = vmatpush2.bf16.msra.mxu0 %v1424
    %2614 = vmatprep.subr.bf16.mxu0 %v1419
    %2615 = vmatpush2.bf16.msra.mxu0 %v1418
    %2616 = vmatprep.subr.bf16.mxu0 %v1413
    %2617 = vmatpush2.bf16.msra.mxu0 %v1412
    %2618 = vmatprep.subr.bf16.mxu0 %v1407
    %2619 = vmatpush2.bf16.msra.mxu0 %v1406
    %2620 = vmatprep.subr.bf16.mxu0 %v1401
    %2621 = vmatpush2.bf16.msra.mxu0 %v1400
    %2622 = vmatprep.subr.bf16.mxu0 %v1395
    %2623 = vmatpush2.bf16.msra.mxu0 %v1394
    %2624 = vmatprep.subr.bf16.mxu0 %v1389
    %2625 = vmatpush2.bf16.msra.mxu0 %v1388
    %2626 = vmatprep.mubr.bf16.mxu0 %v2593
    %2627 = vmatmul.mubr.bf16.gmra.mxu0 %v2592
    %v2628 = vpop.f32.mrf.mxu0
    %v2629 = vadd.f32 0.0, %v2628
    %v2630 = vpop.f32.mrf.mxu0
    %v2631 = vadd.f32 0.0, %v2630
    %v2632 = vpop.f32.mrf.mxu0
    %v2633 = vpop.f32.mrf.mxu0
    %2634 = vdwg.mxu0
    %2635 = vmatprep.subr.bf16.mxu0 %v1385
    %2636 = vmatpush1.bf16.msra.mxu0 %v1384
    %2637 = vmatprep.subr.bf16.mxu0 %v1379
    %2638 = vmatpush1.bf16.msra.mxu0 %v1378
    %2639 = vmatprep.subr.bf16.mxu0 %v1373
    %2640 = vmatpush1.bf16.msra.mxu0 %v1372
    %2641 = vmatprep.subr.bf16.mxu0 %v1367
    %2642 = vmatpush1.bf16.msra.mxu0 %v1366
    %2643 = vmatprep.subr.bf16.mxu0 %v1361
    %2644 = vmatpush1.bf16.msra.mxu0 %v1360
    %2645 = vmatprep.subr.bf16.mxu0 %v1355
    %2646 = vmatpush1.bf16.msra.mxu0 %v1354
    %2647 = vmatprep.subr.bf16.mxu0 %v1349
    %2648 = vmatpush1.bf16.msra.mxu0 %v1348
    %2649 = vmatprep.subr.bf16.mxu0 %v1343
    %2650 = vmatpush1.bf16.msra.mxu0 %v1342
    %2651 = vmatprep.subr.bf16.mxu0 %v1433
    %2652 = vmatpush2.bf16.msra.mxu0 %v1432
    %2653 = vmatprep.subr.bf16.mxu0 %v1427
    %2654 = vmatpush2.bf16.msra.mxu0 %v1426
    %2655 = vmatprep.subr.bf16.mxu0 %v1421
    %2656 = vmatpush2.bf16.msra.mxu0 %v1420
    %2657 = vmatprep.subr.bf16.mxu0 %v1415
    %2658 = vmatpush2.bf16.msra.mxu0 %v1414
    %2659 = vmatprep.subr.bf16.mxu0 %v1409
    %2660 = vmatpush2.bf16.msra.mxu0 %v1408
    %2661 = vmatprep.subr.bf16.mxu0 %v1403
    %2662 = vmatpush2.bf16.msra.mxu0 %v1402
    %2663 = vmatprep.subr.bf16.mxu0 %v1397
    %2664 = vmatpush2.bf16.msra.mxu0 %v1396
    %2665 = vmatprep.subr.bf16.mxu0 %v1391
    %2666 = vmatpush2.bf16.msra.mxu0 %v1390
    %2667 = vmatprep.mubr.bf16.mxu0 %v2593
    %2668 = vmatmul.mubr.bf16.gmra.mxu0 %v2592
    %v2669 = vpop.f32.mrf.mxu0
    %v2670 = vadd.f32 0.0, %v2669
    %v2671 = vpop.f32.mrf.mxu0
    %v2672 = vadd.f32 0.0, %v2671
    %v2673 = vpop.f32.mrf.mxu0
    %v2674 = vpop.f32.mrf.mxu0
    %2675 = vdwg.mxu0
    %2676 = vmatprep.subr.bf16.mxu0 %v1387
    %2677 = vmatpush1.bf16.msra.mxu0 %v1386
    %2678 = vmatprep.subr.bf16.mxu0 %v1381
    %2679 = vmatpush1.bf16.msra.mxu0 %v1380
    %2680 = vmatprep.subr.bf16.mxu0 %v1375
    %2681 = vmatpush1.bf16.msra.mxu0 %v1374
    %2682 = vmatprep.subr.bf16.mxu0 %v1369
    %2683 = vmatpush1.bf16.msra.mxu0 %v1368
    %2684 = vmatprep.subr.bf16.mxu0 %v1363
    %2685 = vmatpush1.bf16.msra.mxu0 %v1362
    %2686 = vmatprep.subr.bf16.mxu0 %v1357
    %2687 = vmatpush1.bf16.msra.mxu0 %v1356
    %2688 = vmatprep.subr.bf16.mxu0 %v1351
    %2689 = vmatpush1.bf16.msra.mxu0 %v1350
    %2690 = vmatprep.subr.bf16.mxu0 %v1345
    %2691 = vmatpush1.bf16.msra.mxu0 %v1344
    %2692 = vmatprep.subr.bf16.mxu0 %v1435
    %2693 = vmatpush2.bf16.msra.mxu0 %v1434
    %2694 = vmatprep.subr.bf16.mxu0 %v1429
    %2695 = vmatpush2.bf16.msra.mxu0 %v1428
    %2696 = vmatprep.subr.bf16.mxu0 %v1423
    %2697 = vmatpush2.bf16.msra.mxu0 %v1422
    %2698 = vmatprep.subr.bf16.mxu0 %v1417
    %2699 = vmatpush2.bf16.msra.mxu0 %v1416
    %2700 = vmatprep.subr.bf16.mxu0 %v1411
    %2701 = vmatpush2.bf16.msra.mxu0 %v1410
    %2702 = vmatprep.subr.bf16.mxu0 %v1405
    %2703 = vmatpush2.bf16.msra.mxu0 %v1404
    %2704 = vmatprep.subr.bf16.mxu0 %v1399
    %2705 = vmatpush2.bf16.msra.mxu0 %v1398
    %2706 = vmatprep.subr.bf16.mxu0 %v1393
    %2707 = vmatpush2.bf16.msra.mxu0 %v1392
    %2708 = vmatprep.mubr.bf16.mxu0 %v2593
    %2709 = vmatmul.mubr.bf16.gmra.mxu0 %v2592
    %v2710 = vpop.f32.mrf.mxu0
    %v2711 = vadd.f32 0.0, %v2710
    %v2712 = vpop.f32.mrf.mxu0
    %v2713 = vadd.f32 0.0, %v2712
    %v2714 = vpop.f32.mrf.mxu0
    %v2715 = vpop.f32.mrf.mxu0
    %2716 = vdwg.mxu0
    %v2717 = vadd.f32 %v2586, %v2629
    %v2718 = vadd.f32 %v2587, %v2631
    %v2719 = vxor.u32 %v2717, 2147483648
    %v2720 = vxor.u32 %v2718, 2147483648
    %v2721 = vmul.f32 %v2719, 1.442695
    %v2722 = vpow.pop %v2721
    %v2723 = vmul.f32 %v2720, 1.442695
    %v2724 = vpow.pop %v2723
    %v2725 = vadd.f32 %v2722, 1.0
    %v2726 = vadd.f32 %v2724, 1.0
    %v2727 = vrcp.pop %v2725
    %v2728 = vmul.f32 1.0, %v2727
    %v2729 = vrcp.pop %v2726
    %v2730 = vmul.f32 1.0, %v2729
    %v2731 = vadd.f32 %v2588, %v2670
    %v2732 = vadd.f32 %v2589, %v2672
    %v2733 = vxor.u32 %v2731, 2147483648
    %v2734 = vxor.u32 %v2732, 2147483648
    %v2735 = vmul.f32 %v2733, 1.442695
    %v2736 = vpow.pop %v2735
    %v2737 = vmul.f32 %v2734, 1.442695
    %v2738 = vpow.pop %v2737
    %v2739 = vadd.f32 %v2736, 1.0
    %v2740 = vadd.f32 %v2738, 1.0
    %v2741 = vrcp.pop %v2739
    %v2742 = vmul.f32 1.0, %v2741
    %v2743 = vrcp.pop %v2740
    %v2744 = vmul.f32 1.0, %v2743
    %v2745 = vadd.f32 %v2711, %v943
    %v2746 = vadd.f32 %v2713, %v947
    %v2747 = vmul.f32 %v2728, %v2745
    %v2748 = vmul.f32 %v2730, %v2746
    %v2749 = vadd.f32 %v2590, %v2747
    %v2750 = vadd.f32 %v2591, %v2748
    %v2751 = vtanh.pop %v2749
    %v2752 = vtanh.pop %v2750
    %v2753 = vsub.f32 1.0, %v2742
    %v2754 = vsub.f32 1.0, %v2744
    %v2755 = vmul.f32 %v2753, %v2751
    %v2756 = vmul.f32 %v2754, %v2752
    %v2757 = vmul.f32 %v2742, %v2582
    %v2758 = vmul.f32 %v2744, %v2583
    %v2759 = vadd.f32 %v2755, %v2757
    %v2760 = vadd.f32 %v2756, %v2758
    %2761 = vst [vmem:[#allocation3 + $0x60] sm:$0xff] %v2759
    %2762 = vst [vmem:[#allocation3 + $0x18] sm:$0xff] %v2760
    %v2763 = vld [vmem:[#allocation2 + $0x150] sm:$0xff]
    %v2764 = vld [vmem:[#allocation2 + $0x158] sm:$0xff]
    %v2765 = vld [vmem:[#allocation2 + $0x160] sm:$0xff]
    %v2766 = vld [vmem:[#allocation2 + $0x168] sm:$0xff]
    %v2767 = vld [vmem:[#allocation2 + $0x170] sm:$0xff]
    %v2768 = vld [vmem:[#allocation2 + $0x178] sm:$0xff]
    %v2769 = vpack.c.bf16 %v2759, %v2759
    %v2770 = vpack.c.bf16 %v2760, %v2760
    %2771 = vmatprep.subr.bf16.mxu0 %v1383
    %2772 = vmatpush1.bf16.msra.mxu0 %v1382
    %2773 = vmatprep.subr.bf16.mxu0 %v1377
    %2774 = vmatpush1.bf16.msra.mxu0 %v1376
    %2775 = vmatprep.subr.bf16.mxu0 %v1371
    %2776 = vmatpush1.bf16.msra.mxu0 %v1370
    %2777 = vmatprep.subr.bf16.mxu0 %v1365
    %2778 = vmatpush1.bf16.msra.mxu0 %v1364
    %2779 = vmatprep.subr.bf16.mxu0 %v1359
    %2780 = vmatpush1.bf16.msra.mxu0 %v1358
    %2781 = vmatprep.subr.bf16.mxu0 %v1353
    %2782 = vmatpush1.bf16.msra.mxu0 %v1352
    %2783 = vmatprep.subr.bf16.mxu0 %v1347
    %2784 = vmatpush1.bf16.msra.mxu0 %v1346
    %2785 = vmatprep.subr.bf16.mxu0 %v1341
    %2786 = vmatpush1.bf16.msra.mxu0 %v1340
    %2787 = vmatprep.subr.bf16.mxu0 %v1431
    %2788 = vmatpush2.bf16.msra.mxu0 %v1430
    %2789 = vmatprep.subr.bf16.mxu0 %v1425
    %2790 = vmatpush2.bf16.msra.mxu0 %v1424
    %2791 = vmatprep.subr.bf16.mxu0 %v1419
    %2792 = vmatpush2.bf16.msra.mxu0 %v1418
    %2793 = vmatprep.subr.bf16.mxu0 %v1413
    %2794 = vmatpush2.bf16.msra.mxu0 %v1412
    %2795 = vmatprep.subr.bf16.mxu0 %v1407
    %2796 = vmatpush2.bf16.msra.mxu0 %v1406
    %2797 = vmatprep.subr.bf16.mxu0 %v1401
    %2798 = vmatpush2.bf16.msra.mxu0 %v1400
    %2799 = vmatprep.subr.bf16.mxu0 %v1395
    %2800 = vmatpush2.bf16.msra.mxu0 %v1394
    %2801 = vmatprep.subr.bf16.mxu0 %v1389
    %2802 = vmatpush2.bf16.msra.mxu0 %v1388
    %2803 = vmatprep.mubr.bf16.mxu0 %v2770
    %2804 = vmatmul.mubr.bf16.gmra.mxu0 %v2769
    %v2805 = vpop.f32.mrf.mxu0
    %v2806 = vadd.f32 0.0, %v2805
    %v2807 = vpop.f32.mrf.mxu0
    %v2808 = vadd.f32 0.0, %v2807
    %v2809 = vpop.f32.mrf.mxu0
    %v2810 = vpop.f32.mrf.mxu0
    %2811 = vdwg.mxu0
    %2812 = vmatprep.subr.bf16.mxu0 %v1385
    %2813 = vmatpush1.bf16.msra.mxu0 %v1384
    %2814 = vmatprep.subr.bf16.mxu0 %v1379
    %2815 = vmatpush1.bf16.msra.mxu0 %v1378
    %2816 = vmatprep.subr.bf16.mxu0 %v1373
    %2817 = vmatpush1.bf16.msra.mxu0 %v1372
    %2818 = vmatprep.subr.bf16.mxu0 %v1367
    %2819 = vmatpush1.bf16.msra.mxu0 %v1366
    %2820 = vmatprep.subr.bf16.mxu0 %v1361
    %2821 = vmatpush1.bf16.msra.mxu0 %v1360
    %2822 = vmatprep.subr.bf16.mxu0 %v1355
    %2823 = vmatpush1.bf16.msra.mxu0 %v1354
    %2824 = vmatprep.subr.bf16.mxu0 %v1349
    %2825 = vmatpush1.bf16.msra.mxu0 %v1348
    %2826 = vmatprep.subr.bf16.mxu0 %v1343
    %2827 = vmatpush1.bf16.msra.mxu0 %v1342
    %2828 = vmatprep.subr.bf16.mxu0 %v1433
    %2829 = vmatpush2.bf16.msra.mxu0 %v1432
    %2830 = vmatprep.subr.bf16.mxu0 %v1427
    %2831 = vmatpush2.bf16.msra.mxu0 %v1426
    %2832 = vmatprep.subr.bf16.mxu0 %v1421
    %2833 = vmatpush2.bf16.msra.mxu0 %v1420
    %2834 = vmatprep.subr.bf16.mxu0 %v1415
    %2835 = vmatpush2.bf16.msra.mxu0 %v1414
    %2836 = vmatprep.subr.bf16.mxu0 %v1409
    %2837 = vmatpush2.bf16.msra.mxu0 %v1408
    %2838 = vmatprep.subr.bf16.mxu0 %v1403
    %2839 = vmatpush2.bf16.msra.mxu0 %v1402
    %2840 = vmatprep.subr.bf16.mxu0 %v1397
    %2841 = vmatpush2.bf16.msra.mxu0 %v1396
    %2842 = vmatprep.subr.bf16.mxu0 %v1391
    %2843 = vmatpush2.bf16.msra.mxu0 %v1390
    %2844 = vmatprep.mubr.bf16.mxu0 %v2770
    %2845 = vmatmul.mubr.bf16.gmra.mxu0 %v2769
    %v2846 = vpop.f32.mrf.mxu0
    %v2847 = vadd.f32 0.0, %v2846
    %v2848 = vpop.f32.mrf.mxu0
    %v2849 = vadd.f32 0.0, %v2848
    %v2850 = vpop.f32.mrf.mxu0
    %v2851 = vpop.f32.mrf.mxu0
    %2852 = vdwg.mxu0
    %2853 = vmatprep.subr.bf16.mxu0 %v1387
    %2854 = vmatpush1.bf16.msra.mxu0 %v1386
    %2855 = vmatprep.subr.bf16.mxu0 %v1381
    %2856 = vmatpush1.bf16.msra.mxu0 %v1380
    %2857 = vmatprep.subr.bf16.mxu0 %v1375
    %2858 = vmatpush1.bf16.msra.mxu0 %v1374
    %2859 = vmatprep.subr.bf16.mxu0 %v1369
    %2860 = vmatpush1.bf16.msra.mxu0 %v1368
    %2861 = vmatprep.subr.bf16.mxu0 %v1363
    %2862 = vmatpush1.bf16.msra.mxu0 %v1362
    %2863 = vmatprep.subr.bf16.mxu0 %v1357
    %2864 = vmatpush1.bf16.msra.mxu0 %v1356
    %2865 = vmatprep.subr.bf16.mxu0 %v1351
    %2866 = vmatpush1.bf16.msra.mxu0 %v1350
    %2867 = vmatprep.subr.bf16.mxu0 %v1345
    %2868 = vmatpush1.bf16.msra.mxu0 %v1344
    %2869 = vmatprep.subr.bf16.mxu0 %v1435
    %2870 = vmatpush2.bf16.msra.mxu0 %v1434
    %2871 = vmatprep.subr.bf16.mxu0 %v1429
    %2872 = vmatpush2.bf16.msra.mxu0 %v1428
    %2873 = vmatprep.subr.bf16.mxu0 %v1423
    %2874 = vmatpush2.bf16.msra.mxu0 %v1422
    %2875 = vmatprep.subr.bf16.mxu0 %v1417
    %2876 = vmatpush2.bf16.msra.mxu0 %v1416
    %2877 = vmatprep.subr.bf16.mxu0 %v1411
    %2878 = vmatpush2.bf16.msra.mxu0 %v1410
    %2879 = vmatprep.subr.bf16.mxu0 %v1405
    %2880 = vmatpush2.bf16.msra.mxu0 %v1404
    %2881 = vmatprep.subr.bf16.mxu0 %v1399
    %2882 = vmatpush2.bf16.msra.mxu0 %v1398
    %2883 = vmatprep.subr.bf16.mxu0 %v1393
    %2884 = vmatpush2.bf16.msra.mxu0 %v1392
    %2885 = vmatprep.mubr.bf16.mxu0 %v2770
    %2886 = vmatmul.mubr.bf16.gmra.mxu0 %v2769
    %v2887 = vpop.f32.mrf.mxu0
    %v2888 = vadd.f32 0.0, %v2887
    %v2889 = vpop.f32.mrf.mxu0
    %v2890 = vadd.f32 0.0, %v2889
    %v2891 = vpop.f32.mrf.mxu0
    %v2892 = vpop.f32.mrf.mxu0
    %2893 = vdwg.mxu0
    %v2894 = vadd.f32 %v2763, %v2806
    %v2895 = vadd.f32 %v2764, %v2808
    %v2896 = vxor.u32 %v2894, 2147483648
    %v2897 = vxor.u32 %v2895, 2147483648
    %v2898 = vmul.f32 %v2896, 1.442695
    %v2899 = vpow.pop %v2898
    %v2900 = vmul.f32 %v2897, 1.442695
    %v2901 = vpow.pop %v2900
    %v2902 = vadd.f32 %v2899, 1.0
    %v2903 = vadd.f32 %v2901, 1.0
    %v2904 = vrcp.pop %v2902
    %v2905 = vmul.f32 1.0, %v2904
    %v2906 = vrcp.pop %v2903
    %v2907 = vmul.f32 1.0, %v2906
    %v2908 = vadd.f32 %v2765, %v2847
    %v2909 = vadd.f32 %v2766, %v2849
    %v2910 = vxor.u32 %v2908, 2147483648
    %v2911 = vxor.u32 %v2909, 2147483648
    %v2912 = vmul.f32 %v2910, 1.442695
    %v2913 = vpow.pop %v2912
    %v2914 = vmul.f32 %v2911, 1.442695
    %v2915 = vpow.pop %v2914
    %v2916 = vadd.f32 %v2913, 1.0
    %v2917 = vadd.f32 %v2915, 1.0
    %v2918 = vrcp.pop %v2916
    %v2919 = vmul.f32 1.0, %v2918
    %v2920 = vrcp.pop %v2917
    %v2921 = vmul.f32 1.0, %v2920
    %v2922 = vadd.f32 %v2888, %v943
    %v2923 = vadd.f32 %v2890, %v947
    %v2924 = vmul.f32 %v2905, %v2922
    %v2925 = vmul.f32 %v2907, %v2923
    %v2926 = vadd.f32 %v2767, %v2924
    %v2927 = vadd.f32 %v2768, %v2925
    %v2928 = vtanh.pop %v2926
    %v2929 = vtanh.pop %v2927
    %v2930 = vsub.f32 1.0, %v2919
    %v2931 = vsub.f32 1.0, %v2921
    %v2932 = vmul.f32 %v2930, %v2928
    %v2933 = vmul.f32 %v2931, %v2929
    %v2934 = vmul.f32 %v2919, %v2759
    %v2935 = vmul.f32 %v2921, %v2760
    %v2936 = vadd.f32 %v2932, %v2934
    %v2937 = vadd.f32 %v2933, %v2935
    %2938 = vst [vmem:[#allocation3 + $0x70] sm:$0xff] %v2936
    %2939 = vst [vmem:[#allocation3 + $0x8] sm:$0xff] %v2937
    %v2940 = vld [vmem:[#allocation3] sm:$0xff]
    %v2941 = vld [vmem:[#allocation3 + $0x8] sm:$0xff]
    %v2942 = vld [vmem:[#allocation3 + $0x10] sm:$0xff]
    %v2943 = vld [vmem:[#allocation3 + $0x18] sm:$0xff]
    %v2944 = vld [vmem:[#allocation3 + $0x20] sm:$0xff]
    %v2945 = vld [vmem:[#allocation3 + $0x28] sm:$0xff]
    %v2946 = vld [vmem:[#allocation3 + $0x30] sm:$0xff]
    %v2947 = vld [vmem:[#allocation3 + $0x38] sm:$0xff]
    %v2948 = vld [vmem:[#allocation3 + $0x40] sm:$0xff]
    %v2949 = vld [vmem:[#allocation3 + $0x48] sm:$0xff]
    %v2950 = vld [vmem:[#allocation3 + $0x50] sm:$0xff]
    %v2951 = vld [vmem:[#allocation3 + $0x58] sm:$0xff]
    %v2952 = vld [vmem:[#allocation3 + $0x60] sm:$0xff]
    %v2953 = vld [vmem:[#allocation3 + $0x68] sm:$0xff]
    %v2954 = vld [vmem:[#allocation3 + $0x70] sm:$0xff]
    %v2955 = vld [vmem:[#allocation3 + $0x78] sm:$0xff]
    %v2956 = vpack.c.bf16 %v2942, %v2940
    %v2957 = vpack.c.bf16 %v2943, %v2941
    %v2958 = vpack.c.bf16 %v2946, %v2944
    %v2959 = vpack.c.bf16 %v2947, %v2945
    %v2960 = vpack.c.bf16 %v2950, %v2948
    %v2961 = vpack.c.bf16 %v2951, %v2949
    %v2962 = vpack.c.bf16 %v2954, %v2952
    %v2963 = vpack.c.bf16 %v2955, %v2953
    %v2964 = vld [vmem:[#allocation12] sm:$0xff]
    %v2965 = vld [vmem:[#allocation12 + $0x8] sm:$0xf]
    %v2966 = vld [vmem:[#allocation12 + $0xc] sm:$0xff]
    %v2967 = vld [vmem:[#allocation12 + $0x14] sm:$0xf]
    %v2968 = vld [vmem:[#allocation12 + $0x18] sm:$0xff]
    %v2969 = vld [vmem:[#allocation12 + $0x20] sm:$0xf]
    %v2970 = vld [vmem:[#allocation12 + $0x24] sm:$0xff]
    %v2971 = vld [vmem:[#allocation12 + $0x2c] sm:$0xf]
    %v2972 = vld [vmem:[#allocation12 + $0x30] sm:$0xff]
    %v2973 = vld [vmem:[#allocation12 + $0x38] sm:$0xf]
    %v2974 = vld [vmem:[#allocation12 + $0x3c] sm:$0xff]
    %v2975 = vld [vmem:[#allocation12 + $0x44] sm:$0xf]
    %v2976 = vld [vmem:[#allocation12 + $0x48] sm:$0xff]
    %v2977 = vld [vmem:[#allocation12 + $0x50] sm:$0xf]
    %v2978 = vld [vmem:[#allocation12 + $0x54] sm:$0xff]
    %v2979 = vld [vmem:[#allocation12 + $0x5c] sm:$0xf]
    %v2980 = vld [vmem:[#allocation12 + $0x60] sm:$0xff]
    %v2981 = vld [vmem:[#allocation12 + $0x68] sm:$0xf]
    %v2982 = vld [vmem:[#allocation12 + $0x6c] sm:$0xff]
    %v2983 = vld [vmem:[#allocation12 + $0x74] sm:$0xf]
    %v2984 = vld [vmem:[#allocation12 + $0x78] sm:$0xff]
    %v2985 = vld [vmem:[#allocation12 + $0x80] sm:$0xf]
    %v2986 = vld [vmem:[#allocation12 + $0x84] sm:$0xff]
    %v2987 = vld [vmem:[#allocation12 + $0x8c] sm:$0xf]
    %v2988 = vld [vmem:[#allocation12 + $0x90] sm:$0xff]
    %v2989 = vld [vmem:[#allocation12 + $0x98] sm:$0xf]
    %v2990 = vld [vmem:[#allocation12 + $0x9c] sm:$0xff]
    %v2991 = vld [vmem:[#allocation12 + $0xa4] sm:$0xf]
    %v2992 = vld [vmem:[#allocation12 + $0xa8] sm:$0xff]
    %v2993 = vld [vmem:[#allocation12 + $0xb0] sm:$0xf]
    %v2994 = vld [vmem:[#allocation12 + $0xb4] sm:$0xff]
    %v2995 = vld [vmem:[#allocation12 + $0xbc] sm:$0xf]
    %v2996 = vld [vmem:[#allocation12 + $0xc0] sm:$0xff]
    %v2997 = vld [vmem:[#allocation12 + $0xc8] sm:$0xf]
    %v2998 = vld [vmem:[#allocation12 + $0xcc] sm:$0xff]
    %v2999 = vld [vmem:[#allocation12 + $0xd4] sm:$0xf]
    %v3000 = vld [vmem:[#allocation12 + $0xd8] sm:$0xff]
    %v3001 = vld [vmem:[#allocation12 + $0xe0] sm:$0xf]
    %v3002 = vld [vmem:[#allocation12 + $0xe4] sm:$0xff]
    %v3003 = vld [vmem:[#allocation12 + $0xec] sm:$0xf]
    %v3004 = vld [vmem:[#allocation12 + $0xf0] sm:$0xff]
    %v3005 = vld [vmem:[#allocation12 + $0xf8] sm:$0xf]
    %v3006 = vld [vmem:[#allocation12 + $0xfc] sm:$0xff]
    %v3007 = vld [vmem:[#allocation12 + $0x104] sm:$0xf]
    %v3008 = vld [vmem:[#allocation12 + $0x108] sm:$0xff]
    %v3009 = vld [vmem:[#allocation12 + $0x110] sm:$0xf]
    %v3010 = vld [vmem:[#allocation12 + $0x114] sm:$0xff]
    %v3011 = vld [vmem:[#allocation12 + $0x11c] sm:$0xf]
    %v3012 = vld [vmem:[#allocation12 + $0x120] sm:$0xff]
    %v3013 = vld [vmem:[#allocation12 + $0x128] sm:$0xf]
    %v3014 = vld [vmem:[#allocation12 + $0x12c] sm:$0xff]
    %v3015 = vld [vmem:[#allocation12 + $0x134] sm:$0xf]
    %v3016 = vld [vmem:[#allocation12 + $0x138] sm:$0xff]
    %v3017 = vld [vmem:[#allocation12 + $0x140] sm:$0xf]
    %v3018 = vld [vmem:[#allocation12 + $0x144] sm:$0xff]
    %v3019 = vld [vmem:[#allocation12 + $0x14c] sm:$0xf]
    %v3020 = vld [vmem:[#allocation12 + $0x150] sm:$0xff]
    %v3021 = vld [vmem:[#allocation12 + $0x158] sm:$0xf]
    %v3022 = vld [vmem:[#allocation12 + $0x15c] sm:$0xff]
    %v3023 = vld [vmem:[#allocation12 + $0x164] sm:$0xf]
    %v3024 = vld [vmem:[#allocation12 + $0x168] sm:$0xff]
    %v3025 = vld [vmem:[#allocation12 + $0x170] sm:$0xf]
    %v3026 = vld [vmem:[#allocation12 + $0x174] sm:$0xff]
    %v3027 = vld [vmem:[#allocation12 + $0x17c] sm:$0xf]
    %v3028 = vld [vmem:[%s8] sm:$0x7]
    %v3030 = vlaneseq
    %v3031 = vshrl.u32 %v3030, 7
    %v3032 = vsub.s32 0, %v3031
    %v3033 = vrot.slane %v3028, %v3032
    %v3034 = vlaneseq
    %v3035 = vshrl.u32 %v3034, 7
    %v3036 = vsub.s32 1, %v3035
    %v3037 = vrot.slane %v3028, %v3036
    %v3038 = vlaneseq
    %v3039 = vshrl.u32 %v3038, 7
    %v3040 = vsub.s32 2, %v3039
    %v3041 = vrot.slane %v3028, %v3040
    %v3109 = vunpack.c.l.b16 %v2964
    %v3110 = vunpack.c.h.b16 %v2964
    %v3111 = vunpack.c.l.b16 %v2965
    %v3112 = vunpack.c.l.b16 %v2966
    %v3113 = vunpack.c.h.b16 %v2966
    %v3114 = vunpack.c.l.b16 %v2967
    %v3115 = vunpack.c.l.b16 %v2968
    %v3116 = vunpack.c.h.b16 %v2968
    %v3117 = vunpack.c.l.b16 %v2969
    %v3118 = vunpack.c.l.b16 %v2970
    %v3119 = vunpack.c.h.b16 %v2970
    %v3120 = vunpack.c.l.b16 %v2971
    %v3121 = vunpack.c.l.b16 %v2972
    %v3122 = vunpack.c.h.b16 %v2972
    %v3123 = vunpack.c.l.b16 %v2973
    %v3124 = vunpack.c.l.b16 %v2974
    %v3125 = vunpack.c.h.b16 %v2974
    %v3126 = vunpack.c.l.b16 %v2975
    %v3127 = vunpack.c.l.b16 %v2976
    %v3128 = vunpack.c.h.b16 %v2976
    %v3129 = vunpack.c.l.b16 %v2977
    %v3130 = vunpack.c.l.b16 %v2978
    %v3131 = vunpack.c.h.b16 %v2978
    %v3132 = vunpack.c.l.b16 %v2979
    %v3133 = vunpack.c.l.b16 %v2980
    %v3134 = vunpack.c.h.b16 %v2980
    %v3135 = vunpack.c.l.b16 %v2981
    %v3136 = vunpack.c.l.b16 %v2982
    %v3137 = vunpack.c.h.b16 %v2982
    %v3138 = vunpack.c.l.b16 %v2983
    %v3139 = vunpack.c.l.b16 %v2984
    %v3140 = vunpack.c.h.b16 %v2984
    %v3141 = vunpack.c.l.b16 %v2985
    %v3142 = vunpack.c.l.b16 %v2986
    %v3143 = vunpack.c.h.b16 %v2986
    %v3144 = vunpack.c.l.b16 %v2987
    %v3145 = vunpack.c.l.b16 %v2988
    %v3146 = vunpack.c.h.b16 %v2988
    %v3147 = vunpack.c.l.b16 %v2989
    %v3148 = vunpack.c.l.b16 %v2990
    %v3149 = vunpack.c.h.b16 %v2990
    %v3150 = vunpack.c.l.b16 %v2991
    %v3151 = vunpack.c.l.b16 %v2992
    %v3152 = vunpack.c.h.b16 %v2992
    %v3153 = vunpack.c.l.b16 %v2993
    %v3154 = vunpack.c.l.b16 %v2994
    %v3155 = vunpack.c.h.b16 %v2994
    %v3156 = vunpack.c.l.b16 %v2995
    %v3157 = vunpack.c.l.b16 %v2996
    %v3158 = vunpack.c.h.b16 %v2996
    %v3159 = vunpack.c.l.b16 %v2997
    %v3160 = vunpack.c.l.b16 %v2998
    %v3161 = vunpack.c.h.b16 %v2998
    %v3162 = vunpack.c.l.b16 %v2999
    %v3163 = vunpack.c.l.b16 %v3000
    %v3164 = vunpack.c.h.b16 %v3000
    %v3165 = vunpack.c.l.b16 %v3001
    %v3166 = vunpack.c.l.b16 %v3002
    %v3167 = vunpack.c.h.b16 %v3002
    %v3168 = vunpack.c.l.b16 %v3003
    %v3169 = vunpack.c.l.b16 %v3004
    %v3170 = vunpack.c.h.b16 %v3004
    %v3171 = vunpack.c.l.b16 %v3005
    %v3172 = vunpack.c.l.b16 %v3006
    %v3173 = vunpack.c.h.b16 %v3006
    %v3174 = vunpack.c.l.b16 %v3007
    %v3175 = vunpack.c.l.b16 %v3008
    %v3176 = vunpack.c.h.b16 %v3008
    %v3177 = vunpack.c.l.b16 %v3009
    %v3178 = vunpack.c.l.b16 %v3010
    %v3179 = vunpack.c.h.b16 %v3010
    %v3180 = vunpack.c.l.b16 %v3011
    %v3181 = vunpack.c.l.b16 %v3012
    %v3182 = vunpack.c.h.b16 %v3012
    %v3183 = vunpack.c.l.b16 %v3013
    %v3184 = vunpack.c.l.b16 %v3014
    %v3185 = vunpack.c.h.b16 %v3014
    %v3186 = vunpack.c.l.b16 %v3015
    %v3187 = vunpack.c.l.b16 %v3016
    %v3188 = vunpack.c.h.b16 %v3016
    %v3189 = vunpack.c.l.b16 %v3017
    %v3190 = vunpack.c.l.b16 %v3018
    %v3191 = vunpack.c.h.b16 %v3018
    %v3192 = vunpack.c.l.b16 %v3019
    %v3193 = vunpack.c.l.b16 %v3020
    %v3194 = vunpack.c.h.b16 %v3020
    %v3195 = vunpack.c.l.b16 %v3021
    %v3196 = vunpack.c.l.b16 %v3022
    %v3197 = vunpack.c.h.b16 %v3022
    %v3198 = vunpack.c.l.b16 %v3023
    %v3199 = vunpack.c.l.b16 %v3024
    %v3200 = vunpack.c.h.b16 %v3024
    %v3201 = vunpack.c.l.b16 %v3025
    %v3202 = vunpack.c.l.b16 %v3026
    %v3203 = vunpack.c.h.b16 %v3026
    %v3204 = vunpack.c.l.b16 %v3027
    %v3205 = vpack.c.b16 %v3112, %v3109
    %v3206 = vpack.c.b16 %v3113, %v3110
    %v3207 = vpack.c.b16 %v3114, %v3111
    %v3208 = vpack.c.b16 %v3118, %v3115
    %v3209 = vpack.c.b16 %v3119, %v3116
    %v3210 = vpack.c.b16 %v3120, %v3117
    %v3211 = vpack.c.b16 %v3124, %v3121
    %v3212 = vpack.c.b16 %v3125, %v3122
    %v3213 = vpack.c.b16 %v3126, %v3123
    %v3214 = vpack.c.b16 %v3130, %v3127
    %v3215 = vpack.c.b16 %v3131, %v3128
    %v3216 = vpack.c.b16 %v3132, %v3129
    %v3217 = vpack.c.b16 %v3136, %v3133
    %v3218 = vpack.c.b16 %v3137, %v3134
    %v3219 = vpack.c.b16 %v3138, %v3135
    %v3220 = vpack.c.b16 %v3142, %v3139
    %v3221 = vpack.c.b16 %v3143, %v3140
    %v3222 = vpack.c.b16 %v3144, %v3141
    %v3223 = vpack.c.b16 %v3148, %v3145
    %v3224 = vpack.c.b16 %v3149, %v3146
    %v3225 = vpack.c.b16 %v3150, %v3147
    %v3226 = vpack.c.b16 %v3154, %v3151
    %v3227 = vpack.c.b16 %v3155, %v3152
    %v3228 = vpack.c.b16 %v3156, %v3153
    %v3229 = vpack.c.b16 %v3160, %v3157
    %v3230 = vpack.c.b16 %v3161, %v3158
    %v3231 = vpack.c.b16 %v3162, %v3159
    %v3232 = vpack.c.b16 %v3166, %v3163
    %v3233 = vpack.c.b16 %v3167, %v3164
    %v3234 = vpack.c.b16 %v3168, %v3165
    %v3235 = vpack.c.b16 %v3172, %v3169
    %v3236 = vpack.c.b16 %v3173, %v3170
    %v3237 = vpack.c.b16 %v3174, %v3171
    %v3238 = vpack.c.b16 %v3178, %v3175
    %v3239 = vpack.c.b16 %v3179, %v3176
    %v3240 = vpack.c.b16 %v3180, %v3177
    %v3241 = vpack.c.b16 %v3184, %v3181
    %v3242 = vpack.c.b16 %v3185, %v3182
    %v3243 = vpack.c.b16 %v3186, %v3183
    %v3244 = vpack.c.b16 %v3190, %v3187
    %v3245 = vpack.c.b16 %v3191, %v3188
    %v3246 = vpack.c.b16 %v3192, %v3189
    %v3247 = vpack.c.b16 %v3196, %v3193
    %v3248 = vpack.c.b16 %v3197, %v3194
    %v3249 = vpack.c.b16 %v3198, %v3195
    %v3250 = vpack.c.b16 %v3202, %v3199
    %v3251 = vpack.c.b16 %v3203, %v3200
    %v3252 = vpack.c.b16 %v3204, %v3201
    %3301 = vmatprep.subr.bf16.mxu0 %v3227
    %3302 = vmatpush1.bf16.msra.mxu0 %v3226
    %3303 = vmatprep.subr.bf16.mxu0 %v3224
    %3304 = vmatpush1.bf16.msra.mxu0 %v3223
    %3305 = vmatprep.subr.bf16.mxu0 %v3221
    %3306 = vmatpush1.bf16.msra.mxu0 %v3220
    %3307 = vmatprep.subr.bf16.mxu0 %v3218
    %3308 = vmatpush1.bf16.msra.mxu0 %v3217
    %3309 = vmatprep.subr.bf16.mxu0 %v3215
    %3310 = vmatpush1.bf16.msra.mxu0 %v3214
    %3311 = vmatprep.subr.bf16.mxu0 %v3212
    %3312 = vmatpush1.bf16.msra.mxu0 %v3211
    %3313 = vmatprep.subr.bf16.mxu0 %v3209
    %3314 = vmatpush1.bf16.msra.mxu0 %v3208
    %3315 = vmatprep.subr.bf16.mxu0 %v3206
    %3316 = vmatpush1.bf16.msra.mxu0 %v3205
    %3317 = vmatprep.subr.bf16.mxu0 %v3251
    %3318 = vmatpush2.bf16.msra.mxu0 %v3250
    %3319 = vmatprep.subr.bf16.mxu0 %v3248
    %3320 = vmatpush2.bf16.msra.mxu0 %v3247
    %3321 = vmatprep.subr.bf16.mxu0 %v3245
    %3322 = vmatpush2.bf16.msra.mxu0 %v3244
    %3323 = vmatprep.subr.bf16.mxu0 %v3242
    %3324 = vmatpush2.bf16.msra.mxu0 %v3241
    %3325 = vmatprep.subr.bf16.mxu0 %v3239
    %3326 = vmatpush2.bf16.msra.mxu0 %v3238
    %3327 = vmatprep.subr.bf16.mxu0 %v3236
    %3328 = vmatpush2.bf16.msra.mxu0 %v3235
    %3329 = vmatprep.subr.bf16.mxu0 %v3233
    %3330 = vmatpush2.bf16.msra.mxu0 %v3232
    %3331 = vmatprep.subr.bf16.mxu0 %v3230
    %3332 = vmatpush2.bf16.msra.mxu0 %v3229
    %3333 = vmatprep.mubr.bf16.mxu0 %v2957
    %3334 = vmatmul.mubr.bf16.gmra.mxu0 %v2956
    %v3335 = vpop.f32.mrf.mxu0
    %v3336 = vadd.f32 %v3033, %v3335
    %v3337 = vpop.f32.mrf.mxu0
    %v3338 = vadd.f32 %v3037, %v3337
    %v3339 = vpop.f32.mrf.mxu0
    %v3340 = vadd.f32 %v3033, %v3339
    %v3341 = vpop.f32.mrf.mxu0
    %v3342 = vadd.f32 %v3037, %v3341
    %3343 = vmatprep.mubr.bf16.mxu0 %v2959
    %3344 = vmatmul.mubr.bf16.gmra.mxu0 %v2958
    %v3345 = vpop.f32.mrf.mxu0
    %v3346 = vadd.f32 %v3033, %v3345
    %v3347 = vpop.f32.mrf.mxu0
    %v3348 = vadd.f32 %v3037, %v3347
    %v3349 = vpop.f32.mrf.mxu0
    %v3350 = vadd.f32 %v3033, %v3349
    %v3351 = vpop.f32.mrf.mxu0
    %v3352 = vadd.f32 %v3037, %v3351
    %3353 = vmatprep.mubr.bf16.mxu0 %v2961
    %3354 = vmatmul.mubr.bf16.gmra.mxu0 %v2960
    %v3355 = vpop.f32.mrf.mxu0
    %v3356 = vadd.f32 %v3033, %v3355
    %v3357 = vpop.f32.mrf.mxu0
    %v3358 = vadd.f32 %v3037, %v3357
    %v3359 = vpop.f32.mrf.mxu0
    %v3360 = vadd.f32 %v3033, %v3359
    %v3361 = vpop.f32.mrf.mxu0
    %v3362 = vadd.f32 %v3037, %v3361
    %3363 = vmatprep.mubr.bf16.mxu0 %v2963
    %3364 = vmatmul.mubr.bf16.gmra.mxu0 %v2962
    %v3365 = vpop.f32.mrf.mxu0
    %v3366 = vadd.f32 %v3033, %v3365
    %v3367 = vpop.f32.mrf.mxu0
    %v3368 = vadd.f32 %v3037, %v3367
    %v3369 = vpop.f32.mrf.mxu0
    %v3370 = vadd.f32 %v3033, %v3369
    %v3371 = vpop.f32.mrf.mxu0
    %v3372 = vadd.f32 %v3037, %v3371
    %3373 = vdwg.mxu0
    %3374 = vmatprep.subr.bf16.mxu0 0
    %3375 = vmatpush1.bf16.msra.mxu0 %v3228
    %3376 = vmatprep.subr.bf16.mxu0 0
    %3377 = vmatpush1.bf16.msra.mxu0 %v3225
    %3378 = vmatprep.subr.bf16.mxu0 0
    %3379 = vmatpush1.bf16.msra.mxu0 %v3222
    %3380 = vmatprep.subr.bf16.mxu0 0
    %3381 = vmatpush1.bf16.msra.mxu0 %v3219
    %3382 = vmatprep.subr.bf16.mxu0 0
    %3383 = vmatpush1.bf16.msra.mxu0 %v3216
    %3384 = vmatprep.subr.bf16.mxu0 0
    %3385 = vmatpush1.bf16.msra.mxu0 %v3213
    %3386 = vmatprep.subr.bf16.mxu0 0
    %3387 = vmatpush1.bf16.msra.mxu0 %v3210
    %3388 = vmatprep.subr.bf16.mxu0 0
    %3389 = vmatpush1.bf16.msra.mxu0 %v3207
    %3390 = vmatprep.subr.bf16.mxu0 0
    %3391 = vmatpush2.bf16.msra.mxu0 %v3252
    %3392 = vmatprep.subr.bf16.mxu0 0
    %3393 = vmatpush2.bf16.msra.mxu0 %v3249
    %3394 = vmatprep.subr.bf16.mxu0 0
    %3395 = vmatpush2.bf16.msra.mxu0 %v3246
    %3396 = vmatprep.subr.bf16.mxu0 0
    %3397 = vmatpush2.bf16.msra.mxu0 %v3243
    %3398 = vmatprep.subr.bf16.mxu0 0
    %3399 = vmatpush2.bf16.msra.mxu0 %v3240
    %3400 = vmatprep.subr.bf16.mxu0 0
    %3401 = vmatpush2.bf16.msra.mxu0 %v3237
    %3402 = vmatprep.subr.bf16.mxu0 0
    %3403 = vmatpush2.bf16.msra.mxu0 %v3234
    %3404 = vmatprep.subr.bf16.mxu0 0
    %3405 = vmatpush2.bf16.msra.mxu0 %v3231
    %3406 = vmatprep.mubr.bf16.mxu0 %v2957
    %3407 = vmatmul.mubr.bf16.gmra.mxu0 %v2956
    %v3408 = vpop.f32.mrf.mxu0
    %v3409 = vadd.f32 %v3041, %v3408
    %v3410 = vpop.f32.mrf.mxu0
    %v3411 = vpop.f32.mrf.mxu0
    %v3412 = vadd.f32 %v3041, %v3411
    %v3413 = vpop.f32.mrf.mxu0
    %3414 = vmatprep.mubr.bf16.mxu0 %v2959
    %3415 = vmatmul.mubr.bf16.gmra.mxu0 %v2958
    %v3416 = vpop.f32.mrf.mxu0
    %v3417 = vadd.f32 %v3041, %v3416
    %v3418 = vpop.f32.mrf.mxu0
    %v3419 = vpop.f32.mrf.mxu0
    %v3420 = vadd.f32 %v3041, %v3419
    %v3421 = vpop.f32.mrf.mxu0
    %3422 = vmatprep.mubr.bf16.mxu0 %v2961
    %3423 = vmatmul.mubr.bf16.gmra.mxu0 %v2960
    %v3424 = vpop.f32.mrf.mxu0
    %v3425 = vadd.f32 %v3041, %v3424
    %v3426 = vpop.f32.mrf.mxu0
    %v3427 = vpop.f32.mrf.mxu0
    %v3428 = vadd.f32 %v3041, %v3427
    %v3429 = vpop.f32.mrf.mxu0
    %3430 = vmatprep.mubr.bf16.mxu0 %v2963
    %3431 = vmatmul.mubr.bf16.gmra.mxu0 %v2962
    %v3432 = vpop.f32.mrf.mxu0
    %v3433 = vadd.f32 %v3041, %v3432
    %v3434 = vpop.f32.mrf.mxu0
    %v3435 = vpop.f32.mrf.mxu0
    %v3436 = vadd.f32 %v3041, %v3435
    %v3437 = vpop.f32.mrf.mxu0
    %3438 = vdwg.mxu0
    %3439 = vst [vmem:[#allocation4] sm:$0xff] %v3336
    %3440 = vst [vmem:[#allocation4 + $0x8] sm:$0xff] %v3338
    %3441 = vst [vmem:[#allocation4 + $0x10] sm:$0xff] %v3409
    %3442 = vst [vmem:[#allocation4 + $0x18] sm:$0xff] %v3340
    %3443 = vst [vmem:[#allocation4 + $0x20] sm:$0xff] %v3342
    %3444 = vst [vmem:[#allocation4 + $0x28] sm:$0xff] %v3412
    %3445 = vst [vmem:[#allocation4 + $0x30] sm:$0xff] %v3346
    %3446 = vst [vmem:[#allocation4 + $0x38] sm:$0xff] %v3348
    %3447 = vst [vmem:[#allocation4 + $0x40] sm:$0xff] %v3417
    %3448 = vst [vmem:[#allocation4 + $0x48] sm:$0xff] %v3350
    %3449 = vst [vmem:[#allocation4 + $0x50] sm:$0xff] %v3352
    %3450 = vst [vmem:[#allocation4 + $0x58] sm:$0xff] %v3420
    %3451 = vst [vmem:[#allocation4 + $0x60] sm:$0xff] %v3356
    %3452 = vst [vmem:[#allocation4 + $0x68] sm:$0xff] %v3358
    %3453 = vst [vmem:[#allocation4 + $0x70] sm:$0xff] %v3425
    %3454 = vst [vmem:[#allocation4 + $0x78] sm:$0xff] %v3360
    %3455 = vst [vmem:[#allocation4 + $0x80] sm:$0xff] %v3362
    %3456 = vst [vmem:[#allocation4 + $0x88] sm:$0xff] %v3428
    %3457 = vst [vmem:[#allocation4 + $0x90] sm:$0xff] %v3366
    %3458 = vst [vmem:[#allocation4 + $0x98] sm:$0xff] %v3368
    %3459 = vst [vmem:[#allocation4 + $0xa0] sm:$0xff] %v3433
    %3460 = vst [vmem:[#allocation4 + $0xa8] sm:$0xff] %v3370
    %3461 = vst [vmem:[#allocation4 + $0xb0] sm:$0xff] %v3372
    %3462 = vst [vmem:[#allocation4 + $0xb8] sm:$0xff] %v3436
    %vm3463 = vcmp.lt.s32.totalorder %v710, 0
    %v3464 = vsub.s32 0, %v710
    %v3465 = vsel %vm3463, %v3464, %v710
    %v3466 = vshrl.u32 %v3465, 7
    %v3467 = vand.u32 %v3465, 127
    %v3468 = vsub.s32 0, %v3467
    %v3469 = vsel %vm3463, %v3468, %v3467
    %vm3470 = vcmp.lt.s32.totalorder %v711, 0
    %v3471 = vsub.s32 0, %v711
    %v3472 = vsel %vm3470, %v3471, %v711
    %v3473 = vshrl.u32 %v3472, 7
    %v3474 = vand.u32 %v3472, 127
    %v3475 = vsub.s32 0, %v3474
    %v3476 = vsel %vm3470, %v3475, %v3474
    %vm3477 = vcmp.lt.s32.totalorder %v712, 0
    %v3478 = vsub.s32 0, %v712
    %v3479 = vsel %vm3477, %v3478, %v712
    %v3480 = vshrl.u32 %v3479, 7
    %v3481 = vand.u32 %v3479, 127
    %v3482 = vsub.s32 0, %v3481
    %v3483 = vsel %vm3477, %v3482, %v3481
    %vm3484 = vcmp.ne.s32.totalorder %v3469, 0
    %vm3485 = vcmp.ne.s32.totalorder %v3476, 0
    %vm3486 = vcmp.ne.s32.totalorder %v3483, 0
    %vm3487 = vcmp.lt.s32.totalorder %v3469, 0
    %vm3488 = vcmp.lt.s32.totalorder %v3476, 0
    %vm3489 = vcmp.lt.s32.totalorder %v3483, 0
    %vm3490 = vmand %vm3487, %vm3484
    %vm3491 = vmand %vm3488, %vm3485
    %vm3492 = vmand %vm3489, %vm3486
    %v3493 = vadd.s32 %v3469, 128
    %v3494 = vadd.s32 %v3476, 128
    %v3495 = vadd.s32 %v3483, 128
    %v3496 = vsel %vm3490, %v3493, %v3469
    %v3497 = vsel %vm3491, %v3494, %v3476
    %v3498 = vsel %vm3492, %v3495, %v3483
    %vm3499 = vcmp.lt.s32.totalorder %v3496, 64
    %vm3500 = vcmp.lt.s32.totalorder %v3497, 64
    %vm3501 = vcmp.lt.s32.totalorder %v3498, 64
    %v3502 = vld [vmem:[#allocation4] sm:$0xff]
    %v3503 = vld [vmem:[#allocation4 + $0x8] sm:$0xff]
    %v3504 = vld [vmem:[#allocation4 + $0x10] sm:$0xff]
    %v3505 = vld [vmem:[#allocation4 + $0xa8] sm:$0xff]
    %v3506 = vld [vmem:[#allocation4 + $0xb0] sm:$0xff]
    %v3507 = vld [vmem:[#allocation4 + $0xb8] sm:$0xff]
    %v3508 = vsel %vm3499, %v3502, %v3505
    %v3509 = vsel %vm3500, %v3503, %v3506
    %v3510 = vsel %vm3501, %v3504, %v3507
    %3511 = vst [vmem:[#allocation4] sm:$0xff] %v3508
    %3512 = vst [vmem:[#allocation4 + $0x8] sm:$0xff] %v3509
    %3513 = vst [vmem:[#allocation4 + $0x10] sm:$0xff] %v3510
    %v3514 = vsel %vm3499, %v3505, %v3502
    %v3515 = vsel %vm3500, %v3506, %v3503
    %v3516 = vsel %vm3501, %v3507, %v3504
    %3517 = vst [vmem:[#allocation4 + $0xa8] sm:$0xff] %v3514
    %3518 = vst [vmem:[#allocation4 + $0xb0] sm:$0xff] %v3515
    %3519 = vst [vmem:[#allocation4 + $0xb8] sm:$0xff] %v3516
    %v3520 = vld [vmem:[#allocation4 + $0x18] sm:$0xff]
    %v3521 = vld [vmem:[#allocation4 + $0x20] sm:$0xff]
    %v3522 = vld [vmem:[#allocation4 + $0x28] sm:$0xff]
    %v3523 = vld [vmem:[#allocation4 + $0x90] sm:$0xff]
    %v3524 = vld [vmem:[#allocation4 + $0x98] sm:$0xff]
    %v3525 = vld [vmem:[#allocation4 + $0xa0] sm:$0xff]
    %v3526 = vsel %vm3499, %v3520, %v3523
    %v3527 = vsel %vm3500, %v3521, %v3524
    %v3528 = vsel %vm3501, %v3522, %v3525
    %3529 = vst [vmem:[#allocation4 + $0x18] sm:$0xff] %v3526
    %3530 = vst [vmem:[#allocation4 + $0x20] sm:$0xff] %v3527
    %3531 = vst [vmem:[#allocation4 + $0x28] sm:$0xff] %v3528
    %v3532 = vsel %vm3499, %v3523, %v3520
    %v3533 = vsel %vm3500, %v3524, %v3521
    %v3534 = vsel %vm3501, %v3525, %v3522
    %3535 = vst [vmem:[#allocation4 + $0x90] sm:$0xff] %v3532
    %3536 = vst [vmem:[#allocation4 + $0x98] sm:$0xff] %v3533
    %3537 = vst [vmem:[#allocation4 + $0xa0] sm:$0xff] %v3534
    %v3538 = vld [vmem:[#allocation4 + $0x30] sm:$0xff]
    %v3539 = vld [vmem:[#allocation4 + $0x38] sm:$0xff]
    %v3540 = vld [vmem:[#allocation4 + $0x40] sm:$0xff]
    %v3541 = vld [vmem:[#allocation4 + $0x78] sm:$0xff]
    %v3542 = vld [vmem:[#allocation4 + $0x80] sm:$0xff]
    %v3543 = vld [vmem:[#allocation4 + $0x88] sm:$0xff]
    %v3544 = vsel %vm3499, %v3538, %v3541
    %v3545 = vsel %vm3500, %v3539, %v3542
    %v3546 = vsel %vm3501, %v3540, %v3543
    %3547 = vst [vmem:[#allocation4 + $0x30] sm:$0xff] %v3544
    %3548 = vst [vmem:[#allocation4 + $0x38] sm:$0xff] %v3545
    %3549 = vst [vmem:[#allocation4 + $0x40] sm:$0xff] %v3546
    %v3550 = vsel %vm3499, %v3541, %v3538
    %v3551 = vsel %vm3500, %v3542, %v3539
    %v3552 = vsel %vm3501, %v3543, %v3540
    %3553 = vst [vmem:[#allocation4 + $0x78] sm:$0xff] %v3550
    %3554 = vst [vmem:[#allocation4 + $0x80] sm:$0xff] %v3551
    %3555 = vst [vmem:[#allocation4 + $0x88] sm:$0xff] %v3552
    %v3556 = vld [vmem:[#allocation4 + $0x48] sm:$0xff]
    %v3557 = vld [vmem:[#allocation4 + $0x50] sm:$0xff]
    %v3558 = vld [vmem:[#allocation4 + $0x58] sm:$0xff]
    %v3559 = vld [vmem:[#allocation4 + $0x60] sm:$0xff]
    %v3560 = vld [vmem:[#allocation4 + $0x68] sm:$0xff]
    %v3561 = vld [vmem:[#allocation4 + $0x70] sm:$0xff]
    %v3562 = vsel %vm3499, %v3556, %v3559
    %v3563 = vsel %vm3500, %v3557, %v3560
    %v3564 = vsel %vm3501, %v3558, %v3561
    %3565 = vst [vmem:[#allocation4 + $0x48] sm:$0xff] %v3562
    %3566 = vst [vmem:[#allocation4 + $0x50] sm:$0xff] %v3563
    %3567 = vst [vmem:[#allocation4 + $0x58] sm:$0xff] %v3564
    %v3568 = vsel %vm3499, %v3559, %v3556
    %v3569 = vsel %vm3500, %v3560, %v3557
    %v3570 = vsel %vm3501, %v3561, %v3558
    %3571 = vst [vmem:[#allocation4 + $0x60] sm:$0xff] %v3568
    %3572 = vst [vmem:[#allocation4 + $0x68] sm:$0xff] %v3569
    %3573 = vst [vmem:[#allocation4 + $0x70] sm:$0xff] %v3570
    %v3574 = vld [vmem:[%s10] sm:$0x1]
    %v3576 = vlaneseq
    %v3577 = vshrl.u32 %v3576, 7
    %v3578 = vsub.s32 0, %v3577
    %v3579 = vrot.slane %v3574, %v3578
    %v3581 = vld [vmem:[#allocation13] sm:$0xff]
    %v3582 = vld [vmem:[#allocation13 + $0x8] sm:$0xf]
    %v3583 = vld [vmem:[#allocation13 + $0xc] sm:$0xff]
    %v3584 = vld [vmem:[#allocation13 + $0x14] sm:$0xf]
    %v3585 = vld [vmem:[#allocation13 + $0x18] sm:$0xff]
    %v3586 = vld [vmem:[#allocation13 + $0x20] sm:$0xf]
    %v3587 = vld [vmem:[#allocation13 + $0x24] sm:$0xff]
    %v3588 = vld [vmem:[#allocation13 + $0x2c] sm:$0xf]
    %v3589 = vld [vmem:[#allocation13 + $0x30] sm:$0xff]
    %v3590 = vld [vmem:[#allocation13 + $0x38] sm:$0xf]
    %v3591 = vld [vmem:[#allocation13 + $0x3c] sm:$0xff]
    %v3592 = vld [vmem:[#allocation13 + $0x44] sm:$0xf]
    %v3593 = vld [vmem:[#allocation13 + $0x48] sm:$0xff]
    %v3594 = vld [vmem:[#allocation13 + $0x50] sm:$0xf]
    %v3595 = vld [vmem:[#allocation13 + $0x54] sm:$0xff]
    %v3596 = vld [vmem:[#allocation13 + $0x5c] sm:$0xf]
    %v3597 = vld [vmem:[#allocation13 + $0x60] sm:$0xff]
    %v3598 = vld [vmem:[#allocation13 + $0x68] sm:$0xf]
    %v3599 = vld [vmem:[#allocation13 + $0x6c] sm:$0xff]
    %v3600 = vld [vmem:[#allocation13 + $0x74] sm:$0xf]
    %v3601 = vld [vmem:[#allocation13 + $0x78] sm:$0xff]
    %v3602 = vld [vmem:[#allocation13 + $0x80] sm:$0xf]
    %v3603 = vld [vmem:[#allocation13 + $0x84] sm:$0xff]
    %v3604 = vld [vmem:[#allocation13 + $0x8c] sm:$0xf]
    %v3605 = vld [vmem:[#allocation13 + $0x90] sm:$0xff]
    %v3606 = vld [vmem:[#allocation13 + $0x98] sm:$0xf]
    %v3607 = vld [vmem:[#allocation13 + $0x9c] sm:$0xff]
    %v3608 = vld [vmem:[#allocation13 + $0xa4] sm:$0xf]
    %v3609 = vld [vmem:[#allocation13 + $0xa8] sm:$0xff]
    %v3610 = vld [vmem:[#allocation13 + $0xb0] sm:$0xf]
    %v3611 = vld [vmem:[#allocation13 + $0xb4] sm:$0xff]
    %v3612 = vld [vmem:[#allocation13 + $0xbc] sm:$0xf]
    %v3613 = vld [vmem:[#allocation4] sm:$0xff]
    %v3614 = vld [vmem:[#allocation4 + $0x8] sm:$0xff]
    %v3615 = vld [vmem:[#allocation4 + $0x10] sm:$0xff]
    %v3648 = vunpack.c.l.b16 %v3581
    %v3649 = vunpack.c.h.b16 %v3581
    %v3650 = vunpack.c.l.b16 %v3582
    %v3651 = vunpack.c.l.b16 %v3583
    %v3652 = vunpack.c.h.b16 %v3583
    %v3653 = vunpack.c.l.b16 %v3584
    %v3654 = vunpack.c.l.b16 %v3585
    %v3655 = vunpack.c.h.b16 %v3585
    %v3656 = vunpack.c.l.b16 %v3586
    %v3657 = vunpack.c.l.b16 %v3587
    %v3658 = vunpack.c.h.b16 %v3587
    %v3659 = vunpack.c.l.b16 %v3588
    %v3660 = vunpack.c.l.b16 %v3589
    %v3661 = vunpack.c.h.b16 %v3589
    %v3662 = vunpack.c.l.b16 %v3590
    %v3663 = vunpack.c.l.b16 %v3591
    %v3664 = vunpack.c.h.b16 %v3591
    %v3665 = vunpack.c.l.b16 %v3592
    %v3666 = vunpack.c.l.b16 %v3593
    %v3667 = vunpack.c.h.b16 %v3593
    %v3668 = vunpack.c.l.b16 %v3594
    %v3669 = vunpack.c.l.b16 %v3595
    %v3670 = vunpack.c.h.b16 %v3595
    %v3671 = vunpack.c.l.b16 %v3596
    %v3672 = vunpack.c.l.b16 %v3597
    %v3673 = vunpack.c.h.b16 %v3597
    %v3674 = vunpack.c.l.b16 %v3598
    %v3675 = vunpack.c.l.b16 %v3599
    %v3676 = vunpack.c.h.b16 %v3599
    %v3677 = vunpack.c.l.b16 %v3600
    %v3678 = vunpack.c.l.b16 %v3601
    %v3679 = vunpack.c.h.b16 %v3601
    %v3680 = vunpack.c.l.b16 %v3602
    %v3681 = vunpack.c.l.b16 %v3603
    %v3682 = vunpack.c.h.b16 %v3603
    %v3683 = vunpack.c.l.b16 %v3604
    %v3684 = vunpack.c.l.b16 %v3605
    %v3685 = vunpack.c.h.b16 %v3605
    %v3686 = vunpack.c.l.b16 %v3606
    %v3687 = vunpack.c.l.b16 %v3607
    %v3688 = vunpack.c.h.b16 %v3607
    %v3689 = vunpack.c.l.b16 %v3608
    %v3690 = vunpack.c.l.b16 %v3609
    %v3691 = vunpack.c.h.b16 %v3609
    %v3692 = vunpack.c.l.b16 %v3610
    %v3693 = vunpack.c.l.b16 %v3611
    %v3694 = vunpack.c.h.b16 %v3611
    %v3695 = vunpack.c.l.b16 %v3612
    %v3696 = vpack.c.b16 %v3651, %v3648
    %v3697 = vpack.c.b16 %v3652, %v3649
    %v3698 = vpack.c.b16 %v3653, %v3650
    %v3699 = vpack.c.b16 %v3657, %v3654
    %v3700 = vpack.c.b16 %v3658, %v3655
    %v3701 = vpack.c.b16 %v3659, %v3656
    %v3702 = vpack.c.b16 %v3663, %v3660
    %v3703 = vpack.c.b16 %v3664, %v3661
    %v3704 = vpack.c.b16 %v3665, %v3662
    %v3705 = vpack.c.b16 %v3669, %v3666
    %v3706 = vpack.c.b16 %v3670, %v3667
    %v3707 = vpack.c.b16 %v3671, %v3668
    %v3708 = vpack.c.b16 %v3675, %v3672
    %v3709 = vpack.c.b16 %v3676, %v3673
    %v3710 = vpack.c.b16 %v3677, %v3674
    %v3711 = vpack.c.b16 %v3681, %v3678
    %v3712 = vpack.c.b16 %v3682, %v3679
    %v3713 = vpack.c.b16 %v3683, %v3680
    %v3714 = vpack.c.b16 %v3687, %v3684
    %v3715 = vpack.c.b16 %v3688, %v3685
    %v3716 = vpack.c.b16 %v3689, %v3686
    %v3717 = vpack.c.b16 %v3693, %v3690
    %v3718 = vpack.c.b16 %v3694, %v3691
    %v3719 = vpack.c.b16 %v3695, %v3692
    %3744 = vmatprep.subr.bf16.mxu0 %v3718
    %3745 = vmatpush1.bf16.msra.mxu0 %v3717
    %3746 = vmatprep.subr.bf16.mxu0 %v3715
    %3747 = vmatpush1.bf16.msra.mxu0 %v3714
    %3748 = vmatprep.subr.bf16.mxu0 %v3712
    %3749 = vmatpush1.bf16.msra.mxu0 %v3711
    %3750 = vmatprep.subr.bf16.mxu0 %v3709
    %3751 = vmatpush1.bf16.msra.mxu0 %v3708
    %3752 = vmatprep.subr.bf16.mxu0 %v3706
    %3753 = vmatpush1.bf16.msra.mxu0 %v3705
    %3754 = vmatprep.subr.bf16.mxu0 %v3703
    %3755 = vmatpush1.bf16.msra.mxu0 %v3702
    %3756 = vmatprep.subr.bf16.mxu0 %v3700
    %3757 = vmatpush1.bf16.msra.mxu0 %v3699
    %3758 = vmatprep.subr.bf16.mxu0 %v3697
    %3759 = vmatpush1.bf16.msra.mxu0 %v3696
    %3760 = vmatprep.subr.bf16.mxu0 0
    %3761 = vmatpush2.bf16.msra.mxu0 0
    %3762 = vmatprep.subr.bf16.mxu0 0
    %3763 = vmatpush2.bf16.msra.mxu0 0
    %3764 = vmatprep.subr.bf16.mxu0 0
    %3765 = vmatpush2.bf16.msra.mxu0 0
    %3766 = vmatprep.subr.bf16.mxu0 0
    %3767 = vmatpush2.bf16.msra.mxu0 0
    %3768 = vmatprep.subr.bf16.mxu0 0
    %3769 = vmatpush2.bf16.msra.mxu0 0
    %3770 = vmatprep.subr.bf16.mxu0 0
    %3771 = vmatpush2.bf16.msra.mxu0 0
    %3772 = vmatprep.subr.bf16.mxu0 0
    %3773 = vmatpush2.bf16.msra.mxu0 0
    %3774 = vmatprep.subr.bf16.mxu0 0
    %3775 = vmatpush2.bf16.msra.mxu0 0
    %3776 = vmatprep.mubr.bf16.mxu0 0
    %3777 = vmatmul.mubr.bf16.gmra.mxu0 0
    %v3778 = vpop.f32.mrf.mxu0
    %v3779 = vadd.f32 0.0, %v3778
    %v3780 = vpop.f32.mrf.mxu0
    %v3781 = vadd.f32 0.0, %v3780
    %v3782 = vpop.f32.mrf.mxu0
    %v3783 = vpop.f32.mrf.mxu0
    %3784 = vdwg.mxu0
    %3785 = vmatprep.subr.bf16.mxu0 0
    %3786 = vmatpush1.bf16.msra.mxu0 %v3719
    %3787 = vmatprep.subr.bf16.mxu0 0
    %3788 = vmatpush1.bf16.msra.mxu0 %v3716
    %3789 = vmatprep.subr.bf16.mxu0 0
    %3790 = vmatpush1.bf16.msra.mxu0 %v3713
    %3791 = vmatprep.subr.bf16.mxu0 0
    %3792 = vmatpush1.bf16.msra.mxu0 %v3710
    %3793 = vmatprep.subr.bf16.mxu0 0
    %3794 = vmatpush1.bf16.msra.mxu0 %v3707
    %3795 = vmatprep.subr.bf16.mxu0 0
    %3796 = vmatpush1.bf16.msra.mxu0 %v3704
    %3797 = vmatprep.subr.bf16.mxu0 0
    %3798 = vmatpush1.bf16.msra.mxu0 %v3701
    %3799 = vmatprep.subr.bf16.mxu0 0
    %3800 = vmatpush1.bf16.msra.mxu0 %v3698
    %3801 = vmatprep.subr.bf16.mxu0 0
    %3802 = vmatpush2.bf16.msra.mxu0 0
    %3803 = vmatprep.subr.bf16.mxu0 0
    %3804 = vmatpush2.bf16.msra.mxu0 0
    %3805 = vmatprep.subr.bf16.mxu0 0
    %3806 = vmatpush2.bf16.msra.mxu0 0
    %3807 = vmatprep.subr.bf16.mxu0 0
    %3808 = vmatpush2.bf16.msra.mxu0 0
    %3809 = vmatprep.subr.bf16.mxu0 0
    %3810 = vmatpush2.bf16.msra.mxu0 0
    %3811 = vmatprep.subr.bf16.mxu0 0
    %3812 = vmatpush2.bf16.msra.mxu0 0
    %3813 = vmatprep.subr.bf16.mxu0 0
    %3814 = vmatpush2.bf16.msra.mxu0 0
    %3815 = vmatprep.subr.bf16.mxu0 0
    %3816 = vmatpush2.bf16.msra.mxu0 0
    %3817 = vmatprep.mubr.bf16.mxu0 0
    %3818 = vmatmul.mubr.bf16.gmra.mxu0 0
    %v3819 = vpop.f32.mrf.mxu0
    %v3820 = vadd.f32 0.0, %v3819
    %v3821 = vpop.f32.mrf.mxu0
    %v3822 = vpop.f32.mrf.mxu0
    %v3823 = vpop.f32.mrf.mxu0
    %3824 = vdwg.mxu0
    %v3825 = vadd.f32 %v3613, %v3779
    %v3826 = vxor.u32 %v3825, 2147483648
    %v3827 = vmul.f32 %v3826, 1.442695
    %v3828 = vpow.pop %v3827
    %v3829 = vadd.f32 %v3828, 1.0
    %v3830 = vrcp.pop %v3829
    %v3831 = vmul.f32 1.0, %v3830
    %v3832 = vadd.f32 %v3614, %v3781
    %v3833 = vxor.u32 %v3832, 2147483648
    %v3834 = vmul.f32 %v3833, 1.442695
    %v3835 = vpow.pop %v3834
    %v3836 = vadd.f32 %v3835, 1.0
    %v3837 = vrcp.pop %v3836
    %v3838 = vmul.f32 1.0, %v3837
    %v3839 = vadd.f32 %v3820, %v3579
    %v3840 = vmul.f32 %v3831, %v3839
    %v3841 = vadd.f32 %v3615, %v3840
    %v3842 = vtanh.pop %v3841
    %v3843 = vsub.f32 1.0, %v3838
    %v3844 = vmul.f32 %v3843, %v3842
    %v3845 = vmul.f32 %v3838, 0.0
    %v3846 = vadd.f32 %v3844, %v3845
    %3847 = vst [vmem:[#allocation5] sm:$0xff] %v3846
    %3848 = vst [vmem:[#allocation6 + $0x38] sm:$0xff] %v3846
    %v3849 = vld [vmem:[#allocation4 + $0x18] sm:$0xff]
    %v3850 = vld [vmem:[#allocation4 + $0x20] sm:$0xff]
    %v3851 = vld [vmem:[#allocation4 + $0x28] sm:$0xff]
    %v3852 = vpack.c.bf16 %v3846, %v3846
    %3853 = vmatprep.subr.bf16.mxu0 %v3718
    %3854 = vmatpush1.bf16.msra.mxu0 %v3717
    %3855 = vmatprep.subr.bf16.mxu0 %v3715
    %3856 = vmatpush1.bf16.msra.mxu0 %v3714
    %3857 = vmatprep.subr.bf16.mxu0 %v3712
    %3858 = vmatpush1.bf16.msra.mxu0 %v3711
    %3859 = vmatprep.subr.bf16.mxu0 %v3709
    %3860 = vmatpush1.bf16.msra.mxu0 %v3708
    %3861 = vmatprep.subr.bf16.mxu0 %v3706
    %3862 = vmatpush1.bf16.msra.mxu0 %v3705
    %3863 = vmatprep.subr.bf16.mxu0 %v3703
    %3864 = vmatpush1.bf16.msra.mxu0 %v3702
    %3865 = vmatprep.subr.bf16.mxu0 %v3700
    %3866 = vmatpush1.bf16.msra.mxu0 %v3699
    %3867 = vmatprep.subr.bf16.mxu0 %v3697
    %3868 = vmatpush1.bf16.msra.mxu0 %v3696
    %3869 = vmatprep.subr.bf16.mxu0 0
    %3870 = vmatpush2.bf16.msra.mxu0 0
    %3871 = vmatprep.subr.bf16.mxu0 0
    %3872 = vmatpush2.bf16.msra.mxu0 0
    %3873 = vmatprep.subr.bf16.mxu0 0
    %3874 = vmatpush2.bf16.msra.mxu0 0
    %3875 = vmatprep.subr.bf16.mxu0 0
    %3876 = vmatpush2.bf16.msra.mxu0 0
    %3877 = vmatprep.subr.bf16.mxu0 0
    %3878 = vmatpush2.bf16.msra.mxu0 0
    %3879 = vmatprep.subr.bf16.mxu0 0
    %3880 = vmatpush2.bf16.msra.mxu0 0
    %3881 = vmatprep.subr.bf16.mxu0 0
    %3882 = vmatpush2.bf16.msra.mxu0 0
    %3883 = vmatprep.subr.bf16.mxu0 0
    %3884 = vmatpush2.bf16.msra.mxu0 0
    %3885 = vmatprep.mubr.bf16.mxu0 0
    %3886 = vmatmul.mubr.bf16.gmra.mxu0 %v3852
    %v3887 = vpop.f32.mrf.mxu0
    %v3888 = vadd.f32 0.0, %v3887
    %v3889 = vpop.f32.mrf.mxu0
    %v3890 = vadd.f32 0.0, %v3889
    %v3891 = vpop.f32.mrf.mxu0
    %v3892 = vpop.f32.mrf.mxu0
    %3893 = vdwg.mxu0
    %3894 = vmatprep.subr.bf16.mxu0 0
    %3895 = vmatpush1.bf16.msra.mxu0 %v3719
    %3896 = vmatprep.subr.bf16.mxu0 0
    %3897 = vmatpush1.bf16.msra.mxu0 %v3716
    %3898 = vmatprep.subr.bf16.mxu0 0
    %3899 = vmatpush1.bf16.msra.mxu0 %v3713
    %3900 = vmatprep.subr.bf16.mxu0 0
    %3901 = vmatpush1.bf16.msra.mxu0 %v3710
    %3902 = vmatprep.subr.bf16.mxu0 0
    %3903 = vmatpush1.bf16.msra.mxu0 %v3707
    %3904 = vmatprep.subr.bf16.mxu0 0
    %3905 = vmatpush1.bf16.msra.mxu0 %v3704
    %3906 = vmatprep.subr.bf16.mxu0 0
    %3907 = vmatpush1.bf16.msra.mxu0 %v3701
    %3908 = vmatprep.subr.bf16.mxu0 0
    %3909 = vmatpush1.bf16.msra.mxu0 %v3698
    %3910 = vmatprep.subr.bf16.mxu0 0
    %3911 = vmatpush2.bf16.msra.mxu0 0
    %3912 = vmatprep.subr.bf16.mxu0 0
    %3913 = vmatpush2.bf16.msra.mxu0 0
    %3914 = vmatprep.subr.bf16.mxu0 0
    %3915 = vmatpush2.bf16.msra.mxu0 0
    %3916 = vmatprep.subr.bf16.mxu0 0
    %3917 = vmatpush2.bf16.msra.mxu0 0
    %3918 = vmatprep.subr.bf16.mxu0 0
    %3919 = vmatpush2.bf16.msra.mxu0 0
    %3920 = vmatprep.subr.bf16.mxu0 0
    %3921 = vmatpush2.bf16.msra.mxu0 0
    %3922 = vmatprep.subr.bf16.mxu0 0
    %3923 = vmatpush2.bf16.msra.mxu0 0
    %3924 = vmatprep.subr.bf16.mxu0 0
    %3925 = vmatpush2.bf16.msra.mxu0 0
    %3926 = vmatprep.mubr.bf16.mxu0 0
    %3927 = vmatmul.mubr.bf16.gmra.mxu0 %v3852
    %v3928 = vpop.f32.mrf.mxu0
    %v3929 = vadd.f32 0.0, %v3928
    %v3930 = vpop.f32.mrf.mxu0
    %v3931 = vpop.f32.mrf.mxu0
    %v3932 = vpop.f32.mrf.mxu0
    %3933 = vdwg.mxu0
    %v3934 = vadd.f32 %v3849, %v3888
    %v3935 = vxor.u32 %v3934, 2147483648
    %v3936 = vmul.f32 %v3935, 1.442695
    %v3937 = vpow.pop %v3936
    %v3938 = vadd.f32 %v3937, 1.0
    %v3939 = vrcp.pop %v3938
    %v3940 = vmul.f32 1.0, %v3939
    %v3941 = vadd.f32 %v3850, %v3890
    %v3942 = vxor.u32 %v3941, 2147483648
    %v3943 = vmul.f32 %v3942, 1.442695
    %v3944 = vpow.pop %v3943
    %v3945 = vadd.f32 %v3944, 1.0
    %v3946 = vrcp.pop %v3945
    %v3947 = vmul.f32 1.0, %v3946
    %v3948 = vadd.f32 %v3929, %v3579
    %v3949 = vmul.f32 %v3940, %v3948
    %v3950 = vadd.f32 %v3851, %v3949
    %v3951 = vtanh.pop %v3950
    %v3952 = vsub.f32 1.0, %v3947
    %v3953 = vmul.f32 %v3952, %v3951
    %v3954 = vmul.f32 %v3947, %v3846
    %v3955 = vadd.f32 %v3953, %v3954
    %3956 = vst [vmem:[#allocation5 + $0x8] sm:$0xff] %v3955
    %3957 = vst [vmem:[#allocation6 + $0x30] sm:$0xff] %v3955
    %v3958 = vld [vmem:[#allocation4 + $0x30] sm:$0xff]
    %v3959 = vld [vmem:[#allocation4 + $0x38] sm:$0xff]
    %v3960 = vld [vmem:[#allocation4 + $0x40] sm:$0xff]
    %v3961 = vpack.c.bf16 %v3955, %v3955
    %3962 = vmatprep.subr.bf16.mxu0 %v3718
    %3963 = vmatpush1.bf16.msra.mxu0 %v3717
    %3964 = vmatprep.subr.bf16.mxu0 %v3715
    %3965 = vmatpush1.bf16.msra.mxu0 %v3714
    %3966 = vmatprep.subr.bf16.mxu0 %v3712
    %3967 = vmatpush1.bf16.msra.mxu0 %v3711
    %3968 = vmatprep.subr.bf16.mxu0 %v3709
    %3969 = vmatpush1.bf16.msra.mxu0 %v3708
    %3970 = vmatprep.subr.bf16.mxu0 %v3706
    %3971 = vmatpush1.bf16.msra.mxu0 %v3705
    %3972 = vmatprep.subr.bf16.mxu0 %v3703
    %3973 = vmatpush1.bf16.msra.mxu0 %v3702
    %3974 = vmatprep.subr.bf16.mxu0 %v3700
    %3975 = vmatpush1.bf16.msra.mxu0 %v3699
    %3976 = vmatprep.subr.bf16.mxu0 %v3697
    %3977 = vmatpush1.bf16.msra.mxu0 %v3696
    %3978 = vmatprep.subr.bf16.mxu0 0
    %3979 = vmatpush2.bf16.msra.mxu0 0
    %3980 = vmatprep.subr.bf16.mxu0 0
    %3981 = vmatpush2.bf16.msra.mxu0 0
    %3982 = vmatprep.subr.bf16.mxu0 0
    %3983 = vmatpush2.bf16.msra.mxu0 0
    %3984 = vmatprep.subr.bf16.mxu0 0
    %3985 = vmatpush2.bf16.msra.mxu0 0
    %3986 = vmatprep.subr.bf16.mxu0 0
    %3987 = vmatpush2.bf16.msra.mxu0 0
    %3988 = vmatprep.subr.bf16.mxu0 0
    %3989 = vmatpush2.bf16.msra.mxu0 0
    %3990 = vmatprep.subr.bf16.mxu0 0
    %3991 = vmatpush2.bf16.msra.mxu0 0
    %3992 = vmatprep.subr.bf16.mxu0 0
    %3993 = vmatpush2.bf16.msra.mxu0 0
    %3994 = vmatprep.mubr.bf16.mxu0 0
    %3995 = vmatmul.mubr.bf16.gmra.mxu0 %v3961
    %v3996 = vpop.f32.mrf.mxu0
    %v3997 = vadd.f32 0.0, %v3996
    %v3998 = vpop.f32.mrf.mxu0
    %v3999 = vadd.f32 0.0, %v3998
    %v4000 = vpop.f32.mrf.mxu0
    %v4001 = vpop.f32.mrf.mxu0
    %4002 = vdwg.mxu0
    %4003 = vmatprep.subr.bf16.mxu0 0
    %4004 = vmatpush1.bf16.msra.mxu0 %v3719
    %4005 = vmatprep.subr.bf16.mxu0 0
    %4006 = vmatpush1.bf16.msra.mxu0 %v3716
    %4007 = vmatprep.subr.bf16.mxu0 0
    %4008 = vmatpush1.bf16.msra.mxu0 %v3713
    %4009 = vmatprep.subr.bf16.mxu0 0
    %4010 = vmatpush1.bf16.msra.mxu0 %v3710
    %4011 = vmatprep.subr.bf16.mxu0 0
    %4012 = vmatpush1.bf16.msra.mxu0 %v3707
    %4013 = vmatprep.subr.bf16.mxu0 0
    %4014 = vmatpush1.bf16.msra.mxu0 %v3704
    %4015 = vmatprep.subr.bf16.mxu0 0
    %4016 = vmatpush1.bf16.msra.mxu0 %v3701
    %4017 = vmatprep.subr.bf16.mxu0 0
    %4018 = vmatpush1.bf16.msra.mxu0 %v3698
    %4019 = vmatprep.subr.bf16.mxu0 0
    %4020 = vmatpush2.bf16.msra.mxu0 0
    %4021 = vmatprep.subr.bf16.mxu0 0
    %4022 = vmatpush2.bf16.msra.mxu0 0
    %4023 = vmatprep.subr.bf16.mxu0 0
    %4024 = vmatpush2.bf16.msra.mxu0 0
    %4025 = vmatprep.subr.bf16.mxu0 0
    %4026 = vmatpush2.bf16.msra.mxu0 0
    %4027 = vmatprep.subr.bf16.mxu0 0
    %4028 = vmatpush2.bf16.msra.mxu0 0
    %4029 = vmatprep.subr.bf16.mxu0 0
    %4030 = vmatpush2.bf16.msra.mxu0 0
    %4031 = vmatprep.subr.bf16.mxu0 0
    %4032 = vmatpush2.bf16.msra.mxu0 0
    %4033 = vmatprep.subr.bf16.mxu0 0
    %4034 = vmatpush2.bf16.msra.mxu0 0
    %4035 = vmatprep.mubr.bf16.mxu0 0
    %4036 = vmatmul.mubr.bf16.gmra.mxu0 %v3961
    %v4037 = vpop.f32.mrf.mxu0
    %v4038 = vadd.f32 0.0, %v4037
    %v4039 = vpop.f32.mrf.mxu0
    %v4040 = vpop.f32.mrf.mxu0
    %v4041 = vpop.f32.mrf.mxu0
    %4042 = vdwg.mxu0
    %v4043 = vadd.f32 %v3958, %v3997
    %v4044 = vxor.u32 %v4043, 2147483648
    %v4045 = vmul.f32 %v4044, 1.442695
    %v4046 = vpow.pop %v4045
    %v4047 = vadd.f32 %v4046, 1.0
    %v4048 = vrcp.pop %v4047
    %v4049 = vmul.f32 1.0, %v4048
    %v4050 = vadd.f32 %v3959, %v3999
    %v4051 = vxor.u32 %v4050, 2147483648
    %v4052 = vmul.f32 %v4051, 1.442695
    %v4053 = vpow.pop %v4052
    %v4054 = vadd.f32 %v4053, 1.0
    %v4055 = vrcp.pop %v4054
    %v4056 = vmul.f32 1.0, %v4055
    %v4057 = vadd.f32 %v4038, %v3579
    %v4058 = vmul.f32 %v4049, %v4057
    %v4059 = vadd.f32 %v3960, %v4058
    %v4060 = vtanh.pop %v4059
    %v4061 = vsub.f32 1.0, %v4056
    %v4062 = vmul.f32 %v4061, %v4060
    %v4063 = vmul.f32 %v4056, %v3955
    %v4064 = vadd.f32 %v4062, %v4063
    %4065 = vst [vmem:[#allocation5 + $0x10] sm:$0xff] %v4064
    %4066 = vst [vmem:[#allocation6 + $0x28] sm:$0xff] %v4064
    %v4067 = vld [vmem:[#allocation4 + $0x48] sm:$0xff]
    %v4068 = vld [vmem:[#allocation4 + $0x50] sm:$0xff]
    %v4069 = vld [vmem:[#allocation4 + $0x58] sm:$0xff]
    %v4070 = vpack.c.bf16 %v4064, %v4064
    %4071 = vmatprep.subr.bf16.mxu0 %v3718
    %4072 = vmatpush1.bf16.msra.mxu0 %v3717
    %4073 = vmatprep.subr.bf16.mxu0 %v3715
    %4074 = vmatpush1.bf16.msra.mxu0 %v3714
    %4075 = vmatprep.subr.bf16.mxu0 %v3712
    %4076 = vmatpush1.bf16.msra.mxu0 %v3711
    %4077 = vmatprep.subr.bf16.mxu0 %v3709
    %4078 = vmatpush1.bf16.msra.mxu0 %v3708
    %4079 = vmatprep.subr.bf16.mxu0 %v3706
    %4080 = vmatpush1.bf16.msra.mxu0 %v3705
    %4081 = vmatprep.subr.bf16.mxu0 %v3703
    %4082 = vmatpush1.bf16.msra.mxu0 %v3702
    %4083 = vmatprep.subr.bf16.mxu0 %v3700
    %4084 = vmatpush1.bf16.msra.mxu0 %v3699
    %4085 = vmatprep.subr.bf16.mxu0 %v3697
    %4086 = vmatpush1.bf16.msra.mxu0 %v3696
    %4087 = vmatprep.subr.bf16.mxu0 0
    %4088 = vmatpush2.bf16.msra.mxu0 0
    %4089 = vmatprep.subr.bf16.mxu0 0
    %4090 = vmatpush2.bf16.msra.mxu0 0
    %4091 = vmatprep.subr.bf16.mxu0 0
    %4092 = vmatpush2.bf16.msra.mxu0 0
    %4093 = vmatprep.subr.bf16.mxu0 0
    %4094 = vmatpush2.bf16.msra.mxu0 0
    %4095 = vmatprep.subr.bf16.mxu0 0
    %4096 = vmatpush2.bf16.msra.mxu0 0
    %4097 = vmatprep.subr.bf16.mxu0 0
    %4098 = vmatpush2.bf16.msra.mxu0 0
    %4099 = vmatprep.subr.bf16.mxu0 0
    %4100 = vmatpush2.bf16.msra.mxu0 0
    %4101 = vmatprep.subr.bf16.mxu0 0
    %4102 = vmatpush2.bf16.msra.mxu0 0
    %4103 = vmatprep.mubr.bf16.mxu0 0
    %4104 = vmatmul.mubr.bf16.gmra.mxu0 %v4070
    %v4105 = vpop.f32.mrf.mxu0
    %v4106 = vadd.f32 0.0, %v4105
    %v4107 = vpop.f32.mrf.mxu0
    %v4108 = vadd.f32 0.0, %v4107
    %v4109 = vpop.f32.mrf.mxu0
    %v4110 = vpop.f32.mrf.mxu0
    %4111 = vdwg.mxu0
    %4112 = vmatprep.subr.bf16.mxu0 0
    %4113 = vmatpush1.bf16.msra.mxu0 %v3719
    %4114 = vmatprep.subr.bf16.mxu0 0
    %4115 = vmatpush1.bf16.msra.mxu0 %v3716
    %4116 = vmatprep.subr.bf16.mxu0 0
    %4117 = vmatpush1.bf16.msra.mxu0 %v3713
    %4118 = vmatprep.subr.bf16.mxu0 0
    %4119 = vmatpush1.bf16.msra.mxu0 %v3710
    %4120 = vmatprep.subr.bf16.mxu0 0
    %4121 = vmatpush1.bf16.msra.mxu0 %v3707
    %4122 = vmatprep.subr.bf16.mxu0 0
    %4123 = vmatpush1.bf16.msra.mxu0 %v3704
    %4124 = vmatprep.subr.bf16.mxu0 0
    %4125 = vmatpush1.bf16.msra.mxu0 %v3701
    %4126 = vmatprep.subr.bf16.mxu0 0
    %4127 = vmatpush1.bf16.msra.mxu0 %v3698
    %4128 = vmatprep.subr.bf16.mxu0 0
    %4129 = vmatpush2.bf16.msra.mxu0 0
    %4130 = vmatprep.subr.bf16.mxu0 0
    %4131 = vmatpush2.bf16.msra.mxu0 0
    %4132 = vmatprep.subr.bf16.mxu0 0
    %4133 = vmatpush2.bf16.msra.mxu0 0
    %4134 = vmatprep.subr.bf16.mxu0 0
    %4135 = vmatpush2.bf16.msra.mxu0 0
    %4136 = vmatprep.subr.bf16.mxu0 0
    %4137 = vmatpush2.bf16.msra.mxu0 0
    %4138 = vmatprep.subr.bf16.mxu0 0
    %4139 = vmatpush2.bf16.msra.mxu0 0
    %4140 = vmatprep.subr.bf16.mxu0 0
    %4141 = vmatpush2.bf16.msra.mxu0 0
    %4142 = vmatprep.subr.bf16.mxu0 0
    %4143 = vmatpush2.bf16.msra.mxu0 0
    %4144 = vmatprep.mubr.bf16.mxu0 0
    %4145 = vmatmul.mubr.bf16.gmra.mxu0 %v4070
    %v4146 = vpop.f32.mrf.mxu0
    %v4147 = vadd.f32 0.0, %v4146
    %v4148 = vpop.f32.mrf.mxu0
    %v4149 = vpop.f32.mrf.mxu0
    %v4150 = vpop.f32.mrf.mxu0
    %4151 = vdwg.mxu0
    %v4152 = vadd.f32 %v4067, %v4106
    %v4153 = vxor.u32 %v4152, 2147483648
    %v4154 = vmul.f32 %v4153, 1.442695
    %v4155 = vpow.pop %v4154
    %v4156 = vadd.f32 %v4155, 1.0
    %v4157 = vrcp.pop %v4156
    %v4158 = vmul.f32 1.0, %v4157
    %v4159 = vadd.f32 %v4068, %v4108
    %v4160 = vxor.u32 %v4159, 2147483648
    %v4161 = vmul.f32 %v4160, 1.442695
    %v4162 = vpow.pop %v4161
    %v4163 = vadd.f32 %v4162, 1.0
    %v4164 = vrcp.pop %v4163
    %v4165 = vmul.f32 1.0, %v4164
    %v4166 = vadd.f32 %v4147, %v3579
    %v4167 = vmul.f32 %v4158, %v4166
    %v4168 = vadd.f32 %v4069, %v4167
    %v4169 = vtanh.pop %v4168
    %v4170 = vsub.f32 1.0, %v4165
    %v4171 = vmul.f32 %v4170, %v4169
    %v4172 = vmul.f32 %v4165, %v4064
    %v4173 = vadd.f32 %v4171, %v4172
    %4174 = vst [vmem:[#allocation5 + $0x18] sm:$0xff] %v4173
    %4175 = vst [vmem:[#allocation6 + $0x20] sm:$0xff] %v4173
    %v4176 = vld [vmem:[#allocation4 + $0x60] sm:$0xff]
    %v4177 = vld [vmem:[#allocation4 + $0x68] sm:$0xff]
    %v4178 = vld [vmem:[#allocation4 + $0x70] sm:$0xff]
    %v4179 = vpack.c.bf16 %v4173, %v4173
    %4180 = vmatprep.subr.bf16.mxu0 %v3718
    %4181 = vmatpush1.bf16.msra.mxu0 %v3717
    %4182 = vmatprep.subr.bf16.mxu0 %v3715
    %4183 = vmatpush1.bf16.msra.mxu0 %v3714
    %4184 = vmatprep.subr.bf16.mxu0 %v3712
    %4185 = vmatpush1.bf16.msra.mxu0 %v3711
    %4186 = vmatprep.subr.bf16.mxu0 %v3709
    %4187 = vmatpush1.bf16.msra.mxu0 %v3708
    %4188 = vmatprep.subr.bf16.mxu0 %v3706
    %4189 = vmatpush1.bf16.msra.mxu0 %v3705
    %4190 = vmatprep.subr.bf16.mxu0 %v3703
    %4191 = vmatpush1.bf16.msra.mxu0 %v3702
    %4192 = vmatprep.subr.bf16.mxu0 %v3700
    %4193 = vmatpush1.bf16.msra.mxu0 %v3699
    %4194 = vmatprep.subr.bf16.mxu0 %v3697
    %4195 = vmatpush1.bf16.msra.mxu0 %v3696
    %4196 = vmatprep.subr.bf16.mxu0 0
    %4197 = vmatpush2.bf16.msra.mxu0 0
    %4198 = vmatprep.subr.bf16.mxu0 0
    %4199 = vmatpush2.bf16.msra.mxu0 0
    %4200 = vmatprep.subr.bf16.mxu0 0
    %4201 = vmatpush2.bf16.msra.mxu0 0
    %4202 = vmatprep.subr.bf16.mxu0 0
    %4203 = vmatpush2.bf16.msra.mxu0 0
    %4204 = vmatprep.subr.bf16.mxu0 0
    %4205 = vmatpush2.bf16.msra.mxu0 0
    %4206 = vmatprep.subr.bf16.mxu0 0
    %4207 = vmatpush2.bf16.msra.mxu0 0
    %4208 = vmatprep.subr.bf16.mxu0 0
    %4209 = vmatpush2.bf16.msra.mxu0 0
    %4210 = vmatprep.subr.bf16.mxu0 0
    %4211 = vmatpush2.bf16.msra.mxu0 0
    %4212 = vmatprep.mubr.bf16.mxu0 0
    %4213 = vmatmul.mubr.bf16.gmra.mxu0 %v4179
    %v4214 = vpop.f32.mrf.mxu0
    %v4215 = vadd.f32 0.0, %v4214
    %v4216 = vpop.f32.mrf.mxu0
    %v4217 = vadd.f32 0.0, %v4216
    %v4218 = vpop.f32.mrf.mxu0
    %v4219 = vpop.f32.mrf.mxu0
    %4220 = vdwg.mxu0
    %4221 = vmatprep.subr.bf16.mxu0 0
    %4222 = vmatpush1.bf16.msra.mxu0 %v3719
    %4223 = vmatprep.subr.bf16.mxu0 0
    %4224 = vmatpush1.bf16.msra.mxu0 %v3716
    %4225 = vmatprep.subr.bf16.mxu0 0
    %4226 = vmatpush1.bf16.msra.mxu0 %v3713
    %4227 = vmatprep.subr.bf16.mxu0 0
    %4228 = vmatpush1.bf16.msra.mxu0 %v3710
    %4229 = vmatprep.subr.bf16.mxu0 0
    %4230 = vmatpush1.bf16.msra.mxu0 %v3707
    %4231 = vmatprep.subr.bf16.mxu0 0
    %4232 = vmatpush1.bf16.msra.mxu0 %v3704
    %4233 = vmatprep.subr.bf16.mxu0 0
    %4234 = vmatpush1.bf16.msra.mxu0 %v3701
    %4235 = vmatprep.subr.bf16.mxu0 0
    %4236 = vmatpush1.bf16.msra.mxu0 %v3698
    %4237 = vmatprep.subr.bf16.mxu0 0
    %4238 = vmatpush2.bf16.msra.mxu0 0
    %4239 = vmatprep.subr.bf16.mxu0 0
    %4240 = vmatpush2.bf16.msra.mxu0 0
    %4241 = vmatprep.subr.bf16.mxu0 0
    %4242 = vmatpush2.bf16.msra.mxu0 0
    %4243 = vmatprep.subr.bf16.mxu0 0
    %4244 = vmatpush2.bf16.msra.mxu0 0
    %4245 = vmatprep.subr.bf16.mxu0 0
    %4246 = vmatpush2.bf16.msra.mxu0 0
    %4247 = vmatprep.subr.bf16.mxu0 0
    %4248 = vmatpush2.bf16.msra.mxu0 0
    %4249 = vmatprep.subr.bf16.mxu0 0
    %4250 = vmatpush2.bf16.msra.mxu0 0
    %4251 = vmatprep.subr.bf16.mxu0 0
    %4252 = vmatpush2.bf16.msra.mxu0 0
    %4253 = vmatprep.mubr.bf16.mxu0 0
    %4254 = vmatmul.mubr.bf16.gmra.mxu0 %v4179
    %v4255 = vpop.f32.mrf.mxu0
    %v4256 = vadd.f32 0.0, %v4255
    %v4257 = vpop.f32.mrf.mxu0
    %v4258 = vpop.f32.mrf.mxu0
    %v4259 = vpop.f32.mrf.mxu0
    %4260 = vdwg.mxu0
    %v4261 = vadd.f32 %v4176, %v4215
    %v4262 = vxor.u32 %v4261, 2147483648
    %v4263 = vmul.f32 %v4262, 1.442695
    %v4264 = vpow.pop %v4263
    %v4265 = vadd.f32 %v4264, 1.0
    %v4266 = vrcp.pop %v4265
    %v4267 = vmul.f32 1.0, %v4266
    %v4268 = vadd.f32 %v4177, %v4217
    %v4269 = vxor.u32 %v4268, 2147483648
    %v4270 = vmul.f32 %v4269, 1.442695
    %v4271 = vpow.pop %v4270
    %v4272 = vadd.f32 %v4271, 1.0
    %v4273 = vrcp.pop %v4272
    %v4274 = vmul.f32 1.0, %v4273
    %v4275 = vadd.f32 %v4256, %v3579
    %v4276 = vmul.f32 %v4267, %v4275
    %v4277 = vadd.f32 %v4178, %v4276
    %v4278 = vtanh.pop %v4277
    %v4279 = vsub.f32 1.0, %v4274
    %v4280 = vmul.f32 %v4279, %v4278
    %v4281 = vmul.f32 %v4274, %v4173
    %v4282 = vadd.f32 %v4280, %v4281
    %4283 = vst [vmem:[#allocation5 + $0x20] sm:$0xff] %v4282
    %4284 = vst [vmem:[#allocation6 + $0x18] sm:$0xff] %v4282
    %v4285 = vld [vmem:[#allocation4 + $0x78] sm:$0xff]
    %v4286 = vld [vmem:[#allocation4 + $0x80] sm:$0xff]
    %v4287 = vld [vmem:[#allocation4 + $0x88] sm:$0xff]
    %v4288 = vpack.c.bf16 %v4282, %v4282
    %4289 = vmatprep.subr.bf16.mxu0 %v3718
    %4290 = vmatpush1.bf16.msra.mxu0 %v3717
    %4291 = vmatprep.subr.bf16.mxu0 %v3715
    %4292 = vmatpush1.bf16.msra.mxu0 %v3714
    %4293 = vmatprep.subr.bf16.mxu0 %v3712
    %4294 = vmatpush1.bf16.msra.mxu0 %v3711
    %4295 = vmatprep.subr.bf16.mxu0 %v3709
    %4296 = vmatpush1.bf16.msra.mxu0 %v3708
    %4297 = vmatprep.subr.bf16.mxu0 %v3706
    %4298 = vmatpush1.bf16.msra.mxu0 %v3705
    %4299 = vmatprep.subr.bf16.mxu0 %v3703
    %4300 = vmatpush1.bf16.msra.mxu0 %v3702
    %4301 = vmatprep.subr.bf16.mxu0 %v3700
    %4302 = vmatpush1.bf16.msra.mxu0 %v3699
    %4303 = vmatprep.subr.bf16.mxu0 %v3697
    %4304 = vmatpush1.bf16.msra.mxu0 %v3696
    %4305 = vmatprep.subr.bf16.mxu0 0
    %4306 = vmatpush2.bf16.msra.mxu0 0
    %4307 = vmatprep.subr.bf16.mxu0 0
    %4308 = vmatpush2.bf16.msra.mxu0 0
    %4309 = vmatprep.subr.bf16.mxu0 0
    %4310 = vmatpush2.bf16.msra.mxu0 0
    %4311 = vmatprep.subr.bf16.mxu0 0
    %4312 = vmatpush2.bf16.msra.mxu0 0
    %4313 = vmatprep.subr.bf16.mxu0 0
    %4314 = vmatpush2.bf16.msra.mxu0 0
    %4315 = vmatprep.subr.bf16.mxu0 0
    %4316 = vmatpush2.bf16.msra.mxu0 0
    %4317 = vmatprep.subr.bf16.mxu0 0
    %4318 = vmatpush2.bf16.msra.mxu0 0
    %4319 = vmatprep.subr.bf16.mxu0 0
    %4320 = vmatpush2.bf16.msra.mxu0 0
    %4321 = vmatprep.mubr.bf16.mxu0 0
    %4322 = vmatmul.mubr.bf16.gmra.mxu0 %v4288
    %v4323 = vpop.f32.mrf.mxu0
    %v4324 = vadd.f32 0.0, %v4323
    %v4325 = vpop.f32.mrf.mxu0
    %v4326 = vadd.f32 0.0, %v4325
    %v4327 = vpop.f32.mrf.mxu0
    %v4328 = vpop.f32.mrf.mxu0
    %4329 = vdwg.mxu0
    %4330 = vmatprep.subr.bf16.mxu0 0
    %4331 = vmatpush1.bf16.msra.mxu0 %v3719
    %4332 = vmatprep.subr.bf16.mxu0 0
    %4333 = vmatpush1.bf16.msra.mxu0 %v3716
    %4334 = vmatprep.subr.bf16.mxu0 0
    %4335 = vmatpush1.bf16.msra.mxu0 %v3713
    %4336 = vmatprep.subr.bf16.mxu0 0
    %4337 = vmatpush1.bf16.msra.mxu0 %v3710
    %4338 = vmatprep.subr.bf16.mxu0 0
    %4339 = vmatpush1.bf16.msra.mxu0 %v3707
    %4340 = vmatprep.subr.bf16.mxu0 0
    %4341 = vmatpush1.bf16.msra.mxu0 %v3704
    %4342 = vmatprep.subr.bf16.mxu0 0
    %4343 = vmatpush1.bf16.msra.mxu0 %v3701
    %4344 = vmatprep.subr.bf16.mxu0 0
    %4345 = vmatpush1.bf16.msra.mxu0 %v3698
    %4346 = vmatprep.subr.bf16.mxu0 0
    %4347 = vmatpush2.bf16.msra.mxu0 0
    %4348 = vmatprep.subr.bf16.mxu0 0
    %4349 = vmatpush2.bf16.msra.mxu0 0
    %4350 = vmatprep.subr.bf16.mxu0 0
    %4351 = vmatpush2.bf16.msra.mxu0 0
    %4352 = vmatprep.subr.bf16.mxu0 0
    %4353 = vmatpush2.bf16.msra.mxu0 0
    %4354 = vmatprep.subr.bf16.mxu0 0
    %4355 = vmatpush2.bf16.msra.mxu0 0
    %4356 = vmatprep.subr.bf16.mxu0 0
    %4357 = vmatpush2.bf16.msra.mxu0 0
    %4358 = vmatprep.subr.bf16.mxu0 0
    %4359 = vmatpush2.bf16.msra.mxu0 0
    %4360 = vmatprep.subr.bf16.mxu0 0
    %4361 = vmatpush2.bf16.msra.mxu0 0
    %4362 = vmatprep.mubr.bf16.mxu0 0
    %4363 = vmatmul.mubr.bf16.gmra.mxu0 %v4288
    %v4364 = vpop.f32.mrf.mxu0
    %v4365 = vadd.f32 0.0, %v4364
    %v4366 = vpop.f32.mrf.mxu0
    %v4367 = vpop.f32.mrf.mxu0
    %v4368 = vpop.f32.mrf.mxu0
    %4369 = vdwg.mxu0
    %v4370 = vadd.f32 %v4285, %v4324
    %v4371 = vxor.u32 %v4370, 2147483648
    %v4372 = vmul.f32 %v4371, 1.442695
    %v4373 = vpow.pop %v4372
    %v4374 = vadd.f32 %v4373, 1.0
    %v4375 = vrcp.pop %v4374
    %v4376 = vmul.f32 1.0, %v4375
    %v4377 = vadd.f32 %v4286, %v4326
    %v4378 = vxor.u32 %v4377, 2147483648
    %v4379 = vmul.f32 %v4378, 1.442695
    %v4380 = vpow.pop %v4379
    %v4381 = vadd.f32 %v4380, 1.0
    %v4382 = vrcp.pop %v4381
    %v4383 = vmul.f32 1.0, %v4382
    %v4384 = vadd.f32 %v4365, %v3579
    %v4385 = vmul.f32 %v4376, %v4384
    %v4386 = vadd.f32 %v4287, %v4385
    %v4387 = vtanh.pop %v4386
    %v4388 = vsub.f32 1.0, %v4383
    %v4389 = vmul.f32 %v4388, %v4387
    %v4390 = vmul.f32 %v4383, %v4282
    %v4391 = vadd.f32 %v4389, %v4390
    %4392 = vst [vmem:[#allocation5 + $0x28] sm:$0xff] %v4391
    %4393 = vst [vmem:[#allocation6 + $0x10] sm:$0xff] %v4391
    %v4394 = vld [vmem:[#allocation4 + $0x90] sm:$0xff]
    %v4395 = vld [vmem:[#allocation4 + $0x98] sm:$0xff]
    %v4396 = vld [vmem:[#allocation4 + $0xa0] sm:$0xff]
    %v4397 = vpack.c.bf16 %v4391, %v4391
    %4398 = vmatprep.subr.bf16.mxu0 %v3718
    %4399 = vmatpush1.bf16.msra.mxu0 %v3717
    %4400 = vmatprep.subr.bf16.mxu0 %v3715
    %4401 = vmatpush1.bf16.msra.mxu0 %v3714
    %4402 = vmatprep.subr.bf16.mxu0 %v3712
    %4403 = vmatpush1.bf16.msra.mxu0 %v3711
    %4404 = vmatprep.subr.bf16.mxu0 %v3709
    %4405 = vmatpush1.bf16.msra.mxu0 %v3708
    %4406 = vmatprep.subr.bf16.mxu0 %v3706
    %4407 = vmatpush1.bf16.msra.mxu0 %v3705
    %4408 = vmatprep.subr.bf16.mxu0 %v3703
    %4409 = vmatpush1.bf16.msra.mxu0 %v3702
    %4410 = vmatprep.subr.bf16.mxu0 %v3700
    %4411 = vmatpush1.bf16.msra.mxu0 %v3699
    %4412 = vmatprep.subr.bf16.mxu0 %v3697
    %4413 = vmatpush1.bf16.msra.mxu0 %v3696
    %4414 = vmatprep.subr.bf16.mxu0 0
    %4415 = vmatpush2.bf16.msra.mxu0 0
    %4416 = vmatprep.subr.bf16.mxu0 0
    %4417 = vmatpush2.bf16.msra.mxu0 0
    %4418 = vmatprep.subr.bf16.mxu0 0
    %4419 = vmatpush2.bf16.msra.mxu0 0
    %4420 = vmatprep.subr.bf16.mxu0 0
    %4421 = vmatpush2.bf16.msra.mxu0 0
    %4422 = vmatprep.subr.bf16.mxu0 0
    %4423 = vmatpush2.bf16.msra.mxu0 0
    %4424 = vmatprep.subr.bf16.mxu0 0
    %4425 = vmatpush2.bf16.msra.mxu0 0
    %4426 = vmatprep.subr.bf16.mxu0 0
    %4427 = vmatpush2.bf16.msra.mxu0 0
    %4428 = vmatprep.subr.bf16.mxu0 0
    %4429 = vmatpush2.bf16.msra.mxu0 0
    %4430 = vmatprep.mubr.bf16.mxu0 0
    %4431 = vmatmul.mubr.bf16.gmra.mxu0 %v4397
    %v4432 = vpop.f32.mrf.mxu0
    %v4433 = vadd.f32 0.0, %v4432
    %v4434 = vpop.f32.mrf.mxu0
    %v4435 = vadd.f32 0.0, %v4434
    %v4436 = vpop.f32.mrf.mxu0
    %v4437 = vpop.f32.mrf.mxu0
    %4438 = vdwg.mxu0
    %4439 = vmatprep.subr.bf16.mxu0 0
    %4440 = vmatpush1.bf16.msra.mxu0 %v3719
    %4441 = vmatprep.subr.bf16.mxu0 0
    %4442 = vmatpush1.bf16.msra.mxu0 %v3716
    %4443 = vmatprep.subr.bf16.mxu0 0
    %4444 = vmatpush1.bf16.msra.mxu0 %v3713
    %4445 = vmatprep.subr.bf16.mxu0 0
    %4446 = vmatpush1.bf16.msra.mxu0 %v3710
    %4447 = vmatprep.subr.bf16.mxu0 0
    %4448 = vmatpush1.bf16.msra.mxu0 %v3707
    %4449 = vmatprep.subr.bf16.mxu0 0
    %4450 = vmatpush1.bf16.msra.mxu0 %v3704
    %4451 = vmatprep.subr.bf16.mxu0 0
    %4452 = vmatpush1.bf16.msra.mxu0 %v3701
    %4453 = vmatprep.subr.bf16.mxu0 0
    %4454 = vmatpush1.bf16.msra.mxu0 %v3698
    %4455 = vmatprep.subr.bf16.mxu0 0
    %4456 = vmatpush2.bf16.msra.mxu0 0
    %4457 = vmatprep.subr.bf16.mxu0 0
    %4458 = vmatpush2.bf16.msra.mxu0 0
    %4459 = vmatprep.subr.bf16.mxu0 0
    %4460 = vmatpush2.bf16.msra.mxu0 0
    %4461 = vmatprep.subr.bf16.mxu0 0
    %4462 = vmatpush2.bf16.msra.mxu0 0
    %4463 = vmatprep.subr.bf16.mxu0 0
    %4464 = vmatpush2.bf16.msra.mxu0 0
    %4465 = vmatprep.subr.bf16.mxu0 0
    %4466 = vmatpush2.bf16.msra.mxu0 0
    %4467 = vmatprep.subr.bf16.mxu0 0
    %4468 = vmatpush2.bf16.msra.mxu0 0
    %4469 = vmatprep.subr.bf16.mxu0 0
    %4470 = vmatpush2.bf16.msra.mxu0 0
    %4471 = vmatprep.mubr.bf16.mxu0 0
    %4472 = vmatmul.mubr.bf16.gmra.mxu0 %v4397
    %v4473 = vpop.f32.mrf.mxu0
    %v4474 = vadd.f32 0.0, %v4473
    %v4475 = vpop.f32.mrf.mxu0
    %v4476 = vpop.f32.mrf.mxu0
    %v4477 = vpop.f32.mrf.mxu0
    %4478 = vdwg.mxu0
    %v4479 = vadd.f32 %v4394, %v4433
    %v4480 = vxor.u32 %v4479, 2147483648
    %v4481 = vmul.f32 %v4480, 1.442695
    %v4482 = vpow.pop %v4481
    %v4483 = vadd.f32 %v4482, 1.0
    %v4484 = vrcp.pop %v4483
    %v4485 = vmul.f32 1.0, %v4484
    %v4486 = vadd.f32 %v4395, %v4435
    %v4487 = vxor.u32 %v4486, 2147483648
    %v4488 = vmul.f32 %v4487, 1.442695
    %v4489 = vpow.pop %v4488
    %v4490 = vadd.f32 %v4489, 1.0
    %v4491 = vrcp.pop %v4490
    %v4492 = vmul.f32 1.0, %v4491
    %v4493 = vadd.f32 %v4474, %v3579
    %v4494 = vmul.f32 %v4485, %v4493
    %v4495 = vadd.f32 %v4396, %v4494
    %v4496 = vtanh.pop %v4495
    %v4497 = vsub.f32 1.0, %v4492
    %v4498 = vmul.f32 %v4497, %v4496
    %v4499 = vmul.f32 %v4492, %v4391
    %v4500 = vadd.f32 %v4498, %v4499
    %4501 = vst [vmem:[#allocation5 + $0x30] sm:$0xff] %v4500
    %4502 = vst [vmem:[#allocation6 + $0x8] sm:$0xff] %v4500
    %v4503 = vld [vmem:[#allocation4 + $0xa8] sm:$0xff]
    %v4504 = vld [vmem:[#allocation4 + $0xb0] sm:$0xff]
    %v4505 = vld [vmem:[#allocation4 + $0xb8] sm:$0xff]
    %v4506 = vpack.c.bf16 %v4500, %v4500
    %4507 = vmatprep.subr.bf16.mxu0 %v3718
    %4508 = vmatpush1.bf16.msra.mxu0 %v3717
    %4509 = vmatprep.subr.bf16.mxu0 %v3715
    %4510 = vmatpush1.bf16.msra.mxu0 %v3714
    %4511 = vmatprep.subr.bf16.mxu0 %v3712
    %4512 = vmatpush1.bf16.msra.mxu0 %v3711
    %4513 = vmatprep.subr.bf16.mxu0 %v3709
    %4514 = vmatpush1.bf16.msra.mxu0 %v3708
    %4515 = vmatprep.subr.bf16.mxu0 %v3706
    %4516 = vmatpush1.bf16.msra.mxu0 %v3705
    %4517 = vmatprep.subr.bf16.mxu0 %v3703
    %4518 = vmatpush1.bf16.msra.mxu0 %v3702
    %4519 = vmatprep.subr.bf16.mxu0 %v3700
    %4520 = vmatpush1.bf16.msra.mxu0 %v3699
    %4521 = vmatprep.subr.bf16.mxu0 %v3697
    %4522 = vmatpush1.bf16.msra.mxu0 %v3696
    %4523 = vmatprep.subr.bf16.mxu0 0
    %4524 = vmatpush2.bf16.msra.mxu0 0
    %4525 = vmatprep.subr.bf16.mxu0 0
    %4526 = vmatpush2.bf16.msra.mxu0 0
    %4527 = vmatprep.subr.bf16.mxu0 0
    %4528 = vmatpush2.bf16.msra.mxu0 0
    %4529 = vmatprep.subr.bf16.mxu0 0
    %4530 = vmatpush2.bf16.msra.mxu0 0
    %4531 = vmatprep.subr.bf16.mxu0 0
    %4532 = vmatpush2.bf16.msra.mxu0 0
    %4533 = vmatprep.subr.bf16.mxu0 0
    %4534 = vmatpush2.bf16.msra.mxu0 0
    %4535 = vmatprep.subr.bf16.mxu0 0
    %4536 = vmatpush2.bf16.msra.mxu0 0
    %4537 = vmatprep.subr.bf16.mxu0 0
    %4538 = vmatpush2.bf16.msra.mxu0 0
    %4539 = vmatprep.mubr.bf16.mxu0 0
    %4540 = vmatmul.mubr.bf16.gmra.mxu0 %v4506
    %v4541 = vpop.f32.mrf.mxu0
    %v4542 = vadd.f32 0.0, %v4541
    %v4543 = vpop.f32.mrf.mxu0
    %v4544 = vadd.f32 0.0, %v4543
    %v4545 = vpop.f32.mrf.mxu0
    %v4546 = vpop.f32.mrf.mxu0
    %4547 = vdwg.mxu0
    %4548 = vmatprep.subr.bf16.mxu0 0
    %4549 = vmatpush1.bf16.msra.mxu0 %v3719
    %4550 = vmatprep.subr.bf16.mxu0 0
    %4551 = vmatpush1.bf16.msra.mxu0 %v3716
    %4552 = vmatprep.subr.bf16.mxu0 0
    %4553 = vmatpush1.bf16.msra.mxu0 %v3713
    %4554 = vmatprep.subr.bf16.mxu0 0
    %4555 = vmatpush1.bf16.msra.mxu0 %v3710
    %4556 = vmatprep.subr.bf16.mxu0 0
    %4557 = vmatpush1.bf16.msra.mxu0 %v3707
    %4558 = vmatprep.subr.bf16.mxu0 0
    %4559 = vmatpush1.bf16.msra.mxu0 %v3704
    %4560 = vmatprep.subr.bf16.mxu0 0
    %4561 = vmatpush1.bf16.msra.mxu0 %v3701
    %4562 = vmatprep.subr.bf16.mxu0 0
    %4563 = vmatpush1.bf16.msra.mxu0 %v3698
    %4564 = vmatprep.subr.bf16.mxu0 0
    %4565 = vmatpush2.bf16.msra.mxu0 0
    %4566 = vmatprep.subr.bf16.mxu0 0
    %4567 = vmatpush2.bf16.msra.mxu0 0
    %4568 = vmatprep.subr.bf16.mxu0 0
    %4569 = vmatpush2.bf16.msra.mxu0 0
    %4570 = vmatprep.subr.bf16.mxu0 0
    %4571 = vmatpush2.bf16.msra.mxu0 0
    %4572 = vmatprep.subr.bf16.mxu0 0
    %4573 = vmatpush2.bf16.msra.mxu0 0
    %4574 = vmatprep.subr.bf16.mxu0 0
    %4575 = vmatpush2.bf16.msra.mxu0 0
    %4576 = vmatprep.subr.bf16.mxu0 0
    %4577 = vmatpush2.bf16.msra.mxu0 0
    %4578 = vmatprep.subr.bf16.mxu0 0
    %4579 = vmatpush2.bf16.msra.mxu0 0
    %4580 = vmatprep.mubr.bf16.mxu0 0
    %4581 = vmatmul.mubr.bf16.gmra.mxu0 %v4506
    %v4582 = vpop.f32.mrf.mxu0
    %v4583 = vadd.f32 0.0, %v4582
    %v4584 = vpop.f32.mrf.mxu0
    %v4585 = vpop.f32.mrf.mxu0
    %v4586 = vpop.f32.mrf.mxu0
    %4587 = vdwg.mxu0
    %v4588 = vadd.f32 %v4503, %v4542
    %v4589 = vxor.u32 %v4588, 2147483648
    %v4590 = vmul.f32 %v4589, 1.442695
    %v4591 = vpow.pop %v4590
    %v4592 = vadd.f32 %v4591, 1.0
    %v4593 = vrcp.pop %v4592
    %v4594 = vmul.f32 1.0, %v4593
    %v4595 = vadd.f32 %v4504, %v4544
    %v4596 = vxor.u32 %v4595, 2147483648
    %v4597 = vmul.f32 %v4596, 1.442695
    %v4598 = vpow.pop %v4597
    %v4599 = vadd.f32 %v4598, 1.0
    %v4600 = vrcp.pop %v4599
    %v4601 = vmul.f32 1.0, %v4600
    %v4602 = vadd.f32 %v4583, %v3579
    %v4603 = vmul.f32 %v4594, %v4602
    %v4604 = vadd.f32 %v4505, %v4603
    %v4605 = vtanh.pop %v4604
    %v4606 = vsub.f32 1.0, %v4601
    %v4607 = vmul.f32 %v4606, %v4605
    %v4608 = vmul.f32 %v4601, %v4500
    %v4609 = vadd.f32 %v4607, %v4608
    %4610 = vst [vmem:[#allocation5 + $0x38] sm:$0xff] %v4609
    %4611 = vst [vmem:[#allocation6] sm:$0xff] %v4609
    %v4612 = vld [vmem:[#allocation5] sm:$0xff]
    %v4613 = vld [vmem:[#allocation5 + $0x8] sm:$0xff]
    %v4614 = vld [vmem:[#allocation5 + $0x10] sm:$0xff]
    %v4615 = vld [vmem:[#allocation5 + $0x18] sm:$0xff]
    %v4616 = vld [vmem:[#allocation5 + $0x20] sm:$0xff]
    %v4617 = vld [vmem:[#allocation5 + $0x28] sm:$0xff]
    %v4618 = vld [vmem:[#allocation5 + $0x30] sm:$0xff]
    %v4619 = vld [vmem:[#allocation5 + $0x38] sm:$0xff]
    %v4620 = vpack.c.bf16 %v4613, %v4612
    %v4621 = vpack.c.bf16 %v4615, %v4614
    %v4622 = vpack.c.bf16 %v4617, %v4616
    %v4623 = vpack.c.bf16 %v4619, %v4618
    %v4624 = vld [vmem:[%s11] sm:$0xf]
    %v4625 = vld [vmem:[%s11 + $0x4] sm:$0xf]
    %v4626 = vld [vmem:[%s11 + $0x8] sm:$0xf]
    %v4627 = vld [vmem:[%s11 + $0xc] sm:$0xf]
    %v4628 = vld [vmem:[%s11 + $0x10] sm:$0xf]
    %v4629 = vld [vmem:[%s11 + $0x14] sm:$0xf]
    %v4630 = vld [vmem:[%s11 + $0x18] sm:$0xf]
    %v4631 = vld [vmem:[%s11 + $0x1c] sm:$0xf]
    %v4632 = vld [vmem:[%s11 + $0x20] sm:$0xf]
    %v4633 = vld [vmem:[%s11 + $0x24] sm:$0xf]
    %v4634 = vld [vmem:[%s11 + $0x28] sm:$0xf]
    %v4635 = vld [vmem:[%s11 + $0x2c] sm:$0xf]
    %v4636 = vld [vmem:[%s11 + $0x30] sm:$0xf]
    %v4637 = vld [vmem:[%s11 + $0x34] sm:$0xf]
    %v4638 = vld [vmem:[%s11 + $0x38] sm:$0xf]
    %v4639 = vld [vmem:[%s11 + $0x3c] sm:$0xf]
    %v4640 = vld [vmem:[#allocation6] sm:$0xff]
    %v4641 = vld [vmem:[#allocation6 + $0x8] sm:$0xff]
    %v4642 = vld [vmem:[#allocation6 + $0x10] sm:$0xff]
    %v4643 = vld [vmem:[#allocation6 + $0x18] sm:$0xff]
    %v4644 = vld [vmem:[#allocation6 + $0x20] sm:$0xff]
    %v4645 = vld [vmem:[#allocation6 + $0x28] sm:$0xff]
    %v4646 = vld [vmem:[#allocation6 + $0x30] sm:$0xff]
    %v4647 = vld [vmem:[#allocation6 + $0x38] sm:$0xff]
    %v4648 = vpack.c.bf16 %v4641, %v4640
    %v4649 = vpack.c.bf16 %v4643, %v4642
    %v4650 = vpack.c.bf16 %v4645, %v4644
    %v4651 = vpack.c.bf16 %v4647, %v4646
    %v4652 = vld [vmem:[#allocation15] sm:$0xf]
    %v4653 = vld [vmem:[#allocation15 + $0x4] sm:$0xf]
    %v4654 = vld [vmem:[#allocation15 + $0x8] sm:$0xf]
    %v4655 = vld [vmem:[#allocation15 + $0xc] sm:$0xf]
    %v4656 = vld [vmem:[#allocation15 + $0x10] sm:$0xf]
    %v4657 = vld [vmem:[#allocation15 + $0x14] sm:$0xf]
    %v4658 = vld [vmem:[#allocation15 + $0x18] sm:$0xf]
    %v4659 = vld [vmem:[#allocation15 + $0x1c] sm:$0xf]
    %v4660 = vld [vmem:[#allocation15 + $0x20] sm:$0xf]
    %v4661 = vld [vmem:[#allocation15 + $0x24] sm:$0xf]
    %v4662 = vld [vmem:[#allocation15 + $0x28] sm:$0xf]
    %v4663 = vld [vmem:[#allocation15 + $0x2c] sm:$0xf]
    %v4664 = vld [vmem:[#allocation15 + $0x30] sm:$0xf]
    %v4665 = vld [vmem:[#allocation15 + $0x34] sm:$0xf]
    %v4666 = vld [vmem:[#allocation15 + $0x38] sm:$0xf]
    %v4667 = vld [vmem:[#allocation15 + $0x3c] sm:$0xf]
    %v4684 = vunpack.c.l.b16 %v4652
    %v4685 = vunpack.c.l.b16 %v4653
    %v4686 = vunpack.c.l.b16 %v4654
    %v4687 = vunpack.c.l.b16 %v4655
    %v4688 = vunpack.c.l.b16 %v4656
    %v4689 = vunpack.c.l.b16 %v4657
    %v4690 = vunpack.c.l.b16 %v4658
    %v4691 = vunpack.c.l.b16 %v4659
    %v4692 = vunpack.c.l.b16 %v4660
    %v4693 = vunpack.c.l.b16 %v4661
    %v4694 = vunpack.c.l.b16 %v4662
    %v4695 = vunpack.c.l.b16 %v4663
    %v4696 = vunpack.c.l.b16 %v4664
    %v4697 = vunpack.c.l.b16 %v4665
    %v4698 = vunpack.c.l.b16 %v4666
    %v4699 = vunpack.c.l.b16 %v4667
    %v4700 = vpack.c.b16 %v4685, %v4684
    %v4701 = vpack.c.b16 %v4687, %v4686
    %v4702 = vpack.c.b16 %v4689, %v4688
    %v4703 = vpack.c.b16 %v4691, %v4690
    %v4704 = vpack.c.b16 %v4693, %v4692
    %v4705 = vpack.c.b16 %v4695, %v4694
    %v4706 = vpack.c.b16 %v4697, %v4696
    %v4707 = vpack.c.b16 %v4699, %v4698
    %4716 = vmatprep.subr.bf16.mxu0 0
    %4717 = vmatpush1.bf16.msra.mxu0 %v4707
    %4718 = vmatprep.subr.bf16.mxu0 0
    %4719 = vmatpush1.bf16.msra.mxu0 %v4706
    %4720 = vmatprep.subr.bf16.mxu0 0
    %4721 = vmatpush1.bf16.msra.mxu0 %v4705
    %4722 = vmatprep.subr.bf16.mxu0 0
    %4723 = vmatpush1.bf16.msra.mxu0 %v4704
    %4724 = vmatprep.subr.bf16.mxu0 0
    %4725 = vmatpush1.bf16.msra.mxu0 %v4703
    %4726 = vmatprep.subr.bf16.mxu0 0
    %4727 = vmatpush1.bf16.msra.mxu0 %v4702
    %4728 = vmatprep.subr.bf16.mxu0 0
    %4729 = vmatpush1.bf16.msra.mxu0 %v4701
    %4730 = vmatprep.subr.bf16.mxu0 0
    %4731 = vmatpush1.bf16.msra.mxu0 %v4700
    %4732 = vmatprep.subr.bf16.mxu0 0
    %4733 = vmatpush2.bf16.msra.mxu0 0
    %4734 = vmatprep.subr.bf16.mxu0 0
    %4735 = vmatpush2.bf16.msra.mxu0 0
    %4736 = vmatprep.subr.bf16.mxu0 0
    %4737 = vmatpush2.bf16.msra.mxu0 0
    %4738 = vmatprep.subr.bf16.mxu0 0
    %4739 = vmatpush2.bf16.msra.mxu0 0
    %4740 = vmatprep.subr.bf16.mxu0 0
    %4741 = vmatpush2.bf16.msra.mxu0 0
    %4742 = vmatprep.subr.bf16.mxu0 0
    %4743 = vmatpush2.bf16.msra.mxu0 0
    %4744 = vmatprep.subr.bf16.mxu0 0
    %4745 = vmatpush2.bf16.msra.mxu0 0
    %4746 = vmatprep.subr.bf16.mxu0 0
    %4747 = vmatpush2.bf16.msra.mxu0 0
    %4748 = vmatprep.mubr.bf16.mxu0 0
    %4749 = vmatmul.mubr.bf16.gmra.mxu0 %v4648
    %v4750 = vpop.f32.mrf.mxu0
    %v4751 = vadd.f32 0.0, %v4750
    %v4752 = vpop.f32.mrf.mxu0
    %v4753 = vpop.f32.mrf.mxu0
    %v4754 = vadd.f32 0.0, %v4753
    %v4755 = vpop.f32.mrf.mxu0
    %4756 = vmatprep.mubr.bf16.mxu0 0
    %4757 = vmatmul.mubr.bf16.gmra.mxu0 %v4649
    %v4758 = vpop.f32.mrf.mxu0
    %v4759 = vadd.f32 0.0, %v4758
    %v4760 = vpop.f32.mrf.mxu0
    %v4761 = vpop.f32.mrf.mxu0
    %v4762 = vadd.f32 0.0, %v4761
    %v4763 = vpop.f32.mrf.mxu0
    %4764 = vmatprep.mubr.bf16.mxu0 0
    %4765 = vmatmul.mubr.bf16.gmra.mxu0 %v4650
    %v4766 = vpop.f32.mrf.mxu0
    %v4767 = vadd.f32 0.0, %v4766
    %v4768 = vpop.f32.mrf.mxu0
    %v4769 = vpop.f32.mrf.mxu0
    %v4770 = vadd.f32 0.0, %v4769
    %v4771 = vpop.f32.mrf.mxu0
    %4772 = vmatprep.mubr.bf16.mxu0 0
    %4773 = vmatmul.mubr.bf16.gmra.mxu0 %v4651
    %v4774 = vpop.f32.mrf.mxu0
    %v4775 = vadd.f32 0.0, %v4774
    %v4776 = vpop.f32.mrf.mxu0
    %v4777 = vpop.f32.mrf.mxu0
    %v4778 = vadd.f32 0.0, %v4777
    %v4779 = vpop.f32.mrf.mxu0
    %4780 = vdwg.mxu0
    %v4797 = vunpack.c.l.b16 %v4624
    %v4798 = vunpack.c.l.b16 %v4625
    %v4799 = vunpack.c.l.b16 %v4626
    %v4800 = vunpack.c.l.b16 %v4627
    %v4801 = vunpack.c.l.b16 %v4628
    %v4802 = vunpack.c.l.b16 %v4629
    %v4803 = vunpack.c.l.b16 %v4630
    %v4804 = vunpack.c.l.b16 %v4631
    %v4805 = vunpack.c.l.b16 %v4632
    %v4806 = vunpack.c.l.b16 %v4633
    %v4807 = vunpack.c.l.b16 %v4634
    %v4808 = vunpack.c.l.b16 %v4635
    %v4809 = vunpack.c.l.b16 %v4636
    %v4810 = vunpack.c.l.b16 %v4637
    %v4811 = vunpack.c.l.b16 %v4638
    %v4812 = vunpack.c.l.b16 %v4639
    %v4813 = vpack.c.b16 %v4798, %v4797
    %v4814 = vpack.c.b16 %v4800, %v4799
    %v4815 = vpack.c.b16 %v4802, %v4801
    %v4816 = vpack.c.b16 %v4804, %v4803
    %v4817 = vpack.c.b16 %v4806, %v4805
    %v4818 = vpack.c.b16 %v4808, %v4807
    %v4819 = vpack.c.b16 %v4810, %v4809
    %v4820 = vpack.c.b16 %v4812, %v4811
    %4829 = vmatprep.subr.bf16.mxu0 0
    %4830 = vmatpush1.bf16.msra.mxu0 %v4820
    %4831 = vmatprep.subr.bf16.mxu0 0
    %4832 = vmatpush1.bf16.msra.mxu0 %v4819
    %4833 = vmatprep.subr.bf16.mxu0 0
    %4834 = vmatpush1.bf16.msra.mxu0 %v4818
    %4835 = vmatprep.subr.bf16.mxu0 0
    %4836 = vmatpush1.bf16.msra.mxu0 %v4817
    %4837 = vmatprep.subr.bf16.mxu0 0
    %4838 = vmatpush1.bf16.msra.mxu0 %v4816
    %4839 = vmatprep.subr.bf16.mxu0 0
    %4840 = vmatpush1.bf16.msra.mxu0 %v4815
    %4841 = vmatprep.subr.bf16.mxu0 0
    %4842 = vmatpush1.bf16.msra.mxu0 %v4814
    %4843 = vmatprep.subr.bf16.mxu0 0
    %4844 = vmatpush1.bf16.msra.mxu0 %v4813
    %4845 = vmatprep.subr.bf16.mxu0 0
    %4846 = vmatpush2.bf16.msra.mxu0 0
    %4847 = vmatprep.subr.bf16.mxu0 0
    %4848 = vmatpush2.bf16.msra.mxu0 0
    %4849 = vmatprep.subr.bf16.mxu0 0
    %4850 = vmatpush2.bf16.msra.mxu0 0
    %4851 = vmatprep.subr.bf16.mxu0 0
    %4852 = vmatpush2.bf16.msra.mxu0 0
    %4853 = vmatprep.subr.bf16.mxu0 0
    %4854 = vmatpush2.bf16.msra.mxu0 0
    %4855 = vmatprep.subr.bf16.mxu0 0
    %4856 = vmatpush2.bf16.msra.mxu0 0
    %4857 = vmatprep.subr.bf16.mxu0 0
    %4858 = vmatpush2.bf16.msra.mxu0 0
    %4859 = vmatprep.subr.bf16.mxu0 0
    %4860 = vmatpush2.bf16.msra.mxu0 0
    %4861 = vmatprep.mubr.bf16.mxu0 0
    %4862 = vmatmul.mubr.bf16.gmra.mxu0 %v4620
    %v4863 = vpop.f32.mrf.mxu0
    %v4864 = vadd.f32 %v4751, %v4863
    %v4865 = vpop.f32.mrf.mxu0
    %v4866 = vpop.f32.mrf.mxu0
    %v4867 = vadd.f32 %v4754, %v4866
    %v4868 = vpop.f32.mrf.mxu0
    %4869 = vmatprep.mubr.bf16.mxu0 0
    %4870 = vmatmul.mubr.bf16.gmra.mxu0 %v4621
    %v4871 = vpop.f32.mrf.mxu0
    %v4872 = vadd.f32 %v4759, %v4871
    %v4873 = vpop.f32.mrf.mxu0
    %v4874 = vpop.f32.mrf.mxu0
    %v4875 = vadd.f32 %v4762, %v4874
    %v4876 = vpop.f32.mrf.mxu0
    %4877 = vmatprep.mubr.bf16.mxu0 0
    %4878 = vmatmul.mubr.bf16.gmra.mxu0 %v4622
    %v4879 = vpop.f32.mrf.mxu0
    %v4880 = vadd.f32 %v4767, %v4879
    %v4881 = vpop.f32.mrf.mxu0
    %v4882 = vpop.f32.mrf.mxu0
    %v4883 = vadd.f32 %v4770, %v4882
    %v4884 = vpop.f32.mrf.mxu0
    %4885 = vmatprep.mubr.bf16.mxu0 0
    %4886 = vmatmul.mubr.bf16.gmra.mxu0 %v4623
    %v4887 = vpop.f32.mrf.mxu0
    %v4888 = vadd.f32 %v4775, %v4887
    %v4889 = vpop.f32.mrf.mxu0
    %v4890 = vpop.f32.mrf.mxu0
    %v4891 = vadd.f32 %v4778, %v4890
    %v4892 = vpop.f32.mrf.mxu0
    %4893 = vdwg.mxu0
    %v4894 = vld [vmem:[%s13] sm:$0x1]
    %v4896 = vlaneseq
    %v4897 = vshrl.u32 %v4896, 7
    %v4898 = vsub.s32 0, %v4897
    %v4899 = vrot.slane %v4894, %v4898
    %v4901 = vadd.f32 %v4864, %v4899
    %v4902 = vadd.f32 %v4867, %v4899
    %v4903 = vadd.f32 %v4872, %v4899
    %v4904 = vadd.f32 %v4875, %v4899
    %v4905 = vadd.f32 %v4880, %v4899
    %v4906 = vadd.f32 %v4883, %v4899
    %v4907 = vadd.f32 %v4888, %v4899
    %v4908 = vadd.f32 %v4891, %v4899
    %4909 = vst [vmem:[#allocation16] sm:$0xff] %v4901
    %4910 = vst [vmem:[#allocation16 + $0x8] sm:$0xff] %v4902
    %4911 = vst [vmem:[#allocation16 + $0x10] sm:$0xff] %v4903
    %4912 = vst [vmem:[#allocation16 + $0x18] sm:$0xff] %v4904
    %4913 = vst [vmem:[#allocation16 + $0x20] sm:$0xff] %v4905
    %4914 = vst [vmem:[#allocation16 + $0x28] sm:$0xff] %v4906
    %4915 = vst [vmem:[#allocation16 + $0x30] sm:$0xff] %v4907
    %4916 = vst [vmem:[#allocation16 + $0x38] sm:$0xff] %v4908
    // Predicated region
    $region78: #{tpu_custom_call.1} parent=1 // pred_check
      _
    $region79: #{tpu_custom_call.1} parent=1 // pred_check_branch
      %4918 = sbr.rel (0) target = $region81
    $region80: #{tpu_custom_call.1} parent=1 // pred_region
      %s4920 = ssub.s32 1024, 1024
      %4921 = vsyncadd [#allocation9], %s4920
      %s4922 = sshll.u32 [#allocation16], 4
      %s4923 = int_to_ptr.vmem [resolvable:$true] %s4922
      %4928 = dma.vmem_to_hbm [thread:$0]  %s4923, 1024, %s14, [#allocation9], 128, 128, 8
    $region81: #{tpu_custom_call.1} parent=1 // pred_fallthru
      _
    // Predicated region
    $region82: #{tpu_custom_call.1} parent=1 // pred_check
      _
    $region83: #{tpu_custom_call.1} parent=1 // pred_check_branch
      %4930 = sbr.rel (0) target = $region85
    $region84: #{tpu_custom_call.1} parent=1 // pred_region
      %4931 = dma.done [#allocation9], 1024
    $region85: #{tpu_custom_call.1} parent=1 // pred_fallthru
      _
    %4932 = vsyncpa [#allocation8], 1
    %4933 = vsyncpa [#allocation11], 1
    %4934 = vsyncpa [#allocation14], 1
    %4935 = vsyncpa [#allocation9], 1

</llo_original>
